<compile_context>
chip_gen: v6e
topology: v6e:2x2x1
jax: 0.10.0
libtpu: 0.0.40
codegen_flags: <defaults>
</compile_context>

<pallas_src>
import math
from functools import partial

import numpy as np
import jax
import jax.numpy as jnp
from jax.experimental import pallas as pl
from jax.experimental.pallas import tpu as pltpu

C1, C2, C3 = 16, 32, 64   # conv1 / conv2 / conv3 output channels (match the module)
FC1 = 32                  # fc1 width


def _pick_btile(b):
    """Samples per grid step: keep >= 2 grid steps when possible (v7x has 2 TensorCores),
    otherwise batch everything into a single step."""
    for bt in range(min(b // 2, 8), 0, -1):
        if b % bt == 0:
            return bt
    return max(b, 1)


# ------------------------------- fused kernel -------------------------------- #

def _tiny_cnn_kernel(xp_ref, mask_ref, w1_ref, b1_ref, w2_ref, b2_ref,
                     w3_ref, b3_ref, wf1_ref, bf1_ref, wh_ref, bh_ref,
                     out_ref, p2_ref, m_ref, p3_ref,
                     *, cin, rows, cols, out0, out1, bt, samp):
    f32, bf16 = jnp.float32, jnp.bfloat16
    stride1 = cols + 2                        # row stride of the padded (rows+2, cols+2) buffers
    lout1 = rows * stride1 - 2                # per-sample flat conv1/conv2 output length
    hp, wq = rows // 2, cols // 2
    stride2 = wq + 2
    samp2 = (hp + 2) * (wq + 2)               # per-sample stride of the padded pooled buffer
    lout3 = hp * stride2 - 2
    lpool = (rows - 2) * stride1 + (cols - 2) + 1
    m1 = (bt - 1) * samp + lout1              # stacked (all samples in this step) conv1/2 rows
    mp = (bt - 1) * samp + lpool              # stacked 2x2 max-map rows
    m3 = (bt - 1) * samp2 + lout3             # stacked conv3 output rows

    def conv3x3_relu(pad_bf, w_ref_, b_ref_, stride, mrows):
        # ONE MXU dot per layer: lane-concat the 9 shifted views -> (mrows, 9*Cin) @ (9*Cin, Cout)
        lhs = jnp.concatenate(
            [pad_bf[(k // 3) * stride + (k % 3):(k // 3) * stride + (k % 3) + mrows, :]
             for k in range(9)], axis=1)
        acc = jnp.dot(lhs, w_ref_[...], preferred_element_type=f32)
        return jnp.maximum(acc + b_ref_[...], 0.0)

    # conv1 + relu (all bt samples stacked along M)
    z1 = conv3x3_relu(xp_ref[...].astype(bf16), w1_ref, b1_ref, stride1, m1)      # (m1, 16)

    # Scatter valid conv1 outputs into the zero-padded conv2 input: zero the scratch, then a
    # single masked slice store at offset stride1+1 (replaces the old (324,286) 0/1 matmul).
    p2_ref[...] = jnp.zeros_like(p2_ref)
    p2_ref[pl.ds(stride1 + 1, m1), :] = z1 * mask_ref[...]

    # conv2 + relu
    z2 = conv3x3_relu(p2_ref[...].astype(bf16), w2_ref, b2_ref, stride1, m1)      # (m1, 32)

    # 2x2 / stride-2 max-pool: elementwise max of the 4 shifted views, then stride-2 reads
    # straight into the zero-padded conv3 input scratch (replaces the old (100,267) matmul).
    m_ref[...] = jnp.maximum(jnp.maximum(z2[0:mp, :], z2[1:1 + mp, :]),
                             jnp.maximum(z2[stride1:stride1 + mp, :],
                                         z2[stride1 + 1:stride1 + 1 + mp, :]))
    p3_ref[...] = jnp.zeros_like(p3_ref)
    for i in range(bt):
        for h in range(hp):
            vals = m_ref[pl.ds(i * samp + 2 * h * stride1, wq, stride=2), :]      # (wq, 32)
            p3_ref[pl.ds(i * samp2 + (h + 1) * stride2 + 1, wq), :] = vals

    # conv3 + relu
    z3 = conv3x3_relu(p3_ref[...].astype(bf16), w3_ref, b3_ref, stride2, m3)      # (m3, 64)

    # fc1: gather the hp*wq valid pixel rows per sample, lane-flatten them into one
    # (bt, hp*wq*C3) block and contract with wf1 in a SINGLE dot (was 64 serialized M=1 dots).
    flat = []
    for i in range(bt):
        base = i * samp2
        flat.append(jnp.concatenate(
            [z3[base + h * stride2 + w:base + h * stride2 + w + 1, :]
             for h in range(hp) for w in range(wq)], axis=1))                     # (1, hp*wq*C3)
    feat = flat[0] if bt == 1 else jnp.concatenate(flat, axis=0)                  # (bt, hp*wq*C3)
    x1 = jnp.maximum(jnp.dot(feat.astype(bf16), wf1_ref[...],
                             preferred_element_type=f32) + bf1_ref[...], 0.0)     # (bt, 32)

    # fc_out1 | fc_out2 fused into one dot: cols [0:out0] = fc_out1, [out0:] = fc_out2.
    heads = jnp.dot(x1.astype(bf16), wh_ref[...],
                    preferred_element_type=f32) + bh_ref[...]                     # (bt, out0+out1)
    logits = heads[:, out0:out0 + out1]
    e = jnp.exp(logits - jnp.max(logits, axis=-1, keepdims=True))
    probs = e * pl.reciprocal(jnp.sum(e, axis=-1, keepdims=True), approx=True)
    mean = (math.pi / 2.0) * jnp.tanh(heads[:, 0:1])
    std = jnp.exp(x1[:, 1:2])          # matches the module: std = exp(relu(fc1(x))[:, 1])
    out_row = jnp.concatenate([mean, std, probs], axis=1)                         # (bt, 2+out1)
    for i in range(bt):
        out_ref[i] = out_row[i:i + 1, :]


# -------------------------------- parameters --------------------------------- #

def init_params(key, cin, rows, cols, out0, out1):
    fc1_in = C3 * (rows // 2) * (cols // 2)

    def dense(k, fan_in, w_shape, b_shape):
        kw, kb = jax.random.split(k)
        lim = 1.0 / math.sqrt(fan_in)
        w = jax.random.uniform(kw, w_shape, jnp.float32, -lim, lim)
        b = jax.random.uniform(kb, b_shape, jnp.float32, -lim, lim)
        return w.astype(jnp.bfloat16), b   # weights bf16 (MXU), biases f32

    ks = jax.random.split(key, 6)
    w1, b1 = dense(ks[0], 9 * cin, (9 * cin, C1), (1, C1))
    w2, b2 = dense(ks[1], 9 * C1, (9 * C1, C2), (1, C2))
    w3, b3 = dense(ks[2], 9 * C2, (9 * C2, C3), (1, C3))
    wf1, bf1 = dense(ks[3], fc1_in, (fc1_in, FC1), (1, FC1))
    wo1, bo1 = dense(ks[4], FC1, (FC1, out0), (1, out0))
    wo2, bo2 = dense(ks[5], FC1, (FC1, out1), (1, out1))
    return {
        "w1": w1, "b1": b1, "w2": w2, "b2": b2, "w3": w3, "b3": b3,
        "wf1": wf1, "bf1": bf1,
        "wh": jnp.concatenate([wo1, wo2], axis=1),   # fc_out1 | fc_out2 fused
        "bh": jnp.concatenate([bo1, bo2], axis=1),
    }


# ---------------------------------- forward ----------------------------------- #

def tiny_cnn_mixed_forward(params, x, *, out0, out1):
    b, cin, rows, cols = x.shape
    hp, wq = rows // 2, cols // 2
    stride1 = cols + 2
    pad_len = (rows + 2) * (cols + 2)
    samp = -(-pad_len // 8) * 8               # per-sample row stride, padded to a sublane multiple
    samp2 = (hp + 2) * (wq + 2)
    lout1 = rows * stride1 - 2
    lpool = (rows - 2) * stride1 + (cols - 2) + 1

    bt = _pick_btile(b)
    m1 = (bt - 1) * samp + lout1
    mp = (bt - 1) * samp + lpool

    # Layout plumbing only: zero-pad spatially, go channels-last, flatten spatial positions,
    # pad each sample's flat length to `samp`, and stack samples along the row axis.
    xp = jnp.pad(x.astype(jnp.float32), ((0, 0), (0, 0), (1, 1), (1, 1)))
    xp = jnp.transpose(xp, (0, 2, 3, 1)).reshape(b, pad_len, cin)
    xp = jnp.pad(xp, ((0, 0), (0, samp - pad_len), (0, 0))).reshape(b * samp, cin)

    # 0/1 validity mask of the stacked conv-output rows (zeroes wrap rows / inter-sample rows).
    j = np.arange(m1)
    q = j % samp
    mask = jnp.asarray(((q < lout1) & (q % stride1 < cols)).astype(np.float32)[:, None])

    kernel = partial(_tiny_cnn_kernel, cin=cin, rows=rows, cols=cols,
                     out0=out0, out1=out1, bt=bt, samp=samp)

    def full(a):
        return pl.BlockSpec(a.shape, lambda g: (0,) * a.ndim)

    out = pl.pallas_call(
        kernel,
        out_shape=jax.ShapeDtypeStruct((b, 1, 2 + out1), jnp.float32),
        grid=(b // bt,),
        in_specs=[
            pl.BlockSpec((bt * samp, cin), lambda g: (g, 0)),
            full(mask),
            full(params["w1"]), full(params["b1"]),
            full(params["w2"]), full(params["b2"]),
            full(params["w3"]), full(params["b3"]),
            full(params["wf1"]), full(params["bf1"]),
            full(params["wh"]), full(params["bh"]),
        ],
        out_specs=pl.BlockSpec((bt, 1, 2 + out1), lambda g: (g, 0, 0)),
        scratch_shapes=[
            pltpu.VMEM((bt * samp, C1), jnp.float32),    # zero-padded conv2 input
            pltpu.VMEM((mp, C2), jnp.float32),           # 2x2 max map (source of strided reads)
            pltpu.VMEM((bt * samp2, C2), jnp.float32),   # zero-padded conv3 input
        ],
        compiler_params=pltpu.CompilerParams(dimension_semantics=("parallel",)),
    )(xp, mask, params["w1"], params["b1"], params["w2"], params["b2"],
      params["w3"], params["b3"], params["wf1"], params["bf1"],
      params["wh"], params["bh"])
    return out[:, 0, :]


# ------------------------- pure-JAX reference (f32) --------------------------- #

def reference_forward(params, x, *, out0, out1):
    f32 = jnp.float32
    b, cin, rows, cols = x.shape

    def conv(x_nchw, w_flat, bias, c_in, c_out):
        # w_flat rows are ordered (kh, kw, c_in); build an OIHW kernel from it.
        k = w_flat.astype(f32).reshape(3, 3, c_in, c_out).transpose(3, 2, 0, 1)
        y = jax.lax.conv_general_dilated(
            x_nchw.astype(f32), k, window_strides=(1, 1), padding="SAME",
            dimension_numbers=("NCHW", "OIHW", "NCHW"))
        return jax.nn.relu(y + bias.astype(f32).reshape(1, c_out, 1, 1))

    y = conv(x, params["w1"], params["b1"], cin, C1)
    y = conv(y, params["w2"], params["b2"], C1, C2)
    y = y.reshape(b, C2, rows // 2, 2, cols // 2, 2).max(axis=(3, 5))   # 2x2 max-pool
    y = conv(y, params["w3"], params["b3"], C2, C3)

    feat = y.transpose(0, 2, 3, 1).reshape(b, -1)                       # (h, w, c) flatten
    x1 = jax.nn.relu(feat @ params["wf1"].astype(f32) + params["bf1"])
    heads = x1 @ params["wh"].astype(f32) + params["bh"]
    mean_std = heads[:, :out0]
    probs = jax.nn.softmax(heads[:, out0:out0 + out1], axis=-1)
    mean = (math.pi / 2.0) * jnp.tanh(mean_std[:, 0:1])
    std = jnp.exp(x1[:, 1:2])
    return jnp.concatenate([mean, std, probs], axis=-1)


# ------------------------------------ main ------------------------------------ #

if __name__ == "__main__":
    batch, cin, rows, cols = 2, 4, 16, 16
    out0, out1 = 2, 3                      # output_sizes of the module

    key = jax.random.PRNGKey(0)
    k_param, k_x = jax.random.split(key)
    params = init_params(k_param, cin, rows, cols, out0, out1)
    x = jax.random.normal(k_x, (batch, cin, rows, cols), jnp.float32)

    fwd = jax.jit(partial(tiny_cnn_mixed_forward, out0=out0, out1=out1))
    out = fwd(params, x)
    jax.block_until_ready(out)

    ref = reference_forward(params, x, out0=out0, out1=out1)
    assert out.shape == (batch, 2 + out1)
    assert bool(jnp.all(jnp.isfinite(out)))
    # approx-reciprocal softmax: allow a slightly looser sum-to-one check
    assert bool(jnp.all(jnp.abs(jnp.sum(out[:, 2:], axis=-1) - 1.0) < 5e-3))
    assert bool(jnp.all(jnp.abs(out - ref) < 5e-2)), (out, ref)
    print("KERNEL_OK")
</pallas_src>

<mosaic_0001>
module attributes {stable_mosaic.version = 11 : i64} {
  func.func @_tiny_cnn_kernel(%arg0: i32, %arg1: memref<328x4xf32, #tpu.memory_space<vmem>>, %arg2: memref<286x1xf32, #tpu.memory_space<vmem>>, %arg3: memref<36x16xbf16, #tpu.memory_space<vmem>>, %arg4: memref<1x16xf32, #tpu.memory_space<vmem>>, %arg5: memref<144x32xbf16, #tpu.memory_space<vmem>>, %arg6: memref<1x32xf32, #tpu.memory_space<vmem>>, %arg7: memref<288x64xbf16, #tpu.memory_space<vmem>>, %arg8: memref<1x64xf32, #tpu.memory_space<vmem>>, %arg9: memref<4096x32xbf16, #tpu.memory_space<vmem>>, %arg10: memref<1x32xf32, #tpu.memory_space<vmem>>, %arg11: memref<32x5xbf16, #tpu.memory_space<vmem>>, %arg12: memref<1x5xf32, #tpu.memory_space<vmem>>, %arg13: memref<1x1x5xf32, #tpu.memory_space<vmem>>, %arg14: memref<328x16xf32, #tpu.memory_space<vmem>>, %arg15: memref<267x32xf32, #tpu.memory_space<vmem>>, %arg16: memref<100x32xf32, #tpu.memory_space<vmem>>) attributes {dimension_semantics = [#tpu.dimension_semantics<parallel>], iteration_bounds = array<i64: 2>, scalar_prefetch = 0 : i64, scratch_operands = 3 : i64, tpu.core_type = #tpu.core_type<tc>, window_params = [{transform_indices = @transform_0, window_bounds = array<i64: 328, 4>}, {pipeline_mode = #tpu.pipeline_mode<synchronous>, transform_indices = @transform_1, window_bounds = array<i64: 286, 1>}, {pipeline_mode = #tpu.pipeline_mode<synchronous>, transform_indices = @transform_2, window_bounds = array<i64: 36, 16>}, {pipeline_mode = #tpu.pipeline_mode<synchronous>, transform_indices = @transform_3, window_bounds = array<i64: 1, 16>}, {pipeline_mode = #tpu.pipeline_mode<synchronous>, transform_indices = @transform_4, window_bounds = array<i64: 144, 32>}, {pipeline_mode = #tpu.pipeline_mode<synchronous>, transform_indices = @transform_5, window_bounds = array<i64: 1, 32>}, {pipeline_mode = #tpu.pipeline_mode<synchronous>, transform_indices = @transform_6, window_bounds = array<i64: 288, 64>}, {pipeline_mode = #tpu.pipeline_mode<synchronous>, transform_indices = @transform_7, window_bounds = array<i64: 1, 64>}, {pipeline_mode = #tpu.pipeline_mode<synchronous>, transform_indices = @transform_8, window_bounds = array<i64: 4096, 32>}, {pipeline_mode = #tpu.pipeline_mode<synchronous>, transform_indices = @transform_9, window_bounds = array<i64: 1, 32>}, {pipeline_mode = #tpu.pipeline_mode<synchronous>, transform_indices = @transform_10, window_bounds = array<i64: 32, 5>}, {pipeline_mode = #tpu.pipeline_mode<synchronous>, transform_indices = @transform_11, window_bounds = array<i64: 1, 5>}, {transform_indices = @transform_12, window_bounds = array<i64: 1, 1, 5>}]} {
    %c0 = arith.constant 0 : index
    %c0_0 = arith.constant 0 : index
    %0 = vector.load %arg1[%c0, %c0_0] : memref<328x4xf32, #tpu.memory_space<vmem>>, vector<328x4xf32>
    %1 = arith.truncf %0 : vector<328x4xf32> to vector<328x4xbf16>
    %2 = vector.extract_strided_slice %1 {offsets = [0, 0], sizes = [286, 4], strides = [1, 1]} : vector<328x4xbf16> to vector<286x4xbf16>
    %3 = vector.extract_strided_slice %1 {offsets = [1, 0], sizes = [286, 4], strides = [1, 1]} : vector<328x4xbf16> to vector<286x4xbf16>
    %4 = vector.extract_strided_slice %1 {offsets = [2, 0], sizes = [286, 4], strides = [1, 1]} : vector<328x4xbf16> to vector<286x4xbf16>
    %5 = vector.extract_strided_slice %1 {offsets = [18, 0], sizes = [286, 4], strides = [1, 1]} : vector<328x4xbf16> to vector<286x4xbf16>
    %6 = vector.extract_strided_slice %1 {offsets = [19, 0], sizes = [286, 4], strides = [1, 1]} : vector<328x4xbf16> to vector<286x4xbf16>
    %7 = vector.extract_strided_slice %1 {offsets = [20, 0], sizes = [286, 4], strides = [1, 1]} : vector<328x4xbf16> to vector<286x4xbf16>
    %8 = vector.extract_strided_slice %1 {offsets = [36, 0], sizes = [286, 4], strides = [1, 1]} : vector<328x4xbf16> to vector<286x4xbf16>
    %9 = vector.extract_strided_slice %1 {offsets = [37, 0], sizes = [286, 4], strides = [1, 1]} : vector<328x4xbf16> to vector<286x4xbf16>
    %10 = vector.extract_strided_slice %1 {offsets = [38, 0], sizes = [286, 4], strides = [1, 1]} : vector<328x4xbf16> to vector<286x4xbf16>
    %11 = tpu.concatenate %2, %3, %4, %5, %6, %7, %8, %9, %10 in 1 : vector<286x4xbf16>, vector<286x4xbf16>, vector<286x4xbf16>, vector<286x4xbf16>, vector<286x4xbf16>, vector<286x4xbf16>, vector<286x4xbf16>, vector<286x4xbf16>, vector<286x4xbf16> -> vector<286x36xbf16>
    %c0_1 = arith.constant 0 : index
    %c0_2 = arith.constant 0 : index
    %12 = vector.load %arg3[%c0_1, %c0_2] : memref<36x16xbf16, #tpu.memory_space<vmem>>, vector<36x16xbf16>
    %cst = arith.constant dense<0.000000e+00> : vector<286x16xf32>
    %13 = tpu.matmul %11, %12, %cst {dimension_numbers = #tpu.dot_dimension_numbers<[1], [0], [0], [1], [0, 0, 1, 1], [], []>} : vector<286x36xbf16>, vector<36x16xbf16>, vector<286x16xf32> -> vector<286x16xf32>
    %c0_3 = arith.constant 0 : index
    %c0_4 = arith.constant 0 : index
    %14 = vector.load %arg4[%c0_3, %c0_4] : memref<1x16xf32, #tpu.memory_space<vmem>>, vector<1x16xf32>
    %15 = vector.broadcast %14 : vector<1x16xf32> to vector<286x16xf32>
    %16 = arith.addf %13, %15 : vector<286x16xf32>
    %cst_5 = arith.constant 0.000000e+00 : f32
    %17 = vector.broadcast %cst_5 : f32 to vector<286x16xf32>
    %18 = arith.maximumf %16, %17 : vector<286x16xf32>
    %cst_6 = arith.constant 0.000000e+00 : f32
    %19 = vector.broadcast %cst_6 : f32 to vector<328x16xf32>
    %c0_7 = arith.constant 0 : index
    %c0_8 = arith.constant 0 : index
    %20 = vector.load %arg14[%c0_7, %c0_8] : memref<328x16xf32, #tpu.memory_space<vmem>>, vector<328x16xf32>
    tpu.vector_store %arg14[%c0_7, %c0_8], %19 {strides = array<i32>} : memref<328x16xf32, #tpu.memory_space<vmem>>, vector<328x16xf32>,
    %c0_9 = arith.constant 0 : index
    %c0_10 = arith.constant 0 : index
    %21 = vector.load %arg2[%c0_9, %c0_10] : memref<286x1xf32, #tpu.memory_space<vmem>>, vector<286x1xf32>
    %22 = vector.broadcast %21 : vector<286x1xf32> to vector<286x16xf32>
    %23 = arith.mulf %18, %22 : vector<286x16xf32>
    %c19 = arith.constant 19 : index
    %c0_11 = arith.constant 0 : index
    %24 = vector.load %arg14[%c19, %c0_11] : memref<328x16xf32, #tpu.memory_space<vmem>>, vector<286x16xf32>
    tpu.vector_store %arg14[%c19, %c0_11], %23 {strides = array<i32>} : memref<328x16xf32, #tpu.memory_space<vmem>>, vector<286x16xf32>,
    %c0_12 = arith.constant 0 : index
    %c0_13 = arith.constant 0 : index
    %25 = vector.load %arg14[%c0_12, %c0_13] : memref<328x16xf32, #tpu.memory_space<vmem>>, vector<328x16xf32>
    %26 = arith.truncf %25 : vector<328x16xf32> to vector<328x16xbf16>
    %27 = vector.extract_strided_slice %26 {offsets = [0, 0], sizes = [286, 16], strides = [1, 1]} : vector<328x16xbf16> to vector<286x16xbf16>
    %28 = vector.extract_strided_slice %26 {offsets = [1, 0], sizes = [286, 16], strides = [1, 1]} : vector<328x16xbf16> to vector<286x16xbf16>
    %29 = vector.extract_strided_slice %26 {offsets = [2, 0], sizes = [286, 16], strides = [1, 1]} : vector<328x16xbf16> to vector<286x16xbf16>
    %30 = vector.extract_strided_slice %26 {offsets = [18, 0], sizes = [286, 16], strides = [1, 1]} : vector<328x16xbf16> to vector<286x16xbf16>
    %31 = vector.extract_strided_slice %26 {offsets = [19, 0], sizes = [286, 16], strides = [1, 1]} : vector<328x16xbf16> to vector<286x16xbf16>
    %32 = vector.extract_strided_slice %26 {offsets = [20, 0], sizes = [286, 16], strides = [1, 1]} : vector<328x16xbf16> to vector<286x16xbf16>
    %33 = vector.extract_strided_slice %26 {offsets = [36, 0], sizes = [286, 16], strides = [1, 1]} : vector<328x16xbf16> to vector<286x16xbf16>
    %34 = vector.extract_strided_slice %26 {offsets = [37, 0], sizes = [286, 16], strides = [1, 1]} : vector<328x16xbf16> to vector<286x16xbf16>
    %35 = vector.extract_strided_slice %26 {offsets = [38, 0], sizes = [286, 16], strides = [1, 1]} : vector<328x16xbf16> to vector<286x16xbf16>
    %36 = tpu.concatenate %27, %28, %29, %30, %31, %32, %33, %34, %35 in 1 : vector<286x16xbf16>, vector<286x16xbf16>, vector<286x16xbf16>, vector<286x16xbf16>, vector<286x16xbf16>, vector<286x16xbf16>, vector<286x16xbf16>, vector<286x16xbf16>, vector<286x16xbf16> -> vector<286x144xbf16>
    %c0_14 = arith.constant 0 : index
    %c0_15 = arith.constant 0 : index
    %37 = vector.load %arg5[%c0_14, %c0_15] : memref<144x32xbf16, #tpu.memory_space<vmem>>, vector<144x32xbf16>
    %cst_16 = arith.constant dense<0.000000e+00> : vector<286x32xf32>
    %38 = tpu.matmul %36, %37, %cst_16 {dimension_numbers = #tpu.dot_dimension_numbers<[1], [0], [0], [1], [0, 0, 1, 1], [], []>} : vector<286x144xbf16>, vector<144x32xbf16>, vector<286x32xf32> -> vector<286x32xf32>
    %c0_17 = arith.constant 0 : index
    %c0_18 = arith.constant 0 : index
    %39 = vector.load %arg6[%c0_17, %c0_18] : memref<1x32xf32, #tpu.memory_space<vmem>>, vector<1x32xf32>
    %40 = vector.broadcast %39 : vector<1x32xf32> to vector<286x32xf32>
    %41 = arith.addf %38, %40 : vector<286x32xf32>
    %cst_19 = arith.constant 0.000000e+00 : f32
    %42 = vector.broadcast %cst_19 : f32 to vector<286x32xf32>
    %43 = arith.maximumf %41, %42 : vector<286x32xf32>
    %44 = vector.extract_strided_slice %43 {offsets = [0, 0], sizes = [267, 32], strides = [1, 1]} : vector<286x32xf32> to vector<267x32xf32>
    %45 = vector.extract_strided_slice %43 {offsets = [1, 0], sizes = [267, 32], strides = [1, 1]} : vector<286x32xf32> to vector<267x32xf32>
    %46 = arith.maximumf %44, %45 : vector<267x32xf32>
    %47 = vector.extract_strided_slice %43 {offsets = [18, 0], sizes = [267, 32], strides = [1, 1]} : vector<286x32xf32> to vector<267x32xf32>
    %48 = vector.extract_strided_slice %43 {offsets = [19, 0], sizes = [267, 32], strides = [1, 1]} : vector<286x32xf32> to vector<267x32xf32>
    %49 = arith.maximumf %47, %48 : vector<267x32xf32>
    %50 = arith.maximumf %46, %49 : vector<267x32xf32>
    %c0_20 = arith.constant 0 : index
    %c0_21 = arith.constant 0 : index
    %51 = vector.load %arg15[%c0_20, %c0_21] : memref<267x32xf32, #tpu.memory_space<vmem>>, vector<267x32xf32>
    tpu.vector_store %arg15[%c0_20, %c0_21], %50 {strides = array<i32>} : memref<267x32xf32, #tpu.memory_space<vmem>>, vector<267x32xf32>,
    %cst_22 = arith.constant 0.000000e+00 : f32
    %52 = vector.broadcast %cst_22 : f32 to vector<100x32xf32>
    %c0_23 = arith.constant 0 : index
    %c0_24 = arith.constant 0 : index
    %53 = vector.load %arg16[%c0_23, %c0_24] : memref<100x32xf32, #tpu.memory_space<vmem>>, vector<100x32xf32>
    tpu.vector_store %arg16[%c0_23, %c0_24], %52 {strides = array<i32>} : memref<100x32xf32, #tpu.memory_space<vmem>>, vector<100x32xf32>,
    %c0_25 = arith.constant 0 : index
    %c0_26 = arith.constant 0 : index
    %54 = tpu.strided_load %arg15[%c0_25, %c0_26] {strides = array<i32: 2, 1>} : memref<267x32xf32, #tpu.memory_space<vmem>>, vector<8x32xf32>
    %c11 = arith.constant 11 : index
    %c0_27 = arith.constant 0 : index
    %55 = vector.load %arg16[%c11, %c0_27] : memref<100x32xf32, #tpu.memory_space<vmem>>, vector<8x32xf32>
    tpu.vector_store %arg16[%c11, %c0_27], %54 {strides = array<i32>} : memref<100x32xf32, #tpu.memory_space<vmem>>, vector<8x32xf32>,
    %c36 = arith.constant 36 : index
    %c0_28 = arith.constant 0 : index
    %56 = tpu.strided_load %arg15[%c36, %c0_28] {strides = array<i32: 2, 1>} : memref<267x32xf32, #tpu.memory_space<vmem>>, vector<8x32xf32>
    %c21 = arith.constant 21 : index
    %c0_29 = arith.constant 0 : index
    %57 = vector.load %arg16[%c21, %c0_29] : memref<100x32xf32, #tpu.memory_space<vmem>>, vector<8x32xf32>
    tpu.vector_store %arg16[%c21, %c0_29], %56 {strides = array<i32>} : memref<100x32xf32, #tpu.memory_space<vmem>>, vector<8x32xf32>,
    %c72 = arith.constant 72 : index
    %c0_30 = arith.constant 0 : index
    %58 = tpu.strided_load %arg15[%c72, %c0_30] {strides = array<i32: 2, 1>} : memref<267x32xf32, #tpu.memory_space<vmem>>, vector<8x32xf32>
    %c31 = arith.constant 31 : index
    %c0_31 = arith.constant 0 : index
    %59 = vector.load %arg16[%c31, %c0_31] : memref<100x32xf32, #tpu.memory_space<vmem>>, vector<8x32xf32>
    tpu.vector_store %arg16[%c31, %c0_31], %58 {strides = array<i32>} : memref<100x32xf32, #tpu.memory_space<vmem>>, vector<8x32xf32>,
    %c108 = arith.constant 108 : index
    %c0_32 = arith.constant 0 : index
    %60 = tpu.strided_load %arg15[%c108, %c0_32] {strides = array<i32: 2, 1>} : memref<267x32xf32, #tpu.memory_space<vmem>>, vector<8x32xf32>
    %c41 = arith.constant 41 : index
    %c0_33 = arith.constant 0 : index
    %61 = vector.load %arg16[%c41, %c0_33] : memref<100x32xf32, #tpu.memory_space<vmem>>, vector<8x32xf32>
    tpu.vector_store %arg16[%c41, %c0_33], %60 {strides = array<i32>} : memref<100x32xf32, #tpu.memory_space<vmem>>, vector<8x32xf32>,
    %c144 = arith.constant 144 : index
    %c0_34 = arith.constant 0 : index
    %62 = tpu.strided_load %arg15[%c144, %c0_34] {strides = array<i32: 2, 1>} : memref<267x32xf32, #tpu.memory_space<vmem>>, vector<8x32xf32>
    %c51 = arith.constant 51 : index
    %c0_35 = arith.constant 0 : index
    %63 = vector.load %arg16[%c51, %c0_35] : memref<100x32xf32, #tpu.memory_space<vmem>>, vector<8x32xf32>
    tpu.vector_store %arg16[%c51, %c0_35], %62 {strides = array<i32>} : memref<100x32xf32, #tpu.memory_space<vmem>>, vector<8x32xf32>,
    %c180 = arith.constant 180 : index
    %c0_36 = arith.constant 0 : index
    %64 = tpu.strided_load %arg15[%c180, %c0_36] {strides = array<i32: 2, 1>} : memref<267x32xf32, #tpu.memory_space<vmem>>, vector<8x32xf32>
    %c61 = arith.constant 61 : index
    %c0_37 = arith.constant 0 : index
    %65 = vector.load %arg16[%c61, %c0_37] : memref<100x32xf32, #tpu.memory_space<vmem>>, vector<8x32xf32>
    tpu.vector_store %arg16[%c61, %c0_37], %64 {strides = array<i32>} : memref<100x32xf32, #tpu.memory_space<vmem>>, vector<8x32xf32>,
    %c216 = arith.constant 216 : index
    %c0_38 = arith.constant 0 : index
    %66 = tpu.strided_load %arg15[%c216, %c0_38] {strides = array<i32: 2, 1>} : memref<267x32xf32, #tpu.memory_space<vmem>>, vector<8x32xf32>
    %c71 = arith.constant 71 : index
    %c0_39 = arith.constant 0 : index
    %67 = vector.load %arg16[%c71, %c0_39] : memref<100x32xf32, #tpu.memory_space<vmem>>, vector<8x32xf32>
    tpu.vector_store %arg16[%c71, %c0_39], %66 {strides = array<i32>} : memref<100x32xf32, #tpu.memory_space<vmem>>, vector<8x32xf32>,
    %c252 = arith.constant 252 : index
    %c0_40 = arith.constant 0 : index
    %68 = tpu.strided_load %arg15[%c252, %c0_40] {strides = array<i32: 2, 1>} : memref<267x32xf32, #tpu.memory_space<vmem>>, vector<8x32xf32>
    %c81 = arith.constant 81 : index
    %c0_41 = arith.constant 0 : index
    %69 = vector.load %arg16[%c81, %c0_41] : memref<100x32xf32, #tpu.memory_space<vmem>>, vector<8x32xf32>
    tpu.vector_store %arg16[%c81, %c0_41], %68 {strides = array<i32>} : memref<100x32xf32, #tpu.memory_space<vmem>>, vector<8x32xf32>,
    %c0_42 = arith.constant 0 : index
    %c0_43 = arith.constant 0 : index
    %70 = vector.load %arg16[%c0_42, %c0_43] : memref<100x32xf32, #tpu.memory_space<vmem>>, vector<100x32xf32>
    %71 = arith.truncf %70 : vector<100x32xf32> to vector<100x32xbf16>
    %72 = vector.extract_strided_slice %71 {offsets = [0, 0], sizes = [78, 32], strides = [1, 1]} : vector<100x32xbf16> to vector<78x32xbf16>
    %73 = vector.extract_strided_slice %71 {offsets = [1, 0], sizes = [78, 32], strides = [1, 1]} : vector<100x32xbf16> to vector<78x32xbf16>
    %74 = vector.extract_strided_slice %71 {offsets = [2, 0], sizes = [78, 32], strides = [1, 1]} : vector<100x32xbf16> to vector<78x32xbf16>
    %75 = vector.extract_strided_slice %71 {offsets = [10, 0], sizes = [78, 32], strides = [1, 1]} : vector<100x32xbf16> to vector<78x32xbf16>
    %76 = vector.extract_strided_slice %71 {offsets = [11, 0], sizes = [78, 32], strides = [1, 1]} : vector<100x32xbf16> to vector<78x32xbf16>
    %77 = vector.extract_strided_slice %71 {offsets = [12, 0], sizes = [78, 32], strides = [1, 1]} : vector<100x32xbf16> to vector<78x32xbf16>
    %78 = vector.extract_strided_slice %71 {offsets = [20, 0], sizes = [78, 32], strides = [1, 1]} : vector<100x32xbf16> to vector<78x32xbf16>
    %79 = vector.extract_strided_slice %71 {offsets = [21, 0], sizes = [78, 32], strides = [1, 1]} : vector<100x32xbf16> to vector<78x32xbf16>
    %80 = vector.extract_strided_slice %71 {offsets = [22, 0], sizes = [78, 32], strides = [1, 1]} : vector<100x32xbf16> to vector<78x32xbf16>
    %81 = tpu.concatenate %72, %73, %74, %75, %76, %77, %78, %79, %80 in 1 : vector<78x32xbf16>, vector<78x32xbf16>, vector<78x32xbf16>, vector<78x32xbf16>, vector<78x32xbf16>, vector<78x32xbf16>, vector<78x32xbf16>, vector<78x32xbf16>, vector<78x32xbf16> -> vector<78x288xbf16>
    %c0_44 = arith.constant 0 : index
    %c0_45 = arith.constant 0 : index
    %82 = vector.load %arg7[%c0_44, %c0_45] : memref<288x64xbf16, #tpu.memory_space<vmem>>, vector<288x64xbf16>
    %cst_46 = arith.constant dense<0.000000e+00> : vector<78x64xf32>
    %83 = tpu.matmul %81, %82, %cst_46 {dimension_numbers = #tpu.dot_dimension_numbers<[1], [0], [0], [1], [0, 0, 1, 1], [], []>} : vector<78x288xbf16>, vector<288x64xbf16>, vector<78x64xf32> -> vector<78x64xf32>
    %c0_47 = arith.constant 0 : index
    %c0_48 = arith.constant 0 : index
    %84 = vector.load %arg8[%c0_47, %c0_48] : memref<1x64xf32, #tpu.memory_space<vmem>>, vector<1x64xf32>
    %85 = vector.broadcast %84 : vector<1x64xf32> to vector<78x64xf32>
    %86 = arith.addf %83, %85 : vector<78x64xf32>
    %cst_49 = arith.constant 0.000000e+00 : f32
    %87 = vector.broadcast %cst_49 : f32 to vector<78x64xf32>
    %88 = arith.maximumf %86, %87 : vector<78x64xf32>
    %89 = vector.extract_strided_slice %88 {offsets = [0, 0], sizes = [1, 64], strides = [1, 1]} : vector<78x64xf32> to vector<1x64xf32>
    %90 = vector.extract_strided_slice %88 {offsets = [1, 0], sizes = [1, 64], strides = [1, 1]} : vector<78x64xf32> to vector<1x64xf32>
    %91 = vector.extract_strided_slice %88 {offsets = [2, 0], sizes = [1, 64], strides = [1, 1]} : vector<78x64xf32> to vector<1x64xf32>
    %92 = vector.extract_strided_slice %88 {offsets = [3, 0], sizes = [1, 64], strides = [1, 1]} : vector<78x64xf32> to vector<1x64xf32>
    %93 = vector.extract_strided_slice %88 {offsets = [4, 0], sizes = [1, 64], strides = [1, 1]} : vector<78x64xf32> to vector<1x64xf32>
    %94 = vector.extract_strided_slice %88 {offsets = [5, 0], sizes = [1, 64], strides = [1, 1]} : vector<78x64xf32> to vector<1x64xf32>
    %95 = vector.extract_strided_slice %88 {offsets = [6, 0], sizes = [1, 64], strides = [1, 1]} : vector<78x64xf32> to vector<1x64xf32>
    %96 = vector.extract_strided_slice %88 {offsets = [7, 0], sizes = [1, 64], strides = [1, 1]} : vector<78x64xf32> to vector<1x64xf32>
    %97 = vector.extract_strided_slice %88 {offsets = [10, 0], sizes = [1, 64], strides = [1, 1]} : vector<78x64xf32> to vector<1x64xf32>
    %98 = vector.extract_strided_slice %88 {offsets = [11, 0], sizes = [1, 64], strides = [1, 1]} : vector<78x64xf32> to vector<1x64xf32>
    %99 = vector.extract_strided_slice %88 {offsets = [12, 0], sizes = [1, 64], strides = [1, 1]} : vector<78x64xf32> to vector<1x64xf32>
    %100 = vector.extract_strided_slice %88 {offsets = [13, 0], sizes = [1, 64], strides = [1, 1]} : vector<78x64xf32> to vector<1x64xf32>
    %101 = vector.extract_strided_slice %88 {offsets = [14, 0], sizes = [1, 64], strides = [1, 1]} : vector<78x64xf32> to vector<1x64xf32>
    %102 = vector.extract_strided_slice %88 {offsets = [15, 0], sizes = [1, 64], strides = [1, 1]} : vector<78x64xf32> to vector<1x64xf32>
    %103 = vector.extract_strided_slice %88 {offsets = [16, 0], sizes = [1, 64], strides = [1, 1]} : vector<78x64xf32> to vector<1x64xf32>
    %104 = vector.extract_strided_slice %88 {offsets = [17, 0], sizes = [1, 64], strides = [1, 1]} : vector<78x64xf32> to vector<1x64xf32>
    %105 = vector.extract_strided_slice %88 {offsets = [20, 0], sizes = [1, 64], strides = [1, 1]} : vector<78x64xf32> to vector<1x64xf32>
    %106 = vector.extract_strided_slice %88 {offsets = [21, 0], sizes = [1, 64], strides = [1, 1]} : vector<78x64xf32> to vector<1x64xf32>
    %107 = vector.extract_strided_slice %88 {offsets = [22, 0], sizes = [1, 64], strides = [1, 1]} : vector<78x64xf32> to vector<1x64xf32>
    %108 = vector.extract_strided_slice %88 {offsets = [23, 0], sizes = [1, 64], strides = [1, 1]} : vector<78x64xf32> to vector<1x64xf32>
    %109 = vector.extract_strided_slice %88 {offsets = [24, 0], sizes = [1, 64], strides = [1, 1]} : vector<78x64xf32> to vector<1x64xf32>
    %110 = vector.extract_strided_slice %88 {offsets = [25, 0], sizes = [1, 64], strides = [1, 1]} : vector<78x64xf32> to vector<1x64xf32>
    %111 = vector.extract_strided_slice %88 {offsets = [26, 0], sizes = [1, 64], strides = [1, 1]} : vector<78x64xf32> to vector<1x64xf32>
    %112 = vector.extract_strided_slice %88 {offsets = [27, 0], sizes = [1, 64], strides = [1, 1]} : vector<78x64xf32> to vector<1x64xf32>
    %113 = vector.extract_strided_slice %88 {offsets = [30, 0], sizes = [1, 64], strides = [1, 1]} : vector<78x64xf32> to vector<1x64xf32>
    %114 = vector.extract_strided_slice %88 {offsets = [31, 0], sizes = [1, 64], strides = [1, 1]} : vector<78x64xf32> to vector<1x64xf32>
    %115 = vector.extract_strided_slice %88 {offsets = [32, 0], sizes = [1, 64], strides = [1, 1]} : vector<78x64xf32> to vector<1x64xf32>
    %116 = vector.extract_strided_slice %88 {offsets = [33, 0], sizes = [1, 64], strides = [1, 1]} : vector<78x64xf32> to vector<1x64xf32>
    %117 = vector.extract_strided_slice %88 {offsets = [34, 0], sizes = [1, 64], strides = [1, 1]} : vector<78x64xf32> to vector<1x64xf32>
    %118 = vector.extract_strided_slice %88 {offsets = [35, 0], sizes = [1, 64], strides = [1, 1]} : vector<78x64xf32> to vector<1x64xf32>
    %119 = vector.extract_strided_slice %88 {offsets = [36, 0], sizes = [1, 64], strides = [1, 1]} : vector<78x64xf32> to vector<1x64xf32>
    %120 = vector.extract_strided_slice %88 {offsets = [37, 0], sizes = [1, 64], strides = [1, 1]} : vector<78x64xf32> to vector<1x64xf32>
    %121 = vector.extract_strided_slice %88 {offsets = [40, 0], sizes = [1, 64], strides = [1, 1]} : vector<78x64xf32> to vector<1x64xf32>
    %122 = vector.extract_strided_slice %88 {offsets = [41, 0], sizes = [1, 64], strides = [1, 1]} : vector<78x64xf32> to vector<1x64xf32>
    %123 = vector.extract_strided_slice %88 {offsets = [42, 0], sizes = [1, 64], strides = [1, 1]} : vector<78x64xf32> to vector<1x64xf32>
    %124 = vector.extract_strided_slice %88 {offsets = [43, 0], sizes = [1, 64], strides = [1, 1]} : vector<78x64xf32> to vector<1x64xf32>
    %125 = vector.extract_strided_slice %88 {offsets = [44, 0], sizes = [1, 64], strides = [1, 1]} : vector<78x64xf32> to vector<1x64xf32>
    %126 = vector.extract_strided_slice %88 {offsets = [45, 0], sizes = [1, 64], strides = [1, 1]} : vector<78x64xf32> to vector<1x64xf32>
    %127 = vector.extract_strided_slice %88 {offsets = [46, 0], sizes = [1, 64], strides = [1, 1]} : vector<78x64xf32> to vector<1x64xf32>
    %128 = vector.extract_strided_slice %88 {offsets = [47, 0], sizes = [1, 64], strides = [1, 1]} : vector<78x64xf32> to vector<1x64xf32>
    %129 = vector.extract_strided_slice %88 {offsets = [50, 0], sizes = [1, 64], strides = [1, 1]} : vector<78x64xf32> to vector<1x64xf32>
    %130 = vector.extract_strided_slice %88 {offsets = [51, 0], sizes = [1, 64], strides = [1, 1]} : vector<78x64xf32> to vector<1x64xf32>
    %131 = vector.extract_strided_slice %88 {offsets = [52, 0], sizes = [1, 64], strides = [1, 1]} : vector<78x64xf32> to vector<1x64xf32>
    %132 = vector.extract_strided_slice %88 {offsets = [53, 0], sizes = [1, 64], strides = [1, 1]} : vector<78x64xf32> to vector<1x64xf32>
    %133 = vector.extract_strided_slice %88 {offsets = [54, 0], sizes = [1, 64], strides = [1, 1]} : vector<78x64xf32> to vector<1x64xf32>
    %134 = vector.extract_strided_slice %88 {offsets = [55, 0], sizes = [1, 64], strides = [1, 1]} : vector<78x64xf32> to vector<1x64xf32>
    %135 = vector.extract_strided_slice %88 {offsets = [56, 0], sizes = [1, 64], strides = [1, 1]} : vector<78x64xf32> to vector<1x64xf32>
    %136 = vector.extract_strided_slice %88 {offsets = [57, 0], sizes = [1, 64], strides = [1, 1]} : vector<78x64xf32> to vector<1x64xf32>
    %137 = vector.extract_strided_slice %88 {offsets = [60, 0], sizes = [1, 64], strides = [1, 1]} : vector<78x64xf32> to vector<1x64xf32>
    %138 = vector.extract_strided_slice %88 {offsets = [61, 0], sizes = [1, 64], strides = [1, 1]} : vector<78x64xf32> to vector<1x64xf32>
    %139 = vector.extract_strided_slice %88 {offsets = [62, 0], sizes = [1, 64], strides = [1, 1]} : vector<78x64xf32> to vector<1x64xf32>
    %140 = vector.extract_strided_slice %88 {offsets = [63, 0], sizes = [1, 64], strides = [1, 1]} : vector<78x64xf32> to vector<1x64xf32>
    %141 = vector.extract_strided_slice %88 {offsets = [64, 0], sizes = [1, 64], strides = [1, 1]} : vector<78x64xf32> to vector<1x64xf32>
    %142 = vector.extract_strided_slice %88 {offsets = [65, 0], sizes = [1, 64], strides = [1, 1]} : vector<78x64xf32> to vector<1x64xf32>
    %143 = vector.extract_strided_slice %88 {offsets = [66, 0], sizes = [1, 64], strides = [1, 1]} : vector<78x64xf32> to vector<1x64xf32>
    %144 = vector.extract_strided_slice %88 {offsets = [67, 0], sizes = [1, 64], strides = [1, 1]} : vector<78x64xf32> to vector<1x64xf32>
    %145 = vector.extract_strided_slice %88 {offsets = [70, 0], sizes = [1, 64], strides = [1, 1]} : vector<78x64xf32> to vector<1x64xf32>
    %146 = vector.extract_strided_slice %88 {offsets = [71, 0], sizes = [1, 64], strides = [1, 1]} : vector<78x64xf32> to vector<1x64xf32>
    %147 = vector.extract_strided_slice %88 {offsets = [72, 0], sizes = [1, 64], strides = [1, 1]} : vector<78x64xf32> to vector<1x64xf32>
    %148 = vector.extract_strided_slice %88 {offsets = [73, 0], sizes = [1, 64], strides = [1, 1]} : vector<78x64xf32> to vector<1x64xf32>
    %149 = vector.extract_strided_slice %88 {offsets = [74, 0], sizes = [1, 64], strides = [1, 1]} : vector<78x64xf32> to vector<1x64xf32>
    %150 = vector.extract_strided_slice %88 {offsets = [75, 0], sizes = [1, 64], strides = [1, 1]} : vector<78x64xf32> to vector<1x64xf32>
    %151 = vector.extract_strided_slice %88 {offsets = [76, 0], sizes = [1, 64], strides = [1, 1]} : vector<78x64xf32> to vector<1x64xf32>
    %152 = vector.extract_strided_slice %88 {offsets = [77, 0], sizes = [1, 64], strides = [1, 1]} : vector<78x64xf32> to vector<1x64xf32>
    %153 = tpu.concatenate %89, %90, %91, %92, %93, %94, %95, %96, %97, %98, %99, %100, %101, %102, %103, %104 in 1 : vector<1x64xf32>, vector<1x64xf32>, vector<1x64xf32>, vector<1x64xf32>, vector<1x64xf32>, vector<1x64xf32>, vector<1x64xf32>, vector<1x64xf32>, vector<1x64xf32>, vector<1x64xf32>, vector<1x64xf32>, vector<1x64xf32>, vector<1x64xf32>, vector<1x64xf32>, vector<1x64xf32>, vector<1x64xf32> -> vector<1x1024xf32>
    %154 = tpu.concatenate %105, %106, %107, %108, %109, %110, %111, %112, %113, %114, %115, %116, %117, %118, %119, %120 in 1 : vector<1x64xf32>, vector<1x64xf32>, vector<1x64xf32>, vector<1x64xf32>, vector<1x64xf32>, vector<1x64xf32>, vector<1x64xf32>, vector<1x64xf32>, vector<1x64xf32>, vector<1x64xf32>, vector<1x64xf32>, vector<1x64xf32>, vector<1x64xf32>, vector<1x64xf32>, vector<1x64xf32>, vector<1x64xf32> -> vector<1x1024xf32>
    %155 = tpu.concatenate %121, %122, %123, %124, %125, %126, %127, %128, %129, %130, %131, %132, %133, %134, %135, %136 in 1 : vector<1x64xf32>, vector<1x64xf32>, vector<1x64xf32>, vector<1x64xf32>, vector<1x64xf32>, vector<1x64xf32>, vector<1x64xf32>, vector<1x64xf32>, vector<1x64xf32>, vector<1x64xf32>, vector<1x64xf32>, vector<1x64xf32>, vector<1x64xf32>, vector<1x64xf32>, vector<1x64xf32>, vector<1x64xf32> -> vector<1x1024xf32>
    %156 = tpu.concatenate %137, %138, %139, %140, %141, %142, %143, %144, %145, %146, %147, %148, %149, %150, %151, %152 in 1 : vector<1x64xf32>, vector<1x64xf32>, vector<1x64xf32>, vector<1x64xf32>, vector<1x64xf32>, vector<1x64xf32>, vector<1x64xf32>, vector<1x64xf32>, vector<1x64xf32>, vector<1x64xf32>, vector<1x64xf32>, vector<1x64xf32>, vector<1x64xf32>, vector<1x64xf32>, vector<1x64xf32>, vector<1x64xf32> -> vector<1x1024xf32>
    %157 = tpu.concatenate %153, %154, %155, %156 in 1 : vector<1x1024xf32>, vector<1x1024xf32>, vector<1x1024xf32>, vector<1x1024xf32> -> vector<1x4096xf32>
    %158 = arith.truncf %157 : vector<1x4096xf32> to vector<1x4096xbf16>
    %c0_50 = arith.constant 0 : index
    %c0_51 = arith.constant 0 : index
    %159 = vector.load %arg9[%c0_50, %c0_51] : memref<4096x32xbf16, #tpu.memory_space<vmem>>, vector<4096x32xbf16>
    %cst_52 = arith.constant dense<0.000000e+00> : vector<1x32xf32>
    %160 = tpu.matmul %158, %159, %cst_52 {dimension_numbers = #tpu.dot_dimension_numbers<[1], [0], [0], [1], [0, 0, 1, 1], [], []>} : vector<1x4096xbf16>, vector<4096x32xbf16>, vector<1x32xf32> -> vector<1x32xf32>
    %c0_53 = arith.constant 0 : index
    %c0_54 = arith.constant 0 : index
    %161 = vector.load %arg10[%c0_53, %c0_54] : memref<1x32xf32, #tpu.memory_space<vmem>>, vector<1x32xf32>
    %162 = arith.addf %160, %161 : vector<1x32xf32>
    %cst_55 = arith.constant 0.000000e+00 : f32
    %163 = vector.broadcast %cst_55 : f32 to vector<1x32xf32>
    %164 = arith.maximumf %162, %163 : vector<1x32xf32>
    %165 = arith.truncf %164 : vector<1x32xf32> to vector<1x32xbf16>
    %c0_56 = arith.constant 0 : index
    %c0_57 = arith.constant 0 : index
    %166 = vector.load %arg11[%c0_56, %c0_57] : memref<32x5xbf16, #tpu.memory_space<vmem>>, vector<32x5xbf16>
    %cst_58 = arith.constant dense<0.000000e+00> : vector<1x5xf32>
    %167 = tpu.matmul %165, %166, %cst_58 {dimension_numbers = #tpu.dot_dimension_numbers<[1], [0], [0], [1], [0, 0, 1, 1], [], []>} : vector<1x32xbf16>, vector<32x5xbf16>, vector<1x5xf32> -> vector<1x5xf32>
    %c0_59 = arith.constant 0 : index
    %c0_60 = arith.constant 0 : index
    %168 = vector.load %arg12[%c0_59, %c0_60] : memref<1x5xf32, #tpu.memory_space<vmem>>, vector<1x5xf32>
    %169 = arith.addf %167, %168 : vector<1x5xf32>
    %170 = vector.extract_strided_slice %169 {offsets = [0, 2], sizes = [1, 3], strides = [1, 1]} : vector<1x5xf32> to vector<1x3xf32>
    %cst_61 = arith.constant dense<0xFF800000> : vector<1xf32>
    %171 = vector.multi_reduction <maximumf>, %170, %cst_61 [1] : vector<1x3xf32> to vector<1xf32>
    %172 = vector.shape_cast %171 : vector<1xf32> to vector<1x1xf32>
    %173 = vector.broadcast %172 : vector<1x1xf32> to vector<1x3xf32>
    %174 = arith.subf %170, %173 : vector<1x3xf32>
    %175 = math.exp %174 : vector<1x3xf32>
    %cst_62 = arith.constant dense<0.000000e+00> : vector<1xf32>
    %176 = vector.multi_reduction <add>, %175, %cst_62 [1] : vector<1x3xf32> to vector<1xf32>
    %177 = vector.shape_cast %176 : vector<1xf32> to vector<1x1xf32>
    %178 = tpu.reciprocal %177 {approx = true} : vector<1x1xf32> -> vector<1x1xf32>
    %179 = vector.broadcast %178 : vector<1x1xf32> to vector<1x3xf32>
    %180 = arith.mulf %175, %179 : vector<1x3xf32>
    %181 = vector.extract_strided_slice %169 {offsets = [0, 0], sizes = [1, 1], strides = [1, 1]} : vector<1x5xf32> to vector<1x1xf32>
    %182 = math.tanh %181 : vector<1x1xf32>
    %cst_63 = arith.constant 1.57079637 : f32
    %183 = vector.broadcast %cst_63 : f32 to vector<1x1xf32>
    %184 = arith.mulf %183, %182 : vector<1x1xf32>
    %185 = vector.extract_strided_slice %164 {offsets = [0, 1], sizes = [1, 1], strides = [1, 1]} : vector<1x32xf32> to vector<1x1xf32>
    %186 = math.exp %185 : vector<1x1xf32>
    %187 = tpu.concatenate %184, %186, %180 in 1 : vector<1x1xf32>, vector<1x1xf32>, vector<1x3xf32> -> vector<1x5xf32>
    %c0_64 = arith.constant 0 : index
    %c0_65 = arith.constant 0 : index
    %c0_66 = arith.constant 0 : index
    %188 = vector.load %arg13[%c0_64, %c0_65, %c0_66] : memref<1x1x5xf32, #tpu.memory_space<vmem>>, vector<1x1x5xf32>
    %189 = vector.shape_cast %188 : vector<1x1x5xf32> to vector<1x5xf32>
    %190 = vector.shape_cast %187 : vector<1x5xf32> to vector<1x1x5xf32>
    tpu.vector_store %arg13[%c0_64, %c0_65, %c0_66], %190 {strides = array<i32>} : memref<1x1x5xf32, #tpu.memory_space<vmem>>, vector<1x1x5xf32>,
    return
  }
  func.func @transform_0(%arg0: i32) -> (i32, i32) {
    %c0_i32 = arith.constant 0 : i32
    %c0_i32_0 = arith.constant 0 : i32
    return %arg0, %c0_i32 : i32, i32
  }
  func.func @transform_1(%arg0: i32) -> (i32, i32) {
    %c0_i32 = arith.constant 0 : i32
    %c0_i32_0 = arith.constant 0 : i32
    %c0_i32_1 = arith.constant 0 : i32
    return %c0_i32, %c0_i32_0 : i32, i32
  }
  func.func @transform_2(%arg0: i32) -> (i32, i32) {
    %c0_i32 = arith.constant 0 : i32
    %c0_i32_0 = arith.constant 0 : i32
    %c0_i32_1 = arith.constant 0 : i32
    return %c0_i32, %c0_i32_0 : i32, i32
  }
  func.func @transform_3(%arg0: i32) -> (i32, i32) {
    %c0_i32 = arith.constant 0 : i32
    %c0_i32_0 = arith.constant 0 : i32
    %c0_i32_1 = arith.constant 0 : i32
    return %c0_i32, %c0_i32_0 : i32, i32
  }
  func.func @transform_4(%arg0: i32) -> (i32, i32) {
    %c0_i32 = arith.constant 0 : i32
    %c0_i32_0 = arith.constant 0 : i32
    %c0_i32_1 = arith.constant 0 : i32
    return %c0_i32, %c0_i32_0 : i32, i32
  }
  func.func @transform_5(%arg0: i32) -> (i32, i32) {
    %c0_i32 = arith.constant 0 : i32
    %c0_i32_0 = arith.constant 0 : i32
    %c0_i32_1 = arith.constant 0 : i32
    return %c0_i32, %c0_i32_0 : i32, i32
  }
  func.func @transform_6(%arg0: i32) -> (i32, i32) {
    %c0_i32 = arith.constant 0 : i32
    %c0_i32_0 = arith.constant 0 : i32
    %c0_i32_1 = arith.constant 0 : i32
    return %c0_i32, %c0_i32_0 : i32, i32
  }
  func.func @transform_7(%arg0: i32) -> (i32, i32) {
    %c0_i32 = arith.constant 0 : i32
    %c0_i32_0 = arith.constant 0 : i32
    %c0_i32_1 = arith.constant 0 : i32
    return %c0_i32, %c0_i32_0 : i32, i32
  }
  func.func @transform_8(%arg0: i32) -> (i32, i32) {
    %c0_i32 = arith.constant 0 : i32
    %c0_i32_0 = arith.constant 0 : i32
    %c0_i32_1 = arith.constant 0 : i32
    return %c0_i32, %c0_i32_0 : i32, i32
  }
  func.func @transform_9(%arg0: i32) -> (i32, i32) {
    %c0_i32 = arith.constant 0 : i32
    %c0_i32_0 = arith.constant 0 : i32
    %c0_i32_1 = arith.constant 0 : i32
    return %c0_i32, %c0_i32_0 : i32, i32
  }
  func.func @transform_10(%arg0: i32) -> (i32, i32) {
    %c0_i32 = arith.constant 0 : i32
    %c0_i32_0 = arith.constant 0 : i32
    %c0_i32_1 = arith.constant 0 : i32
    return %c0_i32, %c0_i32_0 : i32, i32
  }
  func.func @transform_11(%arg0: i32) -> (i32, i32) {
    %c0_i32 = arith.constant 0 : i32
    %c0_i32_0 = arith.constant 0 : i32
    %c0_i32_1 = arith.constant 0 : i32
    return %c0_i32, %c0_i32_0 : i32, i32
  }
  func.func @transform_12(%arg0: i32) -> (i32, i32, i32) {
    %c0_i32 = arith.constant 0 : i32
    %c0_i32_0 = arith.constant 0 : i32
    %c0_i32_1 = arith.constant 0 : i32
    return %arg0, %c0_i32, %c0_i32_0 : i32, i32, i32
  }
}

</mosaic_0001>

<llo_original>
// kernel: tiny_cnn_mixed_forward.1
$region0: #{tiny_cnn_mixed_forward.1}
  #allocation0 [shape = 'u32[]', space=smem, size = 0x4, offset = 0x4, fixed_abs, tag = 'smem constant byte address 0x4 - core index']
  #allocation1 [shape = 'u32[144,128]{1,0:T(1,128)}', space=vmem, size = 0x12000, scoped, tag = 'internal scratch']
  #allocation2 [shape = 'f32[328,16]{1,0:T(8,128)}', space=vmem, size = 0x29000, scoped, tag = 'scratch operand']
  #allocation3 [shape = 'f32[267,32]{1,0:T(8,128)}', space=vmem, size = 0x22000, scoped, tag = 'scratch operand']
  #allocation4 [shape = 'f32[100,32]{1,0:T(8,128)}', space=vmem, size = 0xd000, scoped, tag = 'scratch operand']
  %s0 = inlined_call_operand.vmem [shape: f32[656,4], index: 0, kind: input, shape index: {}]
  %s1 = inlined_call_operand.vmem [shape: f32[286,1], index: 1, kind: input, shape index: {}]
  %s2 = inlined_call_operand.vmem [shape: bf16[36,16], index: 2, kind: input, shape index: {}]
  %s3 = inlined_call_operand.vmem [shape: f32[1,16], index: 3, kind: input, shape index: {}]
  %s4 = inlined_call_operand.vmem [shape: bf16[144,32], index: 4, kind: input, shape index: {}]
  %s5 = inlined_call_operand.vmem [shape: f32[1,32], index: 5, kind: input, shape index: {}]
  %s6 = inlined_call_operand.vmem [shape: bf16[288,64], index: 6, kind: input, shape index: {}]
  %s7 = inlined_call_operand.vmem [shape: f32[1,64], index: 7, kind: input, shape index: {}]
  %s8 = inlined_call_operand.vmem [shape: bf16[4096,32], index: 8, kind: input, shape index: {}]
  %s9 = inlined_call_operand.vmem [shape: f32[1,32], index: 9, kind: input, shape index: {}]
  %s10 = inlined_call_operand.vmem [shape: bf16[32,5], index: 10, kind: input, shape index: {}]
  %s11 = inlined_call_operand.vmem [shape: f32[1,5], index: 11, kind: input, shape index: {}]
  %s12 = inlined_call_operand.hbm [shape: f32[2,1,5], index: 12, kind: output, shape index: {}]
  %s13 = sld [smem:[#allocation0]]
  $region81: #{tiny_cnn_mixed_forward.1} parent=0
    _
  %s15 = ssub.s32 1, %s13
  %s16 = scalar_select 0, %s15, %s13
  $region1: #{tiny_cnn_mixed_forward.1} parent=0
    #allocation5 [shape = 'u8[1024]{0}', space=vmem, size = 0x400, scoped, tag = 'output window, operand 0']
    #allocation6 [shape = 's32[2]{0}', space=sflag, size = 0x8, scoped, tag = 'scoped memory for tiny_cnn_mixed_forward.1']
    %17 = vsyncpa [#allocation6], 0
    %s18 = scalar_lea.sflag [#allocation6], 1
    %19 = vsyncpa %s18, 0
    loop: start=0, step=1, limit=4
    $region2: #{tiny_cnn_mixed_forward.1} parent=1 // loop_pre_header
      _
    $region3: #{tiny_cnn_mixed_forward.1} parent=1 // loop_header
      %s21 = sphi 0, %s25
      %p22 = scmp.ge.s32.totalorder %s21, 4
      %s31 = sphi 0, %s33
      %s34 = sphi 0, %s31
      %s35 = sphi 0, %s34
      %s51 = sphi 0, %s35
      %s55 = sphi 0, %s55
      %s57 = sphi 0, %s55
      %s58 = sphi 0, %s57
      %s72 = sphi 0, %s58
      %s76 = sphi 0, %s76
      %s78 = sphi 0, %s76
      %s79 = sphi 0, %s78
      %s93 = sphi 0, %s79
      %s97 = sphi 0, %s97
      %s99 = sphi 0, %s97
      %s100 = sphi 0, %s99
      %s114 = sphi 0, %s100
      %s118 = sphi 0, %s118
      %s120 = sphi 0, %s118
      %s121 = sphi 0, %s120
      %s135 = sphi 0, %s121
      %s139 = sphi 0, %s139
      %s141 = sphi 0, %s139
      %s142 = sphi 0, %s141
      %s156 = sphi 0, %s142
      %s160 = sphi 0, %s160
      %s162 = sphi 0, %s160
      %s163 = sphi 0, %s162
      %s177 = sphi 0, %s163
      %s181 = sphi 0, %s181
      %s183 = sphi 0, %s181
      %s184 = sphi 0, %s183
      %s198 = sphi 0, %s184
      %s202 = sphi 0, %s202
      %s204 = sphi 0, %s202
      %s205 = sphi 0, %s204
      %s219 = sphi 0, %s205
      %s223 = sphi 0, %s223
      %s225 = sphi 0, %s223
      %s226 = sphi 0, %s225
      %s240 = sphi 0, %s226
      %s244 = sphi 0, %s244
      %s246 = sphi 0, %s244
      %s247 = sphi 0, %s246
      %s261 = sphi 0, %s247
      %s265 = sphi 0, %s265
      %s267 = sphi 0, %s265
      %s268 = sphi 0, %s267
      %s282 = sphi 0, %s268
      %s288 = sphi 0, %s290
      %s291 = sphi 0, %s288
      %s292 = sphi 0, %s291
      %s308 = sphi 0, %s292
    $region4: #{tiny_cnn_mixed_forward.1} parent=1 // loop_header_branch
      %24 = sbr.rel (%p22) target = $region8
    $region5: #{tiny_cnn_mixed_forward.1} parent=1 // loop_body
      %s26 = ssub.s32 %s21, 1
      %s27 = ssub.s32 %s21, 2
      %s28 = sadd.s32 %s21, 1
      %s29 = ssub.s32 %s21, %s28
      %p30 = scmp.eq.s32.totalorder %s29, 0
      %s32 = sadd.s32 %s31, 1
      %s33 = scalar_select %p30, %s31, %s32
      %p36 = pneg %p30
      %p37 = scmp.eq.s32.totalorder %s21, 1
      %p38 = por %p36, %p37
      %p39 = scmp.ne.s32.totalorder %s31, %s34
      %p40 = scmp.eq.s32.totalorder %s21, 0
      %p41 = por %p39, %p40
      %p42 = scmp.ne.s32.totalorder %s31, %s34
      %p43 = scmp.eq.s32.totalorder %s26, 1
      %p44 = por %p42, %p43
      %p45 = scmp.ne.s32.totalorder %s34, %s35
      %p46 = scmp.eq.s32.totalorder %s26, 0
      %p47 = por %p45, %p46
      %p48 = scmp.ne.s32.totalorder %s34, %s35
      %p49 = scmp.eq.s32.totalorder %s27, 1
      %p50 = por %p48, %p49
      %p52 = scmp.ne.s32.totalorder %s35, %s51
      %p53 = scmp.eq.s32.totalorder %s27, 0
      %p54 = por %p52, %p53
      %s56 = sadd.s32 %s55, 1
      %p59 = scmp.eq.s32.totalorder %s21, 1
      %p60 = scmp.ne.s32.totalorder %s55, %s57
      %p61 = scmp.eq.s32.totalorder %s21, 0
      %p62 = por %p60, %p61
      %p63 = scmp.ne.s32.totalorder %s55, %s57
      %p64 = scmp.eq.s32.totalorder %s26, 1
      %p65 = por %p63, %p64
      %p66 = scmp.ne.s32.totalorder %s57, %s58
      %p67 = scmp.eq.s32.totalorder %s26, 0
      %p68 = por %p66, %p67
      %p69 = scmp.ne.s32.totalorder %s57, %s58
      %p70 = scmp.eq.s32.totalorder %s27, 1
      %p71 = por %p69, %p70
      %p73 = scmp.ne.s32.totalorder %s58, %s72
      %p74 = scmp.eq.s32.totalorder %s27, 0
      %p75 = por %p73, %p74
      %s77 = sadd.s32 %s76, 1
      %p80 = scmp.eq.s32.totalorder %s21, 1
      %p81 = scmp.ne.s32.totalorder %s76, %s78
      %p82 = scmp.eq.s32.totalorder %s21, 0
      %p83 = por %p81, %p82
      %p84 = scmp.ne.s32.totalorder %s76, %s78
      %p85 = scmp.eq.s32.totalorder %s26, 1
      %p86 = por %p84, %p85
      %p87 = scmp.ne.s32.totalorder %s78, %s79
      %p88 = scmp.eq.s32.totalorder %s26, 0
      %p89 = por %p87, %p88
      %p90 = scmp.ne.s32.totalorder %s78, %s79
      %p91 = scmp.eq.s32.totalorder %s27, 1
      %p92 = por %p90, %p91
      %p94 = scmp.ne.s32.totalorder %s79, %s93
      %p95 = scmp.eq.s32.totalorder %s27, 0
      %p96 = por %p94, %p95
      %s98 = sadd.s32 %s97, 1
      %p101 = scmp.eq.s32.totalorder %s21, 1
      %p102 = scmp.ne.s32.totalorder %s97, %s99
      %p103 = scmp.eq.s32.totalorder %s21, 0
      %p104 = por %p102, %p103
      %p105 = scmp.ne.s32.totalorder %s97, %s99
      %p106 = scmp.eq.s32.totalorder %s26, 1
      %p107 = por %p105, %p106
      %p108 = scmp.ne.s32.totalorder %s99, %s100
      %p109 = scmp.eq.s32.totalorder %s26, 0
      %p110 = por %p108, %p109
      %p111 = scmp.ne.s32.totalorder %s99, %s100
      %p112 = scmp.eq.s32.totalorder %s27, 1
      %p113 = por %p111, %p112
      %p115 = scmp.ne.s32.totalorder %s100, %s114
      %p116 = scmp.eq.s32.totalorder %s27, 0
      %p117 = por %p115, %p116
      %s119 = sadd.s32 %s118, 1
      %p122 = scmp.eq.s32.totalorder %s21, 1
      %p123 = scmp.ne.s32.totalorder %s118, %s120
      %p124 = scmp.eq.s32.totalorder %s21, 0
      %p125 = por %p123, %p124
      %p126 = scmp.ne.s32.totalorder %s118, %s120
      %p127 = scmp.eq.s32.totalorder %s26, 1
      %p128 = por %p126, %p127
      %p129 = scmp.ne.s32.totalorder %s120, %s121
      %p130 = scmp.eq.s32.totalorder %s26, 0
      %p131 = por %p129, %p130
      %p132 = scmp.ne.s32.totalorder %s120, %s121
      %p133 = scmp.eq.s32.totalorder %s27, 1
      %p134 = por %p132, %p133
      %p136 = scmp.ne.s32.totalorder %s121, %s135
      %p137 = scmp.eq.s32.totalorder %s27, 0
      %p138 = por %p136, %p137
      %s140 = sadd.s32 %s139, 1
      %p143 = scmp.eq.s32.totalorder %s21, 1
      %p144 = scmp.ne.s32.totalorder %s139, %s141
      %p145 = scmp.eq.s32.totalorder %s21, 0
      %p146 = por %p144, %p145
      %p147 = scmp.ne.s32.totalorder %s139, %s141
      %p148 = scmp.eq.s32.totalorder %s26, 1
      %p149 = por %p147, %p148
      %p150 = scmp.ne.s32.totalorder %s141, %s142
      %p151 = scmp.eq.s32.totalorder %s26, 0
      %p152 = por %p150, %p151
      %p153 = scmp.ne.s32.totalorder %s141, %s142
      %p154 = scmp.eq.s32.totalorder %s27, 1
      %p155 = por %p153, %p154
      %p157 = scmp.ne.s32.totalorder %s142, %s156
      %p158 = scmp.eq.s32.totalorder %s27, 0
      %p159 = por %p157, %p158
      %s161 = sadd.s32 %s160, 1
      %p164 = scmp.eq.s32.totalorder %s21, 1
      %p165 = scmp.ne.s32.totalorder %s160, %s162
      %p166 = scmp.eq.s32.totalorder %s21, 0
      %p167 = por %p165, %p166
      %p168 = scmp.ne.s32.totalorder %s160, %s162
      %p169 = scmp.eq.s32.totalorder %s26, 1
      %p170 = por %p168, %p169
      %p171 = scmp.ne.s32.totalorder %s162, %s163
      %p172 = scmp.eq.s32.totalorder %s26, 0
      %p173 = por %p171, %p172
      %p174 = scmp.ne.s32.totalorder %s162, %s163
      %p175 = scmp.eq.s32.totalorder %s27, 1
      %p176 = por %p174, %p175
      %p178 = scmp.ne.s32.totalorder %s163, %s177
      %p179 = scmp.eq.s32.totalorder %s27, 0
      %p180 = por %p178, %p179
      %s182 = sadd.s32 %s181, 1
      %p185 = scmp.eq.s32.totalorder %s21, 1
      %p186 = scmp.ne.s32.totalorder %s181, %s183
      %p187 = scmp.eq.s32.totalorder %s21, 0
      %p188 = por %p186, %p187
      %p189 = scmp.ne.s32.totalorder %s181, %s183
      %p190 = scmp.eq.s32.totalorder %s26, 1
      %p191 = por %p189, %p190
      %p192 = scmp.ne.s32.totalorder %s183, %s184
      %p193 = scmp.eq.s32.totalorder %s26, 0
      %p194 = por %p192, %p193
      %p195 = scmp.ne.s32.totalorder %s183, %s184
      %p196 = scmp.eq.s32.totalorder %s27, 1
      %p197 = por %p195, %p196
      %p199 = scmp.ne.s32.totalorder %s184, %s198
      %p200 = scmp.eq.s32.totalorder %s27, 0
      %p201 = por %p199, %p200
      %s203 = sadd.s32 %s202, 1
      %p206 = scmp.eq.s32.totalorder %s21, 1
      %p207 = scmp.ne.s32.totalorder %s202, %s204
      %p208 = scmp.eq.s32.totalorder %s21, 0
      %p209 = por %p207, %p208
      %p210 = scmp.ne.s32.totalorder %s202, %s204
      %p211 = scmp.eq.s32.totalorder %s26, 1
      %p212 = por %p210, %p211
      %p213 = scmp.ne.s32.totalorder %s204, %s205
      %p214 = scmp.eq.s32.totalorder %s26, 0
      %p215 = por %p213, %p214
      %p216 = scmp.ne.s32.totalorder %s204, %s205
      %p217 = scmp.eq.s32.totalorder %s27, 1
      %p218 = por %p216, %p217
      %p220 = scmp.ne.s32.totalorder %s205, %s219
      %p221 = scmp.eq.s32.totalorder %s27, 0
      %p222 = por %p220, %p221
      %s224 = sadd.s32 %s223, 1
      %p227 = scmp.eq.s32.totalorder %s21, 1
      %p228 = scmp.ne.s32.totalorder %s223, %s225
      %p229 = scmp.eq.s32.totalorder %s21, 0
      %p230 = por %p228, %p229
      %p231 = scmp.ne.s32.totalorder %s223, %s225
      %p232 = scmp.eq.s32.totalorder %s26, 1
      %p233 = por %p231, %p232
      %p234 = scmp.ne.s32.totalorder %s225, %s226
      %p235 = scmp.eq.s32.totalorder %s26, 0
      %p236 = por %p234, %p235
      %p237 = scmp.ne.s32.totalorder %s225, %s226
      %p238 = scmp.eq.s32.totalorder %s27, 1
      %p239 = por %p237, %p238
      %p241 = scmp.ne.s32.totalorder %s226, %s240
      %p242 = scmp.eq.s32.totalorder %s27, 0
      %p243 = por %p241, %p242
      %s245 = sadd.s32 %s244, 1
      %p248 = scmp.eq.s32.totalorder %s21, 1
      %p249 = scmp.ne.s32.totalorder %s244, %s246
      %p250 = scmp.eq.s32.totalorder %s21, 0
      %p251 = por %p249, %p250
      %p252 = scmp.ne.s32.totalorder %s244, %s246
      %p253 = scmp.eq.s32.totalorder %s26, 1
      %p254 = por %p252, %p253
      %p255 = scmp.ne.s32.totalorder %s246, %s247
      %p256 = scmp.eq.s32.totalorder %s26, 0
      %p257 = por %p255, %p256
      %p258 = scmp.ne.s32.totalorder %s246, %s247
      %p259 = scmp.eq.s32.totalorder %s27, 1
      %p260 = por %p258, %p259
      %p262 = scmp.ne.s32.totalorder %s247, %s261
      %p263 = scmp.eq.s32.totalorder %s27, 0
      %p264 = por %p262, %p263
      %s266 = sadd.s32 %s265, 1
      %p269 = scmp.eq.s32.totalorder %s21, 1
      %p270 = scmp.ne.s32.totalorder %s265, %s267
      %p271 = scmp.eq.s32.totalorder %s21, 0
      %p272 = por %p270, %p271
      %p273 = scmp.ne.s32.totalorder %s265, %s267
      %p274 = scmp.eq.s32.totalorder %s26, 1
      %p275 = por %p273, %p274
      %p276 = scmp.ne.s32.totalorder %s267, %s268
      %p277 = scmp.eq.s32.totalorder %s26, 0
      %p278 = por %p276, %p277
      %p279 = scmp.ne.s32.totalorder %s267, %s268
      %p280 = scmp.eq.s32.totalorder %s27, 1
      %p281 = por %p279, %p280
      %p283 = scmp.ne.s32.totalorder %s268, %s282
      %p284 = scmp.eq.s32.totalorder %s27, 0
      %p285 = por %p283, %p284
      %s286 = ssub.s32 %s21, %s28
      %p287 = scmp.eq.s32.totalorder %s286, 0
      %s289 = sadd.s32 %s288, 1
      %s290 = scalar_select %p287, %s288, %s289
      %p293 = pneg %p287
      %p294 = scmp.eq.s32.totalorder %s21, 1
      %p295 = por %p293, %p294
      %p296 = scmp.ne.s32.totalorder %s288, %s291
      %p297 = scmp.eq.s32.totalorder %s21, 0
      %p298 = por %p296, %p297
      %p299 = scmp.ne.s32.totalorder %s288, %s291
      %p300 = scmp.eq.s32.totalorder %s26, 1
      %p301 = por %p299, %p300
      %p302 = scmp.ne.s32.totalorder %s291, %s292
      %p303 = scmp.eq.s32.totalorder %s26, 0
      %p304 = por %p302, %p303
      %p305 = scmp.ne.s32.totalorder %s291, %s292
      %p306 = scmp.eq.s32.totalorder %s27, 1
      %p307 = por %p305, %p306
      %p309 = scmp.ne.s32.totalorder %s292, %s308
      %p310 = scmp.eq.s32.totalorder %s27, 0
      %p311 = por %p309, %p310
      %p312 = scmp.le.s32.totalorder 1, %s21
      %p313 = scmp.lt.s32.totalorder %s21, 3
      %p314 = pnand %p312, %p313
      %p315 = pneg %p314
      // Predicated region
      $region9: #{tiny_cnn_mixed_forward.1} parent=5 // pred_check
        _
      $region10: #{tiny_cnn_mixed_forward.1} parent=5 // pred_check_branch
        %317 = sbr.rel (%p314) target = $region12
      $region11: #{tiny_cnn_mixed_forward.1} parent=5 // pred_region
        %s318 = ssub.s32 %s21, 1
        // Predicated region
        $region13: #{tiny_cnn_mixed_forward.1} parent=11 // pred_check
          %p319 = pneg %p68
        $region14: #{tiny_cnn_mixed_forward.1} parent=11 // pred_check_branch
          %321 = sbr.rel (%p319) target = $region16
        $region15: #{tiny_cnn_mixed_forward.1} parent=11 // pred_region
          _
        $region16: #{tiny_cnn_mixed_forward.1} parent=11 // pred_fallthru
          _
        // Predicated region
        $region17: #{tiny_cnn_mixed_forward.1} parent=11 // pred_check
          %p322 = pneg %p89
        $region18: #{tiny_cnn_mixed_forward.1} parent=11 // pred_check_branch
          %324 = sbr.rel (%p322) target = $region20
        $region19: #{tiny_cnn_mixed_forward.1} parent=11 // pred_region
          _
        $region20: #{tiny_cnn_mixed_forward.1} parent=11 // pred_fallthru
          _
        // Predicated region
        $region21: #{tiny_cnn_mixed_forward.1} parent=11 // pred_check
          %p325 = pneg %p110
        $region22: #{tiny_cnn_mixed_forward.1} parent=11 // pred_check_branch
          %327 = sbr.rel (%p325) target = $region24
        $region23: #{tiny_cnn_mixed_forward.1} parent=11 // pred_region
          _
        $region24: #{tiny_cnn_mixed_forward.1} parent=11 // pred_fallthru
          _
        // Predicated region
        $region25: #{tiny_cnn_mixed_forward.1} parent=11 // pred_check
          %p328 = pneg %p131
        $region26: #{tiny_cnn_mixed_forward.1} parent=11 // pred_check_branch
          %330 = sbr.rel (%p328) target = $region28
        $region27: #{tiny_cnn_mixed_forward.1} parent=11 // pred_region
          _
        $region28: #{tiny_cnn_mixed_forward.1} parent=11 // pred_fallthru
          _
        // Predicated region
        $region29: #{tiny_cnn_mixed_forward.1} parent=11 // pred_check
          %p331 = pneg %p152
        $region30: #{tiny_cnn_mixed_forward.1} parent=11 // pred_check_branch
          %333 = sbr.rel (%p331) target = $region32
        $region31: #{tiny_cnn_mixed_forward.1} parent=11 // pred_region
          _
        $region32: #{tiny_cnn_mixed_forward.1} parent=11 // pred_fallthru
          _
        // Predicated region
        $region33: #{tiny_cnn_mixed_forward.1} parent=11 // pred_check
          %p334 = pneg %p173
        $region34: #{tiny_cnn_mixed_forward.1} parent=11 // pred_check_branch
          %336 = sbr.rel (%p334) target = $region36
        $region35: #{tiny_cnn_mixed_forward.1} parent=11 // pred_region
          _
        $region36: #{tiny_cnn_mixed_forward.1} parent=11 // pred_fallthru
          _
        // Predicated region
        $region37: #{tiny_cnn_mixed_forward.1} parent=11 // pred_check
          %p337 = pneg %p194
        $region38: #{tiny_cnn_mixed_forward.1} parent=11 // pred_check_branch
          %339 = sbr.rel (%p337) target = $region40
        $region39: #{tiny_cnn_mixed_forward.1} parent=11 // pred_region
          _
        $region40: #{tiny_cnn_mixed_forward.1} parent=11 // pred_fallthru
          _
        // Predicated region
        $region41: #{tiny_cnn_mixed_forward.1} parent=11 // pred_check
          %p340 = pneg %p215
        $region42: #{tiny_cnn_mixed_forward.1} parent=11 // pred_check_branch
          %342 = sbr.rel (%p340) target = $region44
        $region43: #{tiny_cnn_mixed_forward.1} parent=11 // pred_region
          _
        $region44: #{tiny_cnn_mixed_forward.1} parent=11 // pred_fallthru
          _
        // Predicated region
        $region45: #{tiny_cnn_mixed_forward.1} parent=11 // pred_check
          %p343 = pneg %p236
        $region46: #{tiny_cnn_mixed_forward.1} parent=11 // pred_check_branch
          %345 = sbr.rel (%p343) target = $region48
        $region47: #{tiny_cnn_mixed_forward.1} parent=11 // pred_region
          _
        $region48: #{tiny_cnn_mixed_forward.1} parent=11 // pred_fallthru
          _
        // Predicated region
        $region49: #{tiny_cnn_mixed_forward.1} parent=11 // pred_check
          %p346 = pneg %p257
        $region50: #{tiny_cnn_mixed_forward.1} parent=11 // pred_check_branch
          %348 = sbr.rel (%p346) target = $region52
        $region51: #{tiny_cnn_mixed_forward.1} parent=11 // pred_region
          _
        $region52: #{tiny_cnn_mixed_forward.1} parent=11 // pred_fallthru
          _
        // Predicated region
        $region53: #{tiny_cnn_mixed_forward.1} parent=11 // pred_check
          %p349 = pneg %p278
        $region54: #{tiny_cnn_mixed_forward.1} parent=11 // pred_check_branch
          %351 = sbr.rel (%p349) target = $region56
        $region55: #{tiny_cnn_mixed_forward.1} parent=11 // pred_region
          _
        $region56: #{tiny_cnn_mixed_forward.1} parent=11 // pred_fallthru
          _
      $region12: #{tiny_cnn_mixed_forward.1} parent=5 // pred_fallthru
        _
      %p352 = scmp.lt.s32.totalorder %s21, 2
      // Predicated region
      $region57: #{tiny_cnn_mixed_forward.1} parent=5 // pred_check
        %p353 = pneg %p352
      $region58: #{tiny_cnn_mixed_forward.1} parent=5 // pred_check_branch
        %355 = sbr.rel (%p353) target = $region60
      $region59: #{tiny_cnn_mixed_forward.1} parent=5 // pred_region
        // Predicated region
        $region61: #{tiny_cnn_mixed_forward.1} parent=59 // pred_check
          %p356 = pneg %p41
        $region62: #{tiny_cnn_mixed_forward.1} parent=59 // pred_check_branch
          %358 = sbr.rel (%p356) target = $region64
        $region63: #{tiny_cnn_mixed_forward.1} parent=59 // pred_region
          %s359 = smul.u32 41, %s21
          %p360 = scmp.lt.s32.totalorder %s359, 81
          %s361 = scalar_select %p360, %s359, 81
          %s362 = smul.addr %s361, 8
          %s363 = scalar_lea.vmem %s0, %s362
          %s364 = smul.u32 41, %s21
        $region64: #{tiny_cnn_mixed_forward.1} parent=59 // pred_fallthru
          _
      $region60: #{tiny_cnn_mixed_forward.1} parent=5 // pred_fallthru
        _
      %p365 = scmp.le.s32.totalorder 1, %s21
      %p366 = scmp.lt.s32.totalorder %s21, 3
      %p367 = pnand %p365, %p366
      %p368 = pneg %p367
      // Predicated region
      $region65: #{tiny_cnn_mixed_forward.1} parent=5 // pred_check
        _
      $region66: #{tiny_cnn_mixed_forward.1} parent=5 // pred_check_branch
        %370 = sbr.rel (%p367) target = $region68
      $region67: #{tiny_cnn_mixed_forward.1} parent=5 // pred_region
        %s371 = ssub.s32 %s21, 1
        %s372 = smul.u32 41, %s26
        %p373 = scmp.lt.s32.totalorder %s372, 81
        %s374 = scalar_select %p373, %s372, 81
        %s375 = smul.addr %s374, 8
        %s376 = scalar_lea.vmem %s0, %s375
        %p377 = pneg %p47
        %p378 = pneg %p44
        %p379 = pneg %p68
        %p380 = pneg %p65
        %p381 = pneg %p89
        %p382 = pneg %p86
        %p383 = pneg %p110
        %p384 = pneg %p107
        %p385 = pneg %p131
        %p386 = pneg %p128
        %p387 = pneg %p152
        %p388 = pneg %p149
        %p389 = pneg %p173
        %p390 = pneg %p170
        %p391 = pneg %p194
        %p392 = pneg %p191
        %p393 = pneg %p215
        %p394 = pneg %p212
        %p395 = pneg %p236
        %p396 = pneg %p233
        %p397 = pneg %p257
        %p398 = pneg %p254
        %p399 = pneg %p278
        %p400 = pneg %p275
        %p401 = pneg %p304
        %p402 = pneg %p301
        %s403 = sand.u32 %s291, 1
        %s404 = scalar_lea.sflag [#allocation6], %s403
        %s405 = sand.u32 %s291, 1
        %s406 = scalar_lea.vmem [#allocation5], %s405
        %s407 = smul.u32 41, %s26
        %p408 = scmp.lt.s32.totalorder %s407, 81
        %s409 = scalar_select %p408, %s407, 81
        %s410 = smul.addr %s409, 8
        %s411 = scalar_lea.vmem %s0, %s410
        %s412 = smul.u32 41, %s26
        %v414 = vld [vmem:[%s411] sm:$0xff]
        %v415 = vld [vmem:[%s411 + $0x8] sm:$0xff]
        %v416 = vld [vmem:[%s411 + $0x10] sm:$0xff]
        %v417 = vld [vmem:[%s411 + $0x18] sm:$0xff]
        %v418 = vld [vmem:[%s411 + $0x20] sm:$0xff]
        %v419 = vld [vmem:[%s411 + $0x28] sm:$0xff]
        %v420 = vld [vmem:[%s411 + $0x30] sm:$0xff]
        %v421 = vld [vmem:[%s411 + $0x38] sm:$0xff]
        %v422 = vld [vmem:[%s411 + $0x40] sm:$0xff]
        %v423 = vld [vmem:[%s411 + $0x48] sm:$0xff]
        %v424 = vld [vmem:[%s411 + $0x50] sm:$0xff]
        %v425 = vld [vmem:[%s411 + $0x58] sm:$0xff]
        %v426 = vld [vmem:[%s411 + $0x60] sm:$0xff]
        %v427 = vld [vmem:[%s411 + $0x68] sm:$0xff]
        %v428 = vld [vmem:[%s411 + $0x70] sm:$0xff]
        %v429 = vld [vmem:[%s411 + $0x78] sm:$0xff]
        %v430 = vld [vmem:[%s411 + $0x80] sm:$0xff]
        %v431 = vld [vmem:[%s411 + $0x88] sm:$0xff]
        %v432 = vld [vmem:[%s411 + $0x90] sm:$0xff]
        %v433 = vld [vmem:[%s411 + $0x98] sm:$0xff]
        %v434 = vld [vmem:[%s411 + $0xa0] sm:$0xff]
        %v435 = vld [vmem:[%s411 + $0xa8] sm:$0xff]
        %v436 = vld [vmem:[%s411 + $0xb0] sm:$0xff]
        %v437 = vld [vmem:[%s411 + $0xb8] sm:$0xff]
        %v438 = vld [vmem:[%s411 + $0xc0] sm:$0xff]
        %v439 = vld [vmem:[%s411 + $0xc8] sm:$0xff]
        %v440 = vld [vmem:[%s411 + $0xd0] sm:$0xff]
        %v441 = vld [vmem:[%s411 + $0xd8] sm:$0xff]
        %v442 = vld [vmem:[%s411 + $0xe0] sm:$0xff]
        %v443 = vld [vmem:[%s411 + $0xe8] sm:$0xff]
        %v444 = vld [vmem:[%s411 + $0xf0] sm:$0xff]
        %v445 = vld [vmem:[%s411 + $0xf8] sm:$0xff]
        %v446 = vld [vmem:[%s411 + $0x100] sm:$0xff]
        %v447 = vld [vmem:[%s411 + $0x108] sm:$0xff]
        %v448 = vld [vmem:[%s411 + $0x110] sm:$0xff]
        %v449 = vld [vmem:[%s411 + $0x118] sm:$0xff]
        %v450 = vld [vmem:[%s411 + $0x120] sm:$0xff]
        %v451 = vld [vmem:[%s411 + $0x128] sm:$0xff]
        %v452 = vld [vmem:[%s411 + $0x130] sm:$0xff]
        %v453 = vld [vmem:[%s411 + $0x138] sm:$0xff]
        %v454 = vld [vmem:[%s411 + $0x140] sm:$0xff]
        %v455 = vpack.c.bf16 %v415, %v414
        %v456 = vpack.c.bf16 %v417, %v416
        %v457 = vpack.c.bf16 %v419, %v418
        %v458 = vpack.c.bf16 %v421, %v420
        %v459 = vpack.c.bf16 %v423, %v422
        %v460 = vpack.c.bf16 %v425, %v424
        %v461 = vpack.c.bf16 %v427, %v426
        %v462 = vpack.c.bf16 %v429, %v428
        %v463 = vpack.c.bf16 %v431, %v430
        %v464 = vpack.c.bf16 %v433, %v432
        %v465 = vpack.c.bf16 %v435, %v434
        %v466 = vpack.c.bf16 %v437, %v436
        %v467 = vpack.c.bf16 %v439, %v438
        %v468 = vpack.c.bf16 %v441, %v440
        %v469 = vpack.c.bf16 %v443, %v442
        %v470 = vpack.c.bf16 %v445, %v444
        %v471 = vpack.c.bf16 %v447, %v446
        %v472 = vpack.c.bf16 %v449, %v448
        %v473 = vpack.c.bf16 %v451, %v450
        %v474 = vpack.c.bf16 %v453, %v452
        %v475 = vpack.c.bf16 %v454, %v454
        %vm476 = vsmask.f32 7424
        %v478 = vshrl.u32 %v455, 16
        %v480 = vshll.u32 %v455, 16
        %v482 = vrot.slane %v480, 1
        %v483 = vor.u32 %v478, %v482
        %v485 = vshll.u32 %v456, 16
        %v487 = vrot.slane %v485, 1
        %v488 = vsel %vm476, %v483, %v487
        %v489 = vshrl.u32 %v456, 16
        %v491 = vor.u32 %v489, %v487
        %v493 = vshll.u32 %v457, 16
        %v495 = vrot.slane %v493, 1
        %v496 = vsel %vm476, %v491, %v495
        %v497 = vshrl.u32 %v457, 16
        %v499 = vor.u32 %v497, %v495
        %v501 = vshll.u32 %v458, 16
        %v503 = vrot.slane %v501, 1
        %v504 = vsel %vm476, %v499, %v503
        %v505 = vshrl.u32 %v458, 16
        %v507 = vor.u32 %v505, %v503
        %v509 = vshll.u32 %v459, 16
        %v511 = vrot.slane %v509, 1
        %v512 = vsel %vm476, %v507, %v511
        %v513 = vshrl.u32 %v459, 16
        %v515 = vor.u32 %v513, %v511
        %v517 = vshll.u32 %v460, 16
        %v519 = vrot.slane %v517, 1
        %v520 = vsel %vm476, %v515, %v519
        %v521 = vshrl.u32 %v460, 16
        %v523 = vor.u32 %v521, %v519
        %v525 = vshll.u32 %v461, 16
        %v527 = vrot.slane %v525, 1
        %v528 = vsel %vm476, %v523, %v527
        %v529 = vshrl.u32 %v461, 16
        %v531 = vor.u32 %v529, %v527
        %v533 = vshll.u32 %v462, 16
        %v535 = vrot.slane %v533, 1
        %v536 = vsel %vm476, %v531, %v535
        %v537 = vshrl.u32 %v462, 16
        %v539 = vor.u32 %v537, %v535
        %v541 = vshll.u32 %v463, 16
        %v543 = vrot.slane %v541, 1
        %v544 = vsel %vm476, %v539, %v543
        %v545 = vshrl.u32 %v463, 16
        %v547 = vor.u32 %v545, %v543
        %v549 = vshll.u32 %v464, 16
        %v551 = vrot.slane %v549, 1
        %v552 = vsel %vm476, %v547, %v551
        %v553 = vshrl.u32 %v464, 16
        %v555 = vor.u32 %v553, %v551
        %v557 = vshll.u32 %v465, 16
        %v559 = vrot.slane %v557, 1
        %v560 = vsel %vm476, %v555, %v559
        %v561 = vshrl.u32 %v465, 16
        %v563 = vor.u32 %v561, %v559
        %v565 = vshll.u32 %v466, 16
        %v567 = vrot.slane %v565, 1
        %v568 = vsel %vm476, %v563, %v567
        %v569 = vshrl.u32 %v466, 16
        %v571 = vor.u32 %v569, %v567
        %v573 = vshll.u32 %v467, 16
        %v575 = vrot.slane %v573, 1
        %v576 = vsel %vm476, %v571, %v575
        %v577 = vshrl.u32 %v467, 16
        %v579 = vor.u32 %v577, %v575
        %v581 = vshll.u32 %v468, 16
        %v583 = vrot.slane %v581, 1
        %v584 = vsel %vm476, %v579, %v583
        %v585 = vshrl.u32 %v468, 16
        %v587 = vor.u32 %v585, %v583
        %v589 = vshll.u32 %v469, 16
        %v591 = vrot.slane %v589, 1
        %v592 = vsel %vm476, %v587, %v591
        %v593 = vshrl.u32 %v469, 16
        %v595 = vor.u32 %v593, %v591
        %v597 = vshll.u32 %v470, 16
        %v599 = vrot.slane %v597, 1
        %v600 = vsel %vm476, %v595, %v599
        %v601 = vshrl.u32 %v470, 16
        %v603 = vor.u32 %v601, %v599
        %v605 = vshll.u32 %v471, 16
        %v607 = vrot.slane %v605, 1
        %v608 = vsel %vm476, %v603, %v607
        %v609 = vshrl.u32 %v471, 16
        %v611 = vor.u32 %v609, %v607
        %v613 = vshll.u32 %v472, 16
        %v615 = vrot.slane %v613, 1
        %v616 = vsel %vm476, %v611, %v615
        %v617 = vshrl.u32 %v472, 16
        %v619 = vor.u32 %v617, %v615
        %620 = vrot.lane.b32.xlu0 %v488, 4
        %v621 = vpop.permute.xlu0 %620
        %622 = vrot.lane.b32.xlu0 %v496, 4
        %v623 = vpop.permute.xlu0 %622
        %624 = vrot.lane.b32.xlu0 %v504, 4
        %v625 = vpop.permute.xlu0 %624
        %626 = vrot.lane.b32.xlu0 %v512, 4
        %v627 = vpop.permute.xlu0 %626
        %628 = vrot.lane.b32.xlu0 %v520, 4
        %v629 = vpop.permute.xlu0 %628
        %630 = vrot.lane.b32.xlu0 %v528, 4
        %v631 = vpop.permute.xlu0 %630
        %632 = vrot.lane.b32.xlu0 %v536, 4
        %v633 = vpop.permute.xlu0 %632
        %634 = vrot.lane.b32.xlu0 %v544, 4
        %v635 = vpop.permute.xlu0 %634
        %636 = vrot.lane.b32.xlu0 %v552, 4
        %v637 = vpop.permute.xlu0 %636
        %638 = vrot.lane.b32.xlu0 %v560, 4
        %v639 = vpop.permute.xlu0 %638
        %640 = vrot.lane.b32.xlu0 %v568, 4
        %v641 = vpop.permute.xlu0 %640
        %642 = vrot.lane.b32.xlu0 %v576, 4
        %v643 = vpop.permute.xlu0 %642
        %644 = vrot.lane.b32.xlu0 %v584, 4
        %v645 = vpop.permute.xlu0 %644
        %646 = vrot.lane.b32.xlu0 %v592, 4
        %v647 = vpop.permute.xlu0 %646
        %648 = vrot.lane.b32.xlu0 %v600, 4
        %v649 = vpop.permute.xlu0 %648
        %650 = vrot.lane.b32.xlu0 %v608, 4
        %v651 = vpop.permute.xlu0 %650
        %652 = vrot.lane.b32.xlu0 %v616, 4
        %v653 = vpop.permute.xlu0 %652
        %654 = vrot.lane.b32.xlu0 %v619, 4
        %v655 = vpop.permute.xlu0 %654
        %vm674 = vcmask 1046528
        %v675 = vrot.slane %v455, 1
        %v676 = vrot.slane %v456, 1
        %v677 = vsel %vm674, %v675, %v676
        %v678 = vrot.slane %v457, 1
        %v679 = vsel %vm674, %v676, %v678
        %v680 = vrot.slane %v458, 1
        %v681 = vsel %vm674, %v678, %v680
        %v682 = vrot.slane %v459, 1
        %v683 = vsel %vm674, %v680, %v682
        %v684 = vrot.slane %v460, 1
        %v685 = vsel %vm674, %v682, %v684
        %v686 = vrot.slane %v461, 1
        %v687 = vsel %vm674, %v684, %v686
        %v688 = vrot.slane %v462, 1
        %v689 = vsel %vm674, %v686, %v688
        %v690 = vrot.slane %v463, 1
        %v691 = vsel %vm674, %v688, %v690
        %v692 = vrot.slane %v464, 1
        %v693 = vsel %vm674, %v690, %v692
        %v694 = vrot.slane %v465, 1
        %v695 = vsel %vm674, %v692, %v694
        %v696 = vrot.slane %v466, 1
        %v697 = vsel %vm674, %v694, %v696
        %v698 = vrot.slane %v467, 1
        %v699 = vsel %vm674, %v696, %v698
        %v700 = vrot.slane %v468, 1
        %v701 = vsel %vm674, %v698, %v700
        %v702 = vrot.slane %v469, 1
        %v703 = vsel %vm674, %v700, %v702
        %v704 = vrot.slane %v470, 1
        %v705 = vsel %vm674, %v702, %v704
        %v706 = vrot.slane %v471, 1
        %v707 = vsel %vm674, %v704, %v706
        %v708 = vrot.slane %v472, 1
        %v709 = vsel %vm674, %v706, %v708
        %710 = vrot.lane.b32.xlu0 %v677, 8
        %v711 = vpop.permute.xlu0 %710
        %712 = vrot.lane.b32.xlu0 %v679, 8
        %v713 = vpop.permute.xlu0 %712
        %714 = vrot.lane.b32.xlu0 %v681, 8
        %v715 = vpop.permute.xlu0 %714
        %716 = vrot.lane.b32.xlu0 %v683, 8
        %v717 = vpop.permute.xlu0 %716
        %718 = vrot.lane.b32.xlu0 %v685, 8
        %v719 = vpop.permute.xlu0 %718
        %720 = vrot.lane.b32.xlu0 %v687, 8
        %v721 = vpop.permute.xlu0 %720
        %722 = vrot.lane.b32.xlu0 %v689, 8
        %v723 = vpop.permute.xlu0 %722
        %724 = vrot.lane.b32.xlu0 %v691, 8
        %v725 = vpop.permute.xlu0 %724
        %726 = vrot.lane.b32.xlu0 %v693, 8
        %v727 = vpop.permute.xlu0 %726
        %728 = vrot.lane.b32.xlu0 %v695, 8
        %v729 = vpop.permute.xlu0 %728
        %730 = vrot.lane.b32.xlu0 %v697, 8
        %v731 = vpop.permute.xlu0 %730
        %732 = vrot.lane.b32.xlu0 %v699, 8
        %v733 = vpop.permute.xlu0 %732
        %734 = vrot.lane.b32.xlu0 %v701, 8
        %v735 = vpop.permute.xlu0 %734
        %736 = vrot.lane.b32.xlu0 %v703, 8
        %v737 = vpop.permute.xlu0 %736
        %738 = vrot.lane.b32.xlu0 %v705, 8
        %v739 = vpop.permute.xlu0 %738
        %740 = vrot.lane.b32.xlu0 %v707, 8
        %v741 = vpop.permute.xlu0 %740
        %742 = vrot.lane.b32.xlu0 %v709, 8
        %v743 = vpop.permute.xlu0 %742
        %744 = vrot.lane.b32.xlu0 %v708, 8
        %v745 = vpop.permute.xlu0 %744
        %v747 = vrot.slane %v473, 1
        %v748 = vsel %vm674, %v708, %v747
        %749 = vrot.lane.b32.xlu0 %v679, 12
        %v750 = vpop.permute.xlu0 %749
        %751 = vrot.lane.b32.xlu0 %v681, 12
        %v752 = vpop.permute.xlu0 %751
        %753 = vrot.lane.b32.xlu0 %v683, 12
        %v754 = vpop.permute.xlu0 %753
        %755 = vrot.lane.b32.xlu0 %v685, 12
        %v756 = vpop.permute.xlu0 %755
        %757 = vrot.lane.b32.xlu0 %v687, 12
        %v758 = vpop.permute.xlu0 %757
        %759 = vrot.lane.b32.xlu0 %v689, 12
        %v760 = vpop.permute.xlu0 %759
        %761 = vrot.lane.b32.xlu0 %v691, 12
        %v762 = vpop.permute.xlu0 %761
        %763 = vrot.lane.b32.xlu0 %v693, 12
        %v764 = vpop.permute.xlu0 %763
        %765 = vrot.lane.b32.xlu0 %v695, 12
        %v766 = vpop.permute.xlu0 %765
        %767 = vrot.lane.b32.xlu0 %v697, 12
        %v768 = vpop.permute.xlu0 %767
        %769 = vrot.lane.b32.xlu0 %v699, 12
        %v770 = vpop.permute.xlu0 %769
        %771 = vrot.lane.b32.xlu0 %v701, 12
        %v772 = vpop.permute.xlu0 %771
        %773 = vrot.lane.b32.xlu0 %v703, 12
        %v774 = vpop.permute.xlu0 %773
        %775 = vrot.lane.b32.xlu0 %v705, 12
        %v776 = vpop.permute.xlu0 %775
        %777 = vrot.lane.b32.xlu0 %v707, 12
        %v778 = vpop.permute.xlu0 %777
        %779 = vrot.lane.b32.xlu0 %v709, 12
        %v780 = vpop.permute.xlu0 %779
        %781 = vrot.lane.b32.xlu0 %v748, 12
        %v782 = vpop.permute.xlu0 %781
        %783 = vrot.lane.b32.xlu0 %v747, 12
        %v784 = vpop.permute.xlu0 %783
        %vm785 = vsmask.f32 6400
        %v786 = vrot.slane %v489, 1
        %v787 = vrot.slane %v485, 2
        %v788 = vor.u32 %v786, %v787
        %v789 = vrot.slane %v497, 1
        %v790 = vrot.slane %v493, 2
        %v791 = vor.u32 %v789, %v790
        %v792 = vsel %vm785, %v788, %v791
        %v793 = vrot.slane %v505, 1
        %v794 = vrot.slane %v501, 2
        %v795 = vor.u32 %v793, %v794
        %v796 = vsel %vm785, %v791, %v795
        %v797 = vrot.slane %v513, 1
        %v798 = vrot.slane %v509, 2
        %v799 = vor.u32 %v797, %v798
        %v800 = vsel %vm785, %v795, %v799
        %v801 = vrot.slane %v521, 1
        %v802 = vrot.slane %v517, 2
        %v803 = vor.u32 %v801, %v802
        %v804 = vsel %vm785, %v799, %v803
        %v805 = vrot.slane %v529, 1
        %v806 = vrot.slane %v525, 2
        %v807 = vor.u32 %v805, %v806
        %v808 = vsel %vm785, %v803, %v807
        %v809 = vrot.slane %v537, 1
        %v810 = vrot.slane %v533, 2
        %v811 = vor.u32 %v809, %v810
        %v812 = vsel %vm785, %v807, %v811
        %v813 = vrot.slane %v545, 1
        %v814 = vrot.slane %v541, 2
        %v815 = vor.u32 %v813, %v814
        %v816 = vsel %vm785, %v811, %v815
        %v817 = vrot.slane %v553, 1
        %v818 = vrot.slane %v549, 2
        %v819 = vor.u32 %v817, %v818
        %v820 = vsel %vm785, %v815, %v819
        %v821 = vrot.slane %v561, 1
        %v822 = vrot.slane %v557, 2
        %v823 = vor.u32 %v821, %v822
        %v824 = vsel %vm785, %v819, %v823
        %v825 = vrot.slane %v569, 1
        %v826 = vrot.slane %v565, 2
        %v827 = vor.u32 %v825, %v826
        %v828 = vsel %vm785, %v823, %v827
        %v829 = vrot.slane %v577, 1
        %v830 = vrot.slane %v573, 2
        %v831 = vor.u32 %v829, %v830
        %v832 = vsel %vm785, %v827, %v831
        %v833 = vrot.slane %v585, 1
        %v834 = vrot.slane %v581, 2
        %v835 = vor.u32 %v833, %v834
        %v836 = vsel %vm785, %v831, %v835
        %v837 = vrot.slane %v593, 1
        %v838 = vrot.slane %v589, 2
        %v839 = vor.u32 %v837, %v838
        %v840 = vsel %vm785, %v835, %v839
        %v841 = vrot.slane %v601, 1
        %v842 = vrot.slane %v597, 2
        %v843 = vor.u32 %v841, %v842
        %v844 = vsel %vm785, %v839, %v843
        %v845 = vrot.slane %v609, 1
        %v846 = vrot.slane %v605, 2
        %v847 = vor.u32 %v845, %v846
        %v848 = vsel %vm785, %v843, %v847
        %v849 = vrot.slane %v617, 1
        %v850 = vrot.slane %v613, 2
        %v851 = vor.u32 %v849, %v850
        %v852 = vsel %vm785, %v847, %v851
        %v854 = vshrl.u32 %v473, 16
        %v856 = vrot.slane %v854, 1
        %v857 = vshll.u32 %v473, 16
        %v859 = vrot.slane %v857, 2
        %v860 = vor.u32 %v856, %v859
        %v861 = vsel %vm785, %v851, %v860
        %v863 = vshll.u32 %v474, 16
        %v865 = vrot.slane %v863, 2
        %v866 = vsel %vm785, %v860, %v865
        %867 = vrot.lane.b32.xlu0 %v792, 16
        %v868 = vpop.permute.xlu0 %867
        %869 = vrot.lane.b32.xlu0 %v796, 16
        %v870 = vpop.permute.xlu0 %869
        %871 = vrot.lane.b32.xlu0 %v800, 16
        %v872 = vpop.permute.xlu0 %871
        %873 = vrot.lane.b32.xlu0 %v804, 16
        %v874 = vpop.permute.xlu0 %873
        %875 = vrot.lane.b32.xlu0 %v808, 16
        %v876 = vpop.permute.xlu0 %875
        %877 = vrot.lane.b32.xlu0 %v812, 16
        %v878 = vpop.permute.xlu0 %877
        %879 = vrot.lane.b32.xlu0 %v816, 16
        %v880 = vpop.permute.xlu0 %879
        %881 = vrot.lane.b32.xlu0 %v820, 16
        %v882 = vpop.permute.xlu0 %881
        %883 = vrot.lane.b32.xlu0 %v824, 16
        %v884 = vpop.permute.xlu0 %883
        %885 = vrot.lane.b32.xlu0 %v828, 16
        %v886 = vpop.permute.xlu0 %885
        %887 = vrot.lane.b32.xlu0 %v832, 16
        %v888 = vpop.permute.xlu0 %887
        %889 = vrot.lane.b32.xlu0 %v836, 16
        %v890 = vpop.permute.xlu0 %889
        %891 = vrot.lane.b32.xlu0 %v840, 16
        %v892 = vpop.permute.xlu0 %891
        %893 = vrot.lane.b32.xlu0 %v844, 16
        %v894 = vpop.permute.xlu0 %893
        %895 = vrot.lane.b32.xlu0 %v848, 16
        %v896 = vpop.permute.xlu0 %895
        %897 = vrot.lane.b32.xlu0 %v852, 16
        %v898 = vpop.permute.xlu0 %897
        %899 = vrot.lane.b32.xlu0 %v861, 16
        %v900 = vpop.permute.xlu0 %899
        %901 = vrot.lane.b32.xlu0 %v866, 16
        %v902 = vpop.permute.xlu0 %901
        %vm904 = vcmask 1045504
        %v905 = vrot.slane %v456, 2
        %v906 = vrot.slane %v457, 2
        %v907 = vsel %vm904, %v905, %v906
        %v908 = vrot.slane %v458, 2
        %v909 = vsel %vm904, %v906, %v908
        %v910 = vrot.slane %v459, 2
        %v911 = vsel %vm904, %v908, %v910
        %v912 = vrot.slane %v460, 2
        %v913 = vsel %vm904, %v910, %v912
        %v914 = vrot.slane %v461, 2
        %v915 = vsel %vm904, %v912, %v914
        %v916 = vrot.slane %v462, 2
        %v917 = vsel %vm904, %v914, %v916
        %v918 = vrot.slane %v463, 2
        %v919 = vsel %vm904, %v916, %v918
        %v920 = vrot.slane %v464, 2
        %v921 = vsel %vm904, %v918, %v920
        %v922 = vrot.slane %v465, 2
        %v923 = vsel %vm904, %v920, %v922
        %v924 = vrot.slane %v466, 2
        %v925 = vsel %vm904, %v922, %v924
        %v926 = vrot.slane %v467, 2
        %v927 = vsel %vm904, %v924, %v926
        %v928 = vrot.slane %v468, 2
        %v929 = vsel %vm904, %v926, %v928
        %v930 = vrot.slane %v469, 2
        %v931 = vsel %vm904, %v928, %v930
        %v932 = vrot.slane %v470, 2
        %v933 = vsel %vm904, %v930, %v932
        %v934 = vrot.slane %v471, 2
        %v935 = vsel %vm904, %v932, %v934
        %v936 = vrot.slane %v472, 2
        %v937 = vsel %vm904, %v934, %v936
        %v938 = vrot.slane %v473, 2
        %v939 = vsel %vm904, %v936, %v938
        %v940 = vrot.slane %v474, 2
        %v941 = vsel %vm904, %v938, %v940
        %942 = vrot.lane.b32.xlu0 %v907, 20
        %v943 = vpop.permute.xlu0 %942
        %944 = vrot.lane.b32.xlu0 %v909, 20
        %v945 = vpop.permute.xlu0 %944
        %946 = vrot.lane.b32.xlu0 %v911, 20
        %v947 = vpop.permute.xlu0 %946
        %948 = vrot.lane.b32.xlu0 %v913, 20
        %v949 = vpop.permute.xlu0 %948
        %950 = vrot.lane.b32.xlu0 %v915, 20
        %v951 = vpop.permute.xlu0 %950
        %952 = vrot.lane.b32.xlu0 %v917, 20
        %v953 = vpop.permute.xlu0 %952
        %954 = vrot.lane.b32.xlu0 %v919, 20
        %v955 = vpop.permute.xlu0 %954
        %956 = vrot.lane.b32.xlu0 %v921, 20
        %v957 = vpop.permute.xlu0 %956
        %958 = vrot.lane.b32.xlu0 %v923, 20
        %v959 = vpop.permute.xlu0 %958
        %960 = vrot.lane.b32.xlu0 %v925, 20
        %v961 = vpop.permute.xlu0 %960
        %962 = vrot.lane.b32.xlu0 %v927, 20
        %v963 = vpop.permute.xlu0 %962
        %964 = vrot.lane.b32.xlu0 %v929, 20
        %v965 = vpop.permute.xlu0 %964
        %966 = vrot.lane.b32.xlu0 %v931, 20
        %v967 = vpop.permute.xlu0 %966
        %968 = vrot.lane.b32.xlu0 %v933, 20
        %v969 = vpop.permute.xlu0 %968
        %970 = vrot.lane.b32.xlu0 %v935, 20
        %v971 = vpop.permute.xlu0 %970
        %972 = vrot.lane.b32.xlu0 %v937, 20
        %v973 = vpop.permute.xlu0 %972
        %974 = vrot.lane.b32.xlu0 %v939, 20
        %v975 = vpop.permute.xlu0 %974
        %976 = vrot.lane.b32.xlu0 %v941, 20
        %v977 = vpop.permute.xlu0 %976
        %v979 = vrot.slane %v475, 2
        %v980 = vsel %vm904, %v940, %v979
        %981 = vrot.lane.b32.xlu0 %v909, 24
        %v982 = vpop.permute.xlu0 %981
        %983 = vrot.lane.b32.xlu0 %v911, 24
        %v984 = vpop.permute.xlu0 %983
        %985 = vrot.lane.b32.xlu0 %v913, 24
        %v986 = vpop.permute.xlu0 %985
        %987 = vrot.lane.b32.xlu0 %v915, 24
        %v988 = vpop.permute.xlu0 %987
        %989 = vrot.lane.b32.xlu0 %v917, 24
        %v990 = vpop.permute.xlu0 %989
        %991 = vrot.lane.b32.xlu0 %v919, 24
        %v992 = vpop.permute.xlu0 %991
        %993 = vrot.lane.b32.xlu0 %v921, 24
        %v994 = vpop.permute.xlu0 %993
        %995 = vrot.lane.b32.xlu0 %v923, 24
        %v996 = vpop.permute.xlu0 %995
        %997 = vrot.lane.b32.xlu0 %v925, 24
        %v998 = vpop.permute.xlu0 %997
        %999 = vrot.lane.b32.xlu0 %v927, 24
        %v1000 = vpop.permute.xlu0 %999
        %1001 = vrot.lane.b32.xlu0 %v929, 24
        %v1002 = vpop.permute.xlu0 %1001
        %1003 = vrot.lane.b32.xlu0 %v931, 24
        %v1004 = vpop.permute.xlu0 %1003
        %1005 = vrot.lane.b32.xlu0 %v933, 24
        %v1006 = vpop.permute.xlu0 %1005
        %1007 = vrot.lane.b32.xlu0 %v935, 24
        %v1008 = vpop.permute.xlu0 %1007
        %1009 = vrot.lane.b32.xlu0 %v937, 24
        %v1010 = vpop.permute.xlu0 %1009
        %1011 = vrot.lane.b32.xlu0 %v939, 24
        %v1012 = vpop.permute.xlu0 %1011
        %1013 = vrot.lane.b32.xlu0 %v941, 24
        %v1014 = vpop.permute.xlu0 %1013
        %1015 = vrot.lane.b32.xlu0 %v980, 24
        %v1016 = vpop.permute.xlu0 %1015
        %vm1017 = vsmask.f32 5376
        %v1018 = vrot.slane %v497, 2
        %v1019 = vrot.slane %v493, 3
        %v1020 = vor.u32 %v1018, %v1019
        %v1021 = vrot.slane %v505, 2
        %v1022 = vrot.slane %v501, 3
        %v1023 = vor.u32 %v1021, %v1022
        %v1024 = vsel %vm1017, %v1020, %v1023
        %v1025 = vrot.slane %v513, 2
        %v1026 = vrot.slane %v509, 3
        %v1027 = vor.u32 %v1025, %v1026
        %v1028 = vsel %vm1017, %v1023, %v1027
        %v1029 = vrot.slane %v521, 2
        %v1030 = vrot.slane %v517, 3
        %v1031 = vor.u32 %v1029, %v1030
        %v1032 = vsel %vm1017, %v1027, %v1031
        %v1033 = vrot.slane %v529, 2
        %v1034 = vrot.slane %v525, 3
        %v1035 = vor.u32 %v1033, %v1034
        %v1036 = vsel %vm1017, %v1031, %v1035
        %v1037 = vrot.slane %v537, 2
        %v1038 = vrot.slane %v533, 3
        %v1039 = vor.u32 %v1037, %v1038
        %v1040 = vsel %vm1017, %v1035, %v1039
        %v1041 = vrot.slane %v545, 2
        %v1042 = vrot.slane %v541, 3
        %v1043 = vor.u32 %v1041, %v1042
        %v1044 = vsel %vm1017, %v1039, %v1043
        %v1045 = vrot.slane %v553, 2
        %v1046 = vrot.slane %v549, 3
        %v1047 = vor.u32 %v1045, %v1046
        %v1048 = vsel %vm1017, %v1043, %v1047
        %v1049 = vrot.slane %v561, 2
        %v1050 = vrot.slane %v557, 3
        %v1051 = vor.u32 %v1049, %v1050
        %v1052 = vsel %vm1017, %v1047, %v1051
        %v1053 = vrot.slane %v569, 2
        %v1054 = vrot.slane %v565, 3
        %v1055 = vor.u32 %v1053, %v1054
        %v1056 = vsel %vm1017, %v1051, %v1055
        %v1057 = vrot.slane %v577, 2
        %v1058 = vrot.slane %v573, 3
        %v1059 = vor.u32 %v1057, %v1058
        %v1060 = vsel %vm1017, %v1055, %v1059
        %v1061 = vrot.slane %v585, 2
        %v1062 = vrot.slane %v581, 3
        %v1063 = vor.u32 %v1061, %v1062
        %v1064 = vsel %vm1017, %v1059, %v1063
        %v1065 = vrot.slane %v593, 2
        %v1066 = vrot.slane %v589, 3
        %v1067 = vor.u32 %v1065, %v1066
        %v1068 = vsel %vm1017, %v1063, %v1067
        %v1069 = vrot.slane %v601, 2
        %v1070 = vrot.slane %v597, 3
        %v1071 = vor.u32 %v1069, %v1070
        %v1072 = vsel %vm1017, %v1067, %v1071
        %v1073 = vrot.slane %v609, 2
        %v1074 = vrot.slane %v605, 3
        %v1075 = vor.u32 %v1073, %v1074
        %v1076 = vsel %vm1017, %v1071, %v1075
        %v1077 = vrot.slane %v617, 2
        %v1078 = vrot.slane %v613, 3
        %v1079 = vor.u32 %v1077, %v1078
        %v1080 = vsel %vm1017, %v1075, %v1079
        %v1081 = vrot.slane %v854, 2
        %v1082 = vrot.slane %v857, 3
        %v1083 = vor.u32 %v1081, %v1082
        %v1084 = vsel %vm1017, %v1079, %v1083
        %v1085 = vshrl.u32 %v474, 16
        %v1087 = vrot.slane %v1085, 2
        %v1088 = vrot.slane %v863, 3
        %v1089 = vor.u32 %v1087, %v1088
        %v1090 = vsel %vm1017, %v1083, %v1089
        %v1092 = vshrl.u32 %v475, 16
        %v1094 = vrot.slane %v1092, 2
        %v1095 = vshll.u32 %v475, 16
        %v1097 = vrot.slane %v1095, 3
        %v1098 = vor.u32 %v1094, %v1097
        %v1099 = vsel %vm1017, %v1089, %v1098
        %1100 = vrot.lane.b32.xlu0 %v1024, 28
        %v1101 = vpop.permute.xlu0 %1100
        %1102 = vrot.lane.b32.xlu0 %v1028, 28
        %v1103 = vpop.permute.xlu0 %1102
        %1104 = vrot.lane.b32.xlu0 %v1032, 28
        %v1105 = vpop.permute.xlu0 %1104
        %1106 = vrot.lane.b32.xlu0 %v1036, 28
        %v1107 = vpop.permute.xlu0 %1106
        %1108 = vrot.lane.b32.xlu0 %v1040, 28
        %v1109 = vpop.permute.xlu0 %1108
        %1110 = vrot.lane.b32.xlu0 %v1044, 28
        %v1111 = vpop.permute.xlu0 %1110
        %1112 = vrot.lane.b32.xlu0 %v1048, 28
        %v1113 = vpop.permute.xlu0 %1112
        %1114 = vrot.lane.b32.xlu0 %v1052, 28
        %v1115 = vpop.permute.xlu0 %1114
        %1116 = vrot.lane.b32.xlu0 %v1056, 28
        %v1117 = vpop.permute.xlu0 %1116
        %1118 = vrot.lane.b32.xlu0 %v1060, 28
        %v1119 = vpop.permute.xlu0 %1118
        %1120 = vrot.lane.b32.xlu0 %v1064, 28
        %v1121 = vpop.permute.xlu0 %1120
        %1122 = vrot.lane.b32.xlu0 %v1068, 28
        %v1123 = vpop.permute.xlu0 %1122
        %1124 = vrot.lane.b32.xlu0 %v1072, 28
        %v1125 = vpop.permute.xlu0 %1124
        %1126 = vrot.lane.b32.xlu0 %v1076, 28
        %v1127 = vpop.permute.xlu0 %1126
        %1128 = vrot.lane.b32.xlu0 %v1080, 28
        %v1129 = vpop.permute.xlu0 %1128
        %1130 = vrot.lane.b32.xlu0 %v1084, 28
        %v1131 = vpop.permute.xlu0 %1130
        %1132 = vrot.lane.b32.xlu0 %v1090, 28
        %v1133 = vpop.permute.xlu0 %1132
        %1134 = vrot.lane.b32.xlu0 %v1099, 28
        %v1135 = vpop.permute.xlu0 %1134
        %vm1136 = vcmask 1044480
        %v1137 = vrot.slane %v457, 3
        %v1138 = vrot.slane %v458, 3
        %v1139 = vsel %vm1136, %v1137, %v1138
        %v1140 = vrot.slane %v459, 3
        %v1141 = vsel %vm1136, %v1138, %v1140
        %v1142 = vrot.slane %v460, 3
        %v1143 = vsel %vm1136, %v1140, %v1142
        %v1144 = vrot.slane %v461, 3
        %v1145 = vsel %vm1136, %v1142, %v1144
        %v1146 = vrot.slane %v462, 3
        %v1147 = vsel %vm1136, %v1144, %v1146
        %v1148 = vrot.slane %v463, 3
        %v1149 = vsel %vm1136, %v1146, %v1148
        %v1150 = vrot.slane %v464, 3
        %v1151 = vsel %vm1136, %v1148, %v1150
        %v1152 = vrot.slane %v465, 3
        %v1153 = vsel %vm1136, %v1150, %v1152
        %v1154 = vrot.slane %v466, 3
        %v1155 = vsel %vm1136, %v1152, %v1154
        %v1156 = vrot.slane %v467, 3
        %v1157 = vsel %vm1136, %v1154, %v1156
        %v1158 = vrot.slane %v468, 3
        %v1159 = vsel %vm1136, %v1156, %v1158
        %v1160 = vrot.slane %v469, 3
        %v1161 = vsel %vm1136, %v1158, %v1160
        %v1162 = vrot.slane %v470, 3
        %v1163 = vsel %vm1136, %v1160, %v1162
        %v1164 = vrot.slane %v471, 3
        %v1165 = vsel %vm1136, %v1162, %v1164
        %v1166 = vrot.slane %v472, 3
        %v1167 = vsel %vm1136, %v1164, %v1166
        %v1168 = vrot.slane %v473, 3
        %v1169 = vsel %vm1136, %v1166, %v1168
        %v1170 = vrot.slane %v474, 3
        %v1171 = vsel %vm1136, %v1168, %v1170
        %v1172 = vrot.slane %v475, 3
        %v1173 = vsel %vm1136, %v1170, %v1172
        %1174 = vrot.lane.b32.xlu0 %v1139, 32
        %v1175 = vpop.permute.xlu0 %1174
        %1176 = vrot.lane.b32.xlu0 %v1141, 32
        %v1177 = vpop.permute.xlu0 %1176
        %1178 = vrot.lane.b32.xlu0 %v1143, 32
        %v1179 = vpop.permute.xlu0 %1178
        %1180 = vrot.lane.b32.xlu0 %v1145, 32
        %v1181 = vpop.permute.xlu0 %1180
        %1182 = vrot.lane.b32.xlu0 %v1147, 32
        %v1183 = vpop.permute.xlu0 %1182
        %1184 = vrot.lane.b32.xlu0 %v1149, 32
        %v1185 = vpop.permute.xlu0 %1184
        %1186 = vrot.lane.b32.xlu0 %v1151, 32
        %v1187 = vpop.permute.xlu0 %1186
        %1188 = vrot.lane.b32.xlu0 %v1153, 32
        %v1189 = vpop.permute.xlu0 %1188
        %1190 = vrot.lane.b32.xlu0 %v1155, 32
        %v1191 = vpop.permute.xlu0 %1190
        %1192 = vrot.lane.b32.xlu0 %v1157, 32
        %v1193 = vpop.permute.xlu0 %1192
        %1194 = vrot.lane.b32.xlu0 %v1159, 32
        %v1195 = vpop.permute.xlu0 %1194
        %1196 = vrot.lane.b32.xlu0 %v1161, 32
        %v1197 = vpop.permute.xlu0 %1196
        %1198 = vrot.lane.b32.xlu0 %v1163, 32
        %v1199 = vpop.permute.xlu0 %1198
        %1200 = vrot.lane.b32.xlu0 %v1165, 32
        %v1201 = vpop.permute.xlu0 %1200
        %1202 = vrot.lane.b32.xlu0 %v1167, 32
        %v1203 = vpop.permute.xlu0 %1202
        %1204 = vrot.lane.b32.xlu0 %v1169, 32
        %v1205 = vpop.permute.xlu0 %1204
        %1206 = vrot.lane.b32.xlu0 %v1171, 32
        %v1207 = vpop.permute.xlu0 %1206
        %1208 = vrot.lane.b32.xlu0 %v1173, 32
        %v1209 = vpop.permute.xlu0 %1208
        %vm1210 = vcmask 31744
        %v1212 = vsel %vm1210, %v455, %v621
        %v1214 = vsel %vm1210, %v456, %v623
        %v1216 = vsel %vm1210, %v457, %v625
        %v1218 = vsel %vm1210, %v458, %v627
        %v1220 = vsel %vm1210, %v459, %v629
        %v1222 = vsel %vm1210, %v460, %v631
        %v1224 = vsel %vm1210, %v461, %v633
        %v1226 = vsel %vm1210, %v462, %v635
        %v1228 = vsel %vm1210, %v463, %v637
        %v1230 = vsel %vm1210, %v464, %v639
        %v1232 = vsel %vm1210, %v465, %v641
        %v1234 = vsel %vm1210, %v466, %v643
        %v1236 = vsel %vm1210, %v467, %v645
        %v1238 = vsel %vm1210, %v468, %v647
        %v1240 = vsel %vm1210, %v469, %v649
        %v1242 = vsel %vm1210, %v470, %v651
        %v1244 = vsel %vm1210, %v471, %v653
        %v1246 = vsel %vm1210, %v472, %v655
        %vm1247 = vcmask 64512
        %v1249 = vsel %vm1247, %v1212, %v711
        %v1251 = vsel %vm1247, %v1214, %v713
        %v1253 = vsel %vm1247, %v1216, %v715
        %v1255 = vsel %vm1247, %v1218, %v717
        %v1257 = vsel %vm1247, %v1220, %v719
        %v1259 = vsel %vm1247, %v1222, %v721
        %v1261 = vsel %vm1247, %v1224, %v723
        %v1263 = vsel %vm1247, %v1226, %v725
        %v1265 = vsel %vm1247, %v1228, %v727
        %v1267 = vsel %vm1247, %v1230, %v729
        %v1269 = vsel %vm1247, %v1232, %v731
        %v1271 = vsel %vm1247, %v1234, %v733
        %v1273 = vsel %vm1247, %v1236, %v735
        %v1275 = vsel %vm1247, %v1238, %v737
        %v1277 = vsel %vm1247, %v1240, %v739
        %v1279 = vsel %vm1247, %v1242, %v741
        %v1281 = vsel %vm1247, %v1244, %v743
        %v1283 = vsel %vm1247, %v1246, %v745
        %vm1284 = vcmask 97280
        %v1286 = vsel %vm1284, %v1249, %v750
        %v1288 = vsel %vm1284, %v1251, %v752
        %v1290 = vsel %vm1284, %v1253, %v754
        %v1292 = vsel %vm1284, %v1255, %v756
        %v1294 = vsel %vm1284, %v1257, %v758
        %v1296 = vsel %vm1284, %v1259, %v760
        %v1298 = vsel %vm1284, %v1261, %v762
        %v1300 = vsel %vm1284, %v1263, %v764
        %v1302 = vsel %vm1284, %v1265, %v766
        %v1304 = vsel %vm1284, %v1267, %v768
        %v1306 = vsel %vm1284, %v1269, %v770
        %v1308 = vsel %vm1284, %v1271, %v772
        %v1310 = vsel %vm1284, %v1273, %v774
        %v1312 = vsel %vm1284, %v1275, %v776
        %v1314 = vsel %vm1284, %v1277, %v778
        %v1316 = vsel %vm1284, %v1279, %v780
        %v1318 = vsel %vm1284, %v1281, %v782
        %v1320 = vsel %vm1284, %v1283, %v784
        %vm1321 = vcmask 130048
        %v1323 = vsel %vm1321, %v1286, %v868
        %v1325 = vsel %vm1321, %v1288, %v870
        %v1327 = vsel %vm1321, %v1290, %v872
        %v1329 = vsel %vm1321, %v1292, %v874
        %v1331 = vsel %vm1321, %v1294, %v876
        %v1333 = vsel %vm1321, %v1296, %v878
        %v1335 = vsel %vm1321, %v1298, %v880
        %v1337 = vsel %vm1321, %v1300, %v882
        %v1339 = vsel %vm1321, %v1302, %v884
        %v1341 = vsel %vm1321, %v1304, %v886
        %v1343 = vsel %vm1321, %v1306, %v888
        %v1345 = vsel %vm1321, %v1308, %v890
        %v1347 = vsel %vm1321, %v1310, %v892
        %v1349 = vsel %vm1321, %v1312, %v894
        %v1351 = vsel %vm1321, %v1314, %v896
        %v1353 = vsel %vm1321, %v1316, %v898
        %v1355 = vsel %vm1321, %v1318, %v900
        %v1357 = vsel %vm1321, %v1320, %v902
        %vm1358 = vcmask 162816
        %v1360 = vsel %vm1358, %v1323, %v943
        %v1362 = vsel %vm1358, %v1325, %v945
        %v1364 = vsel %vm1358, %v1327, %v947
        %v1366 = vsel %vm1358, %v1329, %v949
        %v1368 = vsel %vm1358, %v1331, %v951
        %v1370 = vsel %vm1358, %v1333, %v953
        %v1372 = vsel %vm1358, %v1335, %v955
        %v1374 = vsel %vm1358, %v1337, %v957
        %v1376 = vsel %vm1358, %v1339, %v959
        %v1378 = vsel %vm1358, %v1341, %v961
        %v1380 = vsel %vm1358, %v1343, %v963
        %v1382 = vsel %vm1358, %v1345, %v965
        %v1384 = vsel %vm1358, %v1347, %v967
        %v1386 = vsel %vm1358, %v1349, %v969
        %v1388 = vsel %vm1358, %v1351, %v971
        %v1390 = vsel %vm1358, %v1353, %v973
        %v1392 = vsel %vm1358, %v1355, %v975
        %v1394 = vsel %vm1358, %v1357, %v977
        %vm1395 = vcmask 195584
        %v1397 = vsel %vm1395, %v1360, %v982
        %v1399 = vsel %vm1395, %v1362, %v984
        %v1401 = vsel %vm1395, %v1364, %v986
        %v1403 = vsel %vm1395, %v1366, %v988
        %v1405 = vsel %vm1395, %v1368, %v990
        %v1407 = vsel %vm1395, %v1370, %v992
        %v1409 = vsel %vm1395, %v1372, %v994
        %v1411 = vsel %vm1395, %v1374, %v996
        %v1413 = vsel %vm1395, %v1376, %v998
        %v1415 = vsel %vm1395, %v1378, %v1000
        %v1417 = vsel %vm1395, %v1380, %v1002
        %v1419 = vsel %vm1395, %v1382, %v1004
        %v1421 = vsel %vm1395, %v1384, %v1006
        %v1423 = vsel %vm1395, %v1386, %v1008
        %v1425 = vsel %vm1395, %v1388, %v1010
        %v1427 = vsel %vm1395, %v1390, %v1012
        %v1429 = vsel %vm1395, %v1392, %v1014
        %v1431 = vsel %vm1395, %v1394, %v1016
        %vm1432 = vcmask 228352
        %v1434 = vsel %vm1432, %v1397, %v1101
        %v1436 = vsel %vm1432, %v1399, %v1103
        %v1438 = vsel %vm1432, %v1401, %v1105
        %v1440 = vsel %vm1432, %v1403, %v1107
        %v1442 = vsel %vm1432, %v1405, %v1109
        %v1444 = vsel %vm1432, %v1407, %v1111
        %v1446 = vsel %vm1432, %v1409, %v1113
        %v1448 = vsel %vm1432, %v1411, %v1115
        %v1450 = vsel %vm1432, %v1413, %v1117
        %v1452 = vsel %vm1432, %v1415, %v1119
        %v1454 = vsel %vm1432, %v1417, %v1121
        %v1456 = vsel %vm1432, %v1419, %v1123
        %v1458 = vsel %vm1432, %v1421, %v1125
        %v1460 = vsel %vm1432, %v1423, %v1127
        %v1462 = vsel %vm1432, %v1425, %v1129
        %v1464 = vsel %vm1432, %v1427, %v1131
        %v1466 = vsel %vm1432, %v1429, %v1133
        %v1468 = vsel %vm1432, %v1431, %v1135
        %vm1469 = vcmask 261120
        %v1471 = vsel %vm1469, %v1434, %v1175
        %v1473 = vsel %vm1469, %v1436, %v1177
        %v1475 = vsel %vm1469, %v1438, %v1179
        %v1477 = vsel %vm1469, %v1440, %v1181
        %v1479 = vsel %vm1469, %v1442, %v1183
        %v1481 = vsel %vm1469, %v1444, %v1185
        %v1483 = vsel %vm1469, %v1446, %v1187
        %v1485 = vsel %vm1469, %v1448, %v1189
        %v1487 = vsel %vm1469, %v1450, %v1191
        %v1489 = vsel %vm1469, %v1452, %v1193
        %v1491 = vsel %vm1469, %v1454, %v1195
        %v1493 = vsel %vm1469, %v1456, %v1197
        %v1495 = vsel %vm1469, %v1458, %v1199
        %v1497 = vsel %vm1469, %v1460, %v1201
        %v1499 = vsel %vm1469, %v1462, %v1203
        %v1501 = vsel %vm1469, %v1464, %v1205
        %v1503 = vsel %vm1469, %v1466, %v1207
        %v1505 = vsel %vm1469, %v1468, %v1209
        %v1506 = vld [vmem:[%s2] sm:$0xf]
        %v1507 = vld [vmem:[%s2 + $0x4] sm:$0xf]
        %v1508 = vld [vmem:[%s2 + $0x8] sm:$0xf]
        %v1509 = vld [vmem:[%s2 + $0xc] sm:$0xf]
        %v1510 = vld [vmem:[%s2 + $0x10] sm:$0x3]
        %v1511 = vld [vmem:[%s3] sm:$0x1]
        %v1513 = vlaneseq
        %v1514 = vshrl.u32 %v1513, 7
        %v1515 = vsub.s32 0, %v1514
        %v1516 = vrot.slane %v1511, %v1515
        %v1523 = vunpack.c.l.b16 %v1506
        %v1524 = vunpack.c.l.b16 %v1507
        %v1525 = vunpack.c.l.b16 %v1508
        %v1526 = vunpack.c.l.b16 %v1509
        %v1527 = vunpack.c.l.b16 %v1510
        %v1528 = vpack.c.b16 %v1524, %v1523
        %v1529 = vpack.c.b16 %v1526, %v1525
        %v1530 = vpack.c.b16 %v1527, %v1527
        %vm1533 = vcmask 293888
        %v1534 = vsel %vm1533, %v1471, 0
        %v1536 = vsel %vm1533, %v1473, 0
        %v1538 = vsel %vm1533, %v1475, 0
        %v1540 = vsel %vm1533, %v1477, 0
        %v1542 = vsel %vm1533, %v1479, 0
        %v1544 = vsel %vm1533, %v1481, 0
        %v1546 = vsel %vm1533, %v1483, 0
        %v1548 = vsel %vm1533, %v1485, 0
        %v1550 = vsel %vm1533, %v1487, 0
        %v1552 = vsel %vm1533, %v1489, 0
        %v1554 = vsel %vm1533, %v1491, 0
        %v1556 = vsel %vm1533, %v1493, 0
        %v1558 = vsel %vm1533, %v1495, 0
        %v1560 = vsel %vm1533, %v1497, 0
        %v1562 = vsel %vm1533, %v1499, 0
        %v1564 = vsel %vm1533, %v1501, 0
        %v1566 = vsel %vm1533, %v1503, 0
        %v1568 = vsel %vm1533, %v1505, 0
        %vm1570 = vcmask 1041408
        %v1572 = vsel %vm1570, %v1530, 0
        %1574 = vmatprep.subr.bf16.mxu0 0
        %1575 = vmatpush1.bf16.msra.mxu0 0
        %1576 = vmatprep.subr.bf16.mxu0 0
        %1577 = vmatpush1.bf16.msra.mxu0 0
        %1578 = vmatprep.subr.bf16.mxu0 0
        %1579 = vmatpush1.bf16.msra.mxu0 0
        %1580 = vmatprep.subr.bf16.mxu0 0
        %1581 = vmatpush1.bf16.msra.mxu0 0
        %1582 = vmatprep.subr.bf16.mxu0 0
        %1583 = vmatpush1.bf16.msra.mxu0 0
        %1584 = vmatprep.subr.bf16.mxu0 0
        %1585 = vmatpush1.bf16.msra.mxu0 %v1572
        %1586 = vmatprep.subr.bf16.mxu0 0
        %1587 = vmatpush1.bf16.msra.mxu0 %v1529
        %1588 = vmatprep.subr.bf16.mxu0 0
        %1589 = vmatpush1.bf16.msra.mxu0 %v1528
        %1590 = vmatprep.subr.bf16.mxu0 0
        %1591 = vmatpush2.bf16.msra.mxu0 0
        %1592 = vmatprep.subr.bf16.mxu0 0
        %1593 = vmatpush2.bf16.msra.mxu0 0
        %1594 = vmatprep.subr.bf16.mxu0 0
        %1595 = vmatpush2.bf16.msra.mxu0 0
        %1596 = vmatprep.subr.bf16.mxu0 0
        %1597 = vmatpush2.bf16.msra.mxu0 0
        %1598 = vmatprep.subr.bf16.mxu0 0
        %1599 = vmatpush2.bf16.msra.mxu0 0
        %1600 = vmatprep.subr.bf16.mxu0 0
        %1601 = vmatpush2.bf16.msra.mxu0 0
        %1602 = vmatprep.subr.bf16.mxu0 0
        %1603 = vmatpush2.bf16.msra.mxu0 0
        %1604 = vmatprep.subr.bf16.mxu0 0
        %1605 = vmatpush2.bf16.msra.mxu0 0
        %1606 = vmatprep.mubr.bf16.mxu0 0
        %1607 = vmatmul.mubr.bf16.gmra.mxu0 %v1534
        %v1608 = vpop.f32.mrf.mxu0
        %v1609 = vadd.f32 %v1516, %v1608
        %v1610 = vpop.f32.mrf.mxu0
        %v1611 = vpop.f32.mrf.mxu0
        %v1612 = vadd.f32 %v1516, %v1611
        %v1613 = vpop.f32.mrf.mxu0
        %1614 = vmatprep.mubr.bf16.mxu0 0
        %1615 = vmatmul.mubr.bf16.gmra.mxu0 %v1536
        %v1616 = vpop.f32.mrf.mxu0
        %v1617 = vadd.f32 %v1516, %v1616
        %v1618 = vpop.f32.mrf.mxu0
        %v1619 = vpop.f32.mrf.mxu0
        %v1620 = vadd.f32 %v1516, %v1619
        %v1621 = vpop.f32.mrf.mxu0
        %1622 = vmatprep.mubr.bf16.mxu0 0
        %1623 = vmatmul.mubr.bf16.gmra.mxu0 %v1538
        %v1624 = vpop.f32.mrf.mxu0
        %v1625 = vadd.f32 %v1516, %v1624
        %v1626 = vpop.f32.mrf.mxu0
        %v1627 = vpop.f32.mrf.mxu0
        %v1628 = vadd.f32 %v1516, %v1627
        %v1629 = vpop.f32.mrf.mxu0
        %1630 = vmatprep.mubr.bf16.mxu0 0
        %1631 = vmatmul.mubr.bf16.gmra.mxu0 %v1540
        %v1632 = vpop.f32.mrf.mxu0
        %v1633 = vadd.f32 %v1516, %v1632
        %v1634 = vpop.f32.mrf.mxu0
        %v1635 = vpop.f32.mrf.mxu0
        %v1636 = vadd.f32 %v1516, %v1635
        %v1637 = vpop.f32.mrf.mxu0
        %1638 = vmatprep.mubr.bf16.mxu0 0
        %1639 = vmatmul.mubr.bf16.gmra.mxu0 %v1542
        %v1640 = vpop.f32.mrf.mxu0
        %v1641 = vadd.f32 %v1516, %v1640
        %v1642 = vpop.f32.mrf.mxu0
        %v1643 = vpop.f32.mrf.mxu0
        %v1644 = vadd.f32 %v1516, %v1643
        %v1645 = vpop.f32.mrf.mxu0
        %1646 = vmatprep.mubr.bf16.mxu0 0
        %1647 = vmatmul.mubr.bf16.gmra.mxu0 %v1544
        %v1648 = vpop.f32.mrf.mxu0
        %v1649 = vadd.f32 %v1516, %v1648
        %v1650 = vpop.f32.mrf.mxu0
        %v1651 = vpop.f32.mrf.mxu0
        %v1652 = vadd.f32 %v1516, %v1651
        %v1653 = vpop.f32.mrf.mxu0
        %1654 = vmatprep.mubr.bf16.mxu0 0
        %1655 = vmatmul.mubr.bf16.gmra.mxu0 %v1546
        %v1656 = vpop.f32.mrf.mxu0
        %v1657 = vadd.f32 %v1516, %v1656
        %v1658 = vpop.f32.mrf.mxu0
        %v1659 = vpop.f32.mrf.mxu0
        %v1660 = vadd.f32 %v1516, %v1659
        %v1661 = vpop.f32.mrf.mxu0
        %1662 = vmatprep.mubr.bf16.mxu0 0
        %1663 = vmatmul.mubr.bf16.gmra.mxu0 %v1548
        %v1664 = vpop.f32.mrf.mxu0
        %v1665 = vadd.f32 %v1516, %v1664
        %v1666 = vpop.f32.mrf.mxu0
        %v1667 = vpop.f32.mrf.mxu0
        %v1668 = vadd.f32 %v1516, %v1667
        %v1669 = vpop.f32.mrf.mxu0
        %1670 = vmatprep.mubr.bf16.mxu0 0
        %1671 = vmatmul.mubr.bf16.gmra.mxu0 %v1550
        %v1672 = vpop.f32.mrf.mxu0
        %v1673 = vadd.f32 %v1516, %v1672
        %v1674 = vpop.f32.mrf.mxu0
        %v1675 = vpop.f32.mrf.mxu0
        %v1676 = vadd.f32 %v1516, %v1675
        %v1677 = vpop.f32.mrf.mxu0
        %1678 = vmatprep.mubr.bf16.mxu0 0
        %1679 = vmatmul.mubr.bf16.gmra.mxu0 %v1552
        %v1680 = vpop.f32.mrf.mxu0
        %v1681 = vadd.f32 %v1516, %v1680
        %v1682 = vpop.f32.mrf.mxu0
        %v1683 = vpop.f32.mrf.mxu0
        %v1684 = vadd.f32 %v1516, %v1683
        %v1685 = vpop.f32.mrf.mxu0
        %1686 = vmatprep.mubr.bf16.mxu0 0
        %1687 = vmatmul.mubr.bf16.gmra.mxu0 %v1554
        %v1688 = vpop.f32.mrf.mxu0
        %v1689 = vadd.f32 %v1516, %v1688
        %v1690 = vpop.f32.mrf.mxu0
        %v1691 = vpop.f32.mrf.mxu0
        %v1692 = vadd.f32 %v1516, %v1691
        %v1693 = vpop.f32.mrf.mxu0
        %1694 = vmatprep.mubr.bf16.mxu0 0
        %1695 = vmatmul.mubr.bf16.gmra.mxu0 %v1556
        %v1696 = vpop.f32.mrf.mxu0
        %v1697 = vadd.f32 %v1516, %v1696
        %v1698 = vpop.f32.mrf.mxu0
        %v1699 = vpop.f32.mrf.mxu0
        %v1700 = vadd.f32 %v1516, %v1699
        %v1701 = vpop.f32.mrf.mxu0
        %1702 = vmatprep.mubr.bf16.mxu0 0
        %1703 = vmatmul.mubr.bf16.gmra.mxu0 %v1558
        %v1704 = vpop.f32.mrf.mxu0
        %v1705 = vadd.f32 %v1516, %v1704
        %v1706 = vpop.f32.mrf.mxu0
        %v1707 = vpop.f32.mrf.mxu0
        %v1708 = vadd.f32 %v1516, %v1707
        %v1709 = vpop.f32.mrf.mxu0
        %1710 = vmatprep.mubr.bf16.mxu0 0
        %1711 = vmatmul.mubr.bf16.gmra.mxu0 %v1560
        %v1712 = vpop.f32.mrf.mxu0
        %v1713 = vadd.f32 %v1516, %v1712
        %v1714 = vpop.f32.mrf.mxu0
        %v1715 = vpop.f32.mrf.mxu0
        %v1716 = vadd.f32 %v1516, %v1715
        %v1717 = vpop.f32.mrf.mxu0
        %1718 = vmatprep.mubr.bf16.mxu0 0
        %1719 = vmatmul.mubr.bf16.gmra.mxu0 %v1562
        %v1720 = vpop.f32.mrf.mxu0
        %v1721 = vadd.f32 %v1516, %v1720
        %v1722 = vpop.f32.mrf.mxu0
        %v1723 = vpop.f32.mrf.mxu0
        %v1724 = vadd.f32 %v1516, %v1723
        %v1725 = vpop.f32.mrf.mxu0
        %1726 = vmatprep.mubr.bf16.mxu0 0
        %1727 = vmatmul.mubr.bf16.gmra.mxu0 %v1564
        %v1728 = vpop.f32.mrf.mxu0
        %v1729 = vadd.f32 %v1516, %v1728
        %v1730 = vpop.f32.mrf.mxu0
        %v1731 = vpop.f32.mrf.mxu0
        %v1732 = vadd.f32 %v1516, %v1731
        %v1733 = vpop.f32.mrf.mxu0
        %1734 = vmatprep.mubr.bf16.mxu0 0
        %1735 = vmatmul.mubr.bf16.gmra.mxu0 %v1566
        %v1736 = vpop.f32.mrf.mxu0
        %v1737 = vadd.f32 %v1516, %v1736
        %v1738 = vpop.f32.mrf.mxu0
        %v1739 = vpop.f32.mrf.mxu0
        %v1740 = vadd.f32 %v1516, %v1739
        %v1741 = vpop.f32.mrf.mxu0
        %1742 = vmatprep.mubr.bf16.mxu0 0
        %1743 = vmatmul.mubr.bf16.gmra.mxu0 %v1568
        %v1744 = vpop.f32.mrf.mxu0
        %v1745 = vadd.f32 %v1516, %v1744
        %v1746 = vpop.f32.mrf.mxu0
        %v1747 = vpop.f32.mrf.mxu0
        %v1748 = vadd.f32 %v1516, %v1747
        %v1749 = vpop.f32.mrf.mxu0
        %1750 = vdwg.mxu0
        %v1751 = vmax.f32 %v1609, 0.0
        %v1752 = vmax.f32 %v1612, 0.0
        %v1753 = vmax.f32 %v1617, 0.0
        %v1754 = vmax.f32 %v1620, 0.0
        %v1755 = vmax.f32 %v1625, 0.0
        %v1756 = vmax.f32 %v1628, 0.0
        %v1757 = vmax.f32 %v1633, 0.0
        %v1758 = vmax.f32 %v1636, 0.0
        %v1759 = vmax.f32 %v1641, 0.0
        %v1760 = vmax.f32 %v1644, 0.0
        %v1761 = vmax.f32 %v1649, 0.0
        %v1762 = vmax.f32 %v1652, 0.0
        %v1763 = vmax.f32 %v1657, 0.0
        %v1764 = vmax.f32 %v1660, 0.0
        %v1765 = vmax.f32 %v1665, 0.0
        %v1766 = vmax.f32 %v1668, 0.0
        %v1767 = vmax.f32 %v1673, 0.0
        %v1768 = vmax.f32 %v1676, 0.0
        %v1769 = vmax.f32 %v1681, 0.0
        %v1770 = vmax.f32 %v1684, 0.0
        %v1771 = vmax.f32 %v1689, 0.0
        %v1772 = vmax.f32 %v1692, 0.0
        %v1773 = vmax.f32 %v1697, 0.0
        %v1774 = vmax.f32 %v1700, 0.0
        %v1775 = vmax.f32 %v1705, 0.0
        %v1776 = vmax.f32 %v1708, 0.0
        %v1777 = vmax.f32 %v1713, 0.0
        %v1778 = vmax.f32 %v1716, 0.0
        %v1779 = vmax.f32 %v1721, 0.0
        %v1780 = vmax.f32 %v1724, 0.0
        %v1781 = vmax.f32 %v1729, 0.0
        %v1782 = vmax.f32 %v1732, 0.0
        %v1783 = vmax.f32 %v1737, 0.0
        %v1784 = vmax.f32 %v1740, 0.0
        %v1785 = vmax.f32 %v1745, 0.0
        %v1786 = vmax.f32 %v1748, 0.0
        %1787 = vst.msk [vmem:[#allocation2] sm:$0xff] %vm1321, 0.0
        %1788 = vst.msk [vmem:[#allocation2 + $0x8] sm:$0xff] %vm1321, 0.0
        %1789 = vst.msk [vmem:[#allocation2 + $0x10] sm:$0xff] %vm1321, 0.0
        %1790 = vst.msk [vmem:[#allocation2 + $0x18] sm:$0xff] %vm1321, 0.0
        %1791 = vst.msk [vmem:[#allocation2 + $0x20] sm:$0xff] %vm1321, 0.0
        %1792 = vst.msk [vmem:[#allocation2 + $0x28] sm:$0xff] %vm1321, 0.0
        %1793 = vst.msk [vmem:[#allocation2 + $0x30] sm:$0xff] %vm1321, 0.0
        %1794 = vst.msk [vmem:[#allocation2 + $0x38] sm:$0xff] %vm1321, 0.0
        %1795 = vst.msk [vmem:[#allocation2 + $0x40] sm:$0xff] %vm1321, 0.0
        %1796 = vst.msk [vmem:[#allocation2 + $0x48] sm:$0xff] %vm1321, 0.0
        %1797 = vst.msk [vmem:[#allocation2 + $0x50] sm:$0xff] %vm1321, 0.0
        %1798 = vst.msk [vmem:[#allocation2 + $0x58] sm:$0xff] %vm1321, 0.0
        %1799 = vst.msk [vmem:[#allocation2 + $0x60] sm:$0xff] %vm1321, 0.0
        %1800 = vst.msk [vmem:[#allocation2 + $0x68] sm:$0xff] %vm1321, 0.0
        %1801 = vst.msk [vmem:[#allocation2 + $0x70] sm:$0xff] %vm1321, 0.0
        %1802 = vst.msk [vmem:[#allocation2 + $0x78] sm:$0xff] %vm1321, 0.0
        %1803 = vst.msk [vmem:[#allocation2 + $0x80] sm:$0xff] %vm1321, 0.0
        %1804 = vst.msk [vmem:[#allocation2 + $0x88] sm:$0xff] %vm1321, 0.0
        %1805 = vst.msk [vmem:[#allocation2 + $0x90] sm:$0xff] %vm1321, 0.0
        %1806 = vst.msk [vmem:[#allocation2 + $0x98] sm:$0xff] %vm1321, 0.0
        %1807 = vst.msk [vmem:[#allocation2 + $0xa0] sm:$0xff] %vm1321, 0.0
        %1808 = vst.msk [vmem:[#allocation2 + $0xa8] sm:$0xff] %vm1321, 0.0
        %1809 = vst.msk [vmem:[#allocation2 + $0xb0] sm:$0xff] %vm1321, 0.0
        %1810 = vst.msk [vmem:[#allocation2 + $0xb8] sm:$0xff] %vm1321, 0.0
        %1811 = vst.msk [vmem:[#allocation2 + $0xc0] sm:$0xff] %vm1321, 0.0
        %1812 = vst.msk [vmem:[#allocation2 + $0xc8] sm:$0xff] %vm1321, 0.0
        %1813 = vst.msk [vmem:[#allocation2 + $0xd0] sm:$0xff] %vm1321, 0.0
        %1814 = vst.msk [vmem:[#allocation2 + $0xd8] sm:$0xff] %vm1321, 0.0
        %1815 = vst.msk [vmem:[#allocation2 + $0xe0] sm:$0xff] %vm1321, 0.0
        %1816 = vst.msk [vmem:[#allocation2 + $0xe8] sm:$0xff] %vm1321, 0.0
        %1817 = vst.msk [vmem:[#allocation2 + $0xf0] sm:$0xff] %vm1321, 0.0
        %1818 = vst.msk [vmem:[#allocation2 + $0xf8] sm:$0xff] %vm1321, 0.0
        %1819 = vst.msk [vmem:[#allocation2 + $0x100] sm:$0xff] %vm1321, 0.0
        %1820 = vst.msk [vmem:[#allocation2 + $0x108] sm:$0xff] %vm1321, 0.0
        %1821 = vst.msk [vmem:[#allocation2 + $0x110] sm:$0xff] %vm1321, 0.0
        %1822 = vst.msk [vmem:[#allocation2 + $0x118] sm:$0xff] %vm1321, 0.0
        %1823 = vst.msk [vmem:[#allocation2 + $0x120] sm:$0xff] %vm1321, 0.0
        %1824 = vst.msk [vmem:[#allocation2 + $0x128] sm:$0xff] %vm1321, 0.0
        %1825 = vst.msk [vmem:[#allocation2 + $0x130] sm:$0xff] %vm1321, 0.0
        %1826 = vst.msk [vmem:[#allocation2 + $0x138] sm:$0xff] %vm1321, 0.0
        %1827 = vst.msk [vmem:[#allocation2 + $0x140] sm:$0xff] %vm1321, 0.0
        %v1828 = vld [vmem:[%s1] sm:$0xff]
        %v1829 = vld [vmem:[%s1 + $0x8] sm:$0xff]
        %v1830 = vld [vmem:[%s1 + $0x10] sm:$0xff]
        %v1831 = vld [vmem:[%s1 + $0x18] sm:$0xff]
        %v1832 = vld [vmem:[%s1 + $0x20] sm:$0xff]
        %v1833 = vld [vmem:[%s1 + $0x28] sm:$0xff]
        %v1834 = vld [vmem:[%s1 + $0x30] sm:$0xff]
        %v1835 = vld [vmem:[%s1 + $0x38] sm:$0xff]
        %v1836 = vld [vmem:[%s1 + $0x40] sm:$0xff]
        %v1837 = vld [vmem:[%s1 + $0x48] sm:$0xff]
        %v1838 = vld [vmem:[%s1 + $0x50] sm:$0xff]
        %v1839 = vld [vmem:[%s1 + $0x58] sm:$0xff]
        %v1840 = vld [vmem:[%s1 + $0x60] sm:$0xff]
        %v1841 = vld [vmem:[%s1 + $0x68] sm:$0xff]
        %v1842 = vld [vmem:[%s1 + $0x70] sm:$0xff]
        %v1843 = vld [vmem:[%s1 + $0x78] sm:$0xff]
        %v1844 = vld [vmem:[%s1 + $0x80] sm:$0xff]
        %v1845 = vld [vmem:[%s1 + $0x88] sm:$0xff]
        %v1846 = vld [vmem:[%s1 + $0x90] sm:$0xff]
        %v1847 = vld [vmem:[%s1 + $0x98] sm:$0xff]
        %v1848 = vld [vmem:[%s1 + $0xa0] sm:$0xff]
        %v1849 = vld [vmem:[%s1 + $0xa8] sm:$0xff]
        %v1850 = vld [vmem:[%s1 + $0xb0] sm:$0xff]
        %v1851 = vld [vmem:[%s1 + $0xb8] sm:$0xff]
        %v1852 = vld [vmem:[%s1 + $0xc0] sm:$0xff]
        %v1853 = vld [vmem:[%s1 + $0xc8] sm:$0xff]
        %v1854 = vld [vmem:[%s1 + $0xd0] sm:$0xff]
        %v1855 = vld [vmem:[%s1 + $0xd8] sm:$0xff]
        %v1856 = vld [vmem:[%s1 + $0xe0] sm:$0xff]
        %v1857 = vld [vmem:[%s1 + $0xe8] sm:$0xff]
        %v1858 = vld [vmem:[%s1 + $0xf0] sm:$0xff]
        %v1859 = vld [vmem:[%s1 + $0xf8] sm:$0xff]
        %v1860 = vld [vmem:[%s1 + $0x100] sm:$0xff]
        %v1861 = vld [vmem:[%s1 + $0x108] sm:$0xff]
        %v1862 = vld [vmem:[%s1 + $0x110] sm:$0xff]
        %v1863 = vld [vmem:[%s1 + $0x118] sm:$0x3f]
        %1865 = vset.pattern.permute.xlu0 0
        %1866 = vperm.xlu0 %1865, %v1828
        %v1867 = vpop.permute.xlu0 %1866
        %1870 = vset.pattern.permute.xlu0 0
        %1871 = vperm.xlu0 %1870, %v1829
        %v1872 = vpop.permute.xlu0 %1871
        %1875 = vset.pattern.permute.xlu0 0
        %1876 = vperm.xlu0 %1875, %v1830
        %v1877 = vpop.permute.xlu0 %1876
        %1880 = vset.pattern.permute.xlu0 0
        %1881 = vperm.xlu0 %1880, %v1831
        %v1882 = vpop.permute.xlu0 %1881
        %1885 = vset.pattern.permute.xlu0 0
        %1886 = vperm.xlu0 %1885, %v1832
        %v1887 = vpop.permute.xlu0 %1886
        %1890 = vset.pattern.permute.xlu0 0
        %1891 = vperm.xlu0 %1890, %v1833
        %v1892 = vpop.permute.xlu0 %1891
        %1895 = vset.pattern.permute.xlu0 0
        %1896 = vperm.xlu0 %1895, %v1834
        %v1897 = vpop.permute.xlu0 %1896
        %1900 = vset.pattern.permute.xlu0 0
        %1901 = vperm.xlu0 %1900, %v1835
        %v1902 = vpop.permute.xlu0 %1901
        %1905 = vset.pattern.permute.xlu0 0
        %1906 = vperm.xlu0 %1905, %v1836
        %v1907 = vpop.permute.xlu0 %1906
        %1910 = vset.pattern.permute.xlu0 0
        %1911 = vperm.xlu0 %1910, %v1837
        %v1912 = vpop.permute.xlu0 %1911
        %1915 = vset.pattern.permute.xlu0 0
        %1916 = vperm.xlu0 %1915, %v1838
        %v1917 = vpop.permute.xlu0 %1916
        %1920 = vset.pattern.permute.xlu0 0
        %1921 = vperm.xlu0 %1920, %v1839
        %v1922 = vpop.permute.xlu0 %1921
        %1925 = vset.pattern.permute.xlu0 0
        %1926 = vperm.xlu0 %1925, %v1840
        %v1927 = vpop.permute.xlu0 %1926
        %1930 = vset.pattern.permute.xlu0 0
        %1931 = vperm.xlu0 %1930, %v1841
        %v1932 = vpop.permute.xlu0 %1931
        %1935 = vset.pattern.permute.xlu0 0
        %1936 = vperm.xlu0 %1935, %v1842
        %v1937 = vpop.permute.xlu0 %1936
        %1940 = vset.pattern.permute.xlu0 0
        %1941 = vperm.xlu0 %1940, %v1843
        %v1942 = vpop.permute.xlu0 %1941
        %1945 = vset.pattern.permute.xlu0 0
        %1946 = vperm.xlu0 %1945, %v1844
        %v1947 = vpop.permute.xlu0 %1946
        %1950 = vset.pattern.permute.xlu0 0
        %1951 = vperm.xlu0 %1950, %v1845
        %v1952 = vpop.permute.xlu0 %1951
        %1955 = vset.pattern.permute.xlu0 0
        %1956 = vperm.xlu0 %1955, %v1846
        %v1957 = vpop.permute.xlu0 %1956
        %1960 = vset.pattern.permute.xlu0 0
        %1961 = vperm.xlu0 %1960, %v1847
        %v1962 = vpop.permute.xlu0 %1961
        %1965 = vset.pattern.permute.xlu0 0
        %1966 = vperm.xlu0 %1965, %v1848
        %v1967 = vpop.permute.xlu0 %1966
        %1970 = vset.pattern.permute.xlu0 0
        %1971 = vperm.xlu0 %1970, %v1849
        %v1972 = vpop.permute.xlu0 %1971
        %1975 = vset.pattern.permute.xlu0 0
        %1976 = vperm.xlu0 %1975, %v1850
        %v1977 = vpop.permute.xlu0 %1976
        %1980 = vset.pattern.permute.xlu0 0
        %1981 = vperm.xlu0 %1980, %v1851
        %v1982 = vpop.permute.xlu0 %1981
        %1985 = vset.pattern.permute.xlu0 0
        %1986 = vperm.xlu0 %1985, %v1852
        %v1987 = vpop.permute.xlu0 %1986
        %1990 = vset.pattern.permute.xlu0 0
        %1991 = vperm.xlu0 %1990, %v1853
        %v1992 = vpop.permute.xlu0 %1991
        %1995 = vset.pattern.permute.xlu0 0
        %1996 = vperm.xlu0 %1995, %v1854
        %v1997 = vpop.permute.xlu0 %1996
        %2000 = vset.pattern.permute.xlu0 0
        %2001 = vperm.xlu0 %2000, %v1855
        %v2002 = vpop.permute.xlu0 %2001
        %2005 = vset.pattern.permute.xlu0 0
        %2006 = vperm.xlu0 %2005, %v1856
        %v2007 = vpop.permute.xlu0 %2006
        %2010 = vset.pattern.permute.xlu0 0
        %2011 = vperm.xlu0 %2010, %v1857
        %v2012 = vpop.permute.xlu0 %2011
        %2015 = vset.pattern.permute.xlu0 0
        %2016 = vperm.xlu0 %2015, %v1858
        %v2017 = vpop.permute.xlu0 %2016
        %2020 = vset.pattern.permute.xlu0 0
        %2021 = vperm.xlu0 %2020, %v1859
        %v2022 = vpop.permute.xlu0 %2021
        %2025 = vset.pattern.permute.xlu0 0
        %2026 = vperm.xlu0 %2025, %v1860
        %v2027 = vpop.permute.xlu0 %2026
        %2030 = vset.pattern.permute.xlu0 0
        %2031 = vperm.xlu0 %2030, %v1861
        %v2032 = vpop.permute.xlu0 %2031
        %2035 = vset.pattern.permute.xlu0 0
        %2036 = vperm.xlu0 %2035, %v1862
        %v2037 = vpop.permute.xlu0 %2036
        %2040 = vset.pattern.permute.xlu0 0
        %2041 = vperm.xlu0 %2040, %v1863
        %v2042 = vpop.permute.xlu0 %2041
        %v2044 = vmul.f32 %v1751, %v1867
        %v2045 = vmul.f32 %v1752, %v1872
        %v2046 = vmul.f32 %v1753, %v1877
        %v2047 = vmul.f32 %v1754, %v1882
        %v2048 = vmul.f32 %v1755, %v1887
        %v2049 = vmul.f32 %v1756, %v1892
        %v2050 = vmul.f32 %v1757, %v1897
        %v2051 = vmul.f32 %v1758, %v1902
        %v2052 = vmul.f32 %v1759, %v1907
        %v2053 = vmul.f32 %v1760, %v1912
        %v2054 = vmul.f32 %v1761, %v1917
        %v2055 = vmul.f32 %v1762, %v1922
        %v2056 = vmul.f32 %v1763, %v1927
        %v2057 = vmul.f32 %v1764, %v1932
        %v2058 = vmul.f32 %v1765, %v1937
        %v2059 = vmul.f32 %v1766, %v1942
        %v2060 = vmul.f32 %v1767, %v1947
        %v2061 = vmul.f32 %v1768, %v1952
        %v2062 = vmul.f32 %v1769, %v1957
        %v2063 = vmul.f32 %v1770, %v1962
        %v2064 = vmul.f32 %v1771, %v1967
        %v2065 = vmul.f32 %v1772, %v1972
        %v2066 = vmul.f32 %v1773, %v1977
        %v2067 = vmul.f32 %v1774, %v1982
        %v2068 = vmul.f32 %v1775, %v1987
        %v2069 = vmul.f32 %v1776, %v1992
        %v2070 = vmul.f32 %v1777, %v1997
        %v2071 = vmul.f32 %v1778, %v2002
        %v2072 = vmul.f32 %v1779, %v2007
        %v2073 = vmul.f32 %v1780, %v2012
        %v2074 = vmul.f32 %v1781, %v2017
        %v2075 = vmul.f32 %v1782, %v2022
        %v2076 = vmul.f32 %v1783, %v2027
        %v2077 = vmul.f32 %v1784, %v2032
        %v2078 = vmul.f32 %v1785, %v2037
        %v2079 = vmul.f32 %v1786, %v2042
        %2080 = vst.msk [vmem:[#allocation2 + $0x13] sm:$0xff] %vm1321, %v2044
        %2081 = vst.msk [vmem:[#allocation2 + $0x1b] sm:$0xff] %vm1321, %v2045
        %2082 = vst.msk [vmem:[#allocation2 + $0x23] sm:$0xff] %vm1321, %v2046
        %2083 = vst.msk [vmem:[#allocation2 + $0x2b] sm:$0xff] %vm1321, %v2047
        %2084 = vst.msk [vmem:[#allocation2 + $0x33] sm:$0xff] %vm1321, %v2048
        %2085 = vst.msk [vmem:[#allocation2 + $0x3b] sm:$0xff] %vm1321, %v2049
        %2086 = vst.msk [vmem:[#allocation2 + $0x43] sm:$0xff] %vm1321, %v2050
        %2087 = vst.msk [vmem:[#allocation2 + $0x4b] sm:$0xff] %vm1321, %v2051
        %2088 = vst.msk [vmem:[#allocation2 + $0x53] sm:$0xff] %vm1321, %v2052
        %2089 = vst.msk [vmem:[#allocation2 + $0x5b] sm:$0xff] %vm1321, %v2053
        %2090 = vst.msk [vmem:[#allocation2 + $0x63] sm:$0xff] %vm1321, %v2054
        %2091 = vst.msk [vmem:[#allocation2 + $0x6b] sm:$0xff] %vm1321, %v2055
        %2092 = vst.msk [vmem:[#allocation2 + $0x73] sm:$0xff] %vm1321, %v2056
        %2093 = vst.msk [vmem:[#allocation2 + $0x7b] sm:$0xff] %vm1321, %v2057
        %2094 = vst.msk [vmem:[#allocation2 + $0x83] sm:$0xff] %vm1321, %v2058
        %2095 = vst.msk [vmem:[#allocation2 + $0x8b] sm:$0xff] %vm1321, %v2059
        %2096 = vst.msk [vmem:[#allocation2 + $0x93] sm:$0xff] %vm1321, %v2060
        %2097 = vst.msk [vmem:[#allocation2 + $0x9b] sm:$0xff] %vm1321, %v2061
        %2098 = vst.msk [vmem:[#allocation2 + $0xa3] sm:$0xff] %vm1321, %v2062
        %2099 = vst.msk [vmem:[#allocation2 + $0xab] sm:$0xff] %vm1321, %v2063
        %2100 = vst.msk [vmem:[#allocation2 + $0xb3] sm:$0xff] %vm1321, %v2064
        %2101 = vst.msk [vmem:[#allocation2 + $0xbb] sm:$0xff] %vm1321, %v2065
        %2102 = vst.msk [vmem:[#allocation2 + $0xc3] sm:$0xff] %vm1321, %v2066
        %2103 = vst.msk [vmem:[#allocation2 + $0xcb] sm:$0xff] %vm1321, %v2067
        %2104 = vst.msk [vmem:[#allocation2 + $0xd3] sm:$0xff] %vm1321, %v2068
        %2105 = vst.msk [vmem:[#allocation2 + $0xdb] sm:$0xff] %vm1321, %v2069
        %2106 = vst.msk [vmem:[#allocation2 + $0xe3] sm:$0xff] %vm1321, %v2070
        %2107 = vst.msk [vmem:[#allocation2 + $0xeb] sm:$0xff] %vm1321, %v2071
        %2108 = vst.msk [vmem:[#allocation2 + $0xf3] sm:$0xff] %vm1321, %v2072
        %2109 = vst.msk [vmem:[#allocation2 + $0xfb] sm:$0xff] %vm1321, %v2073
        %2110 = vst.msk [vmem:[#allocation2 + $0x103] sm:$0xff] %vm1321, %v2074
        %2111 = vst.msk [vmem:[#allocation2 + $0x10b] sm:$0xff] %vm1321, %v2075
        %2112 = vst.msk [vmem:[#allocation2 + $0x113] sm:$0xff] %vm1321, %v2076
        %2113 = vst.msk [vmem:[#allocation2 + $0x11b] sm:$0xff] %vm1321, %v2077
        %2114 = vst.msk [vmem:[#allocation2 + $0x123] sm:$0xff] %vm1321, %v2078
        %vm2115 = vcmask 128000
        %2116 = vst.msk [vmem:[#allocation2 + $0x12b] sm:$0x3f] %vm2115, %v2079
        %v2117 = vld [vmem:[#allocation2] sm:$0xff]
        %v2118 = vld [vmem:[#allocation2 + $0x8] sm:$0xff]
        %v2119 = vld [vmem:[#allocation2 + $0x10] sm:$0xff]
        %v2120 = vld [vmem:[#allocation2 + $0x18] sm:$0xff]
        %v2121 = vld [vmem:[#allocation2 + $0x20] sm:$0xff]
        %v2122 = vld [vmem:[#allocation2 + $0x28] sm:$0xff]
        %v2123 = vld [vmem:[#allocation2 + $0x30] sm:$0xff]
        %v2124 = vld [vmem:[#allocation2 + $0x38] sm:$0xff]
        %v2125 = vld [vmem:[#allocation2 + $0x40] sm:$0xff]
        %v2126 = vld [vmem:[#allocation2 + $0x48] sm:$0xff]
        %v2127 = vld [vmem:[#allocation2 + $0x50] sm:$0xff]
        %v2128 = vld [vmem:[#allocation2 + $0x58] sm:$0xff]
        %v2129 = vld [vmem:[#allocation2 + $0x60] sm:$0xff]
        %v2130 = vld [vmem:[#allocation2 + $0x68] sm:$0xff]
        %v2131 = vld [vmem:[#allocation2 + $0x70] sm:$0xff]
        %v2132 = vld [vmem:[#allocation2 + $0x78] sm:$0xff]
        %v2133 = vld [vmem:[#allocation2 + $0x80] sm:$0xff]
        %v2134 = vld [vmem:[#allocation2 + $0x88] sm:$0xff]
        %v2135 = vld [vmem:[#allocation2 + $0x90] sm:$0xff]
        %v2136 = vld [vmem:[#allocation2 + $0x98] sm:$0xff]
        %v2137 = vld [vmem:[#allocation2 + $0xa0] sm:$0xff]
        %v2138 = vld [vmem:[#allocation2 + $0xa8] sm:$0xff]
        %v2139 = vld [vmem:[#allocation2 + $0xb0] sm:$0xff]
        %v2140 = vld [vmem:[#allocation2 + $0xb8] sm:$0xff]
        %v2141 = vld [vmem:[#allocation2 + $0xc0] sm:$0xff]
        %v2142 = vld [vmem:[#allocation2 + $0xc8] sm:$0xff]
        %v2143 = vld [vmem:[#allocation2 + $0xd0] sm:$0xff]
        %v2144 = vld [vmem:[#allocation2 + $0xd8] sm:$0xff]
        %v2145 = vld [vmem:[#allocation2 + $0xe0] sm:$0xff]
        %v2146 = vld [vmem:[#allocation2 + $0xe8] sm:$0xff]
        %v2147 = vld [vmem:[#allocation2 + $0xf0] sm:$0xff]
        %v2148 = vld [vmem:[#allocation2 + $0xf8] sm:$0xff]
        %v2149 = vld [vmem:[#allocation2 + $0x100] sm:$0xff]
        %v2150 = vld [vmem:[#allocation2 + $0x108] sm:$0xff]
        %v2151 = vld [vmem:[#allocation2 + $0x110] sm:$0xff]
        %v2152 = vld [vmem:[#allocation2 + $0x118] sm:$0xff]
        %v2153 = vld [vmem:[#allocation2 + $0x120] sm:$0xff]
        %v2154 = vld [vmem:[#allocation2 + $0x128] sm:$0xff]
        %v2155 = vld [vmem:[#allocation2 + $0x130] sm:$0xff]
        %v2156 = vld [vmem:[#allocation2 + $0x138] sm:$0xff]
        %v2157 = vld [vmem:[#allocation2 + $0x140] sm:$0xff]
        %v2158 = vpack.c.bf16 %v2118, %v2117
        %v2159 = vpack.c.bf16 %v2120, %v2119
        %v2160 = vpack.c.bf16 %v2122, %v2121
        %v2161 = vpack.c.bf16 %v2124, %v2123
        %v2162 = vpack.c.bf16 %v2126, %v2125
        %v2163 = vpack.c.bf16 %v2128, %v2127
        %v2164 = vpack.c.bf16 %v2130, %v2129
        %v2165 = vpack.c.bf16 %v2132, %v2131
        %v2166 = vpack.c.bf16 %v2134, %v2133
        %v2167 = vpack.c.bf16 %v2136, %v2135
        %v2168 = vpack.c.bf16 %v2138, %v2137
        %v2169 = vpack.c.bf16 %v2140, %v2139
        %v2170 = vpack.c.bf16 %v2142, %v2141
        %v2171 = vpack.c.bf16 %v2144, %v2143
        %v2172 = vpack.c.bf16 %v2146, %v2145
        %v2173 = vpack.c.bf16 %v2148, %v2147
        %v2174 = vpack.c.bf16 %v2150, %v2149
        %v2175 = vpack.c.bf16 %v2152, %v2151
        %v2176 = vpack.c.bf16 %v2154, %v2153
        %v2177 = vpack.c.bf16 %v2156, %v2155
        %v2178 = vpack.c.bf16 %v2157, %v2157
        %v2180 = vshrl.u32 %v2158, 16
        %v2182 = vshll.u32 %v2158, 16
        %v2184 = vrot.slane %v2182, 1
        %v2185 = vor.u32 %v2180, %v2184
        %v2187 = vshll.u32 %v2159, 16
        %v2189 = vrot.slane %v2187, 1
        %v2190 = vsel %vm476, %v2185, %v2189
        %v2191 = vshrl.u32 %v2159, 16
        %v2193 = vor.u32 %v2191, %v2189
        %v2195 = vshll.u32 %v2160, 16
        %v2197 = vrot.slane %v2195, 1
        %v2198 = vsel %vm476, %v2193, %v2197
        %v2199 = vshrl.u32 %v2160, 16
        %v2201 = vor.u32 %v2199, %v2197
        %v2203 = vshll.u32 %v2161, 16
        %v2205 = vrot.slane %v2203, 1
        %v2206 = vsel %vm476, %v2201, %v2205
        %v2207 = vshrl.u32 %v2161, 16
        %v2209 = vor.u32 %v2207, %v2205
        %v2211 = vshll.u32 %v2162, 16
        %v2213 = vrot.slane %v2211, 1
        %v2214 = vsel %vm476, %v2209, %v2213
        %v2215 = vshrl.u32 %v2162, 16
        %v2217 = vor.u32 %v2215, %v2213
        %v2219 = vshll.u32 %v2163, 16
        %v2221 = vrot.slane %v2219, 1
        %v2222 = vsel %vm476, %v2217, %v2221
        %v2223 = vshrl.u32 %v2163, 16
        %v2225 = vor.u32 %v2223, %v2221
        %v2227 = vshll.u32 %v2164, 16
        %v2229 = vrot.slane %v2227, 1
        %v2230 = vsel %vm476, %v2225, %v2229
        %v2231 = vshrl.u32 %v2164, 16
        %v2233 = vor.u32 %v2231, %v2229
        %v2235 = vshll.u32 %v2165, 16
        %v2237 = vrot.slane %v2235, 1
        %v2238 = vsel %vm476, %v2233, %v2237
        %v2239 = vshrl.u32 %v2165, 16
        %v2241 = vor.u32 %v2239, %v2237
        %v2243 = vshll.u32 %v2166, 16
        %v2245 = vrot.slane %v2243, 1
        %v2246 = vsel %vm476, %v2241, %v2245
        %v2247 = vshrl.u32 %v2166, 16
        %v2249 = vor.u32 %v2247, %v2245
        %v2251 = vshll.u32 %v2167, 16
        %v2253 = vrot.slane %v2251, 1
        %v2254 = vsel %vm476, %v2249, %v2253
        %v2255 = vshrl.u32 %v2167, 16
        %v2257 = vor.u32 %v2255, %v2253
        %v2259 = vshll.u32 %v2168, 16
        %v2261 = vrot.slane %v2259, 1
        %v2262 = vsel %vm476, %v2257, %v2261
        %v2263 = vshrl.u32 %v2168, 16
        %v2265 = vor.u32 %v2263, %v2261
        %v2267 = vshll.u32 %v2169, 16
        %v2269 = vrot.slane %v2267, 1
        %v2270 = vsel %vm476, %v2265, %v2269
        %v2271 = vshrl.u32 %v2169, 16
        %v2273 = vor.u32 %v2271, %v2269
        %v2275 = vshll.u32 %v2170, 16
        %v2277 = vrot.slane %v2275, 1
        %v2278 = vsel %vm476, %v2273, %v2277
        %v2279 = vshrl.u32 %v2170, 16
        %v2281 = vor.u32 %v2279, %v2277
        %v2283 = vshll.u32 %v2171, 16
        %v2285 = vrot.slane %v2283, 1
        %v2286 = vsel %vm476, %v2281, %v2285
        %v2287 = vshrl.u32 %v2171, 16
        %v2289 = vor.u32 %v2287, %v2285
        %v2291 = vshll.u32 %v2172, 16
        %v2293 = vrot.slane %v2291, 1
        %v2294 = vsel %vm476, %v2289, %v2293
        %v2295 = vshrl.u32 %v2172, 16
        %v2297 = vor.u32 %v2295, %v2293
        %v2299 = vshll.u32 %v2173, 16
        %v2301 = vrot.slane %v2299, 1
        %v2302 = vsel %vm476, %v2297, %v2301
        %v2303 = vshrl.u32 %v2173, 16
        %v2305 = vor.u32 %v2303, %v2301
        %v2307 = vshll.u32 %v2174, 16
        %v2309 = vrot.slane %v2307, 1
        %v2310 = vsel %vm476, %v2305, %v2309
        %v2311 = vshrl.u32 %v2174, 16
        %v2313 = vor.u32 %v2311, %v2309
        %v2315 = vshll.u32 %v2175, 16
        %v2317 = vrot.slane %v2315, 1
        %v2318 = vsel %vm476, %v2313, %v2317
        %v2319 = vshrl.u32 %v2175, 16
        %v2321 = vor.u32 %v2319, %v2317
        %2322 = vrot.lane.b32.xlu0 %v2190, 16
        %v2323 = vpop.permute.xlu0 %2322
        %2324 = vrot.lane.b32.xlu0 %v2198, 16
        %v2325 = vpop.permute.xlu0 %2324
        %2326 = vrot.lane.b32.xlu0 %v2206, 16
        %v2327 = vpop.permute.xlu0 %2326
        %2328 = vrot.lane.b32.xlu0 %v2214, 16
        %v2329 = vpop.permute.xlu0 %2328
        %2330 = vrot.lane.b32.xlu0 %v2222, 16
        %v2331 = vpop.permute.xlu0 %2330
        %2332 = vrot.lane.b32.xlu0 %v2230, 16
        %v2333 = vpop.permute.xlu0 %2332
        %2334 = vrot.lane.b32.xlu0 %v2238, 16
        %v2335 = vpop.permute.xlu0 %2334
        %2336 = vrot.lane.b32.xlu0 %v2246, 16
        %v2337 = vpop.permute.xlu0 %2336
        %2338 = vrot.lane.b32.xlu0 %v2254, 16
        %v2339 = vpop.permute.xlu0 %2338
        %2340 = vrot.lane.b32.xlu0 %v2262, 16
        %v2341 = vpop.permute.xlu0 %2340
        %2342 = vrot.lane.b32.xlu0 %v2270, 16
        %v2343 = vpop.permute.xlu0 %2342
        %2344 = vrot.lane.b32.xlu0 %v2278, 16
        %v2345 = vpop.permute.xlu0 %2344
        %2346 = vrot.lane.b32.xlu0 %v2286, 16
        %v2347 = vpop.permute.xlu0 %2346
        %2348 = vrot.lane.b32.xlu0 %v2294, 16
        %v2349 = vpop.permute.xlu0 %2348
        %2350 = vrot.lane.b32.xlu0 %v2302, 16
        %v2351 = vpop.permute.xlu0 %2350
        %2352 = vrot.lane.b32.xlu0 %v2310, 16
        %v2353 = vpop.permute.xlu0 %2352
        %2354 = vrot.lane.b32.xlu0 %v2318, 16
        %v2355 = vpop.permute.xlu0 %2354
        %2356 = vrot.lane.b32.xlu0 %v2321, 16
        %v2357 = vpop.permute.xlu0 %2356
        %v2376 = vrot.slane %v2158, 1
        %v2377 = vrot.slane %v2159, 1
        %v2378 = vsel %vm674, %v2376, %v2377
        %v2379 = vrot.slane %v2160, 1
        %v2380 = vsel %vm674, %v2377, %v2379
        %v2381 = vrot.slane %v2161, 1
        %v2382 = vsel %vm674, %v2379, %v2381
        %v2383 = vrot.slane %v2162, 1
        %v2384 = vsel %vm674, %v2381, %v2383
        %v2385 = vrot.slane %v2163, 1
        %v2386 = vsel %vm674, %v2383, %v2385
        %v2387 = vrot.slane %v2164, 1
        %v2388 = vsel %vm674, %v2385, %v2387
        %v2389 = vrot.slane %v2165, 1
        %v2390 = vsel %vm674, %v2387, %v2389
        %v2391 = vrot.slane %v2166, 1
        %v2392 = vsel %vm674, %v2389, %v2391
        %v2393 = vrot.slane %v2167, 1
        %v2394 = vsel %vm674, %v2391, %v2393
        %v2395 = vrot.slane %v2168, 1
        %v2396 = vsel %vm674, %v2393, %v2395
        %v2397 = vrot.slane %v2169, 1
        %v2398 = vsel %vm674, %v2395, %v2397
        %v2399 = vrot.slane %v2170, 1
        %v2400 = vsel %vm674, %v2397, %v2399
        %v2401 = vrot.slane %v2171, 1
        %v2402 = vsel %vm674, %v2399, %v2401
        %v2403 = vrot.slane %v2172, 1
        %v2404 = vsel %vm674, %v2401, %v2403
        %v2405 = vrot.slane %v2173, 1
        %v2406 = vsel %vm674, %v2403, %v2405
        %v2407 = vrot.slane %v2174, 1
        %v2408 = vsel %vm674, %v2405, %v2407
        %v2409 = vrot.slane %v2175, 1
        %v2410 = vsel %vm674, %v2407, %v2409
        %2411 = vrot.lane.b32.xlu0 %v2378, 32
        %v2412 = vpop.permute.xlu0 %2411
        %2413 = vrot.lane.b32.xlu0 %v2380, 32
        %v2414 = vpop.permute.xlu0 %2413
        %2415 = vrot.lane.b32.xlu0 %v2382, 32
        %v2416 = vpop.permute.xlu0 %2415
        %2417 = vrot.lane.b32.xlu0 %v2384, 32
        %v2418 = vpop.permute.xlu0 %2417
        %2419 = vrot.lane.b32.xlu0 %v2386, 32
        %v2420 = vpop.permute.xlu0 %2419
        %2421 = vrot.lane.b32.xlu0 %v2388, 32
        %v2422 = vpop.permute.xlu0 %2421
        %2423 = vrot.lane.b32.xlu0 %v2390, 32
        %v2424 = vpop.permute.xlu0 %2423
        %2425 = vrot.lane.b32.xlu0 %v2392, 32
        %v2426 = vpop.permute.xlu0 %2425
        %2427 = vrot.lane.b32.xlu0 %v2394, 32
        %v2428 = vpop.permute.xlu0 %2427
        %2429 = vrot.lane.b32.xlu0 %v2396, 32
        %v2430 = vpop.permute.xlu0 %2429
        %2431 = vrot.lane.b32.xlu0 %v2398, 32
        %v2432 = vpop.permute.xlu0 %2431
        %2433 = vrot.lane.b32.xlu0 %v2400, 32
        %v2434 = vpop.permute.xlu0 %2433
        %2435 = vrot.lane.b32.xlu0 %v2402, 32
        %v2436 = vpop.permute.xlu0 %2435
        %2437 = vrot.lane.b32.xlu0 %v2404, 32
        %v2438 = vpop.permute.xlu0 %2437
        %2439 = vrot.lane.b32.xlu0 %v2406, 32
        %v2440 = vpop.permute.xlu0 %2439
        %2441 = vrot.lane.b32.xlu0 %v2408, 32
        %v2442 = vpop.permute.xlu0 %2441
        %2443 = vrot.lane.b32.xlu0 %v2410, 32
        %v2444 = vpop.permute.xlu0 %2443
        %2445 = vrot.lane.b32.xlu0 %v2409, 32
        %v2446 = vpop.permute.xlu0 %2445
        %v2448 = vrot.slane %v2176, 1
        %v2449 = vsel %vm674, %v2409, %v2448
        %2450 = vrot.lane.b32.xlu0 %v2380, 48
        %v2451 = vpop.permute.xlu0 %2450
        %2452 = vrot.lane.b32.xlu0 %v2382, 48
        %v2453 = vpop.permute.xlu0 %2452
        %2454 = vrot.lane.b32.xlu0 %v2384, 48
        %v2455 = vpop.permute.xlu0 %2454
        %2456 = vrot.lane.b32.xlu0 %v2386, 48
        %v2457 = vpop.permute.xlu0 %2456
        %2458 = vrot.lane.b32.xlu0 %v2388, 48
        %v2459 = vpop.permute.xlu0 %2458
        %2460 = vrot.lane.b32.xlu0 %v2390, 48
        %v2461 = vpop.permute.xlu0 %2460
        %2462 = vrot.lane.b32.xlu0 %v2392, 48
        %v2463 = vpop.permute.xlu0 %2462
        %2464 = vrot.lane.b32.xlu0 %v2394, 48
        %v2465 = vpop.permute.xlu0 %2464
        %2466 = vrot.lane.b32.xlu0 %v2396, 48
        %v2467 = vpop.permute.xlu0 %2466
        %2468 = vrot.lane.b32.xlu0 %v2398, 48
        %v2469 = vpop.permute.xlu0 %2468
        %2470 = vrot.lane.b32.xlu0 %v2400, 48
        %v2471 = vpop.permute.xlu0 %2470
        %2472 = vrot.lane.b32.xlu0 %v2402, 48
        %v2473 = vpop.permute.xlu0 %2472
        %2474 = vrot.lane.b32.xlu0 %v2404, 48
        %v2475 = vpop.permute.xlu0 %2474
        %2476 = vrot.lane.b32.xlu0 %v2406, 48
        %v2477 = vpop.permute.xlu0 %2476
        %2478 = vrot.lane.b32.xlu0 %v2408, 48
        %v2479 = vpop.permute.xlu0 %2478
        %2480 = vrot.lane.b32.xlu0 %v2410, 48
        %v2481 = vpop.permute.xlu0 %2480
        %2482 = vrot.lane.b32.xlu0 %v2449, 48
        %v2483 = vpop.permute.xlu0 %2482
        %2484 = vrot.lane.b32.xlu0 %v2448, 48
        %v2485 = vpop.permute.xlu0 %2484
        %v2486 = vrot.slane %v2191, 1
        %v2487 = vrot.slane %v2187, 2
        %v2488 = vor.u32 %v2486, %v2487
        %v2489 = vrot.slane %v2199, 1
        %v2490 = vrot.slane %v2195, 2
        %v2491 = vor.u32 %v2489, %v2490
        %v2492 = vsel %vm785, %v2488, %v2491
        %v2493 = vrot.slane %v2207, 1
        %v2494 = vrot.slane %v2203, 2
        %v2495 = vor.u32 %v2493, %v2494
        %v2496 = vsel %vm785, %v2491, %v2495
        %v2497 = vrot.slane %v2215, 1
        %v2498 = vrot.slane %v2211, 2
        %v2499 = vor.u32 %v2497, %v2498
        %v2500 = vsel %vm785, %v2495, %v2499
        %v2501 = vrot.slane %v2223, 1
        %v2502 = vrot.slane %v2219, 2
        %v2503 = vor.u32 %v2501, %v2502
        %v2504 = vsel %vm785, %v2499, %v2503
        %v2505 = vrot.slane %v2231, 1
        %v2506 = vrot.slane %v2227, 2
        %v2507 = vor.u32 %v2505, %v2506
        %v2508 = vsel %vm785, %v2503, %v2507
        %v2509 = vrot.slane %v2239, 1
        %v2510 = vrot.slane %v2235, 2
        %v2511 = vor.u32 %v2509, %v2510
        %v2512 = vsel %vm785, %v2507, %v2511
        %v2513 = vrot.slane %v2247, 1
        %v2514 = vrot.slane %v2243, 2
        %v2515 = vor.u32 %v2513, %v2514
        %v2516 = vsel %vm785, %v2511, %v2515
        %v2517 = vrot.slane %v2255, 1
        %v2518 = vrot.slane %v2251, 2
        %v2519 = vor.u32 %v2517, %v2518
        %v2520 = vsel %vm785, %v2515, %v2519
        %v2521 = vrot.slane %v2263, 1
        %v2522 = vrot.slane %v2259, 2
        %v2523 = vor.u32 %v2521, %v2522
        %v2524 = vsel %vm785, %v2519, %v2523
        %v2525 = vrot.slane %v2271, 1
        %v2526 = vrot.slane %v2267, 2
        %v2527 = vor.u32 %v2525, %v2526
        %v2528 = vsel %vm785, %v2523, %v2527
        %v2529 = vrot.slane %v2279, 1
        %v2530 = vrot.slane %v2275, 2
        %v2531 = vor.u32 %v2529, %v2530
        %v2532 = vsel %vm785, %v2527, %v2531
        %v2533 = vrot.slane %v2287, 1
        %v2534 = vrot.slane %v2283, 2
        %v2535 = vor.u32 %v2533, %v2534
        %v2536 = vsel %vm785, %v2531, %v2535
        %v2537 = vrot.slane %v2295, 1
        %v2538 = vrot.slane %v2291, 2
        %v2539 = vor.u32 %v2537, %v2538
        %v2540 = vsel %vm785, %v2535, %v2539
        %v2541 = vrot.slane %v2303, 1
        %v2542 = vrot.slane %v2299, 2
        %v2543 = vor.u32 %v2541, %v2542
        %v2544 = vsel %vm785, %v2539, %v2543
        %v2545 = vrot.slane %v2311, 1
        %v2546 = vrot.slane %v2307, 2
        %v2547 = vor.u32 %v2545, %v2546
        %v2548 = vsel %vm785, %v2543, %v2547
        %v2549 = vrot.slane %v2319, 1
        %v2550 = vrot.slane %v2315, 2
        %v2551 = vor.u32 %v2549, %v2550
        %v2552 = vsel %vm785, %v2547, %v2551
        %v2554 = vshrl.u32 %v2176, 16
        %v2556 = vrot.slane %v2554, 1
        %v2557 = vshll.u32 %v2176, 16
        %v2559 = vrot.slane %v2557, 2
        %v2560 = vor.u32 %v2556, %v2559
        %v2561 = vsel %vm785, %v2551, %v2560
        %v2563 = vshll.u32 %v2177, 16
        %v2565 = vrot.slane %v2563, 2
        %v2566 = vsel %vm785, %v2560, %v2565
        %2567 = vrot.lane.b32.xlu0 %v2492, 64
        %v2568 = vpop.permute.xlu0 %2567
        %2569 = vrot.lane.b32.xlu0 %v2496, 64
        %v2570 = vpop.permute.xlu0 %2569
        %2571 = vrot.lane.b32.xlu0 %v2500, 64
        %v2572 = vpop.permute.xlu0 %2571
        %2573 = vrot.lane.b32.xlu0 %v2504, 64
        %v2574 = vpop.permute.xlu0 %2573
        %2575 = vrot.lane.b32.xlu0 %v2508, 64
        %v2576 = vpop.permute.xlu0 %2575
        %2577 = vrot.lane.b32.xlu0 %v2512, 64
        %v2578 = vpop.permute.xlu0 %2577
        %2579 = vrot.lane.b32.xlu0 %v2516, 64
        %v2580 = vpop.permute.xlu0 %2579
        %2581 = vrot.lane.b32.xlu0 %v2520, 64
        %v2582 = vpop.permute.xlu0 %2581
        %2583 = vrot.lane.b32.xlu0 %v2524, 64
        %v2584 = vpop.permute.xlu0 %2583
        %2585 = vrot.lane.b32.xlu0 %v2528, 64
        %v2586 = vpop.permute.xlu0 %2585
        %2587 = vrot.lane.b32.xlu0 %v2532, 64
        %v2588 = vpop.permute.xlu0 %2587
        %2589 = vrot.lane.b32.xlu0 %v2536, 64
        %v2590 = vpop.permute.xlu0 %2589
        %2591 = vrot.lane.b32.xlu0 %v2540, 64
        %v2592 = vpop.permute.xlu0 %2591
        %2593 = vrot.lane.b32.xlu0 %v2544, 64
        %v2594 = vpop.permute.xlu0 %2593
        %2595 = vrot.lane.b32.xlu0 %v2548, 64
        %v2596 = vpop.permute.xlu0 %2595
        %2597 = vrot.lane.b32.xlu0 %v2552, 64
        %v2598 = vpop.permute.xlu0 %2597
        %2599 = vrot.lane.b32.xlu0 %v2561, 64
        %v2600 = vpop.permute.xlu0 %2599
        %2601 = vrot.lane.b32.xlu0 %v2566, 64
        %v2602 = vpop.permute.xlu0 %2601
        %v2604 = vrot.slane %v2159, 2
        %v2605 = vrot.slane %v2160, 2
        %v2606 = vsel %vm904, %v2604, %v2605
        %v2607 = vrot.slane %v2161, 2
        %v2608 = vsel %vm904, %v2605, %v2607
        %v2609 = vrot.slane %v2162, 2
        %v2610 = vsel %vm904, %v2607, %v2609
        %v2611 = vrot.slane %v2163, 2
        %v2612 = vsel %vm904, %v2609, %v2611
        %v2613 = vrot.slane %v2164, 2
        %v2614 = vsel %vm904, %v2611, %v2613
        %v2615 = vrot.slane %v2165, 2
        %v2616 = vsel %vm904, %v2613, %v2615
        %v2617 = vrot.slane %v2166, 2
        %v2618 = vsel %vm904, %v2615, %v2617
        %v2619 = vrot.slane %v2167, 2
        %v2620 = vsel %vm904, %v2617, %v2619
        %v2621 = vrot.slane %v2168, 2
        %v2622 = vsel %vm904, %v2619, %v2621
        %v2623 = vrot.slane %v2169, 2
        %v2624 = vsel %vm904, %v2621, %v2623
        %v2625 = vrot.slane %v2170, 2
        %v2626 = vsel %vm904, %v2623, %v2625
        %v2627 = vrot.slane %v2171, 2
        %v2628 = vsel %vm904, %v2625, %v2627
        %v2629 = vrot.slane %v2172, 2
        %v2630 = vsel %vm904, %v2627, %v2629
        %v2631 = vrot.slane %v2173, 2
        %v2632 = vsel %vm904, %v2629, %v2631
        %v2633 = vrot.slane %v2174, 2
        %v2634 = vsel %vm904, %v2631, %v2633
        %v2635 = vrot.slane %v2175, 2
        %v2636 = vsel %vm904, %v2633, %v2635
        %v2637 = vrot.slane %v2176, 2
        %v2638 = vsel %vm904, %v2635, %v2637
        %v2639 = vrot.slane %v2177, 2
        %v2640 = vsel %vm904, %v2637, %v2639
        %2641 = vrot.lane.b32.xlu0 %v2606, 80
        %v2642 = vpop.permute.xlu0 %2641
        %2643 = vrot.lane.b32.xlu0 %v2608, 80
        %v2644 = vpop.permute.xlu0 %2643
        %2645 = vrot.lane.b32.xlu0 %v2610, 80
        %v2646 = vpop.permute.xlu0 %2645
        %2647 = vrot.lane.b32.xlu0 %v2612, 80
        %v2648 = vpop.permute.xlu0 %2647
        %2649 = vrot.lane.b32.xlu0 %v2614, 80
        %v2650 = vpop.permute.xlu0 %2649
        %2651 = vrot.lane.b32.xlu0 %v2616, 80
        %v2652 = vpop.permute.xlu0 %2651
        %2653 = vrot.lane.b32.xlu0 %v2618, 80
        %v2654 = vpop.permute.xlu0 %2653
        %2655 = vrot.lane.b32.xlu0 %v2620, 80
        %v2656 = vpop.permute.xlu0 %2655
        %2657 = vrot.lane.b32.xlu0 %v2622, 80
        %v2658 = vpop.permute.xlu0 %2657
        %2659 = vrot.lane.b32.xlu0 %v2624, 80
        %v2660 = vpop.permute.xlu0 %2659
        %2661 = vrot.lane.b32.xlu0 %v2626, 80
        %v2662 = vpop.permute.xlu0 %2661
        %2663 = vrot.lane.b32.xlu0 %v2628, 80
        %v2664 = vpop.permute.xlu0 %2663
        %2665 = vrot.lane.b32.xlu0 %v2630, 80
        %v2666 = vpop.permute.xlu0 %2665
        %2667 = vrot.lane.b32.xlu0 %v2632, 80
        %v2668 = vpop.permute.xlu0 %2667
        %2669 = vrot.lane.b32.xlu0 %v2634, 80
        %v2670 = vpop.permute.xlu0 %2669
        %2671 = vrot.lane.b32.xlu0 %v2636, 80
        %v2672 = vpop.permute.xlu0 %2671
        %2673 = vrot.lane.b32.xlu0 %v2638, 80
        %v2674 = vpop.permute.xlu0 %2673
        %2675 = vrot.lane.b32.xlu0 %v2640, 80
        %v2676 = vpop.permute.xlu0 %2675
        %v2678 = vrot.slane %v2178, 2
        %v2679 = vsel %vm904, %v2639, %v2678
        %2680 = vrot.lane.b32.xlu0 %v2608, 96
        %v2681 = vpop.permute.xlu0 %2680
        %2682 = vrot.lane.b32.xlu0 %v2610, 96
        %v2683 = vpop.permute.xlu0 %2682
        %2684 = vrot.lane.b32.xlu0 %v2612, 96
        %v2685 = vpop.permute.xlu0 %2684
        %2686 = vrot.lane.b32.xlu0 %v2614, 96
        %v2687 = vpop.permute.xlu0 %2686
        %2688 = vrot.lane.b32.xlu0 %v2616, 96
        %v2689 = vpop.permute.xlu0 %2688
        %2690 = vrot.lane.b32.xlu0 %v2618, 96
        %v2691 = vpop.permute.xlu0 %2690
        %2692 = vrot.lane.b32.xlu0 %v2620, 96
        %v2693 = vpop.permute.xlu0 %2692
        %2694 = vrot.lane.b32.xlu0 %v2622, 96
        %v2695 = vpop.permute.xlu0 %2694
        %2696 = vrot.lane.b32.xlu0 %v2624, 96
        %v2697 = vpop.permute.xlu0 %2696
        %2698 = vrot.lane.b32.xlu0 %v2626, 96
        %v2699 = vpop.permute.xlu0 %2698
        %2700 = vrot.lane.b32.xlu0 %v2628, 96
        %v2701 = vpop.permute.xlu0 %2700
        %2702 = vrot.lane.b32.xlu0 %v2630, 96
        %v2703 = vpop.permute.xlu0 %2702
        %2704 = vrot.lane.b32.xlu0 %v2632, 96
        %v2705 = vpop.permute.xlu0 %2704
        %2706 = vrot.lane.b32.xlu0 %v2634, 96
        %v2707 = vpop.permute.xlu0 %2706
        %2708 = vrot.lane.b32.xlu0 %v2636, 96
        %v2709 = vpop.permute.xlu0 %2708
        %2710 = vrot.lane.b32.xlu0 %v2638, 96
        %v2711 = vpop.permute.xlu0 %2710
        %2712 = vrot.lane.b32.xlu0 %v2640, 96
        %v2713 = vpop.permute.xlu0 %2712
        %2714 = vrot.lane.b32.xlu0 %v2679, 96
        %v2715 = vpop.permute.xlu0 %2714
        %v2716 = vrot.slane %v2199, 2
        %v2717 = vrot.slane %v2195, 3
        %v2718 = vor.u32 %v2716, %v2717
        %v2719 = vrot.slane %v2207, 2
        %v2720 = vrot.slane %v2203, 3
        %v2721 = vor.u32 %v2719, %v2720
        %v2722 = vsel %vm1017, %v2718, %v2721
        %v2723 = vrot.slane %v2215, 2
        %v2724 = vrot.slane %v2211, 3
        %v2725 = vor.u32 %v2723, %v2724
        %v2726 = vsel %vm1017, %v2721, %v2725
        %v2727 = vrot.slane %v2223, 2
        %v2728 = vrot.slane %v2219, 3
        %v2729 = vor.u32 %v2727, %v2728
        %v2730 = vsel %vm1017, %v2725, %v2729
        %v2731 = vrot.slane %v2231, 2
        %v2732 = vrot.slane %v2227, 3
        %v2733 = vor.u32 %v2731, %v2732
        %v2734 = vsel %vm1017, %v2729, %v2733
        %v2735 = vrot.slane %v2239, 2
        %v2736 = vrot.slane %v2235, 3
        %v2737 = vor.u32 %v2735, %v2736
        %v2738 = vsel %vm1017, %v2733, %v2737
        %v2739 = vrot.slane %v2247, 2
        %v2740 = vrot.slane %v2243, 3
        %v2741 = vor.u32 %v2739, %v2740
        %v2742 = vsel %vm1017, %v2737, %v2741
        %v2743 = vrot.slane %v2255, 2
        %v2744 = vrot.slane %v2251, 3
        %v2745 = vor.u32 %v2743, %v2744
        %v2746 = vsel %vm1017, %v2741, %v2745
        %v2747 = vrot.slane %v2263, 2
        %v2748 = vrot.slane %v2259, 3
        %v2749 = vor.u32 %v2747, %v2748
        %v2750 = vsel %vm1017, %v2745, %v2749
        %v2751 = vrot.slane %v2271, 2
        %v2752 = vrot.slane %v2267, 3
        %v2753 = vor.u32 %v2751, %v2752
        %v2754 = vsel %vm1017, %v2749, %v2753
        %v2755 = vrot.slane %v2279, 2
        %v2756 = vrot.slane %v2275, 3
        %v2757 = vor.u32 %v2755, %v2756
        %v2758 = vsel %vm1017, %v2753, %v2757
        %v2759 = vrot.slane %v2287, 2
        %v2760 = vrot.slane %v2283, 3
        %v2761 = vor.u32 %v2759, %v2760
        %v2762 = vsel %vm1017, %v2757, %v2761
        %v2763 = vrot.slane %v2295, 2
        %v2764 = vrot.slane %v2291, 3
        %v2765 = vor.u32 %v2763, %v2764
        %v2766 = vsel %vm1017, %v2761, %v2765
        %v2767 = vrot.slane %v2303, 2
        %v2768 = vrot.slane %v2299, 3
        %v2769 = vor.u32 %v2767, %v2768
        %v2770 = vsel %vm1017, %v2765, %v2769
        %v2771 = vrot.slane %v2311, 2
        %v2772 = vrot.slane %v2307, 3
        %v2773 = vor.u32 %v2771, %v2772
        %v2774 = vsel %vm1017, %v2769, %v2773
        %v2775 = vrot.slane %v2319, 2
        %v2776 = vrot.slane %v2315, 3
        %v2777 = vor.u32 %v2775, %v2776
        %v2778 = vsel %vm1017, %v2773, %v2777
        %v2779 = vrot.slane %v2554, 2
        %v2780 = vrot.slane %v2557, 3
        %v2781 = vor.u32 %v2779, %v2780
        %v2782 = vsel %vm1017, %v2777, %v2781
        %v2783 = vshrl.u32 %v2177, 16
        %v2785 = vrot.slane %v2783, 2
        %v2786 = vrot.slane %v2563, 3
        %v2787 = vor.u32 %v2785, %v2786
        %v2788 = vsel %vm1017, %v2781, %v2787
        %v2790 = vshrl.u32 %v2178, 16
        %v2792 = vrot.slane %v2790, 2
        %v2793 = vshll.u32 %v2178, 16
        %v2795 = vrot.slane %v2793, 3
        %v2796 = vor.u32 %v2792, %v2795
        %v2797 = vsel %vm1017, %v2787, %v2796
        %2798 = vrot.lane.b32.xlu0 %v2722, 112
        %v2799 = vpop.permute.xlu0 %2798
        %2800 = vrot.lane.b32.xlu0 %v2726, 112
        %v2801 = vpop.permute.xlu0 %2800
        %2802 = vrot.lane.b32.xlu0 %v2730, 112
        %v2803 = vpop.permute.xlu0 %2802
        %2804 = vrot.lane.b32.xlu0 %v2734, 112
        %v2805 = vpop.permute.xlu0 %2804
        %2806 = vrot.lane.b32.xlu0 %v2738, 112
        %v2807 = vpop.permute.xlu0 %2806
        %2808 = vrot.lane.b32.xlu0 %v2742, 112
        %v2809 = vpop.permute.xlu0 %2808
        %2810 = vrot.lane.b32.xlu0 %v2746, 112
        %v2811 = vpop.permute.xlu0 %2810
        %2812 = vrot.lane.b32.xlu0 %v2750, 112
        %v2813 = vpop.permute.xlu0 %2812
        %2814 = vrot.lane.b32.xlu0 %v2754, 112
        %v2815 = vpop.permute.xlu0 %2814
        %2816 = vrot.lane.b32.xlu0 %v2758, 112
        %v2817 = vpop.permute.xlu0 %2816
        %2818 = vrot.lane.b32.xlu0 %v2762, 112
        %v2819 = vpop.permute.xlu0 %2818
        %2820 = vrot.lane.b32.xlu0 %v2766, 112
        %v2821 = vpop.permute.xlu0 %2820
        %2822 = vrot.lane.b32.xlu0 %v2770, 112
        %v2823 = vpop.permute.xlu0 %2822
        %2824 = vrot.lane.b32.xlu0 %v2774, 112
        %v2825 = vpop.permute.xlu0 %2824
        %2826 = vrot.lane.b32.xlu0 %v2778, 112
        %v2827 = vpop.permute.xlu0 %2826
        %2828 = vrot.lane.b32.xlu0 %v2782, 112
        %v2829 = vpop.permute.xlu0 %2828
        %2830 = vrot.lane.b32.xlu0 %v2788, 112
        %v2831 = vpop.permute.xlu0 %2830
        %2832 = vrot.lane.b32.xlu0 %v2797, 112
        %v2833 = vpop.permute.xlu0 %2832
        %v2834 = vrot.slane %v2160, 3
        %v2835 = vrot.slane %v2161, 3
        %v2836 = vsel %vm1136, %v2834, %v2835
        %v2837 = vrot.slane %v2162, 3
        %v2838 = vsel %vm1136, %v2835, %v2837
        %v2839 = vrot.slane %v2163, 3
        %v2840 = vsel %vm1136, %v2837, %v2839
        %v2841 = vrot.slane %v2164, 3
        %v2842 = vsel %vm1136, %v2839, %v2841
        %v2843 = vrot.slane %v2165, 3
        %v2844 = vsel %vm1136, %v2841, %v2843
        %v2845 = vrot.slane %v2166, 3
        %v2846 = vsel %vm1136, %v2843, %v2845
        %v2847 = vrot.slane %v2167, 3
        %v2848 = vsel %vm1136, %v2845, %v2847
        %v2849 = vrot.slane %v2168, 3
        %v2850 = vsel %vm1136, %v2847, %v2849
        %v2851 = vrot.slane %v2169, 3
        %v2852 = vsel %vm1136, %v2849, %v2851
        %v2853 = vrot.slane %v2170, 3
        %v2854 = vsel %vm1136, %v2851, %v2853
        %v2855 = vrot.slane %v2171, 3
        %v2856 = vsel %vm1136, %v2853, %v2855
        %v2857 = vrot.slane %v2172, 3
        %v2858 = vsel %vm1136, %v2855, %v2857
        %v2859 = vrot.slane %v2173, 3
        %v2860 = vsel %vm1136, %v2857, %v2859
        %v2861 = vrot.slane %v2174, 3
        %v2862 = vsel %vm1136, %v2859, %v2861
        %v2863 = vrot.slane %v2175, 3
        %v2864 = vsel %vm1136, %v2861, %v2863
        %v2865 = vrot.slane %v2176, 3
        %v2866 = vsel %vm1136, %v2863, %v2865
        %v2867 = vrot.slane %v2177, 3
        %v2868 = vsel %vm1136, %v2865, %v2867
        %v2869 = vrot.slane %v2178, 3
        %v2870 = vsel %vm1136, %v2867, %v2869
        %v2872 = vsel %vm1321, %v2158, %v2323
        %v2874 = vsel %vm1321, %v2159, %v2325
        %v2876 = vsel %vm1321, %v2160, %v2327
        %v2878 = vsel %vm1321, %v2161, %v2329
        %v2880 = vsel %vm1321, %v2162, %v2331
        %v2882 = vsel %vm1321, %v2163, %v2333
        %v2884 = vsel %vm1321, %v2164, %v2335
        %v2886 = vsel %vm1321, %v2165, %v2337
        %v2888 = vsel %vm1321, %v2166, %v2339
        %v2890 = vsel %vm1321, %v2167, %v2341
        %v2892 = vsel %vm1321, %v2168, %v2343
        %v2894 = vsel %vm1321, %v2169, %v2345
        %v2896 = vsel %vm1321, %v2170, %v2347
        %v2898 = vsel %vm1321, %v2171, %v2349
        %v2900 = vsel %vm1321, %v2172, %v2351
        %v2902 = vsel %vm1321, %v2173, %v2353
        %v2904 = vsel %vm1321, %v2174, %v2355
        %v2906 = vsel %vm1321, %v2175, %v2357
        %v2908 = vsel %vm1469, %v2872, %v2412
        %v2910 = vsel %vm1469, %v2874, %v2414
        %v2912 = vsel %vm1469, %v2876, %v2416
        %v2914 = vsel %vm1469, %v2878, %v2418
        %v2916 = vsel %vm1469, %v2880, %v2420
        %v2918 = vsel %vm1469, %v2882, %v2422
        %v2920 = vsel %vm1469, %v2884, %v2424
        %v2922 = vsel %vm1469, %v2886, %v2426
        %v2924 = vsel %vm1469, %v2888, %v2428
        %v2926 = vsel %vm1469, %v2890, %v2430
        %v2928 = vsel %vm1469, %v2892, %v2432
        %v2930 = vsel %vm1469, %v2894, %v2434
        %v2932 = vsel %vm1469, %v2896, %v2436
        %v2934 = vsel %vm1469, %v2898, %v2438
        %v2936 = vsel %vm1469, %v2900, %v2440
        %v2938 = vsel %vm1469, %v2902, %v2442
        %v2940 = vsel %vm1469, %v2904, %v2444
        %v2942 = vsel %vm1469, %v2906, %v2446
        %vm2943 = vcmask 392192
        %v2945 = vsel %vm2943, %v2908, %v2451
        %v2947 = vsel %vm2943, %v2910, %v2453
        %v2949 = vsel %vm2943, %v2912, %v2455
        %v2951 = vsel %vm2943, %v2914, %v2457
        %v2953 = vsel %vm2943, %v2916, %v2459
        %v2955 = vsel %vm2943, %v2918, %v2461
        %v2957 = vsel %vm2943, %v2920, %v2463
        %v2959 = vsel %vm2943, %v2922, %v2465
        %v2961 = vsel %vm2943, %v2924, %v2467
        %v2963 = vsel %vm2943, %v2926, %v2469
        %v2965 = vsel %vm2943, %v2928, %v2471
        %v2967 = vsel %vm2943, %v2930, %v2473
        %v2969 = vsel %vm2943, %v2932, %v2475
        %v2971 = vsel %vm2943, %v2934, %v2477
        %v2973 = vsel %vm2943, %v2936, %v2479
        %v2975 = vsel %vm2943, %v2938, %v2481
        %v2977 = vsel %vm2943, %v2940, %v2483
        %v2979 = vsel %vm2943, %v2942, %v2485
        %vm2980 = vcmask 523264
        %v2982 = vsel %vm2980, %v2945, %v2568
        %v2984 = vsel %vm2980, %v2947, %v2570
        %v2986 = vsel %vm2980, %v2949, %v2572
        %v2988 = vsel %vm2980, %v2951, %v2574
        %v2990 = vsel %vm2980, %v2953, %v2576
        %v2992 = vsel %vm2980, %v2955, %v2578
        %v2994 = vsel %vm2980, %v2957, %v2580
        %v2996 = vsel %vm2980, %v2959, %v2582
        %v2998 = vsel %vm2980, %v2961, %v2584
        %v3000 = vsel %vm2980, %v2963, %v2586
        %v3002 = vsel %vm2980, %v2965, %v2588
        %v3004 = vsel %vm2980, %v2967, %v2590
        %v3006 = vsel %vm2980, %v2969, %v2592
        %v3008 = vsel %vm2980, %v2971, %v2594
        %v3010 = vsel %vm2980, %v2973, %v2596
        %v3012 = vsel %vm2980, %v2975, %v2598
        %v3014 = vsel %vm2980, %v2977, %v2600
        %v3016 = vsel %vm2980, %v2979, %v2602
        %vm3017 = vcmask 654336
        %v3019 = vsel %vm3017, %v2982, %v2642
        %v3021 = vsel %vm3017, %v2984, %v2644
        %v3023 = vsel %vm3017, %v2986, %v2646
        %v3025 = vsel %vm3017, %v2988, %v2648
        %v3027 = vsel %vm3017, %v2990, %v2650
        %v3029 = vsel %vm3017, %v2992, %v2652
        %v3031 = vsel %vm3017, %v2994, %v2654
        %v3033 = vsel %vm3017, %v2996, %v2656
        %v3035 = vsel %vm3017, %v2998, %v2658
        %v3037 = vsel %vm3017, %v3000, %v2660
        %v3039 = vsel %vm3017, %v3002, %v2662
        %v3041 = vsel %vm3017, %v3004, %v2664
        %v3043 = vsel %vm3017, %v3006, %v2666
        %v3045 = vsel %vm3017, %v3008, %v2668
        %v3047 = vsel %vm3017, %v3010, %v2670
        %v3049 = vsel %vm3017, %v3012, %v2672
        %v3051 = vsel %vm3017, %v3014, %v2674
        %v3053 = vsel %vm3017, %v3016, %v2676
        %vm3054 = vcmask 785408
        %v3056 = vsel %vm3054, %v3019, %v2681
        %v3058 = vsel %vm3054, %v3021, %v2683
        %v3060 = vsel %vm3054, %v3023, %v2685
        %v3062 = vsel %vm3054, %v3025, %v2687
        %v3064 = vsel %vm3054, %v3027, %v2689
        %v3066 = vsel %vm3054, %v3029, %v2691
        %v3068 = vsel %vm3054, %v3031, %v2693
        %v3070 = vsel %vm3054, %v3033, %v2695
        %v3072 = vsel %vm3054, %v3035, %v2697
        %v3074 = vsel %vm3054, %v3037, %v2699
        %v3076 = vsel %vm3054, %v3039, %v2701
        %v3078 = vsel %vm3054, %v3041, %v2703
        %v3080 = vsel %vm3054, %v3043, %v2705
        %v3082 = vsel %vm3054, %v3045, %v2707
        %v3084 = vsel %vm3054, %v3047, %v2709
        %v3086 = vsel %vm3054, %v3049, %v2711
        %v3088 = vsel %vm3054, %v3051, %v2713
        %v3090 = vsel %vm3054, %v3053, %v2715
        %vm3091 = vcmask 916480
        %v3093 = vsel %vm3091, %v3056, %v2799
        %v3096 = vsel %vm3091, %v3058, %v2801
        %v3099 = vsel %vm3091, %v3060, %v2803
        %v3102 = vsel %vm3091, %v3062, %v2805
        %v3105 = vsel %vm3091, %v3064, %v2807
        %v3108 = vsel %vm3091, %v3066, %v2809
        %v3111 = vsel %vm3091, %v3068, %v2811
        %v3114 = vsel %vm3091, %v3070, %v2813
        %v3117 = vsel %vm3091, %v3072, %v2815
        %v3120 = vsel %vm3091, %v3074, %v2817
        %v3123 = vsel %vm3091, %v3076, %v2819
        %v3126 = vsel %vm3091, %v3078, %v2821
        %v3129 = vsel %vm3091, %v3080, %v2823
        %v3132 = vsel %vm3091, %v3082, %v2825
        %v3135 = vsel %vm3091, %v3084, %v2827
        %v3138 = vsel %vm3091, %v3086, %v2829
        %v3141 = vsel %vm3091, %v3088, %v2831
        %v3144 = vsel %vm3091, %v3090, %v2833
        %v3146 = vld [vmem:[%s4] sm:$0xf]
        %v3147 = vld [vmem:[%s4 + $0x4] sm:$0xf]
        %v3148 = vld [vmem:[%s4 + $0x8] sm:$0xf]
        %v3149 = vld [vmem:[%s4 + $0xc] sm:$0xf]
        %v3150 = vld [vmem:[%s4 + $0x10] sm:$0xf]
        %v3151 = vld [vmem:[%s4 + $0x14] sm:$0xf]
        %v3152 = vld [vmem:[%s4 + $0x18] sm:$0xf]
        %v3153 = vld [vmem:[%s4 + $0x1c] sm:$0xf]
        %v3154 = vld [vmem:[%s4 + $0x20] sm:$0xf]
        %v3155 = vld [vmem:[%s4 + $0x24] sm:$0xf]
        %v3156 = vld [vmem:[%s4 + $0x28] sm:$0xf]
        %v3157 = vld [vmem:[%s4 + $0x2c] sm:$0xf]
        %v3158 = vld [vmem:[%s4 + $0x30] sm:$0xf]
        %v3159 = vld [vmem:[%s4 + $0x34] sm:$0xf]
        %v3160 = vld [vmem:[%s4 + $0x38] sm:$0xf]
        %v3161 = vld [vmem:[%s4 + $0x3c] sm:$0xf]
        %v3162 = vld [vmem:[%s4 + $0x40] sm:$0xf]
        %v3163 = vld [vmem:[%s4 + $0x44] sm:$0xf]
        %v3164 = vld [vmem:[%s5] sm:$0x1]
        %v3166 = vlaneseq
        %v3167 = vshrl.u32 %v3166, 7
        %v3168 = vsub.s32 0, %v3167
        %v3169 = vrot.slane %v3164, %v3168
        %v3189 = vunpack.c.l.b16 %v3146
        %v3190 = vunpack.c.l.b16 %v3147
        %v3191 = vunpack.c.l.b16 %v3148
        %v3192 = vunpack.c.l.b16 %v3149
        %v3193 = vunpack.c.l.b16 %v3150
        %v3194 = vunpack.c.l.b16 %v3151
        %v3195 = vunpack.c.l.b16 %v3152
        %v3196 = vunpack.c.l.b16 %v3153
        %v3197 = vunpack.c.l.b16 %v3154
        %v3198 = vunpack.c.l.b16 %v3155
        %v3199 = vunpack.c.l.b16 %v3156
        %v3200 = vunpack.c.l.b16 %v3157
        %v3201 = vunpack.c.l.b16 %v3158
        %v3202 = vunpack.c.l.b16 %v3159
        %v3203 = vunpack.c.l.b16 %v3160
        %v3204 = vunpack.c.l.b16 %v3161
        %v3205 = vunpack.c.l.b16 %v3162
        %v3206 = vunpack.c.l.b16 %v3163
        %v3207 = vpack.c.b16 %v3190, %v3189
        %v3208 = vpack.c.b16 %v3192, %v3191
        %v3209 = vpack.c.b16 %v3194, %v3193
        %v3210 = vpack.c.b16 %v3196, %v3195
        %v3211 = vpack.c.b16 %v3198, %v3197
        %v3212 = vpack.c.b16 %v3200, %v3199
        %v3213 = vpack.c.b16 %v3202, %v3201
        %v3214 = vpack.c.b16 %v3204, %v3203
        %v3215 = vpack.c.b16 %v3206, %v3205
        %v3226 = vsel %vm1321, %v2836, 0
        %v3229 = vsel %vm1321, %v2838, 0
        %v3232 = vsel %vm1321, %v2840, 0
        %v3235 = vsel %vm1321, %v2842, 0
        %v3238 = vsel %vm1321, %v2844, 0
        %v3241 = vsel %vm1321, %v2846, 0
        %v3244 = vsel %vm1321, %v2848, 0
        %v3247 = vsel %vm1321, %v2850, 0
        %v3250 = vsel %vm1321, %v2852, 0
        %v3253 = vsel %vm1321, %v2854, 0
        %v3256 = vsel %vm1321, %v2856, 0
        %v3259 = vsel %vm1321, %v2858, 0
        %v3262 = vsel %vm1321, %v2860, 0
        %v3265 = vsel %vm1321, %v2862, 0
        %v3268 = vsel %vm1321, %v2864, 0
        %v3271 = vsel %vm1321, %v2866, 0
        %v3274 = vsel %vm1321, %v2868, 0
        %v3277 = vsel %vm1321, %v2870, 0
        %3279 = vmatprep.subr.bf16.mxu0 0
        %3280 = vmatpush1.bf16.msra.mxu0 %v3214
        %3281 = vmatprep.subr.bf16.mxu0 0
        %3282 = vmatpush1.bf16.msra.mxu0 %v3213
        %3283 = vmatprep.subr.bf16.mxu0 0
        %3284 = vmatpush1.bf16.msra.mxu0 %v3212
        %3285 = vmatprep.subr.bf16.mxu0 0
        %3286 = vmatpush1.bf16.msra.mxu0 %v3211
        %3287 = vmatprep.subr.bf16.mxu0 0
        %3288 = vmatpush1.bf16.msra.mxu0 %v3210
        %3289 = vmatprep.subr.bf16.mxu0 0
        %3290 = vmatpush1.bf16.msra.mxu0 %v3209
        %3291 = vmatprep.subr.bf16.mxu0 0
        %3292 = vmatpush1.bf16.msra.mxu0 %v3208
        %3293 = vmatprep.subr.bf16.mxu0 0
        %3294 = vmatpush1.bf16.msra.mxu0 %v3207
        %3295 = vmatprep.subr.bf16.mxu0 0
        %3296 = vmatpush2.bf16.msra.mxu0 0
        %3297 = vmatprep.subr.bf16.mxu0 0
        %3298 = vmatpush2.bf16.msra.mxu0 0
        %3299 = vmatprep.subr.bf16.mxu0 0
        %3300 = vmatpush2.bf16.msra.mxu0 0
        %3301 = vmatprep.subr.bf16.mxu0 0
        %3302 = vmatpush2.bf16.msra.mxu0 0
        %3303 = vmatprep.subr.bf16.mxu0 0
        %3304 = vmatpush2.bf16.msra.mxu0 0
        %3305 = vmatprep.subr.bf16.mxu0 0
        %3306 = vmatpush2.bf16.msra.mxu0 0
        %3307 = vmatprep.subr.bf16.mxu0 0
        %3308 = vmatpush2.bf16.msra.mxu0 0
        %3309 = vmatprep.subr.bf16.mxu0 0
        %3310 = vmatpush2.bf16.msra.mxu0 %v3215
        %3311 = vmatprep.mubr.bf16.mxu0 %v3226
        %3312 = vmatmul.mubr.bf16.gmra.mxu0 %v3093
        %v3313 = vpop.f32.mrf.mxu0
        %v3314 = vadd.f32 %v3169, %v3313
        %v3315 = vpop.f32.mrf.mxu0
        %v3316 = vpop.f32.mrf.mxu0
        %v3317 = vadd.f32 %v3169, %v3316
        %v3318 = vpop.f32.mrf.mxu0
        %3319 = vmatprep.mubr.bf16.mxu0 %v3229
        %3320 = vmatmul.mubr.bf16.gmra.mxu0 %v3096
        %v3321 = vpop.f32.mrf.mxu0
        %v3322 = vadd.f32 %v3169, %v3321
        %v3323 = vpop.f32.mrf.mxu0
        %v3324 = vpop.f32.mrf.mxu0
        %v3325 = vadd.f32 %v3169, %v3324
        %v3326 = vpop.f32.mrf.mxu0
        %3327 = vmatprep.mubr.bf16.mxu0 %v3232
        %3328 = vmatmul.mubr.bf16.gmra.mxu0 %v3099
        %v3329 = vpop.f32.mrf.mxu0
        %v3330 = vadd.f32 %v3169, %v3329
        %v3331 = vpop.f32.mrf.mxu0
        %v3332 = vpop.f32.mrf.mxu0
        %v3333 = vadd.f32 %v3169, %v3332
        %v3334 = vpop.f32.mrf.mxu0
        %3335 = vmatprep.mubr.bf16.mxu0 %v3235
        %3336 = vmatmul.mubr.bf16.gmra.mxu0 %v3102
        %v3337 = vpop.f32.mrf.mxu0
        %v3338 = vadd.f32 %v3169, %v3337
        %v3339 = vpop.f32.mrf.mxu0
        %v3340 = vpop.f32.mrf.mxu0
        %v3341 = vadd.f32 %v3169, %v3340
        %v3342 = vpop.f32.mrf.mxu0
        %3343 = vmatprep.mubr.bf16.mxu0 %v3238
        %3344 = vmatmul.mubr.bf16.gmra.mxu0 %v3105
        %v3345 = vpop.f32.mrf.mxu0
        %v3346 = vadd.f32 %v3169, %v3345
        %v3347 = vpop.f32.mrf.mxu0
        %v3348 = vpop.f32.mrf.mxu0
        %v3349 = vadd.f32 %v3169, %v3348
        %v3350 = vpop.f32.mrf.mxu0
        %3351 = vmatprep.mubr.bf16.mxu0 %v3241
        %3352 = vmatmul.mubr.bf16.gmra.mxu0 %v3108
        %v3353 = vpop.f32.mrf.mxu0
        %v3354 = vadd.f32 %v3169, %v3353
        %v3355 = vpop.f32.mrf.mxu0
        %v3356 = vpop.f32.mrf.mxu0
        %v3357 = vadd.f32 %v3169, %v3356
        %v3358 = vpop.f32.mrf.mxu0
        %3359 = vmatprep.mubr.bf16.mxu0 %v3244
        %3360 = vmatmul.mubr.bf16.gmra.mxu0 %v3111
        %v3361 = vpop.f32.mrf.mxu0
        %v3362 = vadd.f32 %v3169, %v3361
        %v3363 = vpop.f32.mrf.mxu0
        %v3364 = vpop.f32.mrf.mxu0
        %v3365 = vadd.f32 %v3169, %v3364
        %v3366 = vpop.f32.mrf.mxu0
        %3367 = vmatprep.mubr.bf16.mxu0 %v3247
        %3368 = vmatmul.mubr.bf16.gmra.mxu0 %v3114
        %v3369 = vpop.f32.mrf.mxu0
        %v3370 = vadd.f32 %v3169, %v3369
        %v3371 = vpop.f32.mrf.mxu0
        %v3372 = vpop.f32.mrf.mxu0
        %v3373 = vadd.f32 %v3169, %v3372
        %v3374 = vpop.f32.mrf.mxu0
        %3375 = vmatprep.mubr.bf16.mxu0 %v3250
        %3376 = vmatmul.mubr.bf16.gmra.mxu0 %v3117
        %v3377 = vpop.f32.mrf.mxu0
        %v3378 = vadd.f32 %v3169, %v3377
        %v3379 = vpop.f32.mrf.mxu0
        %v3380 = vpop.f32.mrf.mxu0
        %v3381 = vadd.f32 %v3169, %v3380
        %v3382 = vpop.f32.mrf.mxu0
        %3383 = vmatprep.mubr.bf16.mxu0 %v3253
        %3384 = vmatmul.mubr.bf16.gmra.mxu0 %v3120
        %v3385 = vpop.f32.mrf.mxu0
        %v3386 = vadd.f32 %v3169, %v3385
        %v3387 = vpop.f32.mrf.mxu0
        %v3388 = vpop.f32.mrf.mxu0
        %v3389 = vadd.f32 %v3169, %v3388
        %v3390 = vpop.f32.mrf.mxu0
        %3391 = vmatprep.mubr.bf16.mxu0 %v3256
        %3392 = vmatmul.mubr.bf16.gmra.mxu0 %v3123
        %v3393 = vpop.f32.mrf.mxu0
        %v3394 = vadd.f32 %v3169, %v3393
        %v3395 = vpop.f32.mrf.mxu0
        %v3396 = vpop.f32.mrf.mxu0
        %v3397 = vadd.f32 %v3169, %v3396
        %v3398 = vpop.f32.mrf.mxu0
        %3399 = vmatprep.mubr.bf16.mxu0 %v3259
        %3400 = vmatmul.mubr.bf16.gmra.mxu0 %v3126
        %v3401 = vpop.f32.mrf.mxu0
        %v3402 = vadd.f32 %v3169, %v3401
        %v3403 = vpop.f32.mrf.mxu0
        %v3404 = vpop.f32.mrf.mxu0
        %v3405 = vadd.f32 %v3169, %v3404
        %v3406 = vpop.f32.mrf.mxu0
        %3407 = vmatprep.mubr.bf16.mxu0 %v3262
        %3408 = vmatmul.mubr.bf16.gmra.mxu0 %v3129
        %v3409 = vpop.f32.mrf.mxu0
        %v3410 = vadd.f32 %v3169, %v3409
        %v3411 = vpop.f32.mrf.mxu0
        %v3412 = vpop.f32.mrf.mxu0
        %v3413 = vadd.f32 %v3169, %v3412
        %v3414 = vpop.f32.mrf.mxu0
        %3415 = vmatprep.mubr.bf16.mxu0 %v3265
        %3416 = vmatmul.mubr.bf16.gmra.mxu0 %v3132
        %v3417 = vpop.f32.mrf.mxu0
        %v3418 = vadd.f32 %v3169, %v3417
        %v3419 = vpop.f32.mrf.mxu0
        %v3420 = vpop.f32.mrf.mxu0
        %v3421 = vadd.f32 %v3169, %v3420
        %v3422 = vpop.f32.mrf.mxu0
        %3423 = vmatprep.mubr.bf16.mxu0 %v3268
        %3424 = vmatmul.mubr.bf16.gmra.mxu0 %v3135
        %v3425 = vpop.f32.mrf.mxu0
        %v3426 = vadd.f32 %v3169, %v3425
        %v3427 = vpop.f32.mrf.mxu0
        %v3428 = vpop.f32.mrf.mxu0
        %v3429 = vadd.f32 %v3169, %v3428
        %v3430 = vpop.f32.mrf.mxu0
        %3431 = vmatprep.mubr.bf16.mxu0 %v3271
        %3432 = vmatmul.mubr.bf16.gmra.mxu0 %v3138
        %v3433 = vpop.f32.mrf.mxu0
        %v3434 = vadd.f32 %v3169, %v3433
        %v3435 = vpop.f32.mrf.mxu0
        %v3436 = vpop.f32.mrf.mxu0
        %v3437 = vadd.f32 %v3169, %v3436
        %v3438 = vpop.f32.mrf.mxu0
        %3439 = vmatprep.mubr.bf16.mxu0 %v3274
        %3440 = vmatmul.mubr.bf16.gmra.mxu0 %v3141
        %v3441 = vpop.f32.mrf.mxu0
        %v3442 = vadd.f32 %v3169, %v3441
        %v3443 = vpop.f32.mrf.mxu0
        %v3444 = vpop.f32.mrf.mxu0
        %v3445 = vadd.f32 %v3169, %v3444
        %v3446 = vpop.f32.mrf.mxu0
        %3447 = vmatprep.mubr.bf16.mxu0 %v3277
        %3448 = vmatmul.mubr.bf16.gmra.mxu0 %v3144
        %v3449 = vpop.f32.mrf.mxu0
        %v3450 = vadd.f32 %v3169, %v3449
        %v3451 = vpop.f32.mrf.mxu0
        %v3452 = vpop.f32.mrf.mxu0
        %v3453 = vadd.f32 %v3169, %v3452
        %v3454 = vpop.f32.mrf.mxu0
        %3455 = vdwg.mxu0
        %v3456 = vmax.f32 %v3314, 0.0
        %v3457 = vmax.f32 %v3317, 0.0
        %v3458 = vmax.f32 %v3322, 0.0
        %v3459 = vmax.f32 %v3325, 0.0
        %v3460 = vmax.f32 %v3330, 0.0
        %v3461 = vmax.f32 %v3333, 0.0
        %v3462 = vmax.f32 %v3338, 0.0
        %v3463 = vmax.f32 %v3341, 0.0
        %v3464 = vmax.f32 %v3346, 0.0
        %v3465 = vmax.f32 %v3349, 0.0
        %v3466 = vmax.f32 %v3354, 0.0
        %v3467 = vmax.f32 %v3357, 0.0
        %v3468 = vmax.f32 %v3362, 0.0
        %v3469 = vmax.f32 %v3365, 0.0
        %v3470 = vmax.f32 %v3370, 0.0
        %v3471 = vmax.f32 %v3373, 0.0
        %v3472 = vmax.f32 %v3378, 0.0
        %v3473 = vmax.f32 %v3381, 0.0
        %v3474 = vmax.f32 %v3386, 0.0
        %v3475 = vmax.f32 %v3389, 0.0
        %v3476 = vmax.f32 %v3394, 0.0
        %v3477 = vmax.f32 %v3397, 0.0
        %v3478 = vmax.f32 %v3402, 0.0
        %v3479 = vmax.f32 %v3405, 0.0
        %v3480 = vmax.f32 %v3410, 0.0
        %v3481 = vmax.f32 %v3413, 0.0
        %v3482 = vmax.f32 %v3418, 0.0
        %v3483 = vmax.f32 %v3421, 0.0
        %v3484 = vmax.f32 %v3426, 0.0
        %v3485 = vmax.f32 %v3429, 0.0
        %v3486 = vmax.f32 %v3434, 0.0
        %v3487 = vmax.f32 %v3437, 0.0
        %v3488 = vmax.f32 %v3442, 0.0
        %v3489 = vmax.f32 %v3445, 0.0
        %v3490 = vmax.f32 %v3450, 0.0
        %v3491 = vmax.f32 %v3453, 0.0
        %vm3526 = vcmask 1046528
        %v3527 = vrot.slane %v3456, 1
        %v3528 = vrot.slane %v3457, 1
        %v3529 = vsel %vm3526, %v3527, %v3528
        %v3530 = vrot.slane %v3458, 1
        %v3531 = vsel %vm3526, %v3528, %v3530
        %v3532 = vrot.slane %v3459, 1
        %v3533 = vsel %vm3526, %v3530, %v3532
        %v3534 = vrot.slane %v3460, 1
        %v3535 = vsel %vm3526, %v3532, %v3534
        %v3536 = vrot.slane %v3461, 1
        %v3537 = vsel %vm3526, %v3534, %v3536
        %v3538 = vrot.slane %v3462, 1
        %v3539 = vsel %vm3526, %v3536, %v3538
        %v3540 = vrot.slane %v3463, 1
        %v3541 = vsel %vm3526, %v3538, %v3540
        %v3542 = vrot.slane %v3464, 1
        %v3543 = vsel %vm3526, %v3540, %v3542
        %v3544 = vrot.slane %v3465, 1
        %v3545 = vsel %vm3526, %v3542, %v3544
        %v3546 = vrot.slane %v3466, 1
        %v3547 = vsel %vm3526, %v3544, %v3546
        %v3548 = vrot.slane %v3467, 1
        %v3549 = vsel %vm3526, %v3546, %v3548
        %v3550 = vrot.slane %v3468, 1
        %v3551 = vsel %vm3526, %v3548, %v3550
        %v3552 = vrot.slane %v3469, 1
        %v3553 = vsel %vm3526, %v3550, %v3552
        %v3554 = vrot.slane %v3470, 1
        %v3555 = vsel %vm3526, %v3552, %v3554
        %v3556 = vrot.slane %v3471, 1
        %v3557 = vsel %vm3526, %v3554, %v3556
        %v3558 = vrot.slane %v3472, 1
        %v3559 = vsel %vm3526, %v3556, %v3558
        %v3560 = vrot.slane %v3473, 1
        %v3561 = vsel %vm3526, %v3558, %v3560
        %v3562 = vrot.slane %v3474, 1
        %v3563 = vsel %vm3526, %v3560, %v3562
        %v3564 = vrot.slane %v3475, 1
        %v3565 = vsel %vm3526, %v3562, %v3564
        %v3566 = vrot.slane %v3476, 1
        %v3567 = vsel %vm3526, %v3564, %v3566
        %v3568 = vrot.slane %v3477, 1
        %v3569 = vsel %vm3526, %v3566, %v3568
        %v3570 = vrot.slane %v3478, 1
        %v3571 = vsel %vm3526, %v3568, %v3570
        %v3572 = vrot.slane %v3479, 1
        %v3573 = vsel %vm3526, %v3570, %v3572
        %v3574 = vrot.slane %v3480, 1
        %v3575 = vsel %vm3526, %v3572, %v3574
        %v3576 = vrot.slane %v3481, 1
        %v3577 = vsel %vm3526, %v3574, %v3576
        %v3578 = vrot.slane %v3482, 1
        %v3579 = vsel %vm3526, %v3576, %v3578
        %v3580 = vrot.slane %v3483, 1
        %v3581 = vsel %vm3526, %v3578, %v3580
        %v3582 = vrot.slane %v3484, 1
        %v3583 = vsel %vm3526, %v3580, %v3582
        %v3584 = vrot.slane %v3485, 1
        %v3585 = vsel %vm3526, %v3582, %v3584
        %v3586 = vrot.slane %v3486, 1
        %v3587 = vsel %vm3526, %v3584, %v3586
        %v3588 = vrot.slane %v3487, 1
        %v3589 = vsel %vm3526, %v3586, %v3588
        %v3590 = vrot.slane %v3488, 1
        %v3591 = vsel %vm3526, %v3588, %v3590
        %v3592 = vrot.slane %v3489, 1
        %v3593 = vsel %vm3526, %v3590, %v3592
        %v3628 = vmax.f32 %v3456, %v3529
        %v3629 = vmax.f32 %v3457, %v3531
        %v3630 = vmax.f32 %v3458, %v3533
        %v3631 = vmax.f32 %v3459, %v3535
        %v3632 = vmax.f32 %v3460, %v3537
        %v3633 = vmax.f32 %v3461, %v3539
        %v3634 = vmax.f32 %v3462, %v3541
        %v3635 = vmax.f32 %v3463, %v3543
        %v3636 = vmax.f32 %v3464, %v3545
        %v3637 = vmax.f32 %v3465, %v3547
        %v3638 = vmax.f32 %v3466, %v3549
        %v3639 = vmax.f32 %v3467, %v3551
        %v3640 = vmax.f32 %v3468, %v3553
        %v3641 = vmax.f32 %v3469, %v3555
        %v3642 = vmax.f32 %v3470, %v3557
        %v3643 = vmax.f32 %v3471, %v3559
        %v3644 = vmax.f32 %v3472, %v3561
        %v3645 = vmax.f32 %v3473, %v3563
        %v3646 = vmax.f32 %v3474, %v3565
        %v3647 = vmax.f32 %v3475, %v3567
        %v3648 = vmax.f32 %v3476, %v3569
        %v3649 = vmax.f32 %v3477, %v3571
        %v3650 = vmax.f32 %v3478, %v3573
        %v3651 = vmax.f32 %v3479, %v3575
        %v3652 = vmax.f32 %v3480, %v3577
        %v3653 = vmax.f32 %v3481, %v3579
        %v3654 = vmax.f32 %v3482, %v3581
        %v3655 = vmax.f32 %v3483, %v3583
        %v3656 = vmax.f32 %v3484, %v3585
        %v3657 = vmax.f32 %v3485, %v3587
        %v3658 = vmax.f32 %v3486, %v3589
        %v3659 = vmax.f32 %v3487, %v3591
        %v3660 = vmax.f32 %v3488, %v3593
        %v3661 = vmax.f32 %v3489, %v3592
        %v3664 = vrot.slane %v3490, 1
        %v3665 = vsel %vm3526, %v3592, %v3664
        %v3666 = vrot.slane %v3491, 1
        %v3667 = vsel %vm3526, %v3664, %v3666
        %v3671 = vmax.f32 %v3489, %v3665
        %v3672 = vmax.f32 %v3490, %v3667
        %v3673 = vmax.f32 %v3491, %v3666
        %vm3708 = vcmask 1045504
        %v3709 = vrot.slane %v3630, 2
        %v3710 = vrot.slane %v3631, 2
        %v3711 = vsel %vm3708, %v3709, %v3710
        %v3712 = vrot.slane %v3632, 2
        %v3713 = vsel %vm3708, %v3710, %v3712
        %v3714 = vrot.slane %v3633, 2
        %v3715 = vsel %vm3708, %v3712, %v3714
        %v3716 = vrot.slane %v3634, 2
        %v3717 = vsel %vm3708, %v3714, %v3716
        %v3718 = vrot.slane %v3635, 2
        %v3719 = vsel %vm3708, %v3716, %v3718
        %v3720 = vrot.slane %v3636, 2
        %v3721 = vsel %vm3708, %v3718, %v3720
        %v3722 = vrot.slane %v3637, 2
        %v3723 = vsel %vm3708, %v3720, %v3722
        %v3724 = vrot.slane %v3638, 2
        %v3725 = vsel %vm3708, %v3722, %v3724
        %v3726 = vrot.slane %v3639, 2
        %v3727 = vsel %vm3708, %v3724, %v3726
        %v3728 = vrot.slane %v3640, 2
        %v3729 = vsel %vm3708, %v3726, %v3728
        %v3730 = vrot.slane %v3641, 2
        %v3731 = vsel %vm3708, %v3728, %v3730
        %v3732 = vrot.slane %v3642, 2
        %v3733 = vsel %vm3708, %v3730, %v3732
        %v3734 = vrot.slane %v3643, 2
        %v3735 = vsel %vm3708, %v3732, %v3734
        %v3736 = vrot.slane %v3644, 2
        %v3737 = vsel %vm3708, %v3734, %v3736
        %v3738 = vrot.slane %v3645, 2
        %v3739 = vsel %vm3708, %v3736, %v3738
        %v3740 = vrot.slane %v3646, 2
        %v3741 = vsel %vm3708, %v3738, %v3740
        %v3742 = vrot.slane %v3647, 2
        %v3743 = vsel %vm3708, %v3740, %v3742
        %v3744 = vrot.slane %v3648, 2
        %v3745 = vsel %vm3708, %v3742, %v3744
        %v3746 = vrot.slane %v3649, 2
        %v3747 = vsel %vm3708, %v3744, %v3746
        %v3748 = vrot.slane %v3650, 2
        %v3749 = vsel %vm3708, %v3746, %v3748
        %v3750 = vrot.slane %v3651, 2
        %v3751 = vsel %vm3708, %v3748, %v3750
        %v3752 = vrot.slane %v3652, 2
        %v3753 = vsel %vm3708, %v3750, %v3752
        %v3754 = vrot.slane %v3653, 2
        %v3755 = vsel %vm3708, %v3752, %v3754
        %v3756 = vrot.slane %v3654, 2
        %v3757 = vsel %vm3708, %v3754, %v3756
        %v3758 = vrot.slane %v3655, 2
        %v3759 = vsel %vm3708, %v3756, %v3758
        %v3760 = vrot.slane %v3656, 2
        %v3761 = vsel %vm3708, %v3758, %v3760
        %v3762 = vrot.slane %v3657, 2
        %v3763 = vsel %vm3708, %v3760, %v3762
        %v3764 = vrot.slane %v3658, 2
        %v3765 = vsel %vm3708, %v3762, %v3764
        %v3766 = vrot.slane %v3659, 2
        %v3767 = vsel %vm3708, %v3764, %v3766
        %v3768 = vrot.slane %v3660, 2
        %v3769 = vsel %vm3708, %v3766, %v3768
        %v3770 = vrot.slane %v3671, 2
        %v3771 = vsel %vm3708, %v3768, %v3770
        %v3772 = vrot.slane %v3672, 2
        %v3773 = vsel %vm3708, %v3770, %v3772
        %v3774 = vrot.slane %v3673, 2
        %v3775 = vsel %vm3708, %v3772, %v3774
        %v3810 = vmax.f32 %v3628, %v3711
        %v3811 = vmax.f32 %v3629, %v3713
        %v3812 = vmax.f32 %v3630, %v3715
        %v3813 = vmax.f32 %v3631, %v3717
        %v3814 = vmax.f32 %v3632, %v3719
        %v3815 = vmax.f32 %v3633, %v3721
        %v3816 = vmax.f32 %v3634, %v3723
        %v3817 = vmax.f32 %v3635, %v3725
        %v3818 = vmax.f32 %v3636, %v3727
        %v3819 = vmax.f32 %v3637, %v3729
        %v3820 = vmax.f32 %v3638, %v3731
        %v3821 = vmax.f32 %v3639, %v3733
        %v3822 = vmax.f32 %v3640, %v3735
        %v3823 = vmax.f32 %v3641, %v3737
        %v3824 = vmax.f32 %v3642, %v3739
        %v3825 = vmax.f32 %v3643, %v3741
        %v3826 = vmax.f32 %v3644, %v3743
        %v3827 = vmax.f32 %v3645, %v3745
        %v3828 = vmax.f32 %v3646, %v3747
        %v3829 = vmax.f32 %v3647, %v3749
        %v3830 = vmax.f32 %v3648, %v3751
        %v3831 = vmax.f32 %v3649, %v3753
        %v3832 = vmax.f32 %v3650, %v3755
        %v3833 = vmax.f32 %v3651, %v3757
        %v3834 = vmax.f32 %v3652, %v3759
        %v3835 = vmax.f32 %v3653, %v3761
        %v3836 = vmax.f32 %v3654, %v3763
        %v3837 = vmax.f32 %v3655, %v3765
        %v3838 = vmax.f32 %v3656, %v3767
        %v3839 = vmax.f32 %v3657, %v3769
        %v3840 = vmax.f32 %v3658, %v3771
        %v3841 = vmax.f32 %v3659, %v3773
        %v3842 = vmax.f32 %v3660, %v3775
        %v3843 = vmax.f32 %v3661, %v3774
        %3844 = vst.msk [vmem:[#allocation3] sm:$0xff] %vm1469, %v3810
        %3845 = vst.msk [vmem:[#allocation3 + $0x8] sm:$0xff] %vm1469, %v3811
        %3846 = vst.msk [vmem:[#allocation3 + $0x10] sm:$0xff] %vm1469, %v3812
        %3847 = vst.msk [vmem:[#allocation3 + $0x18] sm:$0xff] %vm1469, %v3813
        %3848 = vst.msk [vmem:[#allocation3 + $0x20] sm:$0xff] %vm1469, %v3814
        %3849 = vst.msk [vmem:[#allocation3 + $0x28] sm:$0xff] %vm1469, %v3815
        %3850 = vst.msk [vmem:[#allocation3 + $0x30] sm:$0xff] %vm1469, %v3816
        %3851 = vst.msk [vmem:[#allocation3 + $0x38] sm:$0xff] %vm1469, %v3817
        %3852 = vst.msk [vmem:[#allocation3 + $0x40] sm:$0xff] %vm1469, %v3818
        %3853 = vst.msk [vmem:[#allocation3 + $0x48] sm:$0xff] %vm1469, %v3819
        %3854 = vst.msk [vmem:[#allocation3 + $0x50] sm:$0xff] %vm1469, %v3820
        %3855 = vst.msk [vmem:[#allocation3 + $0x58] sm:$0xff] %vm1469, %v3821
        %3856 = vst.msk [vmem:[#allocation3 + $0x60] sm:$0xff] %vm1469, %v3822
        %3857 = vst.msk [vmem:[#allocation3 + $0x68] sm:$0xff] %vm1469, %v3823
        %3858 = vst.msk [vmem:[#allocation3 + $0x70] sm:$0xff] %vm1469, %v3824
        %3859 = vst.msk [vmem:[#allocation3 + $0x78] sm:$0xff] %vm1469, %v3825
        %3860 = vst.msk [vmem:[#allocation3 + $0x80] sm:$0xff] %vm1469, %v3826
        %3861 = vst.msk [vmem:[#allocation3 + $0x88] sm:$0xff] %vm1469, %v3827
        %3862 = vst.msk [vmem:[#allocation3 + $0x90] sm:$0xff] %vm1469, %v3828
        %3863 = vst.msk [vmem:[#allocation3 + $0x98] sm:$0xff] %vm1469, %v3829
        %3864 = vst.msk [vmem:[#allocation3 + $0xa0] sm:$0xff] %vm1469, %v3830
        %3865 = vst.msk [vmem:[#allocation3 + $0xa8] sm:$0xff] %vm1469, %v3831
        %3866 = vst.msk [vmem:[#allocation3 + $0xb0] sm:$0xff] %vm1469, %v3832
        %3867 = vst.msk [vmem:[#allocation3 + $0xb8] sm:$0xff] %vm1469, %v3833
        %3868 = vst.msk [vmem:[#allocation3 + $0xc0] sm:$0xff] %vm1469, %v3834
        %3869 = vst.msk [vmem:[#allocation3 + $0xc8] sm:$0xff] %vm1469, %v3835
        %3870 = vst.msk [vmem:[#allocation3 + $0xd0] sm:$0xff] %vm1469, %v3836
        %3871 = vst.msk [vmem:[#allocation3 + $0xd8] sm:$0xff] %vm1469, %v3837
        %3872 = vst.msk [vmem:[#allocation3 + $0xe0] sm:$0xff] %vm1469, %v3838
        %3873 = vst.msk [vmem:[#allocation3 + $0xe8] sm:$0xff] %vm1469, %v3839
        %3874 = vst.msk [vmem:[#allocation3 + $0xf0] sm:$0xff] %vm1469, %v3840
        %3875 = vst.msk [vmem:[#allocation3 + $0xf8] sm:$0xff] %vm1469, %v3841
        %3876 = vst.msk [vmem:[#allocation3 + $0x100] sm:$0xff] %vm1469, %v3842
        %vm3877 = vcmask 256000
        %3878 = vst.msk [vmem:[#allocation3 + $0x108] sm:$0x7] %vm3877, %v3843
        %3879 = vst.msk [vmem:[#allocation4] sm:$0xff] %vm1469, 0.0
        %3880 = vst.msk [vmem:[#allocation4 + $0x8] sm:$0xff] %vm1469, 0.0
        %3881 = vst.msk [vmem:[#allocation4 + $0x10] sm:$0xff] %vm1469, 0.0
        %3882 = vst.msk [vmem:[#allocation4 + $0x18] sm:$0xff] %vm1469, 0.0
        %3883 = vst.msk [vmem:[#allocation4 + $0x20] sm:$0xff] %vm1469, 0.0
        %3884 = vst.msk [vmem:[#allocation4 + $0x28] sm:$0xff] %vm1469, 0.0
        %3885 = vst.msk [vmem:[#allocation4 + $0x30] sm:$0xff] %vm1469, 0.0
        %3886 = vst.msk [vmem:[#allocation4 + $0x38] sm:$0xff] %vm1469, 0.0
        %3887 = vst.msk [vmem:[#allocation4 + $0x40] sm:$0xff] %vm1469, 0.0
        %3888 = vst.msk [vmem:[#allocation4 + $0x48] sm:$0xff] %vm1469, 0.0
        %3889 = vst.msk [vmem:[#allocation4 + $0x50] sm:$0xff] %vm1469, 0.0
        %3890 = vst.msk [vmem:[#allocation4 + $0x58] sm:$0xff] %vm1469, 0.0
        %vm3891 = vcmask 257024
        %3892 = vst.msk [vmem:[#allocation4 + $0x60] sm:$0xf] %vm3891, 0.0
        %v3893 = vld [vmem:[#allocation3] ss:$2 sm:$0xff]
        %3894 = vst.msk [vmem:[#allocation4 + $0xb] sm:$0xff] %vm1469, %v3893
        %s3895 = scalar_lea.vmem [#allocation3], 36
        %v3896 = vld [vmem:[%s3895] ss:$2 sm:$0xff]
        %3897 = vst.msk [vmem:[#allocation4 + $0x15] sm:$0xff] %vm1469, %v3896
        %s3898 = scalar_lea.vmem [#allocation3], 72
        %v3899 = vld [vmem:[%s3898] ss:$2 sm:$0xff]
        %3900 = vst.msk [vmem:[#allocation4 + $0x1f] sm:$0xff] %vm1469, %v3899
        %s3901 = scalar_lea.vmem [#allocation3], 108
        %v3902 = vld [vmem:[%s3901] ss:$2 sm:$0xff]
        %3903 = vst.msk [vmem:[#allocation4 + $0x29] sm:$0xff] %vm1469, %v3902
        %s3904 = scalar_lea.vmem [#allocation3], 144
        %v3905 = vld [vmem:[%s3904] ss:$2 sm:$0xff]
        %3906 = vst.msk [vmem:[#allocation4 + $0x33] sm:$0xff] %vm1469, %v3905
        %s3907 = scalar_lea.vmem [#allocation3], 180
        %v3908 = vld [vmem:[%s3907] ss:$2 sm:$0xff]
        %3909 = vst.msk [vmem:[#allocation4 + $0x3d] sm:$0xff] %vm1469, %v3908
        %s3910 = scalar_lea.vmem [#allocation3], 216
        %v3911 = vld [vmem:[%s3910] ss:$2 sm:$0xff]
        %3912 = vst.msk [vmem:[#allocation4 + $0x47] sm:$0xff] %vm1469, %v3911
        %s3913 = scalar_lea.vmem [#allocation3], 252
        %v3914 = vld [vmem:[%s3913] ss:$2 sm:$0xff]
        %3915 = vst.msk [vmem:[#allocation4 + $0x51] sm:$0xff] %vm1469, %v3914
        %v3916 = vld [vmem:[#allocation4] sm:$0xff]
        %v3917 = vld [vmem:[#allocation4 + $0x8] sm:$0xff]
        %v3918 = vld [vmem:[#allocation4 + $0x10] sm:$0xff]
        %v3919 = vld [vmem:[#allocation4 + $0x18] sm:$0xff]
        %v3920 = vld [vmem:[#allocation4 + $0x20] sm:$0xff]
        %v3921 = vld [vmem:[#allocation4 + $0x28] sm:$0xff]
        %v3922 = vld [vmem:[#allocation4 + $0x30] sm:$0xff]
        %v3923 = vld [vmem:[#allocation4 + $0x38] sm:$0xff]
        %v3924 = vld [vmem:[#allocation4 + $0x40] sm:$0xff]
        %v3925 = vld [vmem:[#allocation4 + $0x48] sm:$0xff]
        %v3926 = vld [vmem:[#allocation4 + $0x50] sm:$0xff]
        %v3927 = vld [vmem:[#allocation4 + $0x58] sm:$0xff]
        %v3928 = vld [vmem:[#allocation4 + $0x60] sm:$0xf]
        %v3929 = vpack.c.bf16 %v3917, %v3916
        %v3930 = vpack.c.bf16 %v3919, %v3918
        %v3931 = vpack.c.bf16 %v3921, %v3920
        %v3932 = vpack.c.bf16 %v3923, %v3922
        %v3933 = vpack.c.bf16 %v3925, %v3924
        %v3934 = vpack.c.bf16 %v3927, %v3926
        %v3935 = vpack.c.bf16 %v3928, %v3928
        %v3937 = vshrl.u32 %v3929, 16
        %v3939 = vshll.u32 %v3929, 16
        %v3941 = vrot.slane %v3939, 1
        %v3942 = vor.u32 %v3937, %v3941
        %v3944 = vshll.u32 %v3930, 16
        %v3946 = vrot.slane %v3944, 1
        %v3947 = vsel %vm476, %v3942, %v3946
        %v3948 = vshrl.u32 %v3930, 16
        %v3950 = vor.u32 %v3948, %v3946
        %v3952 = vshll.u32 %v3931, 16
        %v3954 = vrot.slane %v3952, 1
        %v3955 = vsel %vm476, %v3950, %v3954
        %v3956 = vshrl.u32 %v3931, 16
        %v3958 = vor.u32 %v3956, %v3954
        %v3960 = vshll.u32 %v3932, 16
        %v3962 = vrot.slane %v3960, 1
        %v3963 = vsel %vm476, %v3958, %v3962
        %v3964 = vshrl.u32 %v3932, 16
        %v3966 = vor.u32 %v3964, %v3962
        %v3968 = vshll.u32 %v3933, 16
        %v3970 = vrot.slane %v3968, 1
        %v3971 = vsel %vm476, %v3966, %v3970
        %v3972 = vshrl.u32 %v3933, 16
        %v3974 = vor.u32 %v3972, %v3970
        %3975 = vrot.lane.b32.xlu0 %v3947, 32
        %v3976 = vpop.permute.xlu0 %3975
        %3977 = vrot.lane.b32.xlu0 %v3955, 32
        %v3978 = vpop.permute.xlu0 %3977
        %3979 = vrot.lane.b32.xlu0 %v3963, 32
        %v3980 = vpop.permute.xlu0 %3979
        %3981 = vrot.lane.b32.xlu0 %v3971, 32
        %v3982 = vpop.permute.xlu0 %3981
        %3983 = vrot.lane.b32.xlu0 %v3974, 32
        %v3984 = vpop.permute.xlu0 %3983
        %v3990 = vrot.slane %v3929, 1
        %v3991 = vrot.slane %v3930, 1
        %v3992 = vsel %vm674, %v3990, %v3991
        %v3993 = vrot.slane %v3931, 1
        %v3994 = vsel %vm674, %v3991, %v3993
        %v3995 = vrot.slane %v3932, 1
        %v3996 = vsel %vm674, %v3993, %v3995
        %v3997 = vrot.slane %v3933, 1
        %v3998 = vsel %vm674, %v3995, %v3997
        %3999 = vrot.lane.b32.xlu0 %v3992, 64
        %v4000 = vpop.permute.xlu0 %3999
        %4001 = vrot.lane.b32.xlu0 %v3994, 64
        %v4002 = vpop.permute.xlu0 %4001
        %4003 = vrot.lane.b32.xlu0 %v3996, 64
        %v4004 = vpop.permute.xlu0 %4003
        %4005 = vrot.lane.b32.xlu0 %v3998, 64
        %v4006 = vpop.permute.xlu0 %4005
        %4007 = vrot.lane.b32.xlu0 %v3997, 64
        %v4008 = vpop.permute.xlu0 %4007
        %vm4010 = vcmask 1042432
        %v4011 = vrot.slane %v3929, 5
        %v4012 = vrot.slane %v3930, 5
        %v4013 = vsel %vm4010, %v4011, %v4012
        %v4014 = vrot.slane %v3931, 5
        %v4015 = vsel %vm4010, %v4012, %v4014
        %v4016 = vrot.slane %v3932, 5
        %v4017 = vsel %vm4010, %v4014, %v4016
        %v4018 = vrot.slane %v3933, 5
        %v4019 = vsel %vm4010, %v4016, %v4018
        %v4020 = vrot.slane %v3934, 5
        %v4021 = vsel %vm4010, %v4018, %v4020
        %4022 = vrot.lane.b32.xlu0 %v4013, 96
        %v4023 = vpop.permute.xlu0 %4022
        %4024 = vrot.lane.b32.xlu0 %v4015, 96
        %v4025 = vpop.permute.xlu0 %4024
        %4026 = vrot.lane.b32.xlu0 %v4017, 96
        %v4027 = vpop.permute.xlu0 %4026
        %4028 = vrot.lane.b32.xlu0 %v4019, 96
        %v4029 = vpop.permute.xlu0 %4028
        %4030 = vrot.lane.b32.xlu0 %v4021, 96
        %v4031 = vpop.permute.xlu0 %4030
        %vm4032 = vsmask.f32 2304
        %v4033 = vrot.slane %v3937, 5
        %v4034 = vrot.slane %v3939, 6
        %v4035 = vor.u32 %v4033, %v4034
        %v4036 = vrot.slane %v3948, 5
        %v4037 = vrot.slane %v3944, 6
        %v4038 = vor.u32 %v4036, %v4037
        %v4039 = vsel %vm4032, %v4035, %v4038
        %v4040 = vrot.slane %v3956, 5
        %v4041 = vrot.slane %v3952, 6
        %v4042 = vor.u32 %v4040, %v4041
        %v4043 = vsel %vm4032, %v4038, %v4042
        %v4044 = vrot.slane %v3964, 5
        %v4045 = vrot.slane %v3960, 6
        %v4046 = vor.u32 %v4044, %v4045
        %v4047 = vsel %vm4032, %v4042, %v4046
        %v4048 = vrot.slane %v3972, 5
        %v4049 = vrot.slane %v3968, 6
        %v4050 = vor.u32 %v4048, %v4049
        %v4051 = vsel %vm4032, %v4046, %v4050
        %v4053 = vshrl.u32 %v3934, 16
        %v4055 = vrot.slane %v4053, 5
        %v4056 = vshll.u32 %v3934, 16
        %v4058 = vrot.slane %v4056, 6
        %v4059 = vor.u32 %v4055, %v4058
        %v4060 = vsel %vm4032, %v4050, %v4059
        %vm4061 = vcmask 1041408
        %v4062 = vrot.slane %v3929, 6
        %v4063 = vrot.slane %v3930, 6
        %v4064 = vsel %vm4061, %v4062, %v4063
        %v4065 = vrot.slane %v3931, 6
        %v4066 = vsel %vm4061, %v4063, %v4065
        %v4067 = vrot.slane %v3932, 6
        %v4068 = vsel %vm4061, %v4065, %v4067
        %v4069 = vrot.slane %v3933, 6
        %v4070 = vsel %vm4061, %v4067, %v4069
        %v4071 = vrot.slane %v3934, 6
        %v4072 = vsel %vm4061, %v4069, %v4071
        %4073 = vrot.lane.b32.xlu0 %v4064, 32
        %v4074 = vpop.permute.xlu0 %4073
        %4075 = vrot.lane.b32.xlu0 %v4066, 32
        %v4076 = vpop.permute.xlu0 %4075
        %4077 = vrot.lane.b32.xlu0 %v4068, 32
        %v4078 = vpop.permute.xlu0 %4077
        %4079 = vrot.lane.b32.xlu0 %v4070, 32
        %v4080 = vpop.permute.xlu0 %4079
        %4081 = vrot.lane.b32.xlu0 %v4072, 32
        %v4082 = vpop.permute.xlu0 %4081
        %v4084 = vrot.slane %v3930, 2
        %v4085 = vrot.slane %v3931, 2
        %v4086 = vsel %vm904, %v4084, %v4085
        %v4087 = vrot.slane %v3932, 2
        %v4088 = vsel %vm904, %v4085, %v4087
        %v4089 = vrot.slane %v3933, 2
        %v4090 = vsel %vm904, %v4087, %v4089
        %v4091 = vrot.slane %v3934, 2
        %v4092 = vsel %vm904, %v4089, %v4091
        %v4093 = vrot.slane %v3935, 2
        %v4094 = vsel %vm904, %v4091, %v4093
        %4095 = vrot.lane.b32.xlu0 %v4086, 64
        %v4096 = vpop.permute.xlu0 %4095
        %4097 = vrot.lane.b32.xlu0 %v4088, 64
        %v4098 = vpop.permute.xlu0 %4097
        %4099 = vrot.lane.b32.xlu0 %v4090, 64
        %v4100 = vpop.permute.xlu0 %4099
        %4101 = vrot.lane.b32.xlu0 %v4092, 64
        %v4102 = vpop.permute.xlu0 %4101
        %4103 = vrot.lane.b32.xlu0 %v4094, 64
        %v4104 = vpop.permute.xlu0 %4103
        %v4105 = vrot.slane %v3948, 2
        %v4106 = vrot.slane %v3944, 3
        %v4107 = vor.u32 %v4105, %v4106
        %v4108 = vrot.slane %v3956, 2
        %v4109 = vrot.slane %v3952, 3
        %v4110 = vor.u32 %v4108, %v4109
        %v4111 = vsel %vm1017, %v4107, %v4110
        %v4112 = vrot.slane %v3964, 2
        %v4113 = vrot.slane %v3960, 3
        %v4114 = vor.u32 %v4112, %v4113
        %v4115 = vsel %vm1017, %v4110, %v4114
        %v4116 = vrot.slane %v3972, 2
        %v4117 = vrot.slane %v3968, 3
        %v4118 = vor.u32 %v4116, %v4117
        %v4119 = vsel %vm1017, %v4114, %v4118
        %v4120 = vrot.slane %v4053, 2
        %v4121 = vrot.slane %v4056, 3
        %v4122 = vor.u32 %v4120, %v4121
        %v4123 = vsel %vm1017, %v4118, %v4122
        %v4125 = vshrl.u32 %v3935, 16
        %v4127 = vrot.slane %v4125, 2
        %v4128 = vshll.u32 %v3935, 16
        %v4130 = vrot.slane %v4128, 3
        %v4131 = vor.u32 %v4127, %v4130
        %v4132 = vsel %vm1017, %v4122, %v4131
        %4133 = vrot.lane.b32.xlu0 %v4111, 96
        %v4134 = vpop.permute.xlu0 %4133
        %4135 = vrot.lane.b32.xlu0 %v4115, 96
        %v4136 = vpop.permute.xlu0 %4135
        %4137 = vrot.lane.b32.xlu0 %v4119, 96
        %v4138 = vpop.permute.xlu0 %4137
        %4139 = vrot.lane.b32.xlu0 %v4123, 96
        %v4140 = vpop.permute.xlu0 %4139
        %4141 = vrot.lane.b32.xlu0 %v4132, 96
        %v4142 = vpop.permute.xlu0 %4141
        %v4143 = vrot.slane %v3930, 3
        %v4144 = vrot.slane %v3931, 3
        %v4145 = vsel %vm1136, %v4143, %v4144
        %v4146 = vrot.slane %v3932, 3
        %v4147 = vsel %vm1136, %v4144, %v4146
        %v4148 = vrot.slane %v3933, 3
        %v4149 = vsel %vm1136, %v4146, %v4148
        %v4150 = vrot.slane %v3934, 3
        %v4151 = vsel %vm1136, %v4148, %v4150
        %v4152 = vrot.slane %v3935, 3
        %v4153 = vsel %vm1136, %v4150, %v4152
        %v4155 = vsel %vm1469, %v3929, %v3976
        %v4157 = vsel %vm1469, %v3930, %v3978
        %v4159 = vsel %vm1469, %v3931, %v3980
        %v4161 = vsel %vm1469, %v3932, %v3982
        %v4163 = vsel %vm1469, %v3933, %v3984
        %v4165 = vsel %vm2980, %v4155, %v4000
        %v4167 = vsel %vm2980, %v4157, %v4002
        %v4169 = vsel %vm2980, %v4159, %v4004
        %v4171 = vsel %vm2980, %v4161, %v4006
        %v4173 = vsel %vm2980, %v4163, %v4008
        %v4175 = vsel %vm3054, %v4165, %v4023
        %v4178 = vsel %vm3054, %v4167, %v4025
        %v4181 = vsel %vm3054, %v4169, %v4027
        %v4184 = vsel %vm3054, %v4171, %v4029
        %v4187 = vsel %vm3054, %v4173, %v4031
        %v4191 = vsel %vm1469, %v4039, %v4074
        %v4194 = vsel %vm1469, %v4043, %v4076
        %v4197 = vsel %vm1469, %v4047, %v4078
        %v4200 = vsel %vm1469, %v4051, %v4080
        %v4203 = vsel %vm1469, %v4060, %v4082
        %v4205 = vsel %vm2980, %v4191, %v4096
        %v4207 = vsel %vm2980, %v4194, %v4098
        %v4209 = vsel %vm2980, %v4197, %v4100
        %v4211 = vsel %vm2980, %v4200, %v4102
        %v4213 = vsel %vm2980, %v4203, %v4104
        %v4215 = vsel %vm3054, %v4205, %v4134
        %v4218 = vsel %vm3054, %v4207, %v4136
        %v4221 = vsel %vm3054, %v4209, %v4138
        %v4224 = vsel %vm3054, %v4211, %v4140
        %v4227 = vsel %vm3054, %v4213, %v4142
        %v4229 = vld [vmem:[%s6] sm:$0xf]
        %v4230 = vld [vmem:[%s6 + $0x4] sm:$0xf]
        %v4231 = vld [vmem:[%s6 + $0x8] sm:$0xf]
        %v4232 = vld [vmem:[%s6 + $0xc] sm:$0xf]
        %v4233 = vld [vmem:[%s6 + $0x10] sm:$0xf]
        %v4234 = vld [vmem:[%s6 + $0x14] sm:$0xf]
        %v4235 = vld [vmem:[%s6 + $0x18] sm:$0xf]
        %v4236 = vld [vmem:[%s6 + $0x1c] sm:$0xf]
        %v4237 = vld [vmem:[%s6 + $0x20] sm:$0xf]
        %v4238 = vld [vmem:[%s6 + $0x24] sm:$0xf]
        %v4239 = vld [vmem:[%s6 + $0x28] sm:$0xf]
        %v4240 = vld [vmem:[%s6 + $0x2c] sm:$0xf]
        %v4241 = vld [vmem:[%s6 + $0x30] sm:$0xf]
        %v4242 = vld [vmem:[%s6 + $0x34] sm:$0xf]
        %v4243 = vld [vmem:[%s6 + $0x38] sm:$0xf]
        %v4244 = vld [vmem:[%s6 + $0x3c] sm:$0xf]
        %v4245 = vld [vmem:[%s6 + $0x40] sm:$0xf]
        %v4246 = vld [vmem:[%s6 + $0x44] sm:$0xf]
        %v4247 = vld [vmem:[%s6 + $0x48] sm:$0xf]
        %v4248 = vld [vmem:[%s6 + $0x4c] sm:$0xf]
        %v4249 = vld [vmem:[%s6 + $0x50] sm:$0xf]
        %v4250 = vld [vmem:[%s6 + $0x54] sm:$0xf]
        %v4251 = vld [vmem:[%s6 + $0x58] sm:$0xf]
        %v4252 = vld [vmem:[%s6 + $0x5c] sm:$0xf]
        %v4253 = vld [vmem:[%s6 + $0x60] sm:$0xf]
        %v4254 = vld [vmem:[%s6 + $0x64] sm:$0xf]
        %v4255 = vld [vmem:[%s6 + $0x68] sm:$0xf]
        %v4256 = vld [vmem:[%s6 + $0x6c] sm:$0xf]
        %v4257 = vld [vmem:[%s6 + $0x70] sm:$0xf]
        %v4258 = vld [vmem:[%s6 + $0x74] sm:$0xf]
        %v4259 = vld [vmem:[%s6 + $0x78] sm:$0xf]
        %v4260 = vld [vmem:[%s6 + $0x7c] sm:$0xf]
        %v4261 = vld [vmem:[%s6 + $0x80] sm:$0xf]
        %v4262 = vld [vmem:[%s6 + $0x84] sm:$0xf]
        %v4263 = vld [vmem:[%s6 + $0x88] sm:$0xf]
        %v4264 = vld [vmem:[%s6 + $0x8c] sm:$0xf]
        %v4265 = vld [vmem:[%s7] sm:$0x1]
        %v4267 = vlaneseq
        %v4268 = vshrl.u32 %v4267, 7
        %v4269 = vsub.s32 0, %v4268
        %v4270 = vrot.slane %v4265, %v4269
        %v4308 = vunpack.c.l.b16 %v4229
        %v4309 = vunpack.c.l.b16 %v4230
        %v4310 = vunpack.c.l.b16 %v4231
        %v4311 = vunpack.c.l.b16 %v4232
        %v4312 = vunpack.c.l.b16 %v4233
        %v4313 = vunpack.c.l.b16 %v4234
        %v4314 = vunpack.c.l.b16 %v4235
        %v4315 = vunpack.c.l.b16 %v4236
        %v4316 = vunpack.c.l.b16 %v4237
        %v4317 = vunpack.c.l.b16 %v4238
        %v4318 = vunpack.c.l.b16 %v4239
        %v4319 = vunpack.c.l.b16 %v4240
        %v4320 = vunpack.c.l.b16 %v4241
        %v4321 = vunpack.c.l.b16 %v4242
        %v4322 = vunpack.c.l.b16 %v4243
        %v4323 = vunpack.c.l.b16 %v4244
        %v4324 = vunpack.c.l.b16 %v4245
        %v4325 = vunpack.c.l.b16 %v4246
        %v4326 = vunpack.c.l.b16 %v4247
        %v4327 = vunpack.c.l.b16 %v4248
        %v4328 = vunpack.c.l.b16 %v4249
        %v4329 = vunpack.c.l.b16 %v4250
        %v4330 = vunpack.c.l.b16 %v4251
        %v4331 = vunpack.c.l.b16 %v4252
        %v4332 = vunpack.c.l.b16 %v4253
        %v4333 = vunpack.c.l.b16 %v4254
        %v4334 = vunpack.c.l.b16 %v4255
        %v4335 = vunpack.c.l.b16 %v4256
        %v4336 = vunpack.c.l.b16 %v4257
        %v4337 = vunpack.c.l.b16 %v4258
        %v4338 = vunpack.c.l.b16 %v4259
        %v4339 = vunpack.c.l.b16 %v4260
        %v4340 = vunpack.c.l.b16 %v4261
        %v4341 = vunpack.c.l.b16 %v4262
        %v4342 = vunpack.c.l.b16 %v4263
        %v4343 = vunpack.c.l.b16 %v4264
        %v4344 = vpack.c.b16 %v4309, %v4308
        %v4345 = vpack.c.b16 %v4311, %v4310
        %v4346 = vpack.c.b16 %v4313, %v4312
        %v4347 = vpack.c.b16 %v4315, %v4314
        %v4348 = vpack.c.b16 %v4317, %v4316
        %v4349 = vpack.c.b16 %v4319, %v4318
        %v4350 = vpack.c.b16 %v4321, %v4320
        %v4351 = vpack.c.b16 %v4323, %v4322
        %v4352 = vpack.c.b16 %v4325, %v4324
        %v4353 = vpack.c.b16 %v4327, %v4326
        %v4354 = vpack.c.b16 %v4329, %v4328
        %v4355 = vpack.c.b16 %v4331, %v4330
        %v4356 = vpack.c.b16 %v4333, %v4332
        %v4357 = vpack.c.b16 %v4335, %v4334
        %v4358 = vpack.c.b16 %v4337, %v4336
        %v4359 = vpack.c.b16 %v4339, %v4338
        %v4360 = vpack.c.b16 %v4341, %v4340
        %v4361 = vpack.c.b16 %v4343, %v4342
        %v4381 = vsel %vm1469, %v4145, 0
        %v4384 = vsel %vm1469, %v4147, 0
        %v4387 = vsel %vm1469, %v4149, 0
        %v4390 = vsel %vm1469, %v4151, 0
        %v4393 = vsel %vm1469, %v4153, 0
        %4395 = vmatprep.subr.bf16.mxu0 0
        %4396 = vmatpush1.bf16.msra.mxu0 %v4351
        %4397 = vmatprep.subr.bf16.mxu0 0
        %4398 = vmatpush1.bf16.msra.mxu0 %v4350
        %4399 = vmatprep.subr.bf16.mxu0 0
        %4400 = vmatpush1.bf16.msra.mxu0 %v4349
        %4401 = vmatprep.subr.bf16.mxu0 0
        %4402 = vmatpush1.bf16.msra.mxu0 %v4348
        %4403 = vmatprep.subr.bf16.mxu0 0
        %4404 = vmatpush1.bf16.msra.mxu0 %v4347
        %4405 = vmatprep.subr.bf16.mxu0 0
        %4406 = vmatpush1.bf16.msra.mxu0 %v4346
        %4407 = vmatprep.subr.bf16.mxu0 0
        %4408 = vmatpush1.bf16.msra.mxu0 %v4345
        %4409 = vmatprep.subr.bf16.mxu0 0
        %4410 = vmatpush1.bf16.msra.mxu0 %v4344
        %4411 = vmatprep.subr.bf16.mxu0 0
        %4412 = vmatpush2.bf16.msra.mxu0 %v4359
        %4413 = vmatprep.subr.bf16.mxu0 0
        %4414 = vmatpush2.bf16.msra.mxu0 %v4358
        %4415 = vmatprep.subr.bf16.mxu0 0
        %4416 = vmatpush2.bf16.msra.mxu0 %v4357
        %4417 = vmatprep.subr.bf16.mxu0 0
        %4418 = vmatpush2.bf16.msra.mxu0 %v4356
        %4419 = vmatprep.subr.bf16.mxu0 0
        %4420 = vmatpush2.bf16.msra.mxu0 %v4355
        %4421 = vmatprep.subr.bf16.mxu0 0
        %4422 = vmatpush2.bf16.msra.mxu0 %v4354
        %4423 = vmatprep.subr.bf16.mxu0 0
        %4424 = vmatpush2.bf16.msra.mxu0 %v4353
        %4425 = vmatprep.subr.bf16.mxu0 0
        %4426 = vmatpush2.bf16.msra.mxu0 %v4352
        %4427 = vmatprep.mubr.bf16.mxu0 %v4215
        %4428 = vmatmul.mubr.bf16.gmra.mxu0 %v4175
        %v4429 = vpop.f32.mrf.mxu0
        %v4430 = vadd.f32 %v4270, %v4429
        %v4431 = vpop.f32.mrf.mxu0
        %v4432 = vpop.f32.mrf.mxu0
        %v4433 = vadd.f32 %v4270, %v4432
        %v4434 = vpop.f32.mrf.mxu0
        %4435 = vmatprep.mubr.bf16.mxu0 %v4218
        %4436 = vmatmul.mubr.bf16.gmra.mxu0 %v4178
        %v4437 = vpop.f32.mrf.mxu0
        %v4438 = vadd.f32 %v4270, %v4437
        %v4439 = vpop.f32.mrf.mxu0
        %v4440 = vpop.f32.mrf.mxu0
        %v4441 = vadd.f32 %v4270, %v4440
        %v4442 = vpop.f32.mrf.mxu0
        %4443 = vmatprep.mubr.bf16.mxu0 %v4221
        %4444 = vmatmul.mubr.bf16.gmra.mxu0 %v4181
        %v4445 = vpop.f32.mrf.mxu0
        %v4446 = vadd.f32 %v4270, %v4445
        %v4447 = vpop.f32.mrf.mxu0
        %v4448 = vpop.f32.mrf.mxu0
        %v4449 = vadd.f32 %v4270, %v4448
        %v4450 = vpop.f32.mrf.mxu0
        %4451 = vmatprep.mubr.bf16.mxu0 %v4224
        %4452 = vmatmul.mubr.bf16.gmra.mxu0 %v4184
        %v4453 = vpop.f32.mrf.mxu0
        %v4454 = vadd.f32 %v4270, %v4453
        %v4455 = vpop.f32.mrf.mxu0
        %v4456 = vpop.f32.mrf.mxu0
        %v4457 = vadd.f32 %v4270, %v4456
        %v4458 = vpop.f32.mrf.mxu0
        %4459 = vmatprep.mubr.bf16.mxu0 %v4227
        %4460 = vmatmul.mubr.bf16.gmra.mxu0 %v4187
        %v4461 = vpop.f32.mrf.mxu0
        %v4462 = vadd.f32 %v4270, %v4461
        %v4463 = vpop.f32.mrf.mxu0
        %v4464 = vpop.f32.mrf.mxu0
        %v4465 = vadd.f32 %v4270, %v4464
        %v4466 = vpop.f32.mrf.mxu0
        %4467 = vdwg.mxu0
        %4468 = vmatprep.subr.bf16.mxu0 0
        %4469 = vmatpush1.bf16.msra.mxu0 0
        %4470 = vmatprep.subr.bf16.mxu0 0
        %4471 = vmatpush1.bf16.msra.mxu0 0
        %4472 = vmatprep.subr.bf16.mxu0 0
        %4473 = vmatpush1.bf16.msra.mxu0 0
        %4474 = vmatprep.subr.bf16.mxu0 0
        %4475 = vmatpush1.bf16.msra.mxu0 0
        %4476 = vmatprep.subr.bf16.mxu0 0
        %4477 = vmatpush1.bf16.msra.mxu0 0
        %4478 = vmatprep.subr.bf16.mxu0 0
        %4479 = vmatpush1.bf16.msra.mxu0 0
        %4480 = vmatprep.subr.bf16.mxu0 0
        %4481 = vmatpush1.bf16.msra.mxu0 %v4361
        %4482 = vmatprep.subr.bf16.mxu0 0
        %4483 = vmatpush1.bf16.msra.mxu0 %v4360
        %4484 = vmatprep.subr.bf16.mxu0 0
        %4485 = vmatpush2.bf16.msra.mxu0 0
        %4486 = vmatprep.subr.bf16.mxu0 0
        %4487 = vmatpush2.bf16.msra.mxu0 0
        %4488 = vmatprep.subr.bf16.mxu0 0
        %4489 = vmatpush2.bf16.msra.mxu0 0
        %4490 = vmatprep.subr.bf16.mxu0 0
        %4491 = vmatpush2.bf16.msra.mxu0 0
        %4492 = vmatprep.subr.bf16.mxu0 0
        %4493 = vmatpush2.bf16.msra.mxu0 0
        %4494 = vmatprep.subr.bf16.mxu0 0
        %4495 = vmatpush2.bf16.msra.mxu0 0
        %4496 = vmatprep.subr.bf16.mxu0 0
        %4497 = vmatpush2.bf16.msra.mxu0 0
        %4498 = vmatprep.subr.bf16.mxu0 0
        %4499 = vmatpush2.bf16.msra.mxu0 0
        %4500 = vmatprep.mubr.bf16.mxu0 0
        %4501 = vmatmul.mubr.bf16.gmra.mxu0 %v4381
        %v4502 = vpop.f32.mrf.mxu0
        %v4503 = vadd.f32 %v4430, %v4502
        %v4504 = vpop.f32.mrf.mxu0
        %v4505 = vpop.f32.mrf.mxu0
        %v4506 = vadd.f32 %v4433, %v4505
        %v4507 = vpop.f32.mrf.mxu0
        %4508 = vmatprep.mubr.bf16.mxu0 0
        %4509 = vmatmul.mubr.bf16.gmra.mxu0 %v4384
        %v4510 = vpop.f32.mrf.mxu0
        %v4511 = vadd.f32 %v4438, %v4510
        %v4512 = vpop.f32.mrf.mxu0
        %v4513 = vpop.f32.mrf.mxu0
        %v4514 = vadd.f32 %v4441, %v4513
        %v4515 = vpop.f32.mrf.mxu0
        %4516 = vmatprep.mubr.bf16.mxu0 0
        %4517 = vmatmul.mubr.bf16.gmra.mxu0 %v4387
        %v4518 = vpop.f32.mrf.mxu0
        %v4519 = vadd.f32 %v4446, %v4518
        %v4520 = vpop.f32.mrf.mxu0
        %v4521 = vpop.f32.mrf.mxu0
        %v4522 = vadd.f32 %v4449, %v4521
        %v4523 = vpop.f32.mrf.mxu0
        %4524 = vmatprep.mubr.bf16.mxu0 0
        %4525 = vmatmul.mubr.bf16.gmra.mxu0 %v4390
        %v4526 = vpop.f32.mrf.mxu0
        %v4527 = vadd.f32 %v4454, %v4526
        %v4528 = vpop.f32.mrf.mxu0
        %v4529 = vpop.f32.mrf.mxu0
        %v4530 = vadd.f32 %v4457, %v4529
        %v4531 = vpop.f32.mrf.mxu0
        %4532 = vmatprep.mubr.bf16.mxu0 0
        %4533 = vmatmul.mubr.bf16.gmra.mxu0 %v4393
        %v4534 = vpop.f32.mrf.mxu0
        %v4535 = vadd.f32 %v4462, %v4534
        %v4536 = vpop.f32.mrf.mxu0
        %v4537 = vpop.f32.mrf.mxu0
        %v4538 = vadd.f32 %v4465, %v4537
        %v4539 = vpop.f32.mrf.mxu0
        %4540 = vdwg.mxu0
        %v4541 = vmax.f32 %v4503, 0.0
        %v4542 = vmax.f32 %v4506, 0.0
        %v4543 = vmax.f32 %v4511, 0.0
        %v4544 = vmax.f32 %v4514, 0.0
        %v4545 = vmax.f32 %v4519, 0.0
        %v4546 = vmax.f32 %v4522, 0.0
        %v4547 = vmax.f32 %v4527, 0.0
        %v4548 = vmax.f32 %v4530, 0.0
        %v4549 = vmax.f32 %v4535, 0.0
        %v4550 = vmax.f32 %v4538, 0.0
        %v4552 = vrot.slane %v4541, 1
        %4553 = vrot.lane.b32.xlu0 %v4552, 64
        %v4554 = vpop.permute.xlu0 %4553
        %v4556 = vrot.slane %v4541, 2
        %v4558 = vrot.slane %v4541, 3
        %4559 = vrot.lane.b32.xlu0 %v4558, 64
        %v4560 = vpop.permute.xlu0 %4559
        %v4562 = vrot.slane %v4541, 4
        %v4564 = vrot.slane %v4541, 5
        %4565 = vrot.lane.b32.xlu0 %v4564, 64
        %v4566 = vpop.permute.xlu0 %4565
        %v4568 = vrot.slane %v4541, 6
        %v4570 = vrot.slane %v4541, 7
        %4571 = vrot.lane.b32.xlu0 %v4570, 64
        %v4572 = vpop.permute.xlu0 %4571
        %v4575 = vrot.slane %v4542, 2
        %v4577 = vrot.slane %v4542, 3
        %4578 = vrot.lane.b32.xlu0 %v4577, 64
        %v4579 = vpop.permute.xlu0 %4578
        %v4581 = vrot.slane %v4542, 4
        %v4583 = vrot.slane %v4542, 5
        %4584 = vrot.lane.b32.xlu0 %v4583, 64
        %v4585 = vpop.permute.xlu0 %4584
        %v4587 = vrot.slane %v4542, 6
        %v4589 = vrot.slane %v4542, 7
        %4590 = vrot.lane.b32.xlu0 %v4589, 64
        %v4591 = vpop.permute.xlu0 %4590
        %v4594 = vrot.slane %v4543, 1
        %4595 = vrot.lane.b32.xlu0 %v4594, 64
        %v4596 = vpop.permute.xlu0 %4595
        %v4598 = vsel %vm2980, %v4541, %v4554
        %v4599 = vsel %vm2980, %v4556, %v4560
        %v4600 = vsel %vm2980, %v4562, %v4566
        %v4601 = vsel %vm2980, %v4568, %v4572
        %v4602 = vsel %vm2980, %v4575, %v4579
        %v4603 = vsel %vm2980, %v4581, %v4585
        %v4604 = vsel %vm2980, %v4587, %v4591
        %v4605 = vsel %vm2980, %v4543, %v4596
        %v4606 = vrot.slane %v4543, 2
        %v4608 = vrot.slane %v4543, 3
        %4609 = vrot.lane.b32.xlu0 %v4608, 64
        %v4610 = vpop.permute.xlu0 %4609
        %v4613 = vrot.slane %v4544, 4
        %v4615 = vrot.slane %v4544, 5
        %4616 = vrot.lane.b32.xlu0 %v4615, 64
        %v4617 = vpop.permute.xlu0 %4616
        %v4619 = vrot.slane %v4544, 6
        %v4621 = vrot.slane %v4544, 7
        %4622 = vrot.lane.b32.xlu0 %v4621, 64
        %v4623 = vpop.permute.xlu0 %4622
        %v4625 = vrot.slane %v4544, 2
        %v4627 = vrot.slane %v4544, 3
        %4628 = vrot.lane.b32.xlu0 %v4627, 64
        %v4629 = vpop.permute.xlu0 %4628
        %v4632 = vrot.slane %v4545, 4
        %v4634 = vrot.slane %v4545, 5
        %4635 = vrot.lane.b32.xlu0 %v4634, 64
        %v4636 = vpop.permute.xlu0 %4635
        %v4638 = vrot.slane %v4545, 6
        %v4640 = vrot.slane %v4545, 7
        %4641 = vrot.lane.b32.xlu0 %v4640, 64
        %v4642 = vpop.permute.xlu0 %4641
        %v4644 = vrot.slane %v4545, 1
        %4645 = vrot.lane.b32.xlu0 %v4644, 64
        %v4646 = vpop.permute.xlu0 %4645
        %v4648 = vsel %vm2980, %v4606, %v4610
        %v4649 = vsel %vm2980, %v4613, %v4617
        %v4650 = vsel %vm2980, %v4619, %v4623
        %v4651 = vsel %vm2980, %v4625, %v4629
        %v4652 = vsel %vm2980, %v4632, %v4636
        %v4653 = vsel %vm2980, %v4638, %v4642
        %v4654 = vsel %vm2980, %v4545, %v4646
        %v4656 = vrot.slane %v4546, 1
        %4657 = vrot.lane.b32.xlu0 %v4656, 64
        %v4658 = vpop.permute.xlu0 %4657
        %v4660 = vrot.slane %v4546, 2
        %v4662 = vrot.slane %v4546, 3
        %4663 = vrot.lane.b32.xlu0 %v4662, 64
        %v4664 = vpop.permute.xlu0 %4663
        %v4666 = vrot.slane %v4546, 4
        %v4668 = vrot.slane %v4546, 5
        %4669 = vrot.lane.b32.xlu0 %v4668, 64
        %v4670 = vpop.permute.xlu0 %4669
        %v4672 = vrot.slane %v4546, 6
        %v4674 = vrot.slane %v4546, 7
        %4675 = vrot.lane.b32.xlu0 %v4674, 64
        %v4676 = vpop.permute.xlu0 %4675
        %v4679 = vrot.slane %v4547, 2
        %v4681 = vrot.slane %v4547, 3
        %4682 = vrot.lane.b32.xlu0 %v4681, 64
        %v4683 = vpop.permute.xlu0 %4682
        %v4685 = vrot.slane %v4547, 4
        %v4687 = vrot.slane %v4547, 5
        %4688 = vrot.lane.b32.xlu0 %v4687, 64
        %v4689 = vpop.permute.xlu0 %4688
        %v4691 = vrot.slane %v4547, 6
        %v4693 = vrot.slane %v4547, 7
        %4694 = vrot.lane.b32.xlu0 %v4693, 64
        %v4695 = vpop.permute.xlu0 %4694
        %v4698 = vrot.slane %v4548, 1
        %4699 = vrot.lane.b32.xlu0 %v4698, 64
        %v4700 = vpop.permute.xlu0 %4699
        %v4702 = vsel %vm2980, %v4546, %v4658
        %v4703 = vsel %vm2980, %v4660, %v4664
        %v4704 = vsel %vm2980, %v4666, %v4670
        %v4705 = vsel %vm2980, %v4672, %v4676
        %v4706 = vsel %vm2980, %v4679, %v4683
        %v4707 = vsel %vm2980, %v4685, %v4689
        %v4708 = vsel %vm2980, %v4691, %v4695
        %v4709 = vsel %vm2980, %v4548, %v4700
        %v4710 = vrot.slane %v4548, 2
        %v4712 = vrot.slane %v4548, 3
        %4713 = vrot.lane.b32.xlu0 %v4712, 64
        %v4714 = vpop.permute.xlu0 %4713
        %v4717 = vrot.slane %v4549, 4
        %v4719 = vrot.slane %v4549, 5
        %4720 = vrot.lane.b32.xlu0 %v4719, 64
        %v4721 = vpop.permute.xlu0 %4720
        %v4723 = vrot.slane %v4549, 6
        %v4725 = vrot.slane %v4549, 7
        %4726 = vrot.lane.b32.xlu0 %v4725, 64
        %v4727 = vpop.permute.xlu0 %4726
        %v4729 = vrot.slane %v4549, 2
        %v4731 = vrot.slane %v4549, 3
        %4732 = vrot.lane.b32.xlu0 %v4731, 64
        %v4733 = vpop.permute.xlu0 %4732
        %v4736 = vrot.slane %v4550, 4
        %v4738 = vrot.slane %v4550, 5
        %4739 = vrot.lane.b32.xlu0 %v4738, 64
        %v4740 = vpop.permute.xlu0 %4739
        %v4742 = vrot.slane %v4550, 6
        %v4744 = vrot.slane %v4550, 7
        %4745 = vrot.lane.b32.xlu0 %v4744, 64
        %v4746 = vpop.permute.xlu0 %4745
        %v4748 = vrot.slane %v4550, 1
        %4749 = vrot.lane.b32.xlu0 %v4748, 64
        %v4750 = vpop.permute.xlu0 %4749
        %v4752 = vsel %vm2980, %v4710, %v4714
        %v4753 = vsel %vm2980, %v4717, %v4721
        %v4754 = vsel %vm2980, %v4723, %v4727
        %v4755 = vsel %vm2980, %v4729, %v4733
        %v4756 = vsel %vm2980, %v4736, %v4740
        %v4757 = vsel %vm2980, %v4742, %v4746
        %v4758 = vsel %vm2980, %v4550, %v4750
        %v4767 = vrot.slane %v4605, 4
        %v4768 = vrot.slane %v4648, 4
        %v4769 = vrot.slane %v4649, 4
        %v4770 = vrot.slane %v4650, 4
        %v4771 = vrot.slane %v4651, 4
        %v4772 = vrot.slane %v4652, 4
        %v4773 = vrot.slane %v4653, 4
        %v4774 = vrot.slane %v4654, 4
        %v4791 = vrot.slane %v4709, 4
        %v4792 = vrot.slane %v4752, 4
        %v4793 = vrot.slane %v4753, 4
        %v4794 = vrot.slane %v4754, 4
        %v4795 = vrot.slane %v4755, 4
        %v4796 = vrot.slane %v4756, 4
        %v4797 = vrot.slane %v4757, 4
        %v4798 = vrot.slane %v4758, 4
        %v4807 = vpack.c.bf16 %v4598, %v4598
        %v4808 = vpack.c.bf16 %v4599, %v4599
        %v4809 = vpack.c.bf16 %v4600, %v4600
        %v4810 = vpack.c.bf16 %v4601, %v4601
        %v4811 = vpack.c.bf16 %v4602, %v4602
        %v4812 = vpack.c.bf16 %v4603, %v4603
        %v4813 = vpack.c.bf16 %v4604, %v4604
        %v4814 = vpack.c.bf16 %v4605, %v4605
        %v4815 = vpack.c.bf16 %v4767, %v4767
        %v4816 = vpack.c.bf16 %v4768, %v4768
        %v4817 = vpack.c.bf16 %v4769, %v4769
        %v4818 = vpack.c.bf16 %v4770, %v4770
        %v4819 = vpack.c.bf16 %v4771, %v4771
        %v4820 = vpack.c.bf16 %v4772, %v4772
        %v4821 = vpack.c.bf16 %v4773, %v4773
        %v4822 = vpack.c.bf16 %v4774, %v4774
        %v4823 = vpack.c.bf16 %v4702, %v4702
        %v4824 = vpack.c.bf16 %v4703, %v4703
        %v4825 = vpack.c.bf16 %v4704, %v4704
        %v4826 = vpack.c.bf16 %v4705, %v4705
        %v4827 = vpack.c.bf16 %v4706, %v4706
        %v4828 = vpack.c.bf16 %v4707, %v4707
        %v4829 = vpack.c.bf16 %v4708, %v4708
        %v4830 = vpack.c.bf16 %v4709, %v4709
        %v4831 = vpack.c.bf16 %v4791, %v4791
        %v4832 = vpack.c.bf16 %v4792, %v4792
        %v4833 = vpack.c.bf16 %v4793, %v4793
        %v4834 = vpack.c.bf16 %v4794, %v4794
        %v4835 = vpack.c.bf16 %v4795, %v4795
        %v4836 = vpack.c.bf16 %v4796, %v4796
        %v4837 = vpack.c.bf16 %v4797, %v4797
        %v4838 = vpack.c.bf16 %v4798, %v4798
        %v4839 = vld [vmem:[%s8] sm:$0xf]
        %v4840 = vld [vmem:[%s8 + $0x4] sm:$0xf]
        %v4841 = vld [vmem:[%s8 + $0x8] sm:$0xf]
        %v4842 = vld [vmem:[%s8 + $0xc] sm:$0xf]
        %v4843 = vld [vmem:[%s8 + $0x10] sm:$0xf]
        %v4844 = vld [vmem:[%s8 + $0x14] sm:$0xf]
        %v4845 = vld [vmem:[%s8 + $0x18] sm:$0xf]
        %v4846 = vld [vmem:[%s8 + $0x1c] sm:$0xf]
        %v4847 = vld [vmem:[%s8 + $0x20] sm:$0xf]
        %v4848 = vld [vmem:[%s8 + $0x24] sm:$0xf]
        %v4849 = vld [vmem:[%s8 + $0x28] sm:$0xf]
        %v4850 = vld [vmem:[%s8 + $0x2c] sm:$0xf]
        %v4851 = vld [vmem:[%s8 + $0x30] sm:$0xf]
        %v4852 = vld [vmem:[%s8 + $0x34] sm:$0xf]
        %v4853 = vld [vmem:[%s8 + $0x38] sm:$0xf]
        %v4854 = vld [vmem:[%s8 + $0x3c] sm:$0xf]
        %v4855 = vld [vmem:[%s8 + $0x40] sm:$0xf]
        %v4856 = vld [vmem:[%s8 + $0x44] sm:$0xf]
        %v4857 = vld [vmem:[%s8 + $0x48] sm:$0xf]
        %v4858 = vld [vmem:[%s8 + $0x4c] sm:$0xf]
        %v4859 = vld [vmem:[%s8 + $0x50] sm:$0xf]
        %v4860 = vld [vmem:[%s8 + $0x54] sm:$0xf]
        %v4861 = vld [vmem:[%s8 + $0x58] sm:$0xf]
        %v4862 = vld [vmem:[%s8 + $0x5c] sm:$0xf]
        %v4863 = vld [vmem:[%s8 + $0x60] sm:$0xf]
        %v4864 = vld [vmem:[%s8 + $0x64] sm:$0xf]
        %v4865 = vld [vmem:[%s8 + $0x68] sm:$0xf]
        %v4866 = vld [vmem:[%s8 + $0x6c] sm:$0xf]
        %v4867 = vld [vmem:[%s8 + $0x70] sm:$0xf]
        %v4868 = vld [vmem:[%s8 + $0x74] sm:$0xf]
        %v4869 = vld [vmem:[%s8 + $0x78] sm:$0xf]
        %v4870 = vld [vmem:[%s8 + $0x7c] sm:$0xf]
        %v4871 = vld [vmem:[%s8 + $0x80] sm:$0xf]
        %v4872 = vld [vmem:[%s8 + $0x84] sm:$0xf]
        %v4873 = vld [vmem:[%s8 + $0x88] sm:$0xf]
        %v4874 = vld [vmem:[%s8 + $0x8c] sm:$0xf]
        %v4875 = vld [vmem:[%s8 + $0x90] sm:$0xf]
        %v4876 = vld [vmem:[%s8 + $0x94] sm:$0xf]
        %v4877 = vld [vmem:[%s8 + $0x98] sm:$0xf]
        %v4878 = vld [vmem:[%s8 + $0x9c] sm:$0xf]
        %v4879 = vld [vmem:[%s8 + $0xa0] sm:$0xf]
        %v4880 = vld [vmem:[%s8 + $0xa4] sm:$0xf]
        %v4881 = vld [vmem:[%s8 + $0xa8] sm:$0xf]
        %v4882 = vld [vmem:[%s8 + $0xac] sm:$0xf]
        %v4883 = vld [vmem:[%s8 + $0xb0] sm:$0xf]
        %v4884 = vld [vmem:[%s8 + $0xb4] sm:$0xf]
        %v4885 = vld [vmem:[%s8 + $0xb8] sm:$0xf]
        %v4886 = vld [vmem:[%s8 + $0xbc] sm:$0xf]
        %v4887 = vld [vmem:[%s8 + $0xc0] sm:$0xf]
        %v4888 = vld [vmem:[%s8 + $0xc4] sm:$0xf]
        %v4889 = vld [vmem:[%s8 + $0xc8] sm:$0xf]
        %v4890 = vld [vmem:[%s8 + $0xcc] sm:$0xf]
        %v4891 = vld [vmem:[%s8 + $0xd0] sm:$0xf]
        %v4892 = vld [vmem:[%s8 + $0xd4] sm:$0xf]
        %v4893 = vld [vmem:[%s8 + $0xd8] sm:$0xf]
        %v4894 = vld [vmem:[%s8 + $0xdc] sm:$0xf]
        %v4895 = vld [vmem:[%s8 + $0xe0] sm:$0xf]
        %v4896 = vld [vmem:[%s8 + $0xe4] sm:$0xf]
        %v4897 = vld [vmem:[%s8 + $0xe8] sm:$0xf]
        %v4898 = vld [vmem:[%s8 + $0xec] sm:$0xf]
        %v4899 = vld [vmem:[%s8 + $0xf0] sm:$0xf]
        %v4900 = vld [vmem:[%s8 + $0xf4] sm:$0xf]
        %v4901 = vld [vmem:[%s8 + $0xf8] sm:$0xf]
        %v4902 = vld [vmem:[%s8 + $0xfc] sm:$0xf]
        %v4903 = vld [vmem:[%s8 + $0x100] sm:$0xf]
        %v4904 = vld [vmem:[%s8 + $0x104] sm:$0xf]
        %v4905 = vld [vmem:[%s8 + $0x108] sm:$0xf]
        %v4906 = vld [vmem:[%s8 + $0x10c] sm:$0xf]
        %v4907 = vld [vmem:[%s8 + $0x110] sm:$0xf]
        %v4908 = vld [vmem:[%s8 + $0x114] sm:$0xf]
        %v4909 = vld [vmem:[%s8 + $0x118] sm:$0xf]
        %v4910 = vld [vmem:[%s8 + $0x11c] sm:$0xf]
        %v4911 = vld [vmem:[%s8 + $0x120] sm:$0xf]
        %v4912 = vld [vmem:[%s8 + $0x124] sm:$0xf]
        %v4913 = vld [vmem:[%s8 + $0x128] sm:$0xf]
        %v4914 = vld [vmem:[%s8 + $0x12c] sm:$0xf]
        %v4915 = vld [vmem:[%s8 + $0x130] sm:$0xf]
        %v4916 = vld [vmem:[%s8 + $0x134] sm:$0xf]
        %v4917 = vld [vmem:[%s8 + $0x138] sm:$0xf]
        %v4918 = vld [vmem:[%s8 + $0x13c] sm:$0xf]
        %v4919 = vld [vmem:[%s8 + $0x140] sm:$0xf]
        %v4920 = vld [vmem:[%s8 + $0x144] sm:$0xf]
        %v4921 = vld [vmem:[%s8 + $0x148] sm:$0xf]
        %v4922 = vld [vmem:[%s8 + $0x14c] sm:$0xf]
        %v4923 = vld [vmem:[%s8 + $0x150] sm:$0xf]
        %v4924 = vld [vmem:[%s8 + $0x154] sm:$0xf]
        %v4925 = vld [vmem:[%s8 + $0x158] sm:$0xf]
        %v4926 = vld [vmem:[%s8 + $0x15c] sm:$0xf]
        %v4927 = vld [vmem:[%s8 + $0x160] sm:$0xf]
        %v4928 = vld [vmem:[%s8 + $0x164] sm:$0xf]
        %v4929 = vld [vmem:[%s8 + $0x168] sm:$0xf]
        %v4930 = vld [vmem:[%s8 + $0x16c] sm:$0xf]
        %v4931 = vld [vmem:[%s8 + $0x170] sm:$0xf]
        %v4932 = vld [vmem:[%s8 + $0x174] sm:$0xf]
        %v4933 = vld [vmem:[%s8 + $0x178] sm:$0xf]
        %v4934 = vld [vmem:[%s8 + $0x17c] sm:$0xf]
        %v4935 = vld [vmem:[%s8 + $0x180] sm:$0xf]
        %v4936 = vld [vmem:[%s8 + $0x184] sm:$0xf]
        %v4937 = vld [vmem:[%s8 + $0x188] sm:$0xf]
        %v4938 = vld [vmem:[%s8 + $0x18c] sm:$0xf]
        %v4939 = vld [vmem:[%s8 + $0x190] sm:$0xf]
        %v4940 = vld [vmem:[%s8 + $0x194] sm:$0xf]
        %v4941 = vld [vmem:[%s8 + $0x198] sm:$0xf]
        %v4942 = vld [vmem:[%s8 + $0x19c] sm:$0xf]
        %v4943 = vld [vmem:[%s8 + $0x1a0] sm:$0xf]
        %v4944 = vld [vmem:[%s8 + $0x1a4] sm:$0xf]
        %v4945 = vld [vmem:[%s8 + $0x1a8] sm:$0xf]
        %v4946 = vld [vmem:[%s8 + $0x1ac] sm:$0xf]
        %v4947 = vld [vmem:[%s8 + $0x1b0] sm:$0xf]
        %v4948 = vld [vmem:[%s8 + $0x1b4] sm:$0xf]
        %v4949 = vld [vmem:[%s8 + $0x1b8] sm:$0xf]
        %v4950 = vld [vmem:[%s8 + $0x1bc] sm:$0xf]
        %v4951 = vld [vmem:[%s8 + $0x1c0] sm:$0xf]
        %v4952 = vld [vmem:[%s8 + $0x1c4] sm:$0xf]
        %v4953 = vld [vmem:[%s8 + $0x1c8] sm:$0xf]
        %v4954 = vld [vmem:[%s8 + $0x1cc] sm:$0xf]
        %v4955 = vld [vmem:[%s8 + $0x1d0] sm:$0xf]
        %v4956 = vld [vmem:[%s8 + $0x1d4] sm:$0xf]
        %v4957 = vld [vmem:[%s8 + $0x1d8] sm:$0xf]
        %v4958 = vld [vmem:[%s8 + $0x1dc] sm:$0xf]
        %v4959 = vld [vmem:[%s8 + $0x1e0] sm:$0xf]
        %v4960 = vld [vmem:[%s8 + $0x1e4] sm:$0xf]
        %v4961 = vld [vmem:[%s8 + $0x1e8] sm:$0xf]
        %v4962 = vld [vmem:[%s8 + $0x1ec] sm:$0xf]
        %v4963 = vld [vmem:[%s8 + $0x1f0] sm:$0xf]
        %v4964 = vld [vmem:[%s8 + $0x1f4] sm:$0xf]
        %v4965 = vld [vmem:[%s8 + $0x1f8] sm:$0xf]
        %v4966 = vld [vmem:[%s8 + $0x1fc] sm:$0xf]
        %v4967 = vld [vmem:[%s8 + $0x200] sm:$0xf]
        %v4968 = vld [vmem:[%s8 + $0x204] sm:$0xf]
        %v4969 = vld [vmem:[%s8 + $0x208] sm:$0xf]
        %v4970 = vld [vmem:[%s8 + $0x20c] sm:$0xf]
        %v4971 = vld [vmem:[%s8 + $0x210] sm:$0xf]
        %v4972 = vld [vmem:[%s8 + $0x214] sm:$0xf]
        %v4973 = vld [vmem:[%s8 + $0x218] sm:$0xf]
        %v4974 = vld [vmem:[%s8 + $0x21c] sm:$0xf]
        %v4975 = vld [vmem:[%s8 + $0x220] sm:$0xf]
        %v4976 = vld [vmem:[%s8 + $0x224] sm:$0xf]
        %v4977 = vld [vmem:[%s8 + $0x228] sm:$0xf]
        %v4978 = vld [vmem:[%s8 + $0x22c] sm:$0xf]
        %v4979 = vld [vmem:[%s8 + $0x230] sm:$0xf]
        %v4980 = vld [vmem:[%s8 + $0x234] sm:$0xf]
        %v4981 = vld [vmem:[%s8 + $0x238] sm:$0xf]
        %v4982 = vld [vmem:[%s8 + $0x23c] sm:$0xf]
        %v4983 = vld [vmem:[%s8 + $0x240] sm:$0xf]
        %v4984 = vld [vmem:[%s8 + $0x244] sm:$0xf]
        %v4985 = vld [vmem:[%s8 + $0x248] sm:$0xf]
        %v4986 = vld [vmem:[%s8 + $0x24c] sm:$0xf]
        %v4987 = vld [vmem:[%s8 + $0x250] sm:$0xf]
        %v4988 = vld [vmem:[%s8 + $0x254] sm:$0xf]
        %v4989 = vld [vmem:[%s8 + $0x258] sm:$0xf]
        %v4990 = vld [vmem:[%s8 + $0x25c] sm:$0xf]
        %v4991 = vld [vmem:[%s8 + $0x260] sm:$0xf]
        %v4992 = vld [vmem:[%s8 + $0x264] sm:$0xf]
        %v4993 = vld [vmem:[%s8 + $0x268] sm:$0xf]
        %v4994 = vld [vmem:[%s8 + $0x26c] sm:$0xf]
        %v4995 = vld [vmem:[%s8 + $0x270] sm:$0xf]
        %v4996 = vld [vmem:[%s8 + $0x274] sm:$0xf]
        %v4997 = vld [vmem:[%s8 + $0x278] sm:$0xf]
        %v4998 = vld [vmem:[%s8 + $0x27c] sm:$0xf]
        %v4999 = vld [vmem:[%s8 + $0x280] sm:$0xf]
        %v5000 = vld [vmem:[%s8 + $0x284] sm:$0xf]
        %v5001 = vld [vmem:[%s8 + $0x288] sm:$0xf]
        %v5002 = vld [vmem:[%s8 + $0x28c] sm:$0xf]
        %v5003 = vld [vmem:[%s8 + $0x290] sm:$0xf]
        %v5004 = vld [vmem:[%s8 + $0x294] sm:$0xf]
        %v5005 = vld [vmem:[%s8 + $0x298] sm:$0xf]
        %v5006 = vld [vmem:[%s8 + $0x29c] sm:$0xf]
        %v5007 = vld [vmem:[%s8 + $0x2a0] sm:$0xf]
        %v5008 = vld [vmem:[%s8 + $0x2a4] sm:$0xf]
        %v5009 = vld [vmem:[%s8 + $0x2a8] sm:$0xf]
        %v5010 = vld [vmem:[%s8 + $0x2ac] sm:$0xf]
        %v5011 = vld [vmem:[%s8 + $0x2b0] sm:$0xf]
        %v5012 = vld [vmem:[%s8 + $0x2b4] sm:$0xf]
        %v5013 = vld [vmem:[%s8 + $0x2b8] sm:$0xf]
        %v5014 = vld [vmem:[%s8 + $0x2bc] sm:$0xf]
        %v5015 = vld [vmem:[%s8 + $0x2c0] sm:$0xf]
        %v5016 = vld [vmem:[%s8 + $0x2c4] sm:$0xf]
        %v5017 = vld [vmem:[%s8 + $0x2c8] sm:$0xf]
        %v5018 = vld [vmem:[%s8 + $0x2cc] sm:$0xf]
        %v5019 = vld [vmem:[%s8 + $0x2d0] sm:$0xf]
        %v5020 = vld [vmem:[%s8 + $0x2d4] sm:$0xf]
        %v5021 = vld [vmem:[%s8 + $0x2d8] sm:$0xf]
        %v5022 = vld [vmem:[%s8 + $0x2dc] sm:$0xf]
        %v5023 = vld [vmem:[%s8 + $0x2e0] sm:$0xf]
        %v5024 = vld [vmem:[%s8 + $0x2e4] sm:$0xf]
        %v5025 = vld [vmem:[%s8 + $0x2e8] sm:$0xf]
        %v5026 = vld [vmem:[%s8 + $0x2ec] sm:$0xf]
        %v5027 = vld [vmem:[%s8 + $0x2f0] sm:$0xf]
        %v5028 = vld [vmem:[%s8 + $0x2f4] sm:$0xf]
        %v5029 = vld [vmem:[%s8 + $0x2f8] sm:$0xf]
        %v5030 = vld [vmem:[%s8 + $0x2fc] sm:$0xf]
        %v5031 = vld [vmem:[%s8 + $0x300] sm:$0xf]
        %v5032 = vld [vmem:[%s8 + $0x304] sm:$0xf]
        %v5033 = vld [vmem:[%s8 + $0x308] sm:$0xf]
        %v5034 = vld [vmem:[%s8 + $0x30c] sm:$0xf]
        %v5035 = vld [vmem:[%s8 + $0x310] sm:$0xf]
        %v5036 = vld [vmem:[%s8 + $0x314] sm:$0xf]
        %v5037 = vld [vmem:[%s8 + $0x318] sm:$0xf]
        %v5038 = vld [vmem:[%s8 + $0x31c] sm:$0xf]
        %v5039 = vld [vmem:[%s8 + $0x320] sm:$0xf]
        %v5040 = vld [vmem:[%s8 + $0x324] sm:$0xf]
        %v5041 = vld [vmem:[%s8 + $0x328] sm:$0xf]
        %v5042 = vld [vmem:[%s8 + $0x32c] sm:$0xf]
        %v5043 = vld [vmem:[%s8 + $0x330] sm:$0xf]
        %v5044 = vld [vmem:[%s8 + $0x334] sm:$0xf]
        %v5045 = vld [vmem:[%s8 + $0x338] sm:$0xf]
        %v5046 = vld [vmem:[%s8 + $0x33c] sm:$0xf]
        %v5047 = vld [vmem:[%s8 + $0x340] sm:$0xf]
        %v5048 = vld [vmem:[%s8 + $0x344] sm:$0xf]
        %v5049 = vld [vmem:[%s8 + $0x348] sm:$0xf]
        %v5050 = vld [vmem:[%s8 + $0x34c] sm:$0xf]
        %v5051 = vld [vmem:[%s8 + $0x350] sm:$0xf]
        %v5052 = vld [vmem:[%s8 + $0x354] sm:$0xf]
        %v5053 = vld [vmem:[%s8 + $0x358] sm:$0xf]
        %v5054 = vld [vmem:[%s8 + $0x35c] sm:$0xf]
        %v5055 = vld [vmem:[%s8 + $0x360] sm:$0xf]
        %v5056 = vld [vmem:[%s8 + $0x364] sm:$0xf]
        %v5057 = vld [vmem:[%s8 + $0x368] sm:$0xf]
        %v5058 = vld [vmem:[%s8 + $0x36c] sm:$0xf]
        %v5059 = vld [vmem:[%s8 + $0x370] sm:$0xf]
        %v5060 = vld [vmem:[%s8 + $0x374] sm:$0xf]
        %v5061 = vld [vmem:[%s8 + $0x378] sm:$0xf]
        %v5062 = vld [vmem:[%s8 + $0x37c] sm:$0xf]
        %v5063 = vld [vmem:[%s8 + $0x380] sm:$0xf]
        %v5064 = vld [vmem:[%s8 + $0x384] sm:$0xf]
        %v5065 = vld [vmem:[%s8 + $0x388] sm:$0xf]
        %v5066 = vld [vmem:[%s8 + $0x38c] sm:$0xf]
        %v5067 = vld [vmem:[%s8 + $0x390] sm:$0xf]
        %v5068 = vld [vmem:[%s8 + $0x394] sm:$0xf]
        %v5069 = vld [vmem:[%s8 + $0x398] sm:$0xf]
        %v5070 = vld [vmem:[%s8 + $0x39c] sm:$0xf]
        %v5071 = vld [vmem:[%s8 + $0x3a0] sm:$0xf]
        %v5072 = vld [vmem:[%s8 + $0x3a4] sm:$0xf]
        %v5073 = vld [vmem:[%s8 + $0x3a8] sm:$0xf]
        %v5074 = vld [vmem:[%s8 + $0x3ac] sm:$0xf]
        %v5075 = vld [vmem:[%s8 + $0x3b0] sm:$0xf]
        %v5076 = vld [vmem:[%s8 + $0x3b4] sm:$0xf]
        %v5077 = vld [vmem:[%s8 + $0x3b8] sm:$0xf]
        %v5078 = vld [vmem:[%s8 + $0x3bc] sm:$0xf]
        %v5079 = vld [vmem:[%s8 + $0x3c0] sm:$0xf]
        %v5080 = vld [vmem:[%s8 + $0x3c4] sm:$0xf]
        %v5081 = vld [vmem:[%s8 + $0x3c8] sm:$0xf]
        %v5082 = vld [vmem:[%s8 + $0x3cc] sm:$0xf]
        %v5083 = vld [vmem:[%s8 + $0x3d0] sm:$0xf]
        %v5084 = vld [vmem:[%s8 + $0x3d4] sm:$0xf]
        %v5085 = vld [vmem:[%s8 + $0x3d8] sm:$0xf]
        %v5086 = vld [vmem:[%s8 + $0x3dc] sm:$0xf]
        %v5087 = vld [vmem:[%s8 + $0x3e0] sm:$0xf]
        %v5088 = vld [vmem:[%s8 + $0x3e4] sm:$0xf]
        %v5089 = vld [vmem:[%s8 + $0x3e8] sm:$0xf]
        %v5090 = vld [vmem:[%s8 + $0x3ec] sm:$0xf]
        %v5091 = vld [vmem:[%s8 + $0x3f0] sm:$0xf]
        %v5092 = vld [vmem:[%s8 + $0x3f4] sm:$0xf]
        %v5093 = vld [vmem:[%s8 + $0x3f8] sm:$0xf]
        %v5094 = vld [vmem:[%s8 + $0x3fc] sm:$0xf]
        %v5095 = vld [vmem:[%s8 + $0x400] sm:$0xf]
        %v5096 = vld [vmem:[%s8 + $0x404] sm:$0xf]
        %v5097 = vld [vmem:[%s8 + $0x408] sm:$0xf]
        %v5098 = vld [vmem:[%s8 + $0x40c] sm:$0xf]
        %v5099 = vld [vmem:[%s8 + $0x410] sm:$0xf]
        %v5100 = vld [vmem:[%s8 + $0x414] sm:$0xf]
        %v5101 = vld [vmem:[%s8 + $0x418] sm:$0xf]
        %v5102 = vld [vmem:[%s8 + $0x41c] sm:$0xf]
        %v5103 = vld [vmem:[%s8 + $0x420] sm:$0xf]
        %v5104 = vld [vmem:[%s8 + $0x424] sm:$0xf]
        %v5105 = vld [vmem:[%s8 + $0x428] sm:$0xf]
        %v5106 = vld [vmem:[%s8 + $0x42c] sm:$0xf]
        %v5107 = vld [vmem:[%s8 + $0x430] sm:$0xf]
        %v5108 = vld [vmem:[%s8 + $0x434] sm:$0xf]
        %v5109 = vld [vmem:[%s8 + $0x438] sm:$0xf]
        %v5110 = vld [vmem:[%s8 + $0x43c] sm:$0xf]
        %v5111 = vld [vmem:[%s8 + $0x440] sm:$0xf]
        %v5112 = vld [vmem:[%s8 + $0x444] sm:$0xf]
        %v5113 = vld [vmem:[%s8 + $0x448] sm:$0xf]
        %v5114 = vld [vmem:[%s8 + $0x44c] sm:$0xf]
        %v5115 = vld [vmem:[%s8 + $0x450] sm:$0xf]
        %v5116 = vld [vmem:[%s8 + $0x454] sm:$0xf]
        %v5117 = vld [vmem:[%s8 + $0x458] sm:$0xf]
        %v5118 = vld [vmem:[%s8 + $0x45c] sm:$0xf]
        %v5119 = vld [vmem:[%s8 + $0x460] sm:$0xf]
        %v5120 = vld [vmem:[%s8 + $0x464] sm:$0xf]
        %v5121 = vld [vmem:[%s8 + $0x468] sm:$0xf]
        %v5122 = vld [vmem:[%s8 + $0x46c] sm:$0xf]
        %v5123 = vld [vmem:[%s8 + $0x470] sm:$0xf]
        %v5124 = vld [vmem:[%s8 + $0x474] sm:$0xf]
        %v5125 = vld [vmem:[%s8 + $0x478] sm:$0xf]
        %v5126 = vld [vmem:[%s8 + $0x47c] sm:$0xf]
        %v5127 = vld [vmem:[%s8 + $0x480] sm:$0xf]
        %v5128 = vld [vmem:[%s8 + $0x484] sm:$0xf]
        %v5129 = vld [vmem:[%s8 + $0x488] sm:$0xf]
        %v5130 = vld [vmem:[%s8 + $0x48c] sm:$0xf]
        %v5131 = vld [vmem:[%s8 + $0x490] sm:$0xf]
        %v5132 = vld [vmem:[%s8 + $0x494] sm:$0xf]
        %v5133 = vld [vmem:[%s8 + $0x498] sm:$0xf]
        %v5134 = vld [vmem:[%s8 + $0x49c] sm:$0xf]
        %v5135 = vld [vmem:[%s8 + $0x4a0] sm:$0xf]
        %v5136 = vld [vmem:[%s8 + $0x4a4] sm:$0xf]
        %v5137 = vld [vmem:[%s8 + $0x4a8] sm:$0xf]
        %v5138 = vld [vmem:[%s8 + $0x4ac] sm:$0xf]
        %v5139 = vld [vmem:[%s8 + $0x4b0] sm:$0xf]
        %v5140 = vld [vmem:[%s8 + $0x4b4] sm:$0xf]
        %v5141 = vld [vmem:[%s8 + $0x4b8] sm:$0xf]
        %v5142 = vld [vmem:[%s8 + $0x4bc] sm:$0xf]
        %v5143 = vld [vmem:[%s8 + $0x4c0] sm:$0xf]
        %v5144 = vld [vmem:[%s8 + $0x4c4] sm:$0xf]
        %v5145 = vld [vmem:[%s8 + $0x4c8] sm:$0xf]
        %v5146 = vld [vmem:[%s8 + $0x4cc] sm:$0xf]
        %v5147 = vld [vmem:[%s8 + $0x4d0] sm:$0xf]
        %v5148 = vld [vmem:[%s8 + $0x4d4] sm:$0xf]
        %v5149 = vld [vmem:[%s8 + $0x4d8] sm:$0xf]
        %v5150 = vld [vmem:[%s8 + $0x4dc] sm:$0xf]
        %v5151 = vld [vmem:[%s8 + $0x4e0] sm:$0xf]
        %v5152 = vld [vmem:[%s8 + $0x4e4] sm:$0xf]
        %v5153 = vld [vmem:[%s8 + $0x4e8] sm:$0xf]
        %v5154 = vld [vmem:[%s8 + $0x4ec] sm:$0xf]
        %v5155 = vld [vmem:[%s8 + $0x4f0] sm:$0xf]
        %v5156 = vld [vmem:[%s8 + $0x4f4] sm:$0xf]
        %v5157 = vld [vmem:[%s8 + $0x4f8] sm:$0xf]
        %v5158 = vld [vmem:[%s8 + $0x4fc] sm:$0xf]
        %v5159 = vld [vmem:[%s8 + $0x500] sm:$0xf]
        %v5160 = vld [vmem:[%s8 + $0x504] sm:$0xf]
        %v5161 = vld [vmem:[%s8 + $0x508] sm:$0xf]
        %v5162 = vld [vmem:[%s8 + $0x50c] sm:$0xf]
        %v5163 = vld [vmem:[%s8 + $0x510] sm:$0xf]
        %v5164 = vld [vmem:[%s8 + $0x514] sm:$0xf]
        %v5165 = vld [vmem:[%s8 + $0x518] sm:$0xf]
        %v5166 = vld [vmem:[%s8 + $0x51c] sm:$0xf]
        %v5167 = vld [vmem:[%s8 + $0x520] sm:$0xf]
        %v5168 = vld [vmem:[%s8 + $0x524] sm:$0xf]
        %v5169 = vld [vmem:[%s8 + $0x528] sm:$0xf]
        %v5170 = vld [vmem:[%s8 + $0x52c] sm:$0xf]
        %v5171 = vld [vmem:[%s8 + $0x530] sm:$0xf]
        %v5172 = vld [vmem:[%s8 + $0x534] sm:$0xf]
        %v5173 = vld [vmem:[%s8 + $0x538] sm:$0xf]
        %v5174 = vld [vmem:[%s8 + $0x53c] sm:$0xf]
        %v5175 = vld [vmem:[%s8 + $0x540] sm:$0xf]
        %v5176 = vld [vmem:[%s8 + $0x544] sm:$0xf]
        %v5177 = vld [vmem:[%s8 + $0x548] sm:$0xf]
        %v5178 = vld [vmem:[%s8 + $0x54c] sm:$0xf]
        %v5179 = vld [vmem:[%s8 + $0x550] sm:$0xf]
        %v5180 = vld [vmem:[%s8 + $0x554] sm:$0xf]
        %v5181 = vld [vmem:[%s8 + $0x558] sm:$0xf]
        %v5182 = vld [vmem:[%s8 + $0x55c] sm:$0xf]
        %v5183 = vld [vmem:[%s8 + $0x560] sm:$0xf]
        %v5184 = vld [vmem:[%s8 + $0x564] sm:$0xf]
        %v5185 = vld [vmem:[%s8 + $0x568] sm:$0xf]
        %v5186 = vld [vmem:[%s8 + $0x56c] sm:$0xf]
        %v5187 = vld [vmem:[%s8 + $0x570] sm:$0xf]
        %v5188 = vld [vmem:[%s8 + $0x574] sm:$0xf]
        %v5189 = vld [vmem:[%s8 + $0x578] sm:$0xf]
        %v5190 = vld [vmem:[%s8 + $0x57c] sm:$0xf]
        %v5191 = vld [vmem:[%s8 + $0x580] sm:$0xf]
        %v5192 = vld [vmem:[%s8 + $0x584] sm:$0xf]
        %v5193 = vld [vmem:[%s8 + $0x588] sm:$0xf]
        %v5194 = vld [vmem:[%s8 + $0x58c] sm:$0xf]
        %v5195 = vld [vmem:[%s8 + $0x590] sm:$0xf]
        %v5196 = vld [vmem:[%s8 + $0x594] sm:$0xf]
        %v5197 = vld [vmem:[%s8 + $0x598] sm:$0xf]
        %v5198 = vld [vmem:[%s8 + $0x59c] sm:$0xf]
        %v5199 = vld [vmem:[%s8 + $0x5a0] sm:$0xf]
        %v5200 = vld [vmem:[%s8 + $0x5a4] sm:$0xf]
        %v5201 = vld [vmem:[%s8 + $0x5a8] sm:$0xf]
        %v5202 = vld [vmem:[%s8 + $0x5ac] sm:$0xf]
        %v5203 = vld [vmem:[%s8 + $0x5b0] sm:$0xf]
        %v5204 = vld [vmem:[%s8 + $0x5b4] sm:$0xf]
        %v5205 = vld [vmem:[%s8 + $0x5b8] sm:$0xf]
        %v5206 = vld [vmem:[%s8 + $0x5bc] sm:$0xf]
        %v5207 = vld [vmem:[%s8 + $0x5c0] sm:$0xf]
        %v5208 = vld [vmem:[%s8 + $0x5c4] sm:$0xf]
        %v5209 = vld [vmem:[%s8 + $0x5c8] sm:$0xf]
        %v5210 = vld [vmem:[%s8 + $0x5cc] sm:$0xf]
        %v5211 = vld [vmem:[%s8 + $0x5d0] sm:$0xf]
        %v5212 = vld [vmem:[%s8 + $0x5d4] sm:$0xf]
        %v5213 = vld [vmem:[%s8 + $0x5d8] sm:$0xf]
        %v5214 = vld [vmem:[%s8 + $0x5dc] sm:$0xf]
        %v5215 = vld [vmem:[%s8 + $0x5e0] sm:$0xf]
        %v5216 = vld [vmem:[%s8 + $0x5e4] sm:$0xf]
        %v5217 = vld [vmem:[%s8 + $0x5e8] sm:$0xf]
        %v5218 = vld [vmem:[%s8 + $0x5ec] sm:$0xf]
        %v5219 = vld [vmem:[%s8 + $0x5f0] sm:$0xf]
        %v5220 = vld [vmem:[%s8 + $0x5f4] sm:$0xf]
        %v5221 = vld [vmem:[%s8 + $0x5f8] sm:$0xf]
        %v5222 = vld [vmem:[%s8 + $0x5fc] sm:$0xf]
        %v5223 = vld [vmem:[%s8 + $0x600] sm:$0xf]
        %v5224 = vld [vmem:[%s8 + $0x604] sm:$0xf]
        %v5225 = vld [vmem:[%s8 + $0x608] sm:$0xf]
        %v5226 = vld [vmem:[%s8 + $0x60c] sm:$0xf]
        %v5227 = vld [vmem:[%s8 + $0x610] sm:$0xf]
        %v5228 = vld [vmem:[%s8 + $0x614] sm:$0xf]
        %v5229 = vld [vmem:[%s8 + $0x618] sm:$0xf]
        %v5230 = vld [vmem:[%s8 + $0x61c] sm:$0xf]
        %v5231 = vld [vmem:[%s8 + $0x620] sm:$0xf]
        %v5232 = vld [vmem:[%s8 + $0x624] sm:$0xf]
        %v5233 = vld [vmem:[%s8 + $0x628] sm:$0xf]
        %v5234 = vld [vmem:[%s8 + $0x62c] sm:$0xf]
        %v5235 = vld [vmem:[%s8 + $0x630] sm:$0xf]
        %v5236 = vld [vmem:[%s8 + $0x634] sm:$0xf]
        %v5237 = vld [vmem:[%s8 + $0x638] sm:$0xf]
        %v5238 = vld [vmem:[%s8 + $0x63c] sm:$0xf]
        %v5239 = vld [vmem:[%s8 + $0x640] sm:$0xf]
        %v5240 = vld [vmem:[%s8 + $0x644] sm:$0xf]
        %v5241 = vld [vmem:[%s8 + $0x648] sm:$0xf]
        %v5242 = vld [vmem:[%s8 + $0x64c] sm:$0xf]
        %v5243 = vld [vmem:[%s8 + $0x650] sm:$0xf]
        %v5244 = vld [vmem:[%s8 + $0x654] sm:$0xf]
        %v5245 = vld [vmem:[%s8 + $0x658] sm:$0xf]
        %v5246 = vld [vmem:[%s8 + $0x65c] sm:$0xf]
        %v5247 = vld [vmem:[%s8 + $0x660] sm:$0xf]
        %v5248 = vld [vmem:[%s8 + $0x664] sm:$0xf]
        %v5249 = vld [vmem:[%s8 + $0x668] sm:$0xf]
        %v5250 = vld [vmem:[%s8 + $0x66c] sm:$0xf]
        %v5251 = vld [vmem:[%s8 + $0x670] sm:$0xf]
        %v5252 = vld [vmem:[%s8 + $0x674] sm:$0xf]
        %v5253 = vld [vmem:[%s8 + $0x678] sm:$0xf]
        %v5254 = vld [vmem:[%s8 + $0x67c] sm:$0xf]
        %v5255 = vld [vmem:[%s8 + $0x680] sm:$0xf]
        %v5256 = vld [vmem:[%s8 + $0x684] sm:$0xf]
        %v5257 = vld [vmem:[%s8 + $0x688] sm:$0xf]
        %v5258 = vld [vmem:[%s8 + $0x68c] sm:$0xf]
        %v5259 = vld [vmem:[%s8 + $0x690] sm:$0xf]
        %v5260 = vld [vmem:[%s8 + $0x694] sm:$0xf]
        %v5261 = vld [vmem:[%s8 + $0x698] sm:$0xf]
        %v5262 = vld [vmem:[%s8 + $0x69c] sm:$0xf]
        %v5263 = vld [vmem:[%s8 + $0x6a0] sm:$0xf]
        %v5264 = vld [vmem:[%s8 + $0x6a4] sm:$0xf]
        %v5265 = vld [vmem:[%s8 + $0x6a8] sm:$0xf]
        %v5266 = vld [vmem:[%s8 + $0x6ac] sm:$0xf]
        %v5267 = vld [vmem:[%s8 + $0x6b0] sm:$0xf]
        %v5268 = vld [vmem:[%s8 + $0x6b4] sm:$0xf]
        %v5269 = vld [vmem:[%s8 + $0x6b8] sm:$0xf]
        %v5270 = vld [vmem:[%s8 + $0x6bc] sm:$0xf]
        %v5271 = vld [vmem:[%s8 + $0x6c0] sm:$0xf]
        %v5272 = vld [vmem:[%s8 + $0x6c4] sm:$0xf]
        %v5273 = vld [vmem:[%s8 + $0x6c8] sm:$0xf]
        %v5274 = vld [vmem:[%s8 + $0x6cc] sm:$0xf]
        %v5275 = vld [vmem:[%s8 + $0x6d0] sm:$0xf]
        %v5276 = vld [vmem:[%s8 + $0x6d4] sm:$0xf]
        %v5277 = vld [vmem:[%s8 + $0x6d8] sm:$0xf]
        %v5278 = vld [vmem:[%s8 + $0x6dc] sm:$0xf]
        %v5279 = vld [vmem:[%s8 + $0x6e0] sm:$0xf]
        %v5280 = vld [vmem:[%s8 + $0x6e4] sm:$0xf]
        %v5281 = vld [vmem:[%s8 + $0x6e8] sm:$0xf]
        %v5282 = vld [vmem:[%s8 + $0x6ec] sm:$0xf]
        %v5283 = vld [vmem:[%s8 + $0x6f0] sm:$0xf]
        %v5284 = vld [vmem:[%s8 + $0x6f4] sm:$0xf]
        %v5285 = vld [vmem:[%s8 + $0x6f8] sm:$0xf]
        %v5286 = vld [vmem:[%s8 + $0x6fc] sm:$0xf]
        %v5287 = vld [vmem:[%s8 + $0x700] sm:$0xf]
        %v5288 = vld [vmem:[%s8 + $0x704] sm:$0xf]
        %v5289 = vld [vmem:[%s8 + $0x708] sm:$0xf]
        %v5290 = vld [vmem:[%s8 + $0x70c] sm:$0xf]
        %v5291 = vld [vmem:[%s8 + $0x710] sm:$0xf]
        %v5292 = vld [vmem:[%s8 + $0x714] sm:$0xf]
        %v5293 = vld [vmem:[%s8 + $0x718] sm:$0xf]
        %v5294 = vld [vmem:[%s8 + $0x71c] sm:$0xf]
        %v5295 = vld [vmem:[%s8 + $0x720] sm:$0xf]
        %v5296 = vld [vmem:[%s8 + $0x724] sm:$0xf]
        %v5297 = vld [vmem:[%s8 + $0x728] sm:$0xf]
        %v5298 = vld [vmem:[%s8 + $0x72c] sm:$0xf]
        %v5299 = vld [vmem:[%s8 + $0x730] sm:$0xf]
        %v5300 = vld [vmem:[%s8 + $0x734] sm:$0xf]
        %v5301 = vld [vmem:[%s8 + $0x738] sm:$0xf]
        %v5302 = vld [vmem:[%s8 + $0x73c] sm:$0xf]
        %v5303 = vld [vmem:[%s8 + $0x740] sm:$0xf]
        %v5304 = vld [vmem:[%s8 + $0x744] sm:$0xf]
        %v5305 = vld [vmem:[%s8 + $0x748] sm:$0xf]
        %v5306 = vld [vmem:[%s8 + $0x74c] sm:$0xf]
        %v5307 = vld [vmem:[%s8 + $0x750] sm:$0xf]
        %v5308 = vld [vmem:[%s8 + $0x754] sm:$0xf]
        %v5309 = vld [vmem:[%s8 + $0x758] sm:$0xf]
        %v5310 = vld [vmem:[%s8 + $0x75c] sm:$0xf]
        %v5311 = vld [vmem:[%s8 + $0x760] sm:$0xf]
        %v5312 = vld [vmem:[%s8 + $0x764] sm:$0xf]
        %v5313 = vld [vmem:[%s8 + $0x768] sm:$0xf]
        %v5314 = vld [vmem:[%s8 + $0x76c] sm:$0xf]
        %v5315 = vld [vmem:[%s8 + $0x770] sm:$0xf]
        %v5316 = vld [vmem:[%s8 + $0x774] sm:$0xf]
        %v5317 = vld [vmem:[%s8 + $0x778] sm:$0xf]
        %v5318 = vld [vmem:[%s8 + $0x77c] sm:$0xf]
        %v5319 = vld [vmem:[%s8 + $0x780] sm:$0xf]
        %v5320 = vld [vmem:[%s8 + $0x784] sm:$0xf]
        %v5321 = vld [vmem:[%s8 + $0x788] sm:$0xf]
        %v5322 = vld [vmem:[%s8 + $0x78c] sm:$0xf]
        %v5323 = vld [vmem:[%s8 + $0x790] sm:$0xf]
        %v5324 = vld [vmem:[%s8 + $0x794] sm:$0xf]
        %v5325 = vld [vmem:[%s8 + $0x798] sm:$0xf]
        %v5326 = vld [vmem:[%s8 + $0x79c] sm:$0xf]
        %v5327 = vld [vmem:[%s8 + $0x7a0] sm:$0xf]
        %v5328 = vld [vmem:[%s8 + $0x7a4] sm:$0xf]
        %v5329 = vld [vmem:[%s8 + $0x7a8] sm:$0xf]
        %v5330 = vld [vmem:[%s8 + $0x7ac] sm:$0xf]
        %v5331 = vld [vmem:[%s8 + $0x7b0] sm:$0xf]
        %v5332 = vld [vmem:[%s8 + $0x7b4] sm:$0xf]
        %v5333 = vld [vmem:[%s8 + $0x7b8] sm:$0xf]
        %v5334 = vld [vmem:[%s8 + $0x7bc] sm:$0xf]
        %v5335 = vld [vmem:[%s8 + $0x7c0] sm:$0xf]
        %v5336 = vld [vmem:[%s8 + $0x7c4] sm:$0xf]
        %v5337 = vld [vmem:[%s8 + $0x7c8] sm:$0xf]
        %v5338 = vld [vmem:[%s8 + $0x7cc] sm:$0xf]
        %v5339 = vld [vmem:[%s8 + $0x7d0] sm:$0xf]
        %v5340 = vld [vmem:[%s8 + $0x7d4] sm:$0xf]
        %v5341 = vld [vmem:[%s8 + $0x7d8] sm:$0xf]
        %v5342 = vld [vmem:[%s8 + $0x7dc] sm:$0xf]
        %v5343 = vld [vmem:[%s8 + $0x7e0] sm:$0xf]
        %v5344 = vld [vmem:[%s8 + $0x7e4] sm:$0xf]
        %v5345 = vld [vmem:[%s8 + $0x7e8] sm:$0xf]
        %v5346 = vld [vmem:[%s8 + $0x7ec] sm:$0xf]
        %v5347 = vld [vmem:[%s8 + $0x7f0] sm:$0xf]
        %v5348 = vld [vmem:[%s8 + $0x7f4] sm:$0xf]
        %v5349 = vld [vmem:[%s8 + $0x7f8] sm:$0xf]
        %v5350 = vld [vmem:[%s8 + $0x7fc] sm:$0xf]
        %v5351 = vld [vmem:[%s9] sm:$0x1]
        %v5864 = vunpack.c.l.b16 %v4839
        %v5865 = vunpack.c.l.b16 %v4840
        %v5866 = vunpack.c.l.b16 %v4841
        %v5867 = vunpack.c.l.b16 %v4842
        %v5868 = vunpack.c.l.b16 %v4843
        %v5869 = vunpack.c.l.b16 %v4844
        %v5870 = vunpack.c.l.b16 %v4845
        %v5871 = vunpack.c.l.b16 %v4846
        %v5872 = vunpack.c.l.b16 %v4847
        %v5873 = vunpack.c.l.b16 %v4848
        %v5874 = vunpack.c.l.b16 %v4849
        %v5875 = vunpack.c.l.b16 %v4850
        %v5876 = vunpack.c.l.b16 %v4851
        %v5877 = vunpack.c.l.b16 %v4852
        %v5878 = vunpack.c.l.b16 %v4853
        %v5879 = vunpack.c.l.b16 %v4854
        %v5880 = vunpack.c.l.b16 %v4855
        %v5881 = vunpack.c.l.b16 %v4856
        %v5882 = vunpack.c.l.b16 %v4857
        %v5883 = vunpack.c.l.b16 %v4858
        %v5884 = vunpack.c.l.b16 %v4859
        %v5885 = vunpack.c.l.b16 %v4860
        %v5886 = vunpack.c.l.b16 %v4861
        %v5887 = vunpack.c.l.b16 %v4862
        %v5888 = vunpack.c.l.b16 %v4863
        %v5889 = vunpack.c.l.b16 %v4864
        %v5890 = vunpack.c.l.b16 %v4865
        %v5891 = vunpack.c.l.b16 %v4866
        %v5892 = vunpack.c.l.b16 %v4867
        %v5893 = vunpack.c.l.b16 %v4868
        %v5894 = vunpack.c.l.b16 %v4869
        %v5895 = vunpack.c.l.b16 %v4870
        %v5896 = vunpack.c.l.b16 %v4871
        %v5897 = vunpack.c.l.b16 %v4872
        %v5898 = vunpack.c.l.b16 %v4873
        %v5899 = vunpack.c.l.b16 %v4874
        %v5900 = vunpack.c.l.b16 %v4875
        %v5901 = vunpack.c.l.b16 %v4876
        %v5902 = vunpack.c.l.b16 %v4877
        %v5903 = vunpack.c.l.b16 %v4878
        %v5904 = vunpack.c.l.b16 %v4879
        %v5905 = vunpack.c.l.b16 %v4880
        %v5906 = vunpack.c.l.b16 %v4881
        %v5907 = vunpack.c.l.b16 %v4882
        %v5908 = vunpack.c.l.b16 %v4883
        %v5909 = vunpack.c.l.b16 %v4884
        %v5910 = vunpack.c.l.b16 %v4885
        %v5911 = vunpack.c.l.b16 %v4886
        %v5912 = vunpack.c.l.b16 %v4887
        %v5913 = vunpack.c.l.b16 %v4888
        %v5914 = vunpack.c.l.b16 %v4889
        %v5915 = vunpack.c.l.b16 %v4890
        %v5916 = vunpack.c.l.b16 %v4891
        %v5917 = vunpack.c.l.b16 %v4892
        %v5918 = vunpack.c.l.b16 %v4893
        %v5919 = vunpack.c.l.b16 %v4894
        %v5920 = vunpack.c.l.b16 %v4895
        %v5921 = vunpack.c.l.b16 %v4896
        %v5922 = vunpack.c.l.b16 %v4897
        %v5923 = vunpack.c.l.b16 %v4898
        %v5924 = vunpack.c.l.b16 %v4899
        %v5925 = vunpack.c.l.b16 %v4900
        %v5926 = vunpack.c.l.b16 %v4901
        %v5927 = vunpack.c.l.b16 %v4902
        %v5928 = vunpack.c.l.b16 %v4903
        %v5929 = vunpack.c.l.b16 %v4904
        %v5930 = vunpack.c.l.b16 %v4905
        %v5931 = vunpack.c.l.b16 %v4906
        %v5932 = vunpack.c.l.b16 %v4907
        %v5933 = vunpack.c.l.b16 %v4908
        %v5934 = vunpack.c.l.b16 %v4909
        %v5935 = vunpack.c.l.b16 %v4910
        %v5936 = vunpack.c.l.b16 %v4911
        %v5937 = vunpack.c.l.b16 %v4912
        %v5938 = vunpack.c.l.b16 %v4913
        %v5939 = vunpack.c.l.b16 %v4914
        %v5940 = vunpack.c.l.b16 %v4915
        %v5941 = vunpack.c.l.b16 %v4916
        %v5942 = vunpack.c.l.b16 %v4917
        %v5943 = vunpack.c.l.b16 %v4918
        %v5944 = vunpack.c.l.b16 %v4919
        %v5945 = vunpack.c.l.b16 %v4920
        %v5946 = vunpack.c.l.b16 %v4921
        %v5947 = vunpack.c.l.b16 %v4922
        %v5948 = vunpack.c.l.b16 %v4923
        %v5949 = vunpack.c.l.b16 %v4924
        %v5950 = vunpack.c.l.b16 %v4925
        %v5951 = vunpack.c.l.b16 %v4926
        %v5952 = vunpack.c.l.b16 %v4927
        %v5953 = vunpack.c.l.b16 %v4928
        %v5954 = vunpack.c.l.b16 %v4929
        %v5955 = vunpack.c.l.b16 %v4930
        %v5956 = vunpack.c.l.b16 %v4931
        %v5957 = vunpack.c.l.b16 %v4932
        %v5958 = vunpack.c.l.b16 %v4933
        %v5959 = vunpack.c.l.b16 %v4934
        %v5960 = vunpack.c.l.b16 %v4935
        %v5961 = vunpack.c.l.b16 %v4936
        %v5962 = vunpack.c.l.b16 %v4937
        %v5963 = vunpack.c.l.b16 %v4938
        %v5964 = vunpack.c.l.b16 %v4939
        %v5965 = vunpack.c.l.b16 %v4940
        %v5966 = vunpack.c.l.b16 %v4941
        %v5967 = vunpack.c.l.b16 %v4942
        %v5968 = vunpack.c.l.b16 %v4943
        %v5969 = vunpack.c.l.b16 %v4944
        %v5970 = vunpack.c.l.b16 %v4945
        %v5971 = vunpack.c.l.b16 %v4946
        %v5972 = vunpack.c.l.b16 %v4947
        %v5973 = vunpack.c.l.b16 %v4948
        %v5974 = vunpack.c.l.b16 %v4949
        %v5975 = vunpack.c.l.b16 %v4950
        %v5976 = vunpack.c.l.b16 %v4951
        %v5977 = vunpack.c.l.b16 %v4952
        %v5978 = vunpack.c.l.b16 %v4953
        %v5979 = vunpack.c.l.b16 %v4954
        %v5980 = vunpack.c.l.b16 %v4955
        %v5981 = vunpack.c.l.b16 %v4956
        %v5982 = vunpack.c.l.b16 %v4957
        %v5983 = vunpack.c.l.b16 %v4958
        %v5984 = vunpack.c.l.b16 %v4959
        %v5985 = vunpack.c.l.b16 %v4960
        %v5986 = vunpack.c.l.b16 %v4961
        %v5987 = vunpack.c.l.b16 %v4962
        %v5988 = vunpack.c.l.b16 %v4963
        %v5989 = vunpack.c.l.b16 %v4964
        %v5990 = vunpack.c.l.b16 %v4965
        %v5991 = vunpack.c.l.b16 %v4966
        %v5992 = vunpack.c.l.b16 %v4967
        %v5993 = vunpack.c.l.b16 %v4968
        %v5994 = vunpack.c.l.b16 %v4969
        %v5995 = vunpack.c.l.b16 %v4970
        %v5996 = vunpack.c.l.b16 %v4971
        %v5997 = vunpack.c.l.b16 %v4972
        %v5998 = vunpack.c.l.b16 %v4973
        %v5999 = vunpack.c.l.b16 %v4974
        %v6000 = vunpack.c.l.b16 %v4975
        %v6001 = vunpack.c.l.b16 %v4976
        %v6002 = vunpack.c.l.b16 %v4977
        %v6003 = vunpack.c.l.b16 %v4978
        %v6004 = vunpack.c.l.b16 %v4979
        %v6005 = vunpack.c.l.b16 %v4980
        %v6006 = vunpack.c.l.b16 %v4981
        %v6007 = vunpack.c.l.b16 %v4982
        %v6008 = vunpack.c.l.b16 %v4983
        %v6009 = vunpack.c.l.b16 %v4984
        %v6010 = vunpack.c.l.b16 %v4985
        %v6011 = vunpack.c.l.b16 %v4986
        %v6012 = vunpack.c.l.b16 %v4987
        %v6013 = vunpack.c.l.b16 %v4988
        %v6014 = vunpack.c.l.b16 %v4989
        %v6015 = vunpack.c.l.b16 %v4990
        %v6016 = vunpack.c.l.b16 %v4991
        %v6017 = vunpack.c.l.b16 %v4992
        %v6018 = vunpack.c.l.b16 %v4993
        %v6019 = vunpack.c.l.b16 %v4994
        %v6020 = vunpack.c.l.b16 %v4995
        %v6021 = vunpack.c.l.b16 %v4996
        %v6022 = vunpack.c.l.b16 %v4997
        %v6023 = vunpack.c.l.b16 %v4998
        %v6024 = vunpack.c.l.b16 %v4999
        %v6025 = vunpack.c.l.b16 %v5000
        %v6026 = vunpack.c.l.b16 %v5001
        %v6027 = vunpack.c.l.b16 %v5002
        %v6028 = vunpack.c.l.b16 %v5003
        %v6029 = vunpack.c.l.b16 %v5004
        %v6030 = vunpack.c.l.b16 %v5005
        %v6031 = vunpack.c.l.b16 %v5006
        %v6032 = vunpack.c.l.b16 %v5007
        %v6033 = vunpack.c.l.b16 %v5008
        %v6034 = vunpack.c.l.b16 %v5009
        %v6035 = vunpack.c.l.b16 %v5010
        %v6036 = vunpack.c.l.b16 %v5011
        %v6037 = vunpack.c.l.b16 %v5012
        %v6038 = vunpack.c.l.b16 %v5013
        %v6039 = vunpack.c.l.b16 %v5014
        %v6040 = vunpack.c.l.b16 %v5015
        %v6041 = vunpack.c.l.b16 %v5016
        %v6042 = vunpack.c.l.b16 %v5017
        %v6043 = vunpack.c.l.b16 %v5018
        %v6044 = vunpack.c.l.b16 %v5019
        %v6045 = vunpack.c.l.b16 %v5020
        %v6046 = vunpack.c.l.b16 %v5021
        %v6047 = vunpack.c.l.b16 %v5022
        %v6048 = vunpack.c.l.b16 %v5023
        %v6049 = vunpack.c.l.b16 %v5024
        %v6050 = vunpack.c.l.b16 %v5025
        %v6051 = vunpack.c.l.b16 %v5026
        %v6052 = vunpack.c.l.b16 %v5027
        %v6053 = vunpack.c.l.b16 %v5028
        %v6054 = vunpack.c.l.b16 %v5029
        %v6055 = vunpack.c.l.b16 %v5030
        %v6056 = vunpack.c.l.b16 %v5031
        %v6057 = vunpack.c.l.b16 %v5032
        %v6058 = vunpack.c.l.b16 %v5033
        %v6059 = vunpack.c.l.b16 %v5034
        %v6060 = vunpack.c.l.b16 %v5035
        %v6061 = vunpack.c.l.b16 %v5036
        %v6062 = vunpack.c.l.b16 %v5037
        %v6063 = vunpack.c.l.b16 %v5038
        %v6064 = vunpack.c.l.b16 %v5039
        %v6065 = vunpack.c.l.b16 %v5040
        %v6066 = vunpack.c.l.b16 %v5041
        %v6067 = vunpack.c.l.b16 %v5042
        %v6068 = vunpack.c.l.b16 %v5043
        %v6069 = vunpack.c.l.b16 %v5044
        %v6070 = vunpack.c.l.b16 %v5045
        %v6071 = vunpack.c.l.b16 %v5046
        %v6072 = vunpack.c.l.b16 %v5047
        %v6073 = vunpack.c.l.b16 %v5048
        %v6074 = vunpack.c.l.b16 %v5049
        %v6075 = vunpack.c.l.b16 %v5050
        %v6076 = vunpack.c.l.b16 %v5051
        %v6077 = vunpack.c.l.b16 %v5052
        %v6078 = vunpack.c.l.b16 %v5053
        %v6079 = vunpack.c.l.b16 %v5054
        %v6080 = vunpack.c.l.b16 %v5055
        %v6081 = vunpack.c.l.b16 %v5056
        %v6082 = vunpack.c.l.b16 %v5057
        %v6083 = vunpack.c.l.b16 %v5058
        %v6084 = vunpack.c.l.b16 %v5059
        %v6085 = vunpack.c.l.b16 %v5060
        %v6086 = vunpack.c.l.b16 %v5061
        %v6087 = vunpack.c.l.b16 %v5062
        %v6088 = vunpack.c.l.b16 %v5063
        %v6089 = vunpack.c.l.b16 %v5064
        %v6090 = vunpack.c.l.b16 %v5065
        %v6091 = vunpack.c.l.b16 %v5066
        %v6092 = vunpack.c.l.b16 %v5067
        %v6093 = vunpack.c.l.b16 %v5068
        %v6094 = vunpack.c.l.b16 %v5069
        %v6095 = vunpack.c.l.b16 %v5070
        %v6096 = vunpack.c.l.b16 %v5071
        %v6097 = vunpack.c.l.b16 %v5072
        %v6098 = vunpack.c.l.b16 %v5073
        %v6099 = vunpack.c.l.b16 %v5074
        %v6100 = vunpack.c.l.b16 %v5075
        %v6101 = vunpack.c.l.b16 %v5076
        %v6102 = vunpack.c.l.b16 %v5077
        %v6103 = vunpack.c.l.b16 %v5078
        %v6104 = vunpack.c.l.b16 %v5079
        %v6105 = vunpack.c.l.b16 %v5080
        %v6106 = vunpack.c.l.b16 %v5081
        %v6107 = vunpack.c.l.b16 %v5082
        %v6108 = vunpack.c.l.b16 %v5083
        %v6109 = vunpack.c.l.b16 %v5084
        %v6110 = vunpack.c.l.b16 %v5085
        %v6111 = vunpack.c.l.b16 %v5086
        %v6112 = vunpack.c.l.b16 %v5087
        %v6113 = vunpack.c.l.b16 %v5088
        %v6114 = vunpack.c.l.b16 %v5089
        %v6115 = vunpack.c.l.b16 %v5090
        %v6116 = vunpack.c.l.b16 %v5091
        %v6117 = vunpack.c.l.b16 %v5092
        %v6118 = vunpack.c.l.b16 %v5093
        %v6119 = vunpack.c.l.b16 %v5094
        %v6120 = vunpack.c.l.b16 %v5095
        %v6121 = vunpack.c.l.b16 %v5096
        %v6122 = vunpack.c.l.b16 %v5097
        %v6123 = vunpack.c.l.b16 %v5098
        %v6124 = vunpack.c.l.b16 %v5099
        %v6125 = vunpack.c.l.b16 %v5100
        %v6126 = vunpack.c.l.b16 %v5101
        %v6127 = vunpack.c.l.b16 %v5102
        %v6128 = vunpack.c.l.b16 %v5103
        %v6129 = vunpack.c.l.b16 %v5104
        %v6130 = vunpack.c.l.b16 %v5105
        %v6131 = vunpack.c.l.b16 %v5106
        %v6132 = vunpack.c.l.b16 %v5107
        %v6133 = vunpack.c.l.b16 %v5108
        %v6134 = vunpack.c.l.b16 %v5109
        %v6135 = vunpack.c.l.b16 %v5110
        %v6136 = vunpack.c.l.b16 %v5111
        %v6137 = vunpack.c.l.b16 %v5112
        %v6138 = vunpack.c.l.b16 %v5113
        %v6139 = vunpack.c.l.b16 %v5114
        %v6140 = vunpack.c.l.b16 %v5115
        %v6141 = vunpack.c.l.b16 %v5116
        %v6142 = vunpack.c.l.b16 %v5117
        %v6143 = vunpack.c.l.b16 %v5118
        %v6144 = vunpack.c.l.b16 %v5119
        %v6145 = vunpack.c.l.b16 %v5120
        %v6146 = vunpack.c.l.b16 %v5121
        %v6147 = vunpack.c.l.b16 %v5122
        %v6148 = vunpack.c.l.b16 %v5123
        %v6149 = vunpack.c.l.b16 %v5124
        %v6150 = vunpack.c.l.b16 %v5125
        %v6151 = vunpack.c.l.b16 %v5126
        %v6152 = vunpack.c.l.b16 %v5127
        %v6153 = vunpack.c.l.b16 %v5128
        %v6154 = vunpack.c.l.b16 %v5129
        %v6155 = vunpack.c.l.b16 %v5130
        %v6156 = vunpack.c.l.b16 %v5131
        %v6157 = vunpack.c.l.b16 %v5132
        %v6158 = vunpack.c.l.b16 %v5133
        %v6159 = vunpack.c.l.b16 %v5134
        %v6160 = vunpack.c.l.b16 %v5135
        %v6161 = vunpack.c.l.b16 %v5136
        %v6162 = vunpack.c.l.b16 %v5137
        %v6163 = vunpack.c.l.b16 %v5138
        %v6164 = vunpack.c.l.b16 %v5139
        %v6165 = vunpack.c.l.b16 %v5140
        %v6166 = vunpack.c.l.b16 %v5141
        %v6167 = vunpack.c.l.b16 %v5142
        %v6168 = vunpack.c.l.b16 %v5143
        %v6169 = vunpack.c.l.b16 %v5144
        %v6170 = vunpack.c.l.b16 %v5145
        %v6171 = vunpack.c.l.b16 %v5146
        %v6172 = vunpack.c.l.b16 %v5147
        %v6173 = vunpack.c.l.b16 %v5148
        %v6174 = vunpack.c.l.b16 %v5149
        %v6175 = vunpack.c.l.b16 %v5150
        %v6176 = vunpack.c.l.b16 %v5151
        %v6177 = vunpack.c.l.b16 %v5152
        %v6178 = vunpack.c.l.b16 %v5153
        %v6179 = vunpack.c.l.b16 %v5154
        %v6180 = vunpack.c.l.b16 %v5155
        %v6181 = vunpack.c.l.b16 %v5156
        %v6182 = vunpack.c.l.b16 %v5157
        %v6183 = vunpack.c.l.b16 %v5158
        %v6184 = vunpack.c.l.b16 %v5159
        %v6185 = vunpack.c.l.b16 %v5160
        %v6186 = vunpack.c.l.b16 %v5161
        %v6187 = vunpack.c.l.b16 %v5162
        %v6188 = vunpack.c.l.b16 %v5163
        %v6189 = vunpack.c.l.b16 %v5164
        %v6190 = vunpack.c.l.b16 %v5165
        %v6191 = vunpack.c.l.b16 %v5166
        %v6192 = vunpack.c.l.b16 %v5167
        %v6193 = vunpack.c.l.b16 %v5168
        %v6194 = vunpack.c.l.b16 %v5169
        %v6195 = vunpack.c.l.b16 %v5170
        %v6196 = vunpack.c.l.b16 %v5171
        %v6197 = vunpack.c.l.b16 %v5172
        %v6198 = vunpack.c.l.b16 %v5173
        %v6199 = vunpack.c.l.b16 %v5174
        %v6200 = vunpack.c.l.b16 %v5175
        %v6201 = vunpack.c.l.b16 %v5176
        %v6202 = vunpack.c.l.b16 %v5177
        %v6203 = vunpack.c.l.b16 %v5178
        %v6204 = vunpack.c.l.b16 %v5179
        %v6205 = vunpack.c.l.b16 %v5180
        %v6206 = vunpack.c.l.b16 %v5181
        %v6207 = vunpack.c.l.b16 %v5182
        %v6208 = vunpack.c.l.b16 %v5183
        %v6209 = vunpack.c.l.b16 %v5184
        %v6210 = vunpack.c.l.b16 %v5185
        %v6211 = vunpack.c.l.b16 %v5186
        %v6212 = vunpack.c.l.b16 %v5187
        %v6213 = vunpack.c.l.b16 %v5188
        %v6214 = vunpack.c.l.b16 %v5189
        %v6215 = vunpack.c.l.b16 %v5190
        %v6216 = vunpack.c.l.b16 %v5191
        %v6217 = vunpack.c.l.b16 %v5192
        %v6218 = vunpack.c.l.b16 %v5193
        %v6219 = vunpack.c.l.b16 %v5194
        %v6220 = vunpack.c.l.b16 %v5195
        %v6221 = vunpack.c.l.b16 %v5196
        %v6222 = vunpack.c.l.b16 %v5197
        %v6223 = vunpack.c.l.b16 %v5198
        %v6224 = vunpack.c.l.b16 %v5199
        %v6225 = vunpack.c.l.b16 %v5200
        %v6226 = vunpack.c.l.b16 %v5201
        %v6227 = vunpack.c.l.b16 %v5202
        %v6228 = vunpack.c.l.b16 %v5203
        %v6229 = vunpack.c.l.b16 %v5204
        %v6230 = vunpack.c.l.b16 %v5205
        %v6231 = vunpack.c.l.b16 %v5206
        %v6232 = vunpack.c.l.b16 %v5207
        %v6233 = vunpack.c.l.b16 %v5208
        %v6234 = vunpack.c.l.b16 %v5209
        %v6235 = vunpack.c.l.b16 %v5210
        %v6236 = vunpack.c.l.b16 %v5211
        %v6237 = vunpack.c.l.b16 %v5212
        %v6238 = vunpack.c.l.b16 %v5213
        %v6239 = vunpack.c.l.b16 %v5214
        %v6240 = vunpack.c.l.b16 %v5215
        %v6241 = vunpack.c.l.b16 %v5216
        %v6242 = vunpack.c.l.b16 %v5217
        %v6243 = vunpack.c.l.b16 %v5218
        %v6244 = vunpack.c.l.b16 %v5219
        %v6245 = vunpack.c.l.b16 %v5220
        %v6246 = vunpack.c.l.b16 %v5221
        %v6247 = vunpack.c.l.b16 %v5222
        %v6248 = vunpack.c.l.b16 %v5223
        %v6249 = vunpack.c.l.b16 %v5224
        %v6250 = vunpack.c.l.b16 %v5225
        %v6251 = vunpack.c.l.b16 %v5226
        %v6252 = vunpack.c.l.b16 %v5227
        %v6253 = vunpack.c.l.b16 %v5228
        %v6254 = vunpack.c.l.b16 %v5229
        %v6255 = vunpack.c.l.b16 %v5230
        %v6256 = vunpack.c.l.b16 %v5231
        %v6257 = vunpack.c.l.b16 %v5232
        %v6258 = vunpack.c.l.b16 %v5233
        %v6259 = vunpack.c.l.b16 %v5234
        %v6260 = vunpack.c.l.b16 %v5235
        %v6261 = vunpack.c.l.b16 %v5236
        %v6262 = vunpack.c.l.b16 %v5237
        %v6263 = vunpack.c.l.b16 %v5238
        %v6264 = vunpack.c.l.b16 %v5239
        %v6265 = vunpack.c.l.b16 %v5240
        %v6266 = vunpack.c.l.b16 %v5241
        %v6267 = vunpack.c.l.b16 %v5242
        %v6268 = vunpack.c.l.b16 %v5243
        %v6269 = vunpack.c.l.b16 %v5244
        %v6270 = vunpack.c.l.b16 %v5245
        %v6271 = vunpack.c.l.b16 %v5246
        %v6272 = vunpack.c.l.b16 %v5247
        %v6273 = vunpack.c.l.b16 %v5248
        %v6274 = vunpack.c.l.b16 %v5249
        %v6275 = vunpack.c.l.b16 %v5250
        %v6276 = vunpack.c.l.b16 %v5251
        %v6277 = vunpack.c.l.b16 %v5252
        %v6278 = vunpack.c.l.b16 %v5253
        %v6279 = vunpack.c.l.b16 %v5254
        %v6280 = vunpack.c.l.b16 %v5255
        %v6281 = vunpack.c.l.b16 %v5256
        %v6282 = vunpack.c.l.b16 %v5257
        %v6283 = vunpack.c.l.b16 %v5258
        %v6284 = vunpack.c.l.b16 %v5259
        %v6285 = vunpack.c.l.b16 %v5260
        %v6286 = vunpack.c.l.b16 %v5261
        %v6287 = vunpack.c.l.b16 %v5262
        %v6288 = vunpack.c.l.b16 %v5263
        %v6289 = vunpack.c.l.b16 %v5264
        %v6290 = vunpack.c.l.b16 %v5265
        %v6291 = vunpack.c.l.b16 %v5266
        %v6292 = vunpack.c.l.b16 %v5267
        %v6293 = vunpack.c.l.b16 %v5268
        %v6294 = vunpack.c.l.b16 %v5269
        %v6295 = vunpack.c.l.b16 %v5270
        %v6296 = vunpack.c.l.b16 %v5271
        %v6297 = vunpack.c.l.b16 %v5272
        %v6298 = vunpack.c.l.b16 %v5273
        %v6299 = vunpack.c.l.b16 %v5274
        %v6300 = vunpack.c.l.b16 %v5275
        %v6301 = vunpack.c.l.b16 %v5276
        %v6302 = vunpack.c.l.b16 %v5277
        %v6303 = vunpack.c.l.b16 %v5278
        %v6304 = vunpack.c.l.b16 %v5279
        %v6305 = vunpack.c.l.b16 %v5280
        %v6306 = vunpack.c.l.b16 %v5281
        %v6307 = vunpack.c.l.b16 %v5282
        %v6308 = vunpack.c.l.b16 %v5283
        %v6309 = vunpack.c.l.b16 %v5284
        %v6310 = vunpack.c.l.b16 %v5285
        %v6311 = vunpack.c.l.b16 %v5286
        %v6312 = vunpack.c.l.b16 %v5287
        %v6313 = vunpack.c.l.b16 %v5288
        %v6314 = vunpack.c.l.b16 %v5289
        %v6315 = vunpack.c.l.b16 %v5290
        %v6316 = vunpack.c.l.b16 %v5291
        %v6317 = vunpack.c.l.b16 %v5292
        %v6318 = vunpack.c.l.b16 %v5293
        %v6319 = vunpack.c.l.b16 %v5294
        %v6320 = vunpack.c.l.b16 %v5295
        %v6321 = vunpack.c.l.b16 %v5296
        %v6322 = vunpack.c.l.b16 %v5297
        %v6323 = vunpack.c.l.b16 %v5298
        %v6324 = vunpack.c.l.b16 %v5299
        %v6325 = vunpack.c.l.b16 %v5300
        %v6326 = vunpack.c.l.b16 %v5301
        %v6327 = vunpack.c.l.b16 %v5302
        %v6328 = vunpack.c.l.b16 %v5303
        %v6329 = vunpack.c.l.b16 %v5304
        %v6330 = vunpack.c.l.b16 %v5305
        %v6331 = vunpack.c.l.b16 %v5306
        %v6332 = vunpack.c.l.b16 %v5307
        %v6333 = vunpack.c.l.b16 %v5308
        %v6334 = vunpack.c.l.b16 %v5309
        %v6335 = vunpack.c.l.b16 %v5310
        %v6336 = vunpack.c.l.b16 %v5311
        %v6337 = vunpack.c.l.b16 %v5312
        %v6338 = vunpack.c.l.b16 %v5313
        %v6339 = vunpack.c.l.b16 %v5314
        %v6340 = vunpack.c.l.b16 %v5315
        %v6341 = vunpack.c.l.b16 %v5316
        %v6342 = vunpack.c.l.b16 %v5317
        %v6343 = vunpack.c.l.b16 %v5318
        %v6344 = vunpack.c.l.b16 %v5319
        %v6345 = vunpack.c.l.b16 %v5320
        %v6346 = vunpack.c.l.b16 %v5321
        %v6347 = vunpack.c.l.b16 %v5322
        %v6348 = vunpack.c.l.b16 %v5323
        %v6349 = vunpack.c.l.b16 %v5324
        %v6350 = vunpack.c.l.b16 %v5325
        %v6351 = vunpack.c.l.b16 %v5326
        %v6352 = vunpack.c.l.b16 %v5327
        %v6353 = vunpack.c.l.b16 %v5328
        %v6354 = vunpack.c.l.b16 %v5329
        %v6355 = vunpack.c.l.b16 %v5330
        %v6356 = vunpack.c.l.b16 %v5331
        %v6357 = vunpack.c.l.b16 %v5332
        %v6358 = vunpack.c.l.b16 %v5333
        %v6359 = vunpack.c.l.b16 %v5334
        %v6360 = vunpack.c.l.b16 %v5335
        %v6361 = vunpack.c.l.b16 %v5336
        %v6362 = vunpack.c.l.b16 %v5337
        %v6363 = vunpack.c.l.b16 %v5338
        %v6364 = vunpack.c.l.b16 %v5339
        %v6365 = vunpack.c.l.b16 %v5340
        %v6366 = vunpack.c.l.b16 %v5341
        %v6367 = vunpack.c.l.b16 %v5342
        %v6368 = vunpack.c.l.b16 %v5343
        %v6369 = vunpack.c.l.b16 %v5344
        %v6370 = vunpack.c.l.b16 %v5345
        %v6371 = vunpack.c.l.b16 %v5346
        %v6372 = vunpack.c.l.b16 %v5347
        %v6373 = vunpack.c.l.b16 %v5348
        %v6374 = vunpack.c.l.b16 %v5349
        %v6375 = vunpack.c.l.b16 %v5350
        %v6376 = vpack.c.b16 %v5865, %v5864
        %v6377 = vpack.c.b16 %v5867, %v5866
        %v6378 = vpack.c.b16 %v5869, %v5868
        %v6379 = vpack.c.b16 %v5871, %v5870
        %v6380 = vpack.c.b16 %v5873, %v5872
        %v6381 = vpack.c.b16 %v5875, %v5874
        %v6382 = vpack.c.b16 %v5877, %v5876
        %v6383 = vpack.c.b16 %v5879, %v5878
        %v6384 = vpack.c.b16 %v5881, %v5880
        %v6385 = vpack.c.b16 %v5883, %v5882
        %v6386 = vpack.c.b16 %v5885, %v5884
        %v6387 = vpack.c.b16 %v5887, %v5886
        %v6388 = vpack.c.b16 %v5889, %v5888
        %v6389 = vpack.c.b16 %v5891, %v5890
        %v6390 = vpack.c.b16 %v5893, %v5892
        %v6391 = vpack.c.b16 %v5895, %v5894
        %v6392 = vpack.c.b16 %v5897, %v5896
        %v6393 = vpack.c.b16 %v5899, %v5898
        %v6394 = vpack.c.b16 %v5901, %v5900
        %v6395 = vpack.c.b16 %v5903, %v5902
        %v6396 = vpack.c.b16 %v5905, %v5904
        %v6397 = vpack.c.b16 %v5907, %v5906
        %v6398 = vpack.c.b16 %v5909, %v5908
        %v6399 = vpack.c.b16 %v5911, %v5910
        %v6400 = vpack.c.b16 %v5913, %v5912
        %v6401 = vpack.c.b16 %v5915, %v5914
        %v6402 = vpack.c.b16 %v5917, %v5916
        %v6403 = vpack.c.b16 %v5919, %v5918
        %v6404 = vpack.c.b16 %v5921, %v5920
        %v6405 = vpack.c.b16 %v5923, %v5922
        %v6406 = vpack.c.b16 %v5925, %v5924
        %v6407 = vpack.c.b16 %v5927, %v5926
        %v6408 = vpack.c.b16 %v5929, %v5928
        %v6409 = vpack.c.b16 %v5931, %v5930
        %v6410 = vpack.c.b16 %v5933, %v5932
        %v6411 = vpack.c.b16 %v5935, %v5934
        %v6412 = vpack.c.b16 %v5937, %v5936
        %v6413 = vpack.c.b16 %v5939, %v5938
        %v6414 = vpack.c.b16 %v5941, %v5940
        %v6415 = vpack.c.b16 %v5943, %v5942
        %v6416 = vpack.c.b16 %v5945, %v5944
        %v6417 = vpack.c.b16 %v5947, %v5946
        %v6418 = vpack.c.b16 %v5949, %v5948
        %v6419 = vpack.c.b16 %v5951, %v5950
        %v6420 = vpack.c.b16 %v5953, %v5952
        %v6421 = vpack.c.b16 %v5955, %v5954
        %v6422 = vpack.c.b16 %v5957, %v5956
        %v6423 = vpack.c.b16 %v5959, %v5958
        %v6424 = vpack.c.b16 %v5961, %v5960
        %v6425 = vpack.c.b16 %v5963, %v5962
        %v6426 = vpack.c.b16 %v5965, %v5964
        %v6427 = vpack.c.b16 %v5967, %v5966
        %v6428 = vpack.c.b16 %v5969, %v5968
        %v6429 = vpack.c.b16 %v5971, %v5970
        %v6430 = vpack.c.b16 %v5973, %v5972
        %v6431 = vpack.c.b16 %v5975, %v5974
        %v6432 = vpack.c.b16 %v5977, %v5976
        %v6433 = vpack.c.b16 %v5979, %v5978
        %v6434 = vpack.c.b16 %v5981, %v5980
        %v6435 = vpack.c.b16 %v5983, %v5982
        %v6436 = vpack.c.b16 %v5985, %v5984
        %v6437 = vpack.c.b16 %v5987, %v5986
        %v6438 = vpack.c.b16 %v5989, %v5988
        %v6439 = vpack.c.b16 %v5991, %v5990
        %v6440 = vpack.c.b16 %v5993, %v5992
        %v6441 = vpack.c.b16 %v5995, %v5994
        %v6442 = vpack.c.b16 %v5997, %v5996
        %v6443 = vpack.c.b16 %v5999, %v5998
        %v6444 = vpack.c.b16 %v6001, %v6000
        %v6445 = vpack.c.b16 %v6003, %v6002
        %v6446 = vpack.c.b16 %v6005, %v6004
        %v6447 = vpack.c.b16 %v6007, %v6006
        %v6448 = vpack.c.b16 %v6009, %v6008
        %v6449 = vpack.c.b16 %v6011, %v6010
        %v6450 = vpack.c.b16 %v6013, %v6012
        %v6451 = vpack.c.b16 %v6015, %v6014
        %v6452 = vpack.c.b16 %v6017, %v6016
        %v6453 = vpack.c.b16 %v6019, %v6018
        %v6454 = vpack.c.b16 %v6021, %v6020
        %v6455 = vpack.c.b16 %v6023, %v6022
        %v6456 = vpack.c.b16 %v6025, %v6024
        %v6457 = vpack.c.b16 %v6027, %v6026
        %v6458 = vpack.c.b16 %v6029, %v6028
        %v6459 = vpack.c.b16 %v6031, %v6030
        %v6460 = vpack.c.b16 %v6033, %v6032
        %v6461 = vpack.c.b16 %v6035, %v6034
        %v6462 = vpack.c.b16 %v6037, %v6036
        %v6463 = vpack.c.b16 %v6039, %v6038
        %v6464 = vpack.c.b16 %v6041, %v6040
        %v6465 = vpack.c.b16 %v6043, %v6042
        %v6466 = vpack.c.b16 %v6045, %v6044
        %v6467 = vpack.c.b16 %v6047, %v6046
        %v6468 = vpack.c.b16 %v6049, %v6048
        %v6469 = vpack.c.b16 %v6051, %v6050
        %v6470 = vpack.c.b16 %v6053, %v6052
        %v6471 = vpack.c.b16 %v6055, %v6054
        %v6472 = vpack.c.b16 %v6057, %v6056
        %v6473 = vpack.c.b16 %v6059, %v6058
        %v6474 = vpack.c.b16 %v6061, %v6060
        %v6475 = vpack.c.b16 %v6063, %v6062
        %v6476 = vpack.c.b16 %v6065, %v6064
        %v6477 = vpack.c.b16 %v6067, %v6066
        %v6478 = vpack.c.b16 %v6069, %v6068
        %v6479 = vpack.c.b16 %v6071, %v6070
        %v6480 = vpack.c.b16 %v6073, %v6072
        %v6481 = vpack.c.b16 %v6075, %v6074
        %v6482 = vpack.c.b16 %v6077, %v6076
        %v6483 = vpack.c.b16 %v6079, %v6078
        %v6484 = vpack.c.b16 %v6081, %v6080
        %v6485 = vpack.c.b16 %v6083, %v6082
        %v6486 = vpack.c.b16 %v6085, %v6084
        %v6487 = vpack.c.b16 %v6087, %v6086
        %v6488 = vpack.c.b16 %v6089, %v6088
        %v6489 = vpack.c.b16 %v6091, %v6090
        %v6490 = vpack.c.b16 %v6093, %v6092
        %v6491 = vpack.c.b16 %v6095, %v6094
        %v6492 = vpack.c.b16 %v6097, %v6096
        %v6493 = vpack.c.b16 %v6099, %v6098
        %v6494 = vpack.c.b16 %v6101, %v6100
        %v6495 = vpack.c.b16 %v6103, %v6102
        %v6496 = vpack.c.b16 %v6105, %v6104
        %v6497 = vpack.c.b16 %v6107, %v6106
        %v6498 = vpack.c.b16 %v6109, %v6108
        %v6499 = vpack.c.b16 %v6111, %v6110
        %v6500 = vpack.c.b16 %v6113, %v6112
        %v6501 = vpack.c.b16 %v6115, %v6114
        %v6502 = vpack.c.b16 %v6117, %v6116
        %v6503 = vpack.c.b16 %v6119, %v6118
        %v6504 = vpack.c.b16 %v6121, %v6120
        %v6505 = vpack.c.b16 %v6123, %v6122
        %v6506 = vpack.c.b16 %v6125, %v6124
        %v6507 = vpack.c.b16 %v6127, %v6126
        %v6508 = vpack.c.b16 %v6129, %v6128
        %v6509 = vpack.c.b16 %v6131, %v6130
        %v6510 = vpack.c.b16 %v6133, %v6132
        %v6511 = vpack.c.b16 %v6135, %v6134
        %v6512 = vpack.c.b16 %v6137, %v6136
        %v6513 = vpack.c.b16 %v6139, %v6138
        %v6514 = vpack.c.b16 %v6141, %v6140
        %v6515 = vpack.c.b16 %v6143, %v6142
        %v6516 = vpack.c.b16 %v6145, %v6144
        %v6517 = vpack.c.b16 %v6147, %v6146
        %v6518 = vpack.c.b16 %v6149, %v6148
        %v6519 = vpack.c.b16 %v6151, %v6150
        %v6520 = vpack.c.b16 %v6153, %v6152
        %v6521 = vpack.c.b16 %v6155, %v6154
        %v6522 = vpack.c.b16 %v6157, %v6156
        %v6523 = vpack.c.b16 %v6159, %v6158
        %v6524 = vpack.c.b16 %v6161, %v6160
        %v6525 = vpack.c.b16 %v6163, %v6162
        %v6526 = vpack.c.b16 %v6165, %v6164
        %v6527 = vpack.c.b16 %v6167, %v6166
        %v6528 = vpack.c.b16 %v6169, %v6168
        %v6529 = vpack.c.b16 %v6171, %v6170
        %v6530 = vpack.c.b16 %v6173, %v6172
        %v6531 = vpack.c.b16 %v6175, %v6174
        %v6532 = vpack.c.b16 %v6177, %v6176
        %v6533 = vpack.c.b16 %v6179, %v6178
        %v6534 = vpack.c.b16 %v6181, %v6180
        %v6535 = vpack.c.b16 %v6183, %v6182
        %v6536 = vpack.c.b16 %v6185, %v6184
        %v6537 = vpack.c.b16 %v6187, %v6186
        %v6538 = vpack.c.b16 %v6189, %v6188
        %v6539 = vpack.c.b16 %v6191, %v6190
        %v6540 = vpack.c.b16 %v6193, %v6192
        %v6541 = vpack.c.b16 %v6195, %v6194
        %v6542 = vpack.c.b16 %v6197, %v6196
        %v6543 = vpack.c.b16 %v6199, %v6198
        %v6544 = vpack.c.b16 %v6201, %v6200
        %v6545 = vpack.c.b16 %v6203, %v6202
        %v6546 = vpack.c.b16 %v6205, %v6204
        %v6547 = vpack.c.b16 %v6207, %v6206
        %v6548 = vpack.c.b16 %v6209, %v6208
        %v6549 = vpack.c.b16 %v6211, %v6210
        %v6550 = vpack.c.b16 %v6213, %v6212
        %v6551 = vpack.c.b16 %v6215, %v6214
        %v6552 = vpack.c.b16 %v6217, %v6216
        %v6553 = vpack.c.b16 %v6219, %v6218
        %v6554 = vpack.c.b16 %v6221, %v6220
        %v6555 = vpack.c.b16 %v6223, %v6222
        %v6556 = vpack.c.b16 %v6225, %v6224
        %v6557 = vpack.c.b16 %v6227, %v6226
        %v6558 = vpack.c.b16 %v6229, %v6228
        %v6559 = vpack.c.b16 %v6231, %v6230
        %v6560 = vpack.c.b16 %v6233, %v6232
        %v6561 = vpack.c.b16 %v6235, %v6234
        %v6562 = vpack.c.b16 %v6237, %v6236
        %v6563 = vpack.c.b16 %v6239, %v6238
        %v6564 = vpack.c.b16 %v6241, %v6240
        %v6565 = vpack.c.b16 %v6243, %v6242
        %v6566 = vpack.c.b16 %v6245, %v6244
        %v6567 = vpack.c.b16 %v6247, %v6246
        %v6568 = vpack.c.b16 %v6249, %v6248
        %v6569 = vpack.c.b16 %v6251, %v6250
        %v6570 = vpack.c.b16 %v6253, %v6252
        %v6571 = vpack.c.b16 %v6255, %v6254
        %v6572 = vpack.c.b16 %v6257, %v6256
        %v6573 = vpack.c.b16 %v6259, %v6258
        %v6574 = vpack.c.b16 %v6261, %v6260
        %v6575 = vpack.c.b16 %v6263, %v6262
        %v6576 = vpack.c.b16 %v6265, %v6264
        %v6577 = vpack.c.b16 %v6267, %v6266
        %v6578 = vpack.c.b16 %v6269, %v6268
        %v6579 = vpack.c.b16 %v6271, %v6270
        %v6580 = vpack.c.b16 %v6273, %v6272
        %v6581 = vpack.c.b16 %v6275, %v6274
        %v6582 = vpack.c.b16 %v6277, %v6276
        %v6583 = vpack.c.b16 %v6279, %v6278
        %v6584 = vpack.c.b16 %v6281, %v6280
        %v6585 = vpack.c.b16 %v6283, %v6282
        %v6586 = vpack.c.b16 %v6285, %v6284
        %v6587 = vpack.c.b16 %v6287, %v6286
        %v6588 = vpack.c.b16 %v6289, %v6288
        %v6589 = vpack.c.b16 %v6291, %v6290
        %v6590 = vpack.c.b16 %v6293, %v6292
        %v6591 = vpack.c.b16 %v6295, %v6294
        %v6592 = vpack.c.b16 %v6297, %v6296
        %v6593 = vpack.c.b16 %v6299, %v6298
        %v6594 = vpack.c.b16 %v6301, %v6300
        %v6595 = vpack.c.b16 %v6303, %v6302
        %v6596 = vpack.c.b16 %v6305, %v6304
        %v6597 = vpack.c.b16 %v6307, %v6306
        %v6598 = vpack.c.b16 %v6309, %v6308
        %v6599 = vpack.c.b16 %v6311, %v6310
        %v6600 = vpack.c.b16 %v6313, %v6312
        %v6601 = vpack.c.b16 %v6315, %v6314
        %v6602 = vpack.c.b16 %v6317, %v6316
        %v6603 = vpack.c.b16 %v6319, %v6318
        %v6604 = vpack.c.b16 %v6321, %v6320
        %v6605 = vpack.c.b16 %v6323, %v6322
        %v6606 = vpack.c.b16 %v6325, %v6324
        %v6607 = vpack.c.b16 %v6327, %v6326
        %v6608 = vpack.c.b16 %v6329, %v6328
        %v6609 = vpack.c.b16 %v6331, %v6330
        %v6610 = vpack.c.b16 %v6333, %v6332
        %v6611 = vpack.c.b16 %v6335, %v6334
        %v6612 = vpack.c.b16 %v6337, %v6336
        %v6613 = vpack.c.b16 %v6339, %v6338
        %v6614 = vpack.c.b16 %v6341, %v6340
        %v6615 = vpack.c.b16 %v6343, %v6342
        %v6616 = vpack.c.b16 %v6345, %v6344
        %v6617 = vpack.c.b16 %v6347, %v6346
        %v6618 = vpack.c.b16 %v6349, %v6348
        %v6619 = vpack.c.b16 %v6351, %v6350
        %v6620 = vpack.c.b16 %v6353, %v6352
        %v6621 = vpack.c.b16 %v6355, %v6354
        %v6622 = vpack.c.b16 %v6357, %v6356
        %v6623 = vpack.c.b16 %v6359, %v6358
        %v6624 = vpack.c.b16 %v6361, %v6360
        %v6625 = vpack.c.b16 %v6363, %v6362
        %v6626 = vpack.c.b16 %v6365, %v6364
        %v6627 = vpack.c.b16 %v6367, %v6366
        %v6628 = vpack.c.b16 %v6369, %v6368
        %v6629 = vpack.c.b16 %v6371, %v6370
        %v6630 = vpack.c.b16 %v6373, %v6372
        %v6631 = vpack.c.b16 %v6375, %v6374
        %6888 = vmatprep.subr.bf16.mxu0 0
        %6889 = vmatpush1.bf16.msra.mxu0 %v6383
        %6890 = vmatprep.subr.bf16.mxu0 0
        %6891 = vmatpush1.bf16.msra.mxu0 %v6382
        %6892 = vmatprep.subr.bf16.mxu0 0
        %6893 = vmatpush1.bf16.msra.mxu0 %v6381
        %6894 = vmatprep.subr.bf16.mxu0 0
        %6895 = vmatpush1.bf16.msra.mxu0 %v6380
        %6896 = vmatprep.subr.bf16.mxu0 0
        %6897 = vmatpush1.bf16.msra.mxu0 %v6379
        %6898 = vmatprep.subr.bf16.mxu0 0
        %6899 = vmatpush1.bf16.msra.mxu0 %v6378
        %6900 = vmatprep.subr.bf16.mxu0 0
        %6901 = vmatpush1.bf16.msra.mxu0 %v6377
        %6902 = vmatprep.subr.bf16.mxu0 0
        %6903 = vmatpush1.bf16.msra.mxu0 %v6376
        %6904 = vmatprep.subr.bf16.mxu0 0
        %6905 = vmatpush2.bf16.msra.mxu0 %v6391
        %6906 = vmatprep.subr.bf16.mxu0 0
        %6907 = vmatpush2.bf16.msra.mxu0 %v6390
        %6908 = vmatprep.subr.bf16.mxu0 0
        %6909 = vmatpush2.bf16.msra.mxu0 %v6389
        %6910 = vmatprep.subr.bf16.mxu0 0
        %6911 = vmatpush2.bf16.msra.mxu0 %v6388
        %6912 = vmatprep.subr.bf16.mxu0 0
        %6913 = vmatpush2.bf16.msra.mxu0 %v6387
        %6914 = vmatprep.subr.bf16.mxu0 0
        %6915 = vmatpush2.bf16.msra.mxu0 %v6386
        %6916 = vmatprep.subr.bf16.mxu0 0
        %6917 = vmatpush2.bf16.msra.mxu0 %v6385
        %6918 = vmatprep.subr.bf16.mxu0 0
        %6919 = vmatpush2.bf16.msra.mxu0 %v6384
        %6920 = vmatprep.mubr.bf16.mxu0 %v4808
        %6921 = vmatmul.mubr.bf16.gmra.mxu0 %v4807
        %v6922 = vpop.f32.mrf.mxu0
        %v6923 = vadd.f32 %v5351, %v6922
        %v6924 = vpop.f32.mrf.mxu0
        %v6925 = vpop.f32.mrf.mxu0
        %v6926 = vpop.f32.mrf.mxu0
        %6927 = vdwg.mxu0
        %6928 = vmatprep.subr.bf16.mxu0 0
        %6929 = vmatpush1.bf16.msra.mxu0 %v6399
        %6930 = vmatprep.subr.bf16.mxu0 0
        %6931 = vmatpush1.bf16.msra.mxu0 %v6398
        %6932 = vmatprep.subr.bf16.mxu0 0
        %6933 = vmatpush1.bf16.msra.mxu0 %v6397
        %6934 = vmatprep.subr.bf16.mxu0 0
        %6935 = vmatpush1.bf16.msra.mxu0 %v6396
        %6936 = vmatprep.subr.bf16.mxu0 0
        %6937 = vmatpush1.bf16.msra.mxu0 %v6395
        %6938 = vmatprep.subr.bf16.mxu0 0
        %6939 = vmatpush1.bf16.msra.mxu0 %v6394
        %6940 = vmatprep.subr.bf16.mxu0 0
        %6941 = vmatpush1.bf16.msra.mxu0 %v6393
        %6942 = vmatprep.subr.bf16.mxu0 0
        %6943 = vmatpush1.bf16.msra.mxu0 %v6392
        %6944 = vmatprep.subr.bf16.mxu0 0
        %6945 = vmatpush2.bf16.msra.mxu0 %v6407
        %6946 = vmatprep.subr.bf16.mxu0 0
        %6947 = vmatpush2.bf16.msra.mxu0 %v6406
        %6948 = vmatprep.subr.bf16.mxu0 0
        %6949 = vmatpush2.bf16.msra.mxu0 %v6405
        %6950 = vmatprep.subr.bf16.mxu0 0
        %6951 = vmatpush2.bf16.msra.mxu0 %v6404
        %6952 = vmatprep.subr.bf16.mxu0 0
        %6953 = vmatpush2.bf16.msra.mxu0 %v6403
        %6954 = vmatprep.subr.bf16.mxu0 0
        %6955 = vmatpush2.bf16.msra.mxu0 %v6402
        %6956 = vmatprep.subr.bf16.mxu0 0
        %6957 = vmatpush2.bf16.msra.mxu0 %v6401
        %6958 = vmatprep.subr.bf16.mxu0 0
        %6959 = vmatpush2.bf16.msra.mxu0 %v6400
        %6960 = vmatprep.mubr.bf16.mxu0 %v4810
        %6961 = vmatmul.mubr.bf16.gmra.mxu0 %v4809
        %v6962 = vpop.f32.mrf.mxu0
        %v6963 = vadd.f32 %v6923, %v6962
        %v6964 = vpop.f32.mrf.mxu0
        %v6965 = vpop.f32.mrf.mxu0
        %v6966 = vpop.f32.mrf.mxu0
        %6967 = vdwg.mxu0
        %6968 = vmatprep.subr.bf16.mxu0 0
        %6969 = vmatpush1.bf16.msra.mxu0 %v6415
        %6970 = vmatprep.subr.bf16.mxu0 0
        %6971 = vmatpush1.bf16.msra.mxu0 %v6414
        %6972 = vmatprep.subr.bf16.mxu0 0
        %6973 = vmatpush1.bf16.msra.mxu0 %v6413
        %6974 = vmatprep.subr.bf16.mxu0 0
        %6975 = vmatpush1.bf16.msra.mxu0 %v6412
        %6976 = vmatprep.subr.bf16.mxu0 0
        %6977 = vmatpush1.bf16.msra.mxu0 %v6411
        %6978 = vmatprep.subr.bf16.mxu0 0
        %6979 = vmatpush1.bf16.msra.mxu0 %v6410
        %6980 = vmatprep.subr.bf16.mxu0 0
        %6981 = vmatpush1.bf16.msra.mxu0 %v6409
        %6982 = vmatprep.subr.bf16.mxu0 0
        %6983 = vmatpush1.bf16.msra.mxu0 %v6408
        %6984 = vmatprep.subr.bf16.mxu0 0
        %6985 = vmatpush2.bf16.msra.mxu0 %v6423
        %6986 = vmatprep.subr.bf16.mxu0 0
        %6987 = vmatpush2.bf16.msra.mxu0 %v6422
        %6988 = vmatprep.subr.bf16.mxu0 0
        %6989 = vmatpush2.bf16.msra.mxu0 %v6421
        %6990 = vmatprep.subr.bf16.mxu0 0
        %6991 = vmatpush2.bf16.msra.mxu0 %v6420
        %6992 = vmatprep.subr.bf16.mxu0 0
        %6993 = vmatpush2.bf16.msra.mxu0 %v6419
        %6994 = vmatprep.subr.bf16.mxu0 0
        %6995 = vmatpush2.bf16.msra.mxu0 %v6418
        %6996 = vmatprep.subr.bf16.mxu0 0
        %6997 = vmatpush2.bf16.msra.mxu0 %v6417
        %6998 = vmatprep.subr.bf16.mxu0 0
        %6999 = vmatpush2.bf16.msra.mxu0 %v6416
        %7000 = vmatprep.mubr.bf16.mxu0 %v4812
        %7001 = vmatmul.mubr.bf16.gmra.mxu0 %v4811
        %v7002 = vpop.f32.mrf.mxu0
        %v7003 = vadd.f32 %v6963, %v7002
        %v7004 = vpop.f32.mrf.mxu0
        %v7005 = vpop.f32.mrf.mxu0
        %v7006 = vpop.f32.mrf.mxu0
        %7007 = vdwg.mxu0
        %7008 = vmatprep.subr.bf16.mxu0 0
        %7009 = vmatpush1.bf16.msra.mxu0 %v6431
        %7010 = vmatprep.subr.bf16.mxu0 0
        %7011 = vmatpush1.bf16.msra.mxu0 %v6430
        %7012 = vmatprep.subr.bf16.mxu0 0
        %7013 = vmatpush1.bf16.msra.mxu0 %v6429
        %7014 = vmatprep.subr.bf16.mxu0 0
        %7015 = vmatpush1.bf16.msra.mxu0 %v6428
        %7016 = vmatprep.subr.bf16.mxu0 0
        %7017 = vmatpush1.bf16.msra.mxu0 %v6427
        %7018 = vmatprep.subr.bf16.mxu0 0
        %7019 = vmatpush1.bf16.msra.mxu0 %v6426
        %7020 = vmatprep.subr.bf16.mxu0 0
        %7021 = vmatpush1.bf16.msra.mxu0 %v6425
        %7022 = vmatprep.subr.bf16.mxu0 0
        %7023 = vmatpush1.bf16.msra.mxu0 %v6424
        %7024 = vmatprep.subr.bf16.mxu0 0
        %7025 = vmatpush2.bf16.msra.mxu0 %v6439
        %7026 = vmatprep.subr.bf16.mxu0 0
        %7027 = vmatpush2.bf16.msra.mxu0 %v6438
        %7028 = vmatprep.subr.bf16.mxu0 0
        %7029 = vmatpush2.bf16.msra.mxu0 %v6437
        %7030 = vmatprep.subr.bf16.mxu0 0
        %7031 = vmatpush2.bf16.msra.mxu0 %v6436
        %7032 = vmatprep.subr.bf16.mxu0 0
        %7033 = vmatpush2.bf16.msra.mxu0 %v6435
        %7034 = vmatprep.subr.bf16.mxu0 0
        %7035 = vmatpush2.bf16.msra.mxu0 %v6434
        %7036 = vmatprep.subr.bf16.mxu0 0
        %7037 = vmatpush2.bf16.msra.mxu0 %v6433
        %7038 = vmatprep.subr.bf16.mxu0 0
        %7039 = vmatpush2.bf16.msra.mxu0 %v6432
        %7040 = vmatprep.mubr.bf16.mxu0 %v4814
        %7041 = vmatmul.mubr.bf16.gmra.mxu0 %v4813
        %v7042 = vpop.f32.mrf.mxu0
        %v7043 = vadd.f32 %v7003, %v7042
        %v7044 = vpop.f32.mrf.mxu0
        %v7045 = vpop.f32.mrf.mxu0
        %v7046 = vpop.f32.mrf.mxu0
        %7047 = vdwg.mxu0
        %7048 = vmatprep.subr.bf16.mxu0 0
        %7049 = vmatpush1.bf16.msra.mxu0 %v6447
        %7050 = vmatprep.subr.bf16.mxu0 0
        %7051 = vmatpush1.bf16.msra.mxu0 %v6446
        %7052 = vmatprep.subr.bf16.mxu0 0
        %7053 = vmatpush1.bf16.msra.mxu0 %v6445
        %7054 = vmatprep.subr.bf16.mxu0 0
        %7055 = vmatpush1.bf16.msra.mxu0 %v6444
        %7056 = vmatprep.subr.bf16.mxu0 0
        %7057 = vmatpush1.bf16.msra.mxu0 %v6443
        %7058 = vmatprep.subr.bf16.mxu0 0
        %7059 = vmatpush1.bf16.msra.mxu0 %v6442
        %7060 = vmatprep.subr.bf16.mxu0 0
        %7061 = vmatpush1.bf16.msra.mxu0 %v6441
        %7062 = vmatprep.subr.bf16.mxu0 0
        %7063 = vmatpush1.bf16.msra.mxu0 %v6440
        %7064 = vmatprep.subr.bf16.mxu0 0
        %7065 = vmatpush2.bf16.msra.mxu0 %v6455
        %7066 = vmatprep.subr.bf16.mxu0 0
        %7067 = vmatpush2.bf16.msra.mxu0 %v6454
        %7068 = vmatprep.subr.bf16.mxu0 0
        %7069 = vmatpush2.bf16.msra.mxu0 %v6453
        %7070 = vmatprep.subr.bf16.mxu0 0
        %7071 = vmatpush2.bf16.msra.mxu0 %v6452
        %7072 = vmatprep.subr.bf16.mxu0 0
        %7073 = vmatpush2.bf16.msra.mxu0 %v6451
        %7074 = vmatprep.subr.bf16.mxu0 0
        %7075 = vmatpush2.bf16.msra.mxu0 %v6450
        %7076 = vmatprep.subr.bf16.mxu0 0
        %7077 = vmatpush2.bf16.msra.mxu0 %v6449
        %7078 = vmatprep.subr.bf16.mxu0 0
        %7079 = vmatpush2.bf16.msra.mxu0 %v6448
        %7080 = vmatprep.mubr.bf16.mxu0 %v4816
        %7081 = vmatmul.mubr.bf16.gmra.mxu0 %v4815
        %v7082 = vpop.f32.mrf.mxu0
        %v7083 = vadd.f32 %v7043, %v7082
        %v7084 = vpop.f32.mrf.mxu0
        %v7085 = vpop.f32.mrf.mxu0
        %v7086 = vpop.f32.mrf.mxu0
        %7087 = vdwg.mxu0
        %7088 = vmatprep.subr.bf16.mxu0 0
        %7089 = vmatpush1.bf16.msra.mxu0 %v6463
        %7090 = vmatprep.subr.bf16.mxu0 0
        %7091 = vmatpush1.bf16.msra.mxu0 %v6462
        %7092 = vmatprep.subr.bf16.mxu0 0
        %7093 = vmatpush1.bf16.msra.mxu0 %v6461
        %7094 = vmatprep.subr.bf16.mxu0 0
        %7095 = vmatpush1.bf16.msra.mxu0 %v6460
        %7096 = vmatprep.subr.bf16.mxu0 0
        %7097 = vmatpush1.bf16.msra.mxu0 %v6459
        %7098 = vmatprep.subr.bf16.mxu0 0
        %7099 = vmatpush1.bf16.msra.mxu0 %v6458
        %7100 = vmatprep.subr.bf16.mxu0 0
        %7101 = vmatpush1.bf16.msra.mxu0 %v6457
        %7102 = vmatprep.subr.bf16.mxu0 0
        %7103 = vmatpush1.bf16.msra.mxu0 %v6456
        %7104 = vmatprep.subr.bf16.mxu0 0
        %7105 = vmatpush2.bf16.msra.mxu0 %v6471
        %7106 = vmatprep.subr.bf16.mxu0 0
        %7107 = vmatpush2.bf16.msra.mxu0 %v6470
        %7108 = vmatprep.subr.bf16.mxu0 0
        %7109 = vmatpush2.bf16.msra.mxu0 %v6469
        %7110 = vmatprep.subr.bf16.mxu0 0
        %7111 = vmatpush2.bf16.msra.mxu0 %v6468
        %7112 = vmatprep.subr.bf16.mxu0 0
        %7113 = vmatpush2.bf16.msra.mxu0 %v6467
        %7114 = vmatprep.subr.bf16.mxu0 0
        %7115 = vmatpush2.bf16.msra.mxu0 %v6466
        %7116 = vmatprep.subr.bf16.mxu0 0
        %7117 = vmatpush2.bf16.msra.mxu0 %v6465
        %7118 = vmatprep.subr.bf16.mxu0 0
        %7119 = vmatpush2.bf16.msra.mxu0 %v6464
        %7120 = vmatprep.mubr.bf16.mxu0 %v4818
        %7121 = vmatmul.mubr.bf16.gmra.mxu0 %v4817
        %v7122 = vpop.f32.mrf.mxu0
        %v7123 = vadd.f32 %v7083, %v7122
        %v7124 = vpop.f32.mrf.mxu0
        %v7125 = vpop.f32.mrf.mxu0
        %v7126 = vpop.f32.mrf.mxu0
        %7127 = vdwg.mxu0
        %7128 = vmatprep.subr.bf16.mxu0 0
        %7129 = vmatpush1.bf16.msra.mxu0 %v6479
        %7130 = vmatprep.subr.bf16.mxu0 0
        %7131 = vmatpush1.bf16.msra.mxu0 %v6478
        %7132 = vmatprep.subr.bf16.mxu0 0
        %7133 = vmatpush1.bf16.msra.mxu0 %v6477
        %7134 = vmatprep.subr.bf16.mxu0 0
        %7135 = vmatpush1.bf16.msra.mxu0 %v6476
        %7136 = vmatprep.subr.bf16.mxu0 0
        %7137 = vmatpush1.bf16.msra.mxu0 %v6475
        %7138 = vmatprep.subr.bf16.mxu0 0
        %7139 = vmatpush1.bf16.msra.mxu0 %v6474
        %7140 = vmatprep.subr.bf16.mxu0 0
        %7141 = vmatpush1.bf16.msra.mxu0 %v6473
        %7142 = vmatprep.subr.bf16.mxu0 0
        %7143 = vmatpush1.bf16.msra.mxu0 %v6472
        %7144 = vmatprep.subr.bf16.mxu0 0
        %7145 = vmatpush2.bf16.msra.mxu0 %v6487
        %7146 = vmatprep.subr.bf16.mxu0 0
        %7147 = vmatpush2.bf16.msra.mxu0 %v6486
        %7148 = vmatprep.subr.bf16.mxu0 0
        %7149 = vmatpush2.bf16.msra.mxu0 %v6485
        %7150 = vmatprep.subr.bf16.mxu0 0
        %7151 = vmatpush2.bf16.msra.mxu0 %v6484
        %7152 = vmatprep.subr.bf16.mxu0 0
        %7153 = vmatpush2.bf16.msra.mxu0 %v6483
        %7154 = vmatprep.subr.bf16.mxu0 0
        %7155 = vmatpush2.bf16.msra.mxu0 %v6482
        %7156 = vmatprep.subr.bf16.mxu0 0
        %7157 = vmatpush2.bf16.msra.mxu0 %v6481
        %7158 = vmatprep.subr.bf16.mxu0 0
        %7159 = vmatpush2.bf16.msra.mxu0 %v6480
        %7160 = vmatprep.mubr.bf16.mxu0 %v4820
        %7161 = vmatmul.mubr.bf16.gmra.mxu0 %v4819
        %v7162 = vpop.f32.mrf.mxu0
        %v7163 = vadd.f32 %v7123, %v7162
        %v7164 = vpop.f32.mrf.mxu0
        %v7165 = vpop.f32.mrf.mxu0
        %v7166 = vpop.f32.mrf.mxu0
        %7167 = vdwg.mxu0
        %7168 = vmatprep.subr.bf16.mxu0 0
        %7169 = vmatpush1.bf16.msra.mxu0 %v6495
        %7170 = vmatprep.subr.bf16.mxu0 0
        %7171 = vmatpush1.bf16.msra.mxu0 %v6494
        %7172 = vmatprep.subr.bf16.mxu0 0
        %7173 = vmatpush1.bf16.msra.mxu0 %v6493
        %7174 = vmatprep.subr.bf16.mxu0 0
        %7175 = vmatpush1.bf16.msra.mxu0 %v6492
        %7176 = vmatprep.subr.bf16.mxu0 0
        %7177 = vmatpush1.bf16.msra.mxu0 %v6491
        %7178 = vmatprep.subr.bf16.mxu0 0
        %7179 = vmatpush1.bf16.msra.mxu0 %v6490
        %7180 = vmatprep.subr.bf16.mxu0 0
        %7181 = vmatpush1.bf16.msra.mxu0 %v6489
        %7182 = vmatprep.subr.bf16.mxu0 0
        %7183 = vmatpush1.bf16.msra.mxu0 %v6488
        %7184 = vmatprep.subr.bf16.mxu0 0
        %7185 = vmatpush2.bf16.msra.mxu0 %v6503
        %7186 = vmatprep.subr.bf16.mxu0 0
        %7187 = vmatpush2.bf16.msra.mxu0 %v6502
        %7188 = vmatprep.subr.bf16.mxu0 0
        %7189 = vmatpush2.bf16.msra.mxu0 %v6501
        %7190 = vmatprep.subr.bf16.mxu0 0
        %7191 = vmatpush2.bf16.msra.mxu0 %v6500
        %7192 = vmatprep.subr.bf16.mxu0 0
        %7193 = vmatpush2.bf16.msra.mxu0 %v6499
        %7194 = vmatprep.subr.bf16.mxu0 0
        %7195 = vmatpush2.bf16.msra.mxu0 %v6498
        %7196 = vmatprep.subr.bf16.mxu0 0
        %7197 = vmatpush2.bf16.msra.mxu0 %v6497
        %7198 = vmatprep.subr.bf16.mxu0 0
        %7199 = vmatpush2.bf16.msra.mxu0 %v6496
        %7200 = vmatprep.mubr.bf16.mxu0 %v4822
        %7201 = vmatmul.mubr.bf16.gmra.mxu0 %v4821
        %v7202 = vpop.f32.mrf.mxu0
        %v7203 = vadd.f32 %v7163, %v7202
        %v7204 = vpop.f32.mrf.mxu0
        %v7205 = vpop.f32.mrf.mxu0
        %v7206 = vpop.f32.mrf.mxu0
        %7207 = vdwg.mxu0
        %7208 = vmatprep.subr.bf16.mxu0 0
        %7209 = vmatpush1.bf16.msra.mxu0 %v6511
        %7210 = vmatprep.subr.bf16.mxu0 0
        %7211 = vmatpush1.bf16.msra.mxu0 %v6510
        %7212 = vmatprep.subr.bf16.mxu0 0
        %7213 = vmatpush1.bf16.msra.mxu0 %v6509
        %7214 = vmatprep.subr.bf16.mxu0 0
        %7215 = vmatpush1.bf16.msra.mxu0 %v6508
        %7216 = vmatprep.subr.bf16.mxu0 0
        %7217 = vmatpush1.bf16.msra.mxu0 %v6507
        %7218 = vmatprep.subr.bf16.mxu0 0
        %7219 = vmatpush1.bf16.msra.mxu0 %v6506
        %7220 = vmatprep.subr.bf16.mxu0 0
        %7221 = vmatpush1.bf16.msra.mxu0 %v6505
        %7222 = vmatprep.subr.bf16.mxu0 0
        %7223 = vmatpush1.bf16.msra.mxu0 %v6504
        %7224 = vmatprep.subr.bf16.mxu0 0
        %7225 = vmatpush2.bf16.msra.mxu0 %v6519
        %7226 = vmatprep.subr.bf16.mxu0 0
        %7227 = vmatpush2.bf16.msra.mxu0 %v6518
        %7228 = vmatprep.subr.bf16.mxu0 0
        %7229 = vmatpush2.bf16.msra.mxu0 %v6517
        %7230 = vmatprep.subr.bf16.mxu0 0
        %7231 = vmatpush2.bf16.msra.mxu0 %v6516
        %7232 = vmatprep.subr.bf16.mxu0 0
        %7233 = vmatpush2.bf16.msra.mxu0 %v6515
        %7234 = vmatprep.subr.bf16.mxu0 0
        %7235 = vmatpush2.bf16.msra.mxu0 %v6514
        %7236 = vmatprep.subr.bf16.mxu0 0
        %7237 = vmatpush2.bf16.msra.mxu0 %v6513
        %7238 = vmatprep.subr.bf16.mxu0 0
        %7239 = vmatpush2.bf16.msra.mxu0 %v6512
        %7240 = vmatprep.mubr.bf16.mxu0 %v4824
        %7241 = vmatmul.mubr.bf16.gmra.mxu0 %v4823
        %v7242 = vpop.f32.mrf.mxu0
        %v7243 = vadd.f32 %v7203, %v7242
        %v7244 = vpop.f32.mrf.mxu0
        %v7245 = vpop.f32.mrf.mxu0
        %v7246 = vpop.f32.mrf.mxu0
        %7247 = vdwg.mxu0
        %7248 = vmatprep.subr.bf16.mxu0 0
        %7249 = vmatpush1.bf16.msra.mxu0 %v6527
        %7250 = vmatprep.subr.bf16.mxu0 0
        %7251 = vmatpush1.bf16.msra.mxu0 %v6526
        %7252 = vmatprep.subr.bf16.mxu0 0
        %7253 = vmatpush1.bf16.msra.mxu0 %v6525
        %7254 = vmatprep.subr.bf16.mxu0 0
        %7255 = vmatpush1.bf16.msra.mxu0 %v6524
        %7256 = vmatprep.subr.bf16.mxu0 0
        %7257 = vmatpush1.bf16.msra.mxu0 %v6523
        %7258 = vmatprep.subr.bf16.mxu0 0
        %7259 = vmatpush1.bf16.msra.mxu0 %v6522
        %7260 = vmatprep.subr.bf16.mxu0 0
        %7261 = vmatpush1.bf16.msra.mxu0 %v6521
        %7262 = vmatprep.subr.bf16.mxu0 0
        %7263 = vmatpush1.bf16.msra.mxu0 %v6520
        %7264 = vmatprep.subr.bf16.mxu0 0
        %7265 = vmatpush2.bf16.msra.mxu0 %v6535
        %7266 = vmatprep.subr.bf16.mxu0 0
        %7267 = vmatpush2.bf16.msra.mxu0 %v6534
        %7268 = vmatprep.subr.bf16.mxu0 0
        %7269 = vmatpush2.bf16.msra.mxu0 %v6533
        %7270 = vmatprep.subr.bf16.mxu0 0
        %7271 = vmatpush2.bf16.msra.mxu0 %v6532
        %7272 = vmatprep.subr.bf16.mxu0 0
        %7273 = vmatpush2.bf16.msra.mxu0 %v6531
        %7274 = vmatprep.subr.bf16.mxu0 0
        %7275 = vmatpush2.bf16.msra.mxu0 %v6530
        %7276 = vmatprep.subr.bf16.mxu0 0
        %7277 = vmatpush2.bf16.msra.mxu0 %v6529
        %7278 = vmatprep.subr.bf16.mxu0 0
        %7279 = vmatpush2.bf16.msra.mxu0 %v6528
        %7280 = vmatprep.mubr.bf16.mxu0 %v4826
        %7281 = vmatmul.mubr.bf16.gmra.mxu0 %v4825
        %v7282 = vpop.f32.mrf.mxu0
        %v7283 = vadd.f32 %v7243, %v7282
        %v7284 = vpop.f32.mrf.mxu0
        %v7285 = vpop.f32.mrf.mxu0
        %v7286 = vpop.f32.mrf.mxu0
        %7287 = vdwg.mxu0
        %7288 = vmatprep.subr.bf16.mxu0 0
        %7289 = vmatpush1.bf16.msra.mxu0 %v6543
        %7290 = vmatprep.subr.bf16.mxu0 0
        %7291 = vmatpush1.bf16.msra.mxu0 %v6542
        %7292 = vmatprep.subr.bf16.mxu0 0
        %7293 = vmatpush1.bf16.msra.mxu0 %v6541
        %7294 = vmatprep.subr.bf16.mxu0 0
        %7295 = vmatpush1.bf16.msra.mxu0 %v6540
        %7296 = vmatprep.subr.bf16.mxu0 0
        %7297 = vmatpush1.bf16.msra.mxu0 %v6539
        %7298 = vmatprep.subr.bf16.mxu0 0
        %7299 = vmatpush1.bf16.msra.mxu0 %v6538
        %7300 = vmatprep.subr.bf16.mxu0 0
        %7301 = vmatpush1.bf16.msra.mxu0 %v6537
        %7302 = vmatprep.subr.bf16.mxu0 0
        %7303 = vmatpush1.bf16.msra.mxu0 %v6536
        %7304 = vmatprep.subr.bf16.mxu0 0
        %7305 = vmatpush2.bf16.msra.mxu0 %v6551
        %7306 = vmatprep.subr.bf16.mxu0 0
        %7307 = vmatpush2.bf16.msra.mxu0 %v6550
        %7308 = vmatprep.subr.bf16.mxu0 0
        %7309 = vmatpush2.bf16.msra.mxu0 %v6549
        %7310 = vmatprep.subr.bf16.mxu0 0
        %7311 = vmatpush2.bf16.msra.mxu0 %v6548
        %7312 = vmatprep.subr.bf16.mxu0 0
        %7313 = vmatpush2.bf16.msra.mxu0 %v6547
        %7314 = vmatprep.subr.bf16.mxu0 0
        %7315 = vmatpush2.bf16.msra.mxu0 %v6546
        %7316 = vmatprep.subr.bf16.mxu0 0
        %7317 = vmatpush2.bf16.msra.mxu0 %v6545
        %7318 = vmatprep.subr.bf16.mxu0 0
        %7319 = vmatpush2.bf16.msra.mxu0 %v6544
        %7320 = vmatprep.mubr.bf16.mxu0 %v4828
        %7321 = vmatmul.mubr.bf16.gmra.mxu0 %v4827
        %v7322 = vpop.f32.mrf.mxu0
        %v7323 = vadd.f32 %v7283, %v7322
        %v7324 = vpop.f32.mrf.mxu0
        %v7325 = vpop.f32.mrf.mxu0
        %v7326 = vpop.f32.mrf.mxu0
        %7327 = vdwg.mxu0
        %7328 = vmatprep.subr.bf16.mxu0 0
        %7329 = vmatpush1.bf16.msra.mxu0 %v6559
        %7330 = vmatprep.subr.bf16.mxu0 0
        %7331 = vmatpush1.bf16.msra.mxu0 %v6558
        %7332 = vmatprep.subr.bf16.mxu0 0
        %7333 = vmatpush1.bf16.msra.mxu0 %v6557
        %7334 = vmatprep.subr.bf16.mxu0 0
        %7335 = vmatpush1.bf16.msra.mxu0 %v6556
        %7336 = vmatprep.subr.bf16.mxu0 0
        %7337 = vmatpush1.bf16.msra.mxu0 %v6555
        %7338 = vmatprep.subr.bf16.mxu0 0
        %7339 = vmatpush1.bf16.msra.mxu0 %v6554
        %7340 = vmatprep.subr.bf16.mxu0 0
        %7341 = vmatpush1.bf16.msra.mxu0 %v6553
        %7342 = vmatprep.subr.bf16.mxu0 0
        %7343 = vmatpush1.bf16.msra.mxu0 %v6552
        %7344 = vmatprep.subr.bf16.mxu0 0
        %7345 = vmatpush2.bf16.msra.mxu0 %v6567
        %7346 = vmatprep.subr.bf16.mxu0 0
        %7347 = vmatpush2.bf16.msra.mxu0 %v6566
        %7348 = vmatprep.subr.bf16.mxu0 0
        %7349 = vmatpush2.bf16.msra.mxu0 %v6565
        %7350 = vmatprep.subr.bf16.mxu0 0
        %7351 = vmatpush2.bf16.msra.mxu0 %v6564
        %7352 = vmatprep.subr.bf16.mxu0 0
        %7353 = vmatpush2.bf16.msra.mxu0 %v6563
        %7354 = vmatprep.subr.bf16.mxu0 0
        %7355 = vmatpush2.bf16.msra.mxu0 %v6562
        %7356 = vmatprep.subr.bf16.mxu0 0
        %7357 = vmatpush2.bf16.msra.mxu0 %v6561
        %7358 = vmatprep.subr.bf16.mxu0 0
        %7359 = vmatpush2.bf16.msra.mxu0 %v6560
        %7360 = vmatprep.mubr.bf16.mxu0 %v4830
        %7361 = vmatmul.mubr.bf16.gmra.mxu0 %v4829
        %v7362 = vpop.f32.mrf.mxu0
        %v7363 = vadd.f32 %v7323, %v7362
        %v7364 = vpop.f32.mrf.mxu0
        %v7365 = vpop.f32.mrf.mxu0
        %v7366 = vpop.f32.mrf.mxu0
        %7367 = vdwg.mxu0
        %7368 = vmatprep.subr.bf16.mxu0 0
        %7369 = vmatpush1.bf16.msra.mxu0 %v6575
        %7370 = vmatprep.subr.bf16.mxu0 0
        %7371 = vmatpush1.bf16.msra.mxu0 %v6574
        %7372 = vmatprep.subr.bf16.mxu0 0
        %7373 = vmatpush1.bf16.msra.mxu0 %v6573
        %7374 = vmatprep.subr.bf16.mxu0 0
        %7375 = vmatpush1.bf16.msra.mxu0 %v6572
        %7376 = vmatprep.subr.bf16.mxu0 0
        %7377 = vmatpush1.bf16.msra.mxu0 %v6571
        %7378 = vmatprep.subr.bf16.mxu0 0
        %7379 = vmatpush1.bf16.msra.mxu0 %v6570
        %7380 = vmatprep.subr.bf16.mxu0 0
        %7381 = vmatpush1.bf16.msra.mxu0 %v6569
        %7382 = vmatprep.subr.bf16.mxu0 0
        %7383 = vmatpush1.bf16.msra.mxu0 %v6568
        %7384 = vmatprep.subr.bf16.mxu0 0
        %7385 = vmatpush2.bf16.msra.mxu0 %v6583
        %7386 = vmatprep.subr.bf16.mxu0 0
        %7387 = vmatpush2.bf16.msra.mxu0 %v6582
        %7388 = vmatprep.subr.bf16.mxu0 0
        %7389 = vmatpush2.bf16.msra.mxu0 %v6581
        %7390 = vmatprep.subr.bf16.mxu0 0
        %7391 = vmatpush2.bf16.msra.mxu0 %v6580
        %7392 = vmatprep.subr.bf16.mxu0 0
        %7393 = vmatpush2.bf16.msra.mxu0 %v6579
        %7394 = vmatprep.subr.bf16.mxu0 0
        %7395 = vmatpush2.bf16.msra.mxu0 %v6578
        %7396 = vmatprep.subr.bf16.mxu0 0
        %7397 = vmatpush2.bf16.msra.mxu0 %v6577
        %7398 = vmatprep.subr.bf16.mxu0 0
        %7399 = vmatpush2.bf16.msra.mxu0 %v6576
        %7400 = vmatprep.mubr.bf16.mxu0 %v4832
        %7401 = vmatmul.mubr.bf16.gmra.mxu0 %v4831
        %v7402 = vpop.f32.mrf.mxu0
        %v7403 = vadd.f32 %v7363, %v7402
        %v7404 = vpop.f32.mrf.mxu0
        %v7405 = vpop.f32.mrf.mxu0
        %v7406 = vpop.f32.mrf.mxu0
        %7407 = vdwg.mxu0
        %7408 = vmatprep.subr.bf16.mxu0 0
        %7409 = vmatpush1.bf16.msra.mxu0 %v6591
        %7410 = vmatprep.subr.bf16.mxu0 0
        %7411 = vmatpush1.bf16.msra.mxu0 %v6590
        %7412 = vmatprep.subr.bf16.mxu0 0
        %7413 = vmatpush1.bf16.msra.mxu0 %v6589
        %7414 = vmatprep.subr.bf16.mxu0 0
        %7415 = vmatpush1.bf16.msra.mxu0 %v6588
        %7416 = vmatprep.subr.bf16.mxu0 0
        %7417 = vmatpush1.bf16.msra.mxu0 %v6587
        %7418 = vmatprep.subr.bf16.mxu0 0
        %7419 = vmatpush1.bf16.msra.mxu0 %v6586
        %7420 = vmatprep.subr.bf16.mxu0 0
        %7421 = vmatpush1.bf16.msra.mxu0 %v6585
        %7422 = vmatprep.subr.bf16.mxu0 0
        %7423 = vmatpush1.bf16.msra.mxu0 %v6584
        %7424 = vmatprep.subr.bf16.mxu0 0
        %7425 = vmatpush2.bf16.msra.mxu0 %v6599
        %7426 = vmatprep.subr.bf16.mxu0 0
        %7427 = vmatpush2.bf16.msra.mxu0 %v6598
        %7428 = vmatprep.subr.bf16.mxu0 0
        %7429 = vmatpush2.bf16.msra.mxu0 %v6597
        %7430 = vmatprep.subr.bf16.mxu0 0
        %7431 = vmatpush2.bf16.msra.mxu0 %v6596
        %7432 = vmatprep.subr.bf16.mxu0 0
        %7433 = vmatpush2.bf16.msra.mxu0 %v6595
        %7434 = vmatprep.subr.bf16.mxu0 0
        %7435 = vmatpush2.bf16.msra.mxu0 %v6594
        %7436 = vmatprep.subr.bf16.mxu0 0
        %7437 = vmatpush2.bf16.msra.mxu0 %v6593
        %7438 = vmatprep.subr.bf16.mxu0 0
        %7439 = vmatpush2.bf16.msra.mxu0 %v6592
        %7440 = vmatprep.mubr.bf16.mxu0 %v4834
        %7441 = vmatmul.mubr.bf16.gmra.mxu0 %v4833
        %v7442 = vpop.f32.mrf.mxu0
        %v7443 = vadd.f32 %v7403, %v7442
        %v7444 = vpop.f32.mrf.mxu0
        %v7445 = vpop.f32.mrf.mxu0
        %v7446 = vpop.f32.mrf.mxu0
        %7447 = vdwg.mxu0
        %7448 = vmatprep.subr.bf16.mxu0 0
        %7449 = vmatpush1.bf16.msra.mxu0 %v6607
        %7450 = vmatprep.subr.bf16.mxu0 0
        %7451 = vmatpush1.bf16.msra.mxu0 %v6606
        %7452 = vmatprep.subr.bf16.mxu0 0
        %7453 = vmatpush1.bf16.msra.mxu0 %v6605
        %7454 = vmatprep.subr.bf16.mxu0 0
        %7455 = vmatpush1.bf16.msra.mxu0 %v6604
        %7456 = vmatprep.subr.bf16.mxu0 0
        %7457 = vmatpush1.bf16.msra.mxu0 %v6603
        %7458 = vmatprep.subr.bf16.mxu0 0
        %7459 = vmatpush1.bf16.msra.mxu0 %v6602
        %7460 = vmatprep.subr.bf16.mxu0 0
        %7461 = vmatpush1.bf16.msra.mxu0 %v6601
        %7462 = vmatprep.subr.bf16.mxu0 0
        %7463 = vmatpush1.bf16.msra.mxu0 %v6600
        %7464 = vmatprep.subr.bf16.mxu0 0
        %7465 = vmatpush2.bf16.msra.mxu0 %v6615
        %7466 = vmatprep.subr.bf16.mxu0 0
        %7467 = vmatpush2.bf16.msra.mxu0 %v6614
        %7468 = vmatprep.subr.bf16.mxu0 0
        %7469 = vmatpush2.bf16.msra.mxu0 %v6613
        %7470 = vmatprep.subr.bf16.mxu0 0
        %7471 = vmatpush2.bf16.msra.mxu0 %v6612
        %7472 = vmatprep.subr.bf16.mxu0 0
        %7473 = vmatpush2.bf16.msra.mxu0 %v6611
        %7474 = vmatprep.subr.bf16.mxu0 0
        %7475 = vmatpush2.bf16.msra.mxu0 %v6610
        %7476 = vmatprep.subr.bf16.mxu0 0
        %7477 = vmatpush2.bf16.msra.mxu0 %v6609
        %7478 = vmatprep.subr.bf16.mxu0 0
        %7479 = vmatpush2.bf16.msra.mxu0 %v6608
        %7480 = vmatprep.mubr.bf16.mxu0 %v4836
        %7481 = vmatmul.mubr.bf16.gmra.mxu0 %v4835
        %v7482 = vpop.f32.mrf.mxu0
        %v7483 = vadd.f32 %v7443, %v7482
        %v7484 = vpop.f32.mrf.mxu0
        %v7485 = vpop.f32.mrf.mxu0
        %v7486 = vpop.f32.mrf.mxu0
        %7487 = vdwg.mxu0
        %7488 = vmatprep.subr.bf16.mxu0 0
        %7489 = vmatpush1.bf16.msra.mxu0 %v6623
        %7490 = vmatprep.subr.bf16.mxu0 0
        %7491 = vmatpush1.bf16.msra.mxu0 %v6622
        %7492 = vmatprep.subr.bf16.mxu0 0
        %7493 = vmatpush1.bf16.msra.mxu0 %v6621
        %7494 = vmatprep.subr.bf16.mxu0 0
        %7495 = vmatpush1.bf16.msra.mxu0 %v6620
        %7496 = vmatprep.subr.bf16.mxu0 0
        %7497 = vmatpush1.bf16.msra.mxu0 %v6619
        %7498 = vmatprep.subr.bf16.mxu0 0
        %7499 = vmatpush1.bf16.msra.mxu0 %v6618
        %7500 = vmatprep.subr.bf16.mxu0 0
        %7501 = vmatpush1.bf16.msra.mxu0 %v6617
        %7502 = vmatprep.subr.bf16.mxu0 0
        %7503 = vmatpush1.bf16.msra.mxu0 %v6616
        %7504 = vmatprep.subr.bf16.mxu0 0
        %7505 = vmatpush2.bf16.msra.mxu0 %v6631
        %7506 = vmatprep.subr.bf16.mxu0 0
        %7507 = vmatpush2.bf16.msra.mxu0 %v6630
        %7508 = vmatprep.subr.bf16.mxu0 0
        %7509 = vmatpush2.bf16.msra.mxu0 %v6629
        %7510 = vmatprep.subr.bf16.mxu0 0
        %7511 = vmatpush2.bf16.msra.mxu0 %v6628
        %7512 = vmatprep.subr.bf16.mxu0 0
        %7513 = vmatpush2.bf16.msra.mxu0 %v6627
        %7514 = vmatprep.subr.bf16.mxu0 0
        %7515 = vmatpush2.bf16.msra.mxu0 %v6626
        %7516 = vmatprep.subr.bf16.mxu0 0
        %7517 = vmatpush2.bf16.msra.mxu0 %v6625
        %7518 = vmatprep.subr.bf16.mxu0 0
        %7519 = vmatpush2.bf16.msra.mxu0 %v6624
        %7520 = vmatprep.mubr.bf16.mxu0 %v4838
        %7521 = vmatmul.mubr.bf16.gmra.mxu0 %v4837
        %v7522 = vpop.f32.mrf.mxu0
        %v7523 = vadd.f32 %v7483, %v7522
        %v7524 = vpop.f32.mrf.mxu0
        %v7525 = vpop.f32.mrf.mxu0
        %v7526 = vpop.f32.mrf.mxu0
        %7527 = vdwg.mxu0
        %v7528 = vmax.f32 %v7523, 0.0
        %v7529 = vpack.c.bf16 %v7528, %v7528
        %v7530 = vld [vmem:[%s10] sm:$0xf]
        %v7531 = vld [vmem:[%s10 + $0x4] sm:$0xf]
        %v7532 = vld [vmem:[%s10 + $0x8] sm:$0xf]
        %v7533 = vld [vmem:[%s10 + $0xc] sm:$0xf]
        %v7534 = vld [vmem:[%s11] sm:$0x1]
        %v7539 = vunpack.c.l.b16 %v7530
        %v7540 = vunpack.c.l.b16 %v7531
        %v7541 = vunpack.c.l.b16 %v7532
        %v7542 = vunpack.c.l.b16 %v7533
        %v7543 = vpack.c.b16 %v7540, %v7539
        %v7544 = vpack.c.b16 %v7542, %v7541
        %v7548 = vsel %vm1469, %v7529, 0
        %7550 = vmatprep.subr.bf16.mxu0 0
        %7551 = vmatpush1.bf16.msra.mxu0 0
        %7552 = vmatprep.subr.bf16.mxu0 0
        %7553 = vmatpush1.bf16.msra.mxu0 0
        %7554 = vmatprep.subr.bf16.mxu0 0
        %7555 = vmatpush1.bf16.msra.mxu0 0
        %7556 = vmatprep.subr.bf16.mxu0 0
        %7557 = vmatpush1.bf16.msra.mxu0 0
        %7558 = vmatprep.subr.bf16.mxu0 0
        %7559 = vmatpush1.bf16.msra.mxu0 0
        %7560 = vmatprep.subr.bf16.mxu0 0
        %7561 = vmatpush1.bf16.msra.mxu0 0
        %7562 = vmatprep.subr.bf16.mxu0 0
        %7563 = vmatpush1.bf16.msra.mxu0 %v7544
        %7564 = vmatprep.subr.bf16.mxu0 0
        %7565 = vmatpush1.bf16.msra.mxu0 %v7543
        %7566 = vmatprep.subr.bf16.mxu0 0
        %7567 = vmatpush2.bf16.msra.mxu0 0
        %7568 = vmatprep.subr.bf16.mxu0 0
        %7569 = vmatpush2.bf16.msra.mxu0 0
        %7570 = vmatprep.subr.bf16.mxu0 0
        %7571 = vmatpush2.bf16.msra.mxu0 0
        %7572 = vmatprep.subr.bf16.mxu0 0
        %7573 = vmatpush2.bf16.msra.mxu0 0
        %7574 = vmatprep.subr.bf16.mxu0 0
        %7575 = vmatpush2.bf16.msra.mxu0 0
        %7576 = vmatprep.subr.bf16.mxu0 0
        %7577 = vmatpush2.bf16.msra.mxu0 0
        %7578 = vmatprep.subr.bf16.mxu0 0
        %7579 = vmatpush2.bf16.msra.mxu0 0
        %7580 = vmatprep.subr.bf16.mxu0 0
        %7581 = vmatpush2.bf16.msra.mxu0 0
        %7582 = vmatprep.mubr.bf16.mxu0 0
        %7583 = vmatmul.mubr.bf16.gmra.mxu0 %v7548
        %v7584 = vpop.f32.mrf.mxu0
        %v7585 = vadd.f32 %v7534, %v7584
        %v7586 = vpop.f32.mrf.mxu0
        %v7587 = vpop.f32.mrf.mxu0
        %v7588 = vpop.f32.mrf.mxu0
        %7589 = vdwg.mxu0
        %vm7590 = vcmask 32784
        %v7591 = vsel %vm7590, %v7585, -inf
        %7592 = vmax.xlane.f32.xlu0 %v7591
        %v7593 = vpop.xlane.xlu0 %7592
        %v7594 = vsub.f32 %v7585, %v7593
        %v7595 = vmul.f32 %v7594, 1.442695
        %v7596 = vpow.pop %v7595
        %7598 = vrot.lane.b32.xlu0 %v7596, 126
        %v7599 = vpop.permute.xlu0 %7598
        %vm7601 = vcmask 16384
        %v7602 = vsel %vm7601, %v7599, 0.0
        %7603 = vadd.xlane.f32.xlu0 %v7602
        %v7604 = vpop.xlane.xlu0 %7603
        %v7605 = vrcp.pop %v7604
        %v7606 = vmul.f32 %v7596, %v7605
        %v7607 = vtanh.pop %v7585
        %v7608 = vmul.f32 %v7607, 1.5707964
        %v7609 = vmul.f32 %v7528, 1.442695
        %v7610 = vpow.pop %v7609
        %vm7611 = vcmask 7168
        %v7612 = vsel %vm7611, %v7608, %v7610
        %vm7613 = vcmask 15360
        %v7614 = vsel %vm7613, %v7612, %v7606
        %vm7615 = vcmask 32768
        %7616 = vst.msk [vmem:[%s406] sm:$0x1] %vm7615, %v7614
        %s7617 = sand.u32 %s291, 1
        %s7618 = scalar_lea.sflag [#allocation6], %s7617
        %s7619 = sand.u32 %s291, 1
        %s7620 = scalar_lea.vmem [#allocation5], %s7619
        // Predicated region
        $region69: #{tiny_cnn_mixed_forward.1} parent=67 // pred_check
          %p7621 = pneg %p301
        $region70: #{tiny_cnn_mixed_forward.1} parent=67 // pred_check_branch
          %7623 = sbr.rel (%p7621) target = $region72
        $region71: #{tiny_cnn_mixed_forward.1} parent=67 // pred_region
          %s7625 = ssub.s32 16, 16
          %7626 = vsyncadd %s7618, %s7625
          %s7627 = smul.addr %s26, 16
          %s7628 = scalar_lea.hbm %s12, %s7627
          %s7630 = sshll.u32 %s7620, 4
          %s7631 = int_to_ptr.vmem [resolvable:$true] %s7630
          %7633 = dma.vmem_to_hbm [thread:$0]  %s7631, 16, %s7628, %s7618
        $region72: #{tiny_cnn_mixed_forward.1} parent=67 // pred_fallthru
          _
      $region68: #{tiny_cnn_mixed_forward.1} parent=5 // pred_fallthru
        _
      %p7634 = scmp.le.s32.totalorder 2, %s21
      // Predicated region
      $region73: #{tiny_cnn_mixed_forward.1} parent=5 // pred_check
        %p7635 = pneg %p7634
      $region74: #{tiny_cnn_mixed_forward.1} parent=5 // pred_check_branch
        %7637 = sbr.rel (%p7635) target = $region76
      $region75: #{tiny_cnn_mixed_forward.1} parent=5 // pred_region
        %s7638 = ssub.s32 %s21, 2
        // Predicated region
        $region77: #{tiny_cnn_mixed_forward.1} parent=75 // pred_check
          %p7639 = pneg %p307
        $region78: #{tiny_cnn_mixed_forward.1} parent=75 // pred_check_branch
          %7641 = sbr.rel (%p7639) target = $region80
        $region79: #{tiny_cnn_mixed_forward.1} parent=75 // pred_region
          %s7642 = sand.u32 %s292, 1
          %s7643 = scalar_lea.sflag [#allocation6], %s7642
          %s7644 = sand.u32 %s292, 1
          %s7645 = scalar_lea.vmem [#allocation5], %s7644
          %7646 = dma.done %s7643, 16
        $region80: #{tiny_cnn_mixed_forward.1} parent=75 // pred_fallthru
          _
      $region76: #{tiny_cnn_mixed_forward.1} parent=5 // pred_fallthru
        _
    $region6: #{tiny_cnn_mixed_forward.1} parent=1 // loop_footer
      %s25 = sadd.s32 1, %s21
    $region7: #{tiny_cnn_mixed_forward.1} parent=1 // loop_footer_branch
      %20 = sbr.rel target = $region3
    $region8: #{tiny_cnn_mixed_forward.1} parent=1 // loop_exit
      _
    %7647 = vsyncpa [#allocation6], 1
    %s7648 = scalar_lea.sflag [#allocation6], 1
    %7649 = vsyncpa %s7648, 1

</llo_original>
